<compile_context>
chip_gen: v7x
topology: tpu7x:2x2x1
jax: 0.10.0
libtpu: 0.0.40
codegen_flags: <defaults>
</compile_context>

<pallas_src>
import functools

import numpy as np
import jax
import jax.numpy as jnp
from jax.experimental import pallas as pl
from jax.experimental.pallas import tpu as pltpu  # noqa: F401  (TPU backend import)

# ---------------------------------------------------------------------------
# Small-shape configuration consistent with DGCNNModel's __init__/forward.
# ---------------------------------------------------------------------------
MAXLEN = 64          # protein sequence length (module-level constant in deepgocnn.py)
IN_CH = 21           # one-hot amino-acid channels (fixed by the module)
C_PAD = 24           # channels padded 21 -> 24 (8-sublane-aligned tap blocks)
NB_FILTERS = 16      # nb_filters
MAX_KERNEL = 33      # -> kernels = [8, 16, 24, 32]
HIDDEN_DIM = 32      # hidden_dim
NB_GOS = 10          # nb_gos
BATCH = 2
KERNELS = tuple(range(8, MAX_KERNEL, 8))
K_MAX = max(KERNELS)
L_PAD = ((MAXLEN + K_MAX - 1 + 7) // 8) * 8   # 96: padded seq length (multiple of 8)


# ---------------------------------------------------------------------------
# Fused Pallas kernel
# ---------------------------------------------------------------------------
def _fused_dgcnn_kernel(x_ref, mask_ref, wconv_ref, bconv_ref,
                        w1_ref, b1_ref, w2_ref, b2_ref, o_ref,
                        *, n, l, c_pad, k_max, f, n_k):
    """[4x (Conv1d + global MaxPool)] -> concat -> fc1+relu -> fc2+sigmoid.

    x_ref    : (N, L_PAD, C_PAD)      bf16  padded NLC activations
    mask_ref : (N*L, n_k*F)           f32   0 where conv position valid, -inf else
    wconv_ref: (K_MAX*C_PAD, n_k*F)   bf16  tap-major conv weights (zero-padded taps)
    bconv_ref: (1, n_k*F)             f32   concatenated conv biases
    w1_ref   : (n_k*F, H) bf16, b1_ref: (1, H) f32
    w2_ref   : (H, G)     bf16, b2_ref: (1, G) f32
    o_ref    : (N, G)                 f32   sigmoid probabilities
    """
    nkf = n_k * f

    # --- every conv branch / output position as K_MAX per-tap partial matmuls,
    #     bf16 MXU inputs, f32 accumulation.  Weight rows are sliced per tap
    #     (8-sublane-aligned starts) so only a (C_PAD, n_k*F) block is live.
    acc = None
    for t in range(k_max):
        xt = x_ref[:, t:t + l, :].reshape(n * l, c_pad)            # (N*L, C_PAD) bf16
        wt = wconv_ref[t * c_pad:(t + 1) * c_pad, :]               # (C_PAD, n_k*F) bf16
        p = jnp.dot(xt, wt, preferred_element_type=jnp.float32)    # (N*L, n_k*F) f32
        acc = p if acc is None else acc + p

    # --- mask positions past each branch's valid conv length with a precomputed
    #     additive -inf constant, then global max pool per batch row using
    #     static, sublane-aligned row slices (no rank-3 reshape / axis-1 reduce).
    y = acc + mask_ref[...]                                        # (N*L, n_k*F) f32
    feats = [jnp.max(y[b * l:(b + 1) * l, :], axis=0, keepdims=True)
             for b in range(n)]
    feat = jnp.concatenate(feats, axis=0) + bconv_ref[...]         # (N, n_k*F) f32

    # --- MLP head: bf16 MXU inputs, f32 accumulate / bias / activations.
    h = jnp.dot(feat.astype(w1_ref.dtype), w1_ref[...],
                preferred_element_type=jnp.float32) + b1_ref[...]
    h = jnp.maximum(h, 0.0)
    out = jnp.dot(h.astype(w2_ref.dtype), w2_ref[...],
                  preferred_element_type=jnp.float32) + b2_ref[...]
    o_ref[...] = jax.nn.sigmoid(out)


# ---------------------------------------------------------------------------
# Trace-time constant: additive 0/-inf validity mask (no runtime iota/where).
# ---------------------------------------------------------------------------
@functools.lru_cache(maxsize=None)
def _neg_inf_mask(n, l, f, kernels):
    n_k = len(kernels)
    mask = np.zeros((n * l, n_k * f), np.float32)
    pos = np.arange(n * l) % l
    for g, k in enumerate(kernels):
        # each branch must have >= 1 valid position, else the max pool is empty
        assert k <= l, f"kernel size {k} exceeds sequence length {l}"
        invalid = pos > (l - k)                      # VALID conv: p in [0, l-k]
        mask[np.ix_(invalid, np.arange(g * f, (g + 1) * f))] = -np.inf
    return mask


# ---------------------------------------------------------------------------
# One-time parameter re-layout (hoisted out of the per-call forward)
# ---------------------------------------------------------------------------
def prepare_params(conv_params, w1, b1, w2, b2, k_max=K_MAX, c_pad=C_PAD):
    """Re-layout PyTorch-style params into the fused-kernel layout (done once)."""
    w_cols, b_cols = [], []
    for k, w_fck, b_f in conv_params:                # w_fck: (F, C, k), b_f: (F,)
        assert k <= MAXLEN, f"kernel size {k} exceeds MAXLEN={MAXLEN}"
        f_out, c, _ = w_fck.shape
        w_kcf = jnp.transpose(w_fck, (2, 1, 0))                            # (k, C, F)
        w_kcf = jnp.pad(w_kcf, ((0, k_max - k), (0, c_pad - c), (0, 0)))   # (K_MAX, C_PAD, F)
        w_cols.append(w_kcf.reshape(k_max * c_pad, f_out))                 # tap-major rows
        b_cols.append(b_f)
    return dict(
        w_conv=jnp.concatenate(w_cols, axis=1).astype(jnp.bfloat16),   # (K_MAX*C_PAD, n_k*F)
        b_conv=jnp.concatenate(b_cols)[None, :].astype(jnp.float32),   # (1, n_k*F)
        w1=w1.T.astype(jnp.bfloat16), b1=b1[None, :].astype(jnp.float32),
        w2=w2.T.astype(jnp.bfloat16), b2=b2[None, :].astype(jnp.float32),
    )


# ---------------------------------------------------------------------------
# Forward pass (single pallas_call)
# ---------------------------------------------------------------------------
@jax.jit
def dgcnn_forward(x_ncw, params):
    """Pallas implementation of DGCNNModel.forward. x_ncw: (N, 21, MAXLEN)."""
    n, c, l = x_ncw.shape
    n_k = len(KERNELS)
    f = params["b_conv"].shape[1] // n_k
    g = params["w2"].shape[1]

    # Only per-call XLA prep: NCW -> NLC, pad channels 21->24 and length to 96,
    # cast to bf16.  This (N, 96, 24) slab is ~9 KB (vs the 344 KB im2col slab
    # the previous version pushed through HBM); the im2col is now implicit in
    # the kernel's per-tap partial matmuls.
    x_nlc = jnp.transpose(x_ncw, (0, 2, 1))
    x_pad = jnp.pad(x_nlc, ((0, 0), (0, L_PAD - l), (0, C_PAD - c))).astype(jnp.bfloat16)

    mask = jnp.asarray(_neg_inf_mask(n, l, f, KERNELS))   # trace-time numpy constant

    kern = functools.partial(_fused_dgcnn_kernel, n=n, l=l, c_pad=C_PAD,
                             k_max=K_MAX, f=f, n_k=n_k)
    # TODO(synk): at real DeepGOCNN sizes (L~2000, nb_filters=512, nb_gos in the
    # thousands) this must become a gridded/pipelined kernel: parallel batch axis
    # (v7x has 2 TensorCores), 128-multiple GO output tiles, vmem_limit_bytes set.
    # Not needed (and pure overhead) at this toy size.
    return pl.pallas_call(
        kern,
        out_shape=jax.ShapeDtypeStruct((n, g), jnp.float32),
    )(x_pad, mask, params["w_conv"], params["b_conv"],
      params["w1"], params["b1"], params["w2"], params["b2"])


# ---------------------------------------------------------------------------
# Pure-JAX reference (f32, for verification)
# ---------------------------------------------------------------------------
def reference_forward(x_ncw, conv_params, w1, b1, w2, b2):
    outs = []
    for _, w_fck, b_f in conv_params:
        y = jax.lax.conv_general_dilated(
            x_ncw, w_fck, window_strides=(1,), padding="VALID",
            dimension_numbers=("NCH", "OIH", "NCH"))
        y = y + b_f[None, :, None]
        outs.append(jnp.max(y, axis=2))                  # MaxPool over full length
    flat = jnp.concatenate(outs, axis=1)
    h = jnp.maximum(flat @ w1.T + b1, 0.0)
    return jax.nn.sigmoid(h @ w2.T + b2)


# ---------------------------------------------------------------------------
# Main
# ---------------------------------------------------------------------------
if __name__ == "__main__":
    key = jax.random.PRNGKey(0)
    keys = jax.random.split(key, 16)

    x = jax.random.normal(keys[0], (BATCH, IN_CH, MAXLEN), jnp.float32)

    # Deterministic parameter init (PyTorch-style uniform(-1/sqrt(fan_in), ...)).
    conv_params = []
    for idx, k in enumerate(KERNELS):
        fan_in = IN_CH * k
        bound = 1.0 / (fan_in ** 0.5)
        w = jax.random.uniform(keys[1 + idx], (NB_FILTERS, IN_CH, k),
                               jnp.float32, -bound, bound)
        b = jax.random.uniform(keys[5 + idx], (NB_FILTERS,),
                               jnp.float32, -bound, bound)
        conv_params.append((k, w, b))

    d_in = len(KERNELS) * NB_FILTERS
    bound1 = 1.0 / (d_in ** 0.5)
    w1 = jax.random.uniform(keys[10], (HIDDEN_DIM, d_in), jnp.float32, -bound1, bound1)
    b1 = jax.random.uniform(keys[11], (HIDDEN_DIM,), jnp.float32, -bound1, bound1)
    bound2 = 1.0 / (HIDDEN_DIM ** 0.5)
    w2 = jax.random.uniform(keys[12], (NB_GOS, HIDDEN_DIM), jnp.float32, -bound2, bound2)
    b2 = jax.random.uniform(keys[13], (NB_GOS,), jnp.float32, -bound2, bound2)

    # One-time weight re-layout, then the fused forward.
    params = prepare_params(conv_params, w1, b1, w2, b2)
    out = dgcnn_forward(x, params)
    out = jax.block_until_ready(out)

    ref = reference_forward(x, conv_params, w1, b1, w2, b2)
    assert out.shape == (BATCH, NB_GOS), out.shape
    assert bool(jnp.all(jnp.isfinite(out))), out
    # bf16 MXU inputs (f32 accumulation) -> loosened tolerance vs f32 reference.
    assert jnp.allclose(out, ref, atol=3e-2, rtol=3e-2), (out, ref)

    print("KERNEL_OK")
</pallas_src>

<mosaic_0001>
module attributes {stable_mosaic.version = 11 : i64} {
  func.func @_fused_dgcnn_kernel(%arg0: memref<2x96x24xbf16, #tpu.memory_space<vmem>>, %arg1: memref<128x64xf32, #tpu.memory_space<vmem>>, %arg2: memref<768x64xbf16, #tpu.memory_space<vmem>>, %arg3: memref<1x64xf32, #tpu.memory_space<vmem>>, %arg4: memref<64x32xbf16, #tpu.memory_space<vmem>>, %arg5: memref<1x32xf32, #tpu.memory_space<vmem>>, %arg6: memref<32x10xbf16, #tpu.memory_space<vmem>>, %arg7: memref<1x10xf32, #tpu.memory_space<vmem>>, %arg8: memref<2x10xf32, #tpu.memory_space<vmem>>) attributes {dimension_semantics = [], scalar_prefetch = 0 : i64, scratch_operands = 0 : i64, tpu.core_type = #tpu.core_type<tc>} {
    %c0 = arith.constant 0 : index
    %c0_0 = arith.constant 0 : index
    %c0_1 = arith.constant 0 : index
    %0 = vector.load %arg0[%c0, %c0_0, %c0_1] : memref<2x96x24xbf16, #tpu.memory_space<vmem>>, vector<2x64x24xbf16>
    %1 = vector.shape_cast %0 : vector<2x64x24xbf16> to vector<128x24xbf16>
    %c0_2 = arith.constant 0 : index
    %c0_3 = arith.constant 0 : index
    %2 = vector.load %arg2[%c0_2, %c0_3] : memref<768x64xbf16, #tpu.memory_space<vmem>>, vector<24x64xbf16>
    %cst = arith.constant dense<0.000000e+00> : vector<128x64xf32>
    %3 = tpu.matmul %1, %2, %cst {dimension_numbers = #tpu.dot_dimension_numbers<[1], [0], [0], [1], [0, 0, 1, 1], [], []>} : vector<128x24xbf16>, vector<24x64xbf16>, vector<128x64xf32> -> vector<128x64xf32>
    %c0_4 = arith.constant 0 : index
    %c1 = arith.constant 1 : index
    %c0_5 = arith.constant 0 : index
    %4 = vector.load %arg0[%c0_4, %c1, %c0_5] : memref<2x96x24xbf16, #tpu.memory_space<vmem>>, vector<2x64x24xbf16>
    %5 = vector.shape_cast %4 : vector<2x64x24xbf16> to vector<128x24xbf16>
    %c24 = arith.constant 24 : index
    %c0_6 = arith.constant 0 : index
    %6 = vector.load %arg2[%c24, %c0_6] : memref<768x64xbf16, #tpu.memory_space<vmem>>, vector<24x64xbf16>
    %cst_7 = arith.constant dense<0.000000e+00> : vector<128x64xf32>
    %7 = tpu.matmul %5, %6, %cst_7 {dimension_numbers = #tpu.dot_dimension_numbers<[1], [0], [0], [1], [0, 0, 1, 1], [], []>} : vector<128x24xbf16>, vector<24x64xbf16>, vector<128x64xf32> -> vector<128x64xf32>
    %8 = arith.addf %3, %7 : vector<128x64xf32>
    %c0_8 = arith.constant 0 : index
    %c2 = arith.constant 2 : index
    %c0_9 = arith.constant 0 : index
    %9 = vector.load %arg0[%c0_8, %c2, %c0_9] : memref<2x96x24xbf16, #tpu.memory_space<vmem>>, vector<2x64x24xbf16>
    %10 = vector.shape_cast %9 : vector<2x64x24xbf16> to vector<128x24xbf16>
    %c48 = arith.constant 48 : index
    %c0_10 = arith.constant 0 : index
    %11 = vector.load %arg2[%c48, %c0_10] : memref<768x64xbf16, #tpu.memory_space<vmem>>, vector<24x64xbf16>
    %cst_11 = arith.constant dense<0.000000e+00> : vector<128x64xf32>
    %12 = tpu.matmul %10, %11, %cst_11 {dimension_numbers = #tpu.dot_dimension_numbers<[1], [0], [0], [1], [0, 0, 1, 1], [], []>} : vector<128x24xbf16>, vector<24x64xbf16>, vector<128x64xf32> -> vector<128x64xf32>
    %13 = arith.addf %8, %12 : vector<128x64xf32>
    %c0_12 = arith.constant 0 : index
    %c3 = arith.constant 3 : index
    %c0_13 = arith.constant 0 : index
    %14 = vector.load %arg0[%c0_12, %c3, %c0_13] : memref<2x96x24xbf16, #tpu.memory_space<vmem>>, vector<2x64x24xbf16>
    %15 = vector.shape_cast %14 : vector<2x64x24xbf16> to vector<128x24xbf16>
    %c72 = arith.constant 72 : index
    %c0_14 = arith.constant 0 : index
    %16 = vector.load %arg2[%c72, %c0_14] : memref<768x64xbf16, #tpu.memory_space<vmem>>, vector<24x64xbf16>
    %cst_15 = arith.constant dense<0.000000e+00> : vector<128x64xf32>
    %17 = tpu.matmul %15, %16, %cst_15 {dimension_numbers = #tpu.dot_dimension_numbers<[1], [0], [0], [1], [0, 0, 1, 1], [], []>} : vector<128x24xbf16>, vector<24x64xbf16>, vector<128x64xf32> -> vector<128x64xf32>
    %18 = arith.addf %13, %17 : vector<128x64xf32>
    %c0_16 = arith.constant 0 : index
    %c4 = arith.constant 4 : index
    %c0_17 = arith.constant 0 : index
    %19 = vector.load %arg0[%c0_16, %c4, %c0_17] : memref<2x96x24xbf16, #tpu.memory_space<vmem>>, vector<2x64x24xbf16>
    %20 = vector.shape_cast %19 : vector<2x64x24xbf16> to vector<128x24xbf16>
    %c96 = arith.constant 96 : index
    %c0_18 = arith.constant 0 : index
    %21 = vector.load %arg2[%c96, %c0_18] : memref<768x64xbf16, #tpu.memory_space<vmem>>, vector<24x64xbf16>
    %cst_19 = arith.constant dense<0.000000e+00> : vector<128x64xf32>
    %22 = tpu.matmul %20, %21, %cst_19 {dimension_numbers = #tpu.dot_dimension_numbers<[1], [0], [0], [1], [0, 0, 1, 1], [], []>} : vector<128x24xbf16>, vector<24x64xbf16>, vector<128x64xf32> -> vector<128x64xf32>
    %23 = arith.addf %18, %22 : vector<128x64xf32>
    %c0_20 = arith.constant 0 : index
    %c5 = arith.constant 5 : index
    %c0_21 = arith.constant 0 : index
    %24 = vector.load %arg0[%c0_20, %c5, %c0_21] : memref<2x96x24xbf16, #tpu.memory_space<vmem>>, vector<2x64x24xbf16>
    %25 = vector.shape_cast %24 : vector<2x64x24xbf16> to vector<128x24xbf16>
    %c120 = arith.constant 120 : index
    %c0_22 = arith.constant 0 : index
    %26 = vector.load %arg2[%c120, %c0_22] : memref<768x64xbf16, #tpu.memory_space<vmem>>, vector<24x64xbf16>
    %cst_23 = arith.constant dense<0.000000e+00> : vector<128x64xf32>
    %27 = tpu.matmul %25, %26, %cst_23 {dimension_numbers = #tpu.dot_dimension_numbers<[1], [0], [0], [1], [0, 0, 1, 1], [], []>} : vector<128x24xbf16>, vector<24x64xbf16>, vector<128x64xf32> -> vector<128x64xf32>
    %28 = arith.addf %23, %27 : vector<128x64xf32>
    %c0_24 = arith.constant 0 : index
    %c6 = arith.constant 6 : index
    %c0_25 = arith.constant 0 : index
    %29 = vector.load %arg0[%c0_24, %c6, %c0_25] : memref<2x96x24xbf16, #tpu.memory_space<vmem>>, vector<2x64x24xbf16>
    %30 = vector.shape_cast %29 : vector<2x64x24xbf16> to vector<128x24xbf16>
    %c144 = arith.constant 144 : index
    %c0_26 = arith.constant 0 : index
    %31 = vector.load %arg2[%c144, %c0_26] : memref<768x64xbf16, #tpu.memory_space<vmem>>, vector<24x64xbf16>
    %cst_27 = arith.constant dense<0.000000e+00> : vector<128x64xf32>
    %32 = tpu.matmul %30, %31, %cst_27 {dimension_numbers = #tpu.dot_dimension_numbers<[1], [0], [0], [1], [0, 0, 1, 1], [], []>} : vector<128x24xbf16>, vector<24x64xbf16>, vector<128x64xf32> -> vector<128x64xf32>
    %33 = arith.addf %28, %32 : vector<128x64xf32>
    %c0_28 = arith.constant 0 : index
    %c7 = arith.constant 7 : index
    %c0_29 = arith.constant 0 : index
    %34 = vector.load %arg0[%c0_28, %c7, %c0_29] : memref<2x96x24xbf16, #tpu.memory_space<vmem>>, vector<2x64x24xbf16>
    %35 = vector.shape_cast %34 : vector<2x64x24xbf16> to vector<128x24xbf16>
    %c168 = arith.constant 168 : index
    %c0_30 = arith.constant 0 : index
    %36 = vector.load %arg2[%c168, %c0_30] : memref<768x64xbf16, #tpu.memory_space<vmem>>, vector<24x64xbf16>
    %cst_31 = arith.constant dense<0.000000e+00> : vector<128x64xf32>
    %37 = tpu.matmul %35, %36, %cst_31 {dimension_numbers = #tpu.dot_dimension_numbers<[1], [0], [0], [1], [0, 0, 1, 1], [], []>} : vector<128x24xbf16>, vector<24x64xbf16>, vector<128x64xf32> -> vector<128x64xf32>
    %38 = arith.addf %33, %37 : vector<128x64xf32>
    %c0_32 = arith.constant 0 : index
    %c8 = arith.constant 8 : index
    %c0_33 = arith.constant 0 : index
    %39 = vector.load %arg0[%c0_32, %c8, %c0_33] : memref<2x96x24xbf16, #tpu.memory_space<vmem>>, vector<2x64x24xbf16>
    %40 = vector.shape_cast %39 : vector<2x64x24xbf16> to vector<128x24xbf16>
    %c192 = arith.constant 192 : index
    %c0_34 = arith.constant 0 : index
    %41 = vector.load %arg2[%c192, %c0_34] : memref<768x64xbf16, #tpu.memory_space<vmem>>, vector<24x64xbf16>
    %cst_35 = arith.constant dense<0.000000e+00> : vector<128x64xf32>
    %42 = tpu.matmul %40, %41, %cst_35 {dimension_numbers = #tpu.dot_dimension_numbers<[1], [0], [0], [1], [0, 0, 1, 1], [], []>} : vector<128x24xbf16>, vector<24x64xbf16>, vector<128x64xf32> -> vector<128x64xf32>
    %43 = arith.addf %38, %42 : vector<128x64xf32>
    %c0_36 = arith.constant 0 : index
    %c9 = arith.constant 9 : index
    %c0_37 = arith.constant 0 : index
    %44 = vector.load %arg0[%c0_36, %c9, %c0_37] : memref<2x96x24xbf16, #tpu.memory_space<vmem>>, vector<2x64x24xbf16>
    %45 = vector.shape_cast %44 : vector<2x64x24xbf16> to vector<128x24xbf16>
    %c216 = arith.constant 216 : index
    %c0_38 = arith.constant 0 : index
    %46 = vector.load %arg2[%c216, %c0_38] : memref<768x64xbf16, #tpu.memory_space<vmem>>, vector<24x64xbf16>
    %cst_39 = arith.constant dense<0.000000e+00> : vector<128x64xf32>
    %47 = tpu.matmul %45, %46, %cst_39 {dimension_numbers = #tpu.dot_dimension_numbers<[1], [0], [0], [1], [0, 0, 1, 1], [], []>} : vector<128x24xbf16>, vector<24x64xbf16>, vector<128x64xf32> -> vector<128x64xf32>
    %48 = arith.addf %43, %47 : vector<128x64xf32>
    %c0_40 = arith.constant 0 : index
    %c10 = arith.constant 10 : index
    %c0_41 = arith.constant 0 : index
    %49 = vector.load %arg0[%c0_40, %c10, %c0_41] : memref<2x96x24xbf16, #tpu.memory_space<vmem>>, vector<2x64x24xbf16>
    %50 = vector.shape_cast %49 : vector<2x64x24xbf16> to vector<128x24xbf16>
    %c240 = arith.constant 240 : index
    %c0_42 = arith.constant 0 : index
    %51 = vector.load %arg2[%c240, %c0_42] : memref<768x64xbf16, #tpu.memory_space<vmem>>, vector<24x64xbf16>
    %cst_43 = arith.constant dense<0.000000e+00> : vector<128x64xf32>
    %52 = tpu.matmul %50, %51, %cst_43 {dimension_numbers = #tpu.dot_dimension_numbers<[1], [0], [0], [1], [0, 0, 1, 1], [], []>} : vector<128x24xbf16>, vector<24x64xbf16>, vector<128x64xf32> -> vector<128x64xf32>
    %53 = arith.addf %48, %52 : vector<128x64xf32>
    %c0_44 = arith.constant 0 : index
    %c11 = arith.constant 11 : index
    %c0_45 = arith.constant 0 : index
    %54 = vector.load %arg0[%c0_44, %c11, %c0_45] : memref<2x96x24xbf16, #tpu.memory_space<vmem>>, vector<2x64x24xbf16>
    %55 = vector.shape_cast %54 : vector<2x64x24xbf16> to vector<128x24xbf16>
    %c264 = arith.constant 264 : index
    %c0_46 = arith.constant 0 : index
    %56 = vector.load %arg2[%c264, %c0_46] : memref<768x64xbf16, #tpu.memory_space<vmem>>, vector<24x64xbf16>
    %cst_47 = arith.constant dense<0.000000e+00> : vector<128x64xf32>
    %57 = tpu.matmul %55, %56, %cst_47 {dimension_numbers = #tpu.dot_dimension_numbers<[1], [0], [0], [1], [0, 0, 1, 1], [], []>} : vector<128x24xbf16>, vector<24x64xbf16>, vector<128x64xf32> -> vector<128x64xf32>
    %58 = arith.addf %53, %57 : vector<128x64xf32>
    %c0_48 = arith.constant 0 : index
    %c12 = arith.constant 12 : index
    %c0_49 = arith.constant 0 : index
    %59 = vector.load %arg0[%c0_48, %c12, %c0_49] : memref<2x96x24xbf16, #tpu.memory_space<vmem>>, vector<2x64x24xbf16>
    %60 = vector.shape_cast %59 : vector<2x64x24xbf16> to vector<128x24xbf16>
    %c288 = arith.constant 288 : index
    %c0_50 = arith.constant 0 : index
    %61 = vector.load %arg2[%c288, %c0_50] : memref<768x64xbf16, #tpu.memory_space<vmem>>, vector<24x64xbf16>
    %cst_51 = arith.constant dense<0.000000e+00> : vector<128x64xf32>
    %62 = tpu.matmul %60, %61, %cst_51 {dimension_numbers = #tpu.dot_dimension_numbers<[1], [0], [0], [1], [0, 0, 1, 1], [], []>} : vector<128x24xbf16>, vector<24x64xbf16>, vector<128x64xf32> -> vector<128x64xf32>
    %63 = arith.addf %58, %62 : vector<128x64xf32>
    %c0_52 = arith.constant 0 : index
    %c13 = arith.constant 13 : index
    %c0_53 = arith.constant 0 : index
    %64 = vector.load %arg0[%c0_52, %c13, %c0_53] : memref<2x96x24xbf16, #tpu.memory_space<vmem>>, vector<2x64x24xbf16>
    %65 = vector.shape_cast %64 : vector<2x64x24xbf16> to vector<128x24xbf16>
    %c312 = arith.constant 312 : index
    %c0_54 = arith.constant 0 : index
    %66 = vector.load %arg2[%c312, %c0_54] : memref<768x64xbf16, #tpu.memory_space<vmem>>, vector<24x64xbf16>
    %cst_55 = arith.constant dense<0.000000e+00> : vector<128x64xf32>
    %67 = tpu.matmul %65, %66, %cst_55 {dimension_numbers = #tpu.dot_dimension_numbers<[1], [0], [0], [1], [0, 0, 1, 1], [], []>} : vector<128x24xbf16>, vector<24x64xbf16>, vector<128x64xf32> -> vector<128x64xf32>
    %68 = arith.addf %63, %67 : vector<128x64xf32>
    %c0_56 = arith.constant 0 : index
    %c14 = arith.constant 14 : index
    %c0_57 = arith.constant 0 : index
    %69 = vector.load %arg0[%c0_56, %c14, %c0_57] : memref<2x96x24xbf16, #tpu.memory_space<vmem>>, vector<2x64x24xbf16>
    %70 = vector.shape_cast %69 : vector<2x64x24xbf16> to vector<128x24xbf16>
    %c336 = arith.constant 336 : index
    %c0_58 = arith.constant 0 : index
    %71 = vector.load %arg2[%c336, %c0_58] : memref<768x64xbf16, #tpu.memory_space<vmem>>, vector<24x64xbf16>
    %cst_59 = arith.constant dense<0.000000e+00> : vector<128x64xf32>
    %72 = tpu.matmul %70, %71, %cst_59 {dimension_numbers = #tpu.dot_dimension_numbers<[1], [0], [0], [1], [0, 0, 1, 1], [], []>} : vector<128x24xbf16>, vector<24x64xbf16>, vector<128x64xf32> -> vector<128x64xf32>
    %73 = arith.addf %68, %72 : vector<128x64xf32>
    %c0_60 = arith.constant 0 : index
    %c15 = arith.constant 15 : index
    %c0_61 = arith.constant 0 : index
    %74 = vector.load %arg0[%c0_60, %c15, %c0_61] : memref<2x96x24xbf16, #tpu.memory_space<vmem>>, vector<2x64x24xbf16>
    %75 = vector.shape_cast %74 : vector<2x64x24xbf16> to vector<128x24xbf16>
    %c360 = arith.constant 360 : index
    %c0_62 = arith.constant 0 : index
    %76 = vector.load %arg2[%c360, %c0_62] : memref<768x64xbf16, #tpu.memory_space<vmem>>, vector<24x64xbf16>
    %cst_63 = arith.constant dense<0.000000e+00> : vector<128x64xf32>
    %77 = tpu.matmul %75, %76, %cst_63 {dimension_numbers = #tpu.dot_dimension_numbers<[1], [0], [0], [1], [0, 0, 1, 1], [], []>} : vector<128x24xbf16>, vector<24x64xbf16>, vector<128x64xf32> -> vector<128x64xf32>
    %78 = arith.addf %73, %77 : vector<128x64xf32>
    %c0_64 = arith.constant 0 : index
    %c16 = arith.constant 16 : index
    %c0_65 = arith.constant 0 : index
    %79 = vector.load %arg0[%c0_64, %c16, %c0_65] : memref<2x96x24xbf16, #tpu.memory_space<vmem>>, vector<2x64x24xbf16>
    %80 = vector.shape_cast %79 : vector<2x64x24xbf16> to vector<128x24xbf16>
    %c384 = arith.constant 384 : index
    %c0_66 = arith.constant 0 : index
    %81 = vector.load %arg2[%c384, %c0_66] : memref<768x64xbf16, #tpu.memory_space<vmem>>, vector<24x64xbf16>
    %cst_67 = arith.constant dense<0.000000e+00> : vector<128x64xf32>
    %82 = tpu.matmul %80, %81, %cst_67 {dimension_numbers = #tpu.dot_dimension_numbers<[1], [0], [0], [1], [0, 0, 1, 1], [], []>} : vector<128x24xbf16>, vector<24x64xbf16>, vector<128x64xf32> -> vector<128x64xf32>
    %83 = arith.addf %78, %82 : vector<128x64xf32>
    %c0_68 = arith.constant 0 : index
    %c17 = arith.constant 17 : index
    %c0_69 = arith.constant 0 : index
    %84 = vector.load %arg0[%c0_68, %c17, %c0_69] : memref<2x96x24xbf16, #tpu.memory_space<vmem>>, vector<2x64x24xbf16>
    %85 = vector.shape_cast %84 : vector<2x64x24xbf16> to vector<128x24xbf16>
    %c408 = arith.constant 408 : index
    %c0_70 = arith.constant 0 : index
    %86 = vector.load %arg2[%c408, %c0_70] : memref<768x64xbf16, #tpu.memory_space<vmem>>, vector<24x64xbf16>
    %cst_71 = arith.constant dense<0.000000e+00> : vector<128x64xf32>
    %87 = tpu.matmul %85, %86, %cst_71 {dimension_numbers = #tpu.dot_dimension_numbers<[1], [0], [0], [1], [0, 0, 1, 1], [], []>} : vector<128x24xbf16>, vector<24x64xbf16>, vector<128x64xf32> -> vector<128x64xf32>
    %88 = arith.addf %83, %87 : vector<128x64xf32>
    %c0_72 = arith.constant 0 : index
    %c18 = arith.constant 18 : index
    %c0_73 = arith.constant 0 : index
    %89 = vector.load %arg0[%c0_72, %c18, %c0_73] : memref<2x96x24xbf16, #tpu.memory_space<vmem>>, vector<2x64x24xbf16>
    %90 = vector.shape_cast %89 : vector<2x64x24xbf16> to vector<128x24xbf16>
    %c432 = arith.constant 432 : index
    %c0_74 = arith.constant 0 : index
    %91 = vector.load %arg2[%c432, %c0_74] : memref<768x64xbf16, #tpu.memory_space<vmem>>, vector<24x64xbf16>
    %cst_75 = arith.constant dense<0.000000e+00> : vector<128x64xf32>
    %92 = tpu.matmul %90, %91, %cst_75 {dimension_numbers = #tpu.dot_dimension_numbers<[1], [0], [0], [1], [0, 0, 1, 1], [], []>} : vector<128x24xbf16>, vector<24x64xbf16>, vector<128x64xf32> -> vector<128x64xf32>
    %93 = arith.addf %88, %92 : vector<128x64xf32>
    %c0_76 = arith.constant 0 : index
    %c19 = arith.constant 19 : index
    %c0_77 = arith.constant 0 : index
    %94 = vector.load %arg0[%c0_76, %c19, %c0_77] : memref<2x96x24xbf16, #tpu.memory_space<vmem>>, vector<2x64x24xbf16>
    %95 = vector.shape_cast %94 : vector<2x64x24xbf16> to vector<128x24xbf16>
    %c456 = arith.constant 456 : index
    %c0_78 = arith.constant 0 : index
    %96 = vector.load %arg2[%c456, %c0_78] : memref<768x64xbf16, #tpu.memory_space<vmem>>, vector<24x64xbf16>
    %cst_79 = arith.constant dense<0.000000e+00> : vector<128x64xf32>
    %97 = tpu.matmul %95, %96, %cst_79 {dimension_numbers = #tpu.dot_dimension_numbers<[1], [0], [0], [1], [0, 0, 1, 1], [], []>} : vector<128x24xbf16>, vector<24x64xbf16>, vector<128x64xf32> -> vector<128x64xf32>
    %98 = arith.addf %93, %97 : vector<128x64xf32>
    %c0_80 = arith.constant 0 : index
    %c20 = arith.constant 20 : index
    %c0_81 = arith.constant 0 : index
    %99 = vector.load %arg0[%c0_80, %c20, %c0_81] : memref<2x96x24xbf16, #tpu.memory_space<vmem>>, vector<2x64x24xbf16>
    %100 = vector.shape_cast %99 : vector<2x64x24xbf16> to vector<128x24xbf16>
    %c480 = arith.constant 480 : index
    %c0_82 = arith.constant 0 : index
    %101 = vector.load %arg2[%c480, %c0_82] : memref<768x64xbf16, #tpu.memory_space<vmem>>, vector<24x64xbf16>
    %cst_83 = arith.constant dense<0.000000e+00> : vector<128x64xf32>
    %102 = tpu.matmul %100, %101, %cst_83 {dimension_numbers = #tpu.dot_dimension_numbers<[1], [0], [0], [1], [0, 0, 1, 1], [], []>} : vector<128x24xbf16>, vector<24x64xbf16>, vector<128x64xf32> -> vector<128x64xf32>
    %103 = arith.addf %98, %102 : vector<128x64xf32>
    %c0_84 = arith.constant 0 : index
    %c21 = arith.constant 21 : index
    %c0_85 = arith.constant 0 : index
    %104 = vector.load %arg0[%c0_84, %c21, %c0_85] : memref<2x96x24xbf16, #tpu.memory_space<vmem>>, vector<2x64x24xbf16>
    %105 = vector.shape_cast %104 : vector<2x64x24xbf16> to vector<128x24xbf16>
    %c504 = arith.constant 504 : index
    %c0_86 = arith.constant 0 : index
    %106 = vector.load %arg2[%c504, %c0_86] : memref<768x64xbf16, #tpu.memory_space<vmem>>, vector<24x64xbf16>
    %cst_87 = arith.constant dense<0.000000e+00> : vector<128x64xf32>
    %107 = tpu.matmul %105, %106, %cst_87 {dimension_numbers = #tpu.dot_dimension_numbers<[1], [0], [0], [1], [0, 0, 1, 1], [], []>} : vector<128x24xbf16>, vector<24x64xbf16>, vector<128x64xf32> -> vector<128x64xf32>
    %108 = arith.addf %103, %107 : vector<128x64xf32>
    %c0_88 = arith.constant 0 : index
    %c22 = arith.constant 22 : index
    %c0_89 = arith.constant 0 : index
    %109 = vector.load %arg0[%c0_88, %c22, %c0_89] : memref<2x96x24xbf16, #tpu.memory_space<vmem>>, vector<2x64x24xbf16>
    %110 = vector.shape_cast %109 : vector<2x64x24xbf16> to vector<128x24xbf16>
    %c528 = arith.constant 528 : index
    %c0_90 = arith.constant 0 : index
    %111 = vector.load %arg2[%c528, %c0_90] : memref<768x64xbf16, #tpu.memory_space<vmem>>, vector<24x64xbf16>
    %cst_91 = arith.constant dense<0.000000e+00> : vector<128x64xf32>
    %112 = tpu.matmul %110, %111, %cst_91 {dimension_numbers = #tpu.dot_dimension_numbers<[1], [0], [0], [1], [0, 0, 1, 1], [], []>} : vector<128x24xbf16>, vector<24x64xbf16>, vector<128x64xf32> -> vector<128x64xf32>
    %113 = arith.addf %108, %112 : vector<128x64xf32>
    %c0_92 = arith.constant 0 : index
    %c23 = arith.constant 23 : index
    %c0_93 = arith.constant 0 : index
    %114 = vector.load %arg0[%c0_92, %c23, %c0_93] : memref<2x96x24xbf16, #tpu.memory_space<vmem>>, vector<2x64x24xbf16>
    %115 = vector.shape_cast %114 : vector<2x64x24xbf16> to vector<128x24xbf16>
    %c552 = arith.constant 552 : index
    %c0_94 = arith.constant 0 : index
    %116 = vector.load %arg2[%c552, %c0_94] : memref<768x64xbf16, #tpu.memory_space<vmem>>, vector<24x64xbf16>
    %cst_95 = arith.constant dense<0.000000e+00> : vector<128x64xf32>
    %117 = tpu.matmul %115, %116, %cst_95 {dimension_numbers = #tpu.dot_dimension_numbers<[1], [0], [0], [1], [0, 0, 1, 1], [], []>} : vector<128x24xbf16>, vector<24x64xbf16>, vector<128x64xf32> -> vector<128x64xf32>
    %118 = arith.addf %113, %117 : vector<128x64xf32>
    %c0_96 = arith.constant 0 : index
    %c24_97 = arith.constant 24 : index
    %c0_98 = arith.constant 0 : index
    %119 = vector.load %arg0[%c0_96, %c24_97, %c0_98] : memref<2x96x24xbf16, #tpu.memory_space<vmem>>, vector<2x64x24xbf16>
    %120 = vector.shape_cast %119 : vector<2x64x24xbf16> to vector<128x24xbf16>
    %c576 = arith.constant 576 : index
    %c0_99 = arith.constant 0 : index
    %121 = vector.load %arg2[%c576, %c0_99] : memref<768x64xbf16, #tpu.memory_space<vmem>>, vector<24x64xbf16>
    %cst_100 = arith.constant dense<0.000000e+00> : vector<128x64xf32>
    %122 = tpu.matmul %120, %121, %cst_100 {dimension_numbers = #tpu.dot_dimension_numbers<[1], [0], [0], [1], [0, 0, 1, 1], [], []>} : vector<128x24xbf16>, vector<24x64xbf16>, vector<128x64xf32> -> vector<128x64xf32>
    %123 = arith.addf %118, %122 : vector<128x64xf32>
    %c0_101 = arith.constant 0 : index
    %c25 = arith.constant 25 : index
    %c0_102 = arith.constant 0 : index
    %124 = vector.load %arg0[%c0_101, %c25, %c0_102] : memref<2x96x24xbf16, #tpu.memory_space<vmem>>, vector<2x64x24xbf16>
    %125 = vector.shape_cast %124 : vector<2x64x24xbf16> to vector<128x24xbf16>
    %c600 = arith.constant 600 : index
    %c0_103 = arith.constant 0 : index
    %126 = vector.load %arg2[%c600, %c0_103] : memref<768x64xbf16, #tpu.memory_space<vmem>>, vector<24x64xbf16>
    %cst_104 = arith.constant dense<0.000000e+00> : vector<128x64xf32>
    %127 = tpu.matmul %125, %126, %cst_104 {dimension_numbers = #tpu.dot_dimension_numbers<[1], [0], [0], [1], [0, 0, 1, 1], [], []>} : vector<128x24xbf16>, vector<24x64xbf16>, vector<128x64xf32> -> vector<128x64xf32>
    %128 = arith.addf %123, %127 : vector<128x64xf32>
    %c0_105 = arith.constant 0 : index
    %c26 = arith.constant 26 : index
    %c0_106 = arith.constant 0 : index
    %129 = vector.load %arg0[%c0_105, %c26, %c0_106] : memref<2x96x24xbf16, #tpu.memory_space<vmem>>, vector<2x64x24xbf16>
    %130 = vector.shape_cast %129 : vector<2x64x24xbf16> to vector<128x24xbf16>
    %c624 = arith.constant 624 : index
    %c0_107 = arith.constant 0 : index
    %131 = vector.load %arg2[%c624, %c0_107] : memref<768x64xbf16, #tpu.memory_space<vmem>>, vector<24x64xbf16>
    %cst_108 = arith.constant dense<0.000000e+00> : vector<128x64xf32>
    %132 = tpu.matmul %130, %131, %cst_108 {dimension_numbers = #tpu.dot_dimension_numbers<[1], [0], [0], [1], [0, 0, 1, 1], [], []>} : vector<128x24xbf16>, vector<24x64xbf16>, vector<128x64xf32> -> vector<128x64xf32>
    %133 = arith.addf %128, %132 : vector<128x64xf32>
    %c0_109 = arith.constant 0 : index
    %c27 = arith.constant 27 : index
    %c0_110 = arith.constant 0 : index
    %134 = vector.load %arg0[%c0_109, %c27, %c0_110] : memref<2x96x24xbf16, #tpu.memory_space<vmem>>, vector<2x64x24xbf16>
    %135 = vector.shape_cast %134 : vector<2x64x24xbf16> to vector<128x24xbf16>
    %c648 = arith.constant 648 : index
    %c0_111 = arith.constant 0 : index
    %136 = vector.load %arg2[%c648, %c0_111] : memref<768x64xbf16, #tpu.memory_space<vmem>>, vector<24x64xbf16>
    %cst_112 = arith.constant dense<0.000000e+00> : vector<128x64xf32>
    %137 = tpu.matmul %135, %136, %cst_112 {dimension_numbers = #tpu.dot_dimension_numbers<[1], [0], [0], [1], [0, 0, 1, 1], [], []>} : vector<128x24xbf16>, vector<24x64xbf16>, vector<128x64xf32> -> vector<128x64xf32>
    %138 = arith.addf %133, %137 : vector<128x64xf32>
    %c0_113 = arith.constant 0 : index
    %c28 = arith.constant 28 : index
    %c0_114 = arith.constant 0 : index
    %139 = vector.load %arg0[%c0_113, %c28, %c0_114] : memref<2x96x24xbf16, #tpu.memory_space<vmem>>, vector<2x64x24xbf16>
    %140 = vector.shape_cast %139 : vector<2x64x24xbf16> to vector<128x24xbf16>
    %c672 = arith.constant 672 : index
    %c0_115 = arith.constant 0 : index
    %141 = vector.load %arg2[%c672, %c0_115] : memref<768x64xbf16, #tpu.memory_space<vmem>>, vector<24x64xbf16>
    %cst_116 = arith.constant dense<0.000000e+00> : vector<128x64xf32>
    %142 = tpu.matmul %140, %141, %cst_116 {dimension_numbers = #tpu.dot_dimension_numbers<[1], [0], [0], [1], [0, 0, 1, 1], [], []>} : vector<128x24xbf16>, vector<24x64xbf16>, vector<128x64xf32> -> vector<128x64xf32>
    %143 = arith.addf %138, %142 : vector<128x64xf32>
    %c0_117 = arith.constant 0 : index
    %c29 = arith.constant 29 : index
    %c0_118 = arith.constant 0 : index
    %144 = vector.load %arg0[%c0_117, %c29, %c0_118] : memref<2x96x24xbf16, #tpu.memory_space<vmem>>, vector<2x64x24xbf16>
    %145 = vector.shape_cast %144 : vector<2x64x24xbf16> to vector<128x24xbf16>
    %c696 = arith.constant 696 : index
    %c0_119 = arith.constant 0 : index
    %146 = vector.load %arg2[%c696, %c0_119] : memref<768x64xbf16, #tpu.memory_space<vmem>>, vector<24x64xbf16>
    %cst_120 = arith.constant dense<0.000000e+00> : vector<128x64xf32>
    %147 = tpu.matmul %145, %146, %cst_120 {dimension_numbers = #tpu.dot_dimension_numbers<[1], [0], [0], [1], [0, 0, 1, 1], [], []>} : vector<128x24xbf16>, vector<24x64xbf16>, vector<128x64xf32> -> vector<128x64xf32>
    %148 = arith.addf %143, %147 : vector<128x64xf32>
    %c0_121 = arith.constant 0 : index
    %c30 = arith.constant 30 : index
    %c0_122 = arith.constant 0 : index
    %149 = vector.load %arg0[%c0_121, %c30, %c0_122] : memref<2x96x24xbf16, #tpu.memory_space<vmem>>, vector<2x64x24xbf16>
    %150 = vector.shape_cast %149 : vector<2x64x24xbf16> to vector<128x24xbf16>
    %c720 = arith.constant 720 : index
    %c0_123 = arith.constant 0 : index
    %151 = vector.load %arg2[%c720, %c0_123] : memref<768x64xbf16, #tpu.memory_space<vmem>>, vector<24x64xbf16>
    %cst_124 = arith.constant dense<0.000000e+00> : vector<128x64xf32>
    %152 = tpu.matmul %150, %151, %cst_124 {dimension_numbers = #tpu.dot_dimension_numbers<[1], [0], [0], [1], [0, 0, 1, 1], [], []>} : vector<128x24xbf16>, vector<24x64xbf16>, vector<128x64xf32> -> vector<128x64xf32>
    %153 = arith.addf %148, %152 : vector<128x64xf32>
    %c0_125 = arith.constant 0 : index
    %c31 = arith.constant 31 : index
    %c0_126 = arith.constant 0 : index
    %154 = vector.load %arg0[%c0_125, %c31, %c0_126] : memref<2x96x24xbf16, #tpu.memory_space<vmem>>, vector<2x64x24xbf16>
    %155 = vector.shape_cast %154 : vector<2x64x24xbf16> to vector<128x24xbf16>
    %c744 = arith.constant 744 : index
    %c0_127 = arith.constant 0 : index
    %156 = vector.load %arg2[%c744, %c0_127] : memref<768x64xbf16, #tpu.memory_space<vmem>>, vector<24x64xbf16>
    %cst_128 = arith.constant dense<0.000000e+00> : vector<128x64xf32>
    %157 = tpu.matmul %155, %156, %cst_128 {dimension_numbers = #tpu.dot_dimension_numbers<[1], [0], [0], [1], [0, 0, 1, 1], [], []>} : vector<128x24xbf16>, vector<24x64xbf16>, vector<128x64xf32> -> vector<128x64xf32>
    %158 = arith.addf %153, %157 : vector<128x64xf32>
    %c0_129 = arith.constant 0 : index
    %c0_130 = arith.constant 0 : index
    %159 = vector.load %arg1[%c0_129, %c0_130] : memref<128x64xf32, #tpu.memory_space<vmem>>, vector<128x64xf32>
    %160 = arith.addf %158, %159 : vector<128x64xf32>
    %161 = vector.extract_strided_slice %160 {offsets = [0, 0], sizes = [64, 64], strides = [1, 1]} : vector<128x64xf32> to vector<64x64xf32>
    %cst_131 = arith.constant dense<0xFF800000> : vector<64xf32>
    %162 = vector.multi_reduction <maximumf>, %161, %cst_131 [0] : vector<64x64xf32> to vector<64xf32>
    %163 = vector.shape_cast %162 : vector<64xf32> to vector<1x64xf32>
    %164 = vector.extract_strided_slice %160 {offsets = [64, 0], sizes = [64, 64], strides = [1, 1]} : vector<128x64xf32> to vector<64x64xf32>
    %cst_132 = arith.constant dense<0xFF800000> : vector<64xf32>
    %165 = vector.multi_reduction <maximumf>, %164, %cst_132 [0] : vector<64x64xf32> to vector<64xf32>
    %166 = vector.shape_cast %165 : vector<64xf32> to vector<1x64xf32>
    %167 = tpu.concatenate %163, %166 in 0 : vector<1x64xf32>, vector<1x64xf32> -> vector<2x64xf32>
    %c0_133 = arith.constant 0 : index
    %c0_134 = arith.constant 0 : index
    %168 = vector.load %arg3[%c0_133, %c0_134] : memref<1x64xf32, #tpu.memory_space<vmem>>, vector<1x64xf32>
    %169 = vector.broadcast %168 : vector<1x64xf32> to vector<2x64xf32>
    %170 = arith.addf %167, %169 : vector<2x64xf32>
    %171 = arith.truncf %170 : vector<2x64xf32> to vector<2x64xbf16>
    %c0_135 = arith.constant 0 : index
    %c0_136 = arith.constant 0 : index
    %172 = vector.load %arg4[%c0_135, %c0_136] : memref<64x32xbf16, #tpu.memory_space<vmem>>, vector<64x32xbf16>
    %cst_137 = arith.constant dense<0.000000e+00> : vector<2x32xf32>
    %173 = tpu.matmul %171, %172, %cst_137 {dimension_numbers = #tpu.dot_dimension_numbers<[1], [0], [0], [1], [0, 0, 1, 1], [], []>} : vector<2x64xbf16>, vector<64x32xbf16>, vector<2x32xf32> -> vector<2x32xf32>
    %c0_138 = arith.constant 0 : index
    %c0_139 = arith.constant 0 : index
    %174 = vector.load %arg5[%c0_138, %c0_139] : memref<1x32xf32, #tpu.memory_space<vmem>>, vector<1x32xf32>
    %175 = vector.broadcast %174 : vector<1x32xf32> to vector<2x32xf32>
    %176 = arith.addf %173, %175 : vector<2x32xf32>
    %cst_140 = arith.constant 0.000000e+00 : f32
    %177 = vector.broadcast %cst_140 : f32 to vector<2x32xf32>
    %178 = arith.maximumf %176, %177 : vector<2x32xf32>
    %179 = arith.truncf %178 : vector<2x32xf32> to vector<2x32xbf16>
    %c0_141 = arith.constant 0 : index
    %c0_142 = arith.constant 0 : index
    %180 = vector.load %arg6[%c0_141, %c0_142] : memref<32x10xbf16, #tpu.memory_space<vmem>>, vector<32x10xbf16>
    %cst_143 = arith.constant dense<0.000000e+00> : vector<2x10xf32>
    %181 = tpu.matmul %179, %180, %cst_143 {dimension_numbers = #tpu.dot_dimension_numbers<[1], [0], [0], [1], [0, 0, 1, 1], [], []>} : vector<2x32xbf16>, vector<32x10xbf16>, vector<2x10xf32> -> vector<2x10xf32>
    %c0_144 = arith.constant 0 : index
    %c0_145 = arith.constant 0 : index
    %182 = vector.load %arg7[%c0_144, %c0_145] : memref<1x10xf32, #tpu.memory_space<vmem>>, vector<1x10xf32>
    %183 = vector.broadcast %182 : vector<1x10xf32> to vector<2x10xf32>
    %184 = arith.addf %181, %183 : vector<2x10xf32>
    %185 = arith.negf %184 : vector<2x10xf32>
    %186 = math.exp %185 : vector<2x10xf32>
    %cst_146 = arith.constant 1.000000e+00 : f32
    %187 = vector.broadcast %cst_146 : f32 to vector<2x10xf32>
    %188 = arith.addf %187, %186 : vector<2x10xf32>
    %189 = arith.divf %187, %188 : vector<2x10xf32>
    %c0_147 = arith.constant 0 : index
    %c0_148 = arith.constant 0 : index
    %190 = vector.load %arg8[%c0_147, %c0_148] : memref<2x10xf32, #tpu.memory_space<vmem>>, vector<2x10xf32>
    tpu.vector_store %arg8[%c0_147, %c0_148], %189 {strides = array<i32>} : memref<2x10xf32, #tpu.memory_space<vmem>>, vector<2x10xf32>,
    return
  }
}

</mosaic_0001>

<llo_original>
// kernel: dgcnn_forward.1
$region0: #{dgcnn_forward.1}
  #allocation0 [shape = 'u32[]', space=smem, size = 0x4, offset = 0x4, fixed_abs, tag = 'smem constant byte address 0x4 - core index']
  #allocation1 [shape = 'u32[144,128]{1,0:T(1,128)}', space=vmem, size = 0x12000, scoped, tag = 'internal scratch']
  %s0 = inlined_call_operand.vmem [shape: bf16[2,96,24], index: 0, kind: input, shape index: {}]
  %s1 = inlined_call_operand.vmem [shape: f32[128,64], index: 1, kind: input, shape index: {}]
  %s2 = inlined_call_operand.vmem [shape: bf16[768,64], index: 2, kind: input, shape index: {}]
  %s3 = inlined_call_operand.vmem [shape: f32[1,64], index: 3, kind: input, shape index: {}]
  %s4 = inlined_call_operand.vmem [shape: bf16[64,32], index: 4, kind: input, shape index: {}]
  %s5 = inlined_call_operand.vmem [shape: f32[1,32], index: 5, kind: input, shape index: {}]
  %s6 = inlined_call_operand.vmem [shape: bf16[32,10], index: 6, kind: input, shape index: {}]
  %s7 = inlined_call_operand.vmem [shape: f32[1,10], index: 7, kind: input, shape index: {}]
  %s8 = inlined_call_operand.hbm [shape: f32[2,10], index: 8, kind: output, shape index: {}]
  %s9 = sld [smem:[#allocation0]]
  $region42: #{dgcnn_forward.1} parent=0
    _
  %s11 = ssub.s32 1, %s9
  %s12 = scalar_select 0, %s11, %s9
  $region1: #{dgcnn_forward.1} parent=0
    #allocation2 [shape = 'u8[1024]{0}', space=vmem, size = 0x400, scoped, tag = 'output window, operand 0, single buffered']
    #allocation3 [shape = 's32[1]{0}', space=sflag, size = 0x4, scoped, tag = 'scoped memory for dgcnn_forward.1']
    %13 = vsyncpa [#allocation3], 0
    // Predicated region
    $region2: #{dgcnn_forward.1} parent=1 // pred_check
      _
    $region3: #{dgcnn_forward.1} parent=1 // pred_check_branch
      %15 = sbr.rel (0) target = $region5
    $region4: #{dgcnn_forward.1} parent=1 // pred_region
      _
    $region5: #{dgcnn_forward.1} parent=1 // pred_fallthru
      _
    // Predicated region
    $region6: #{dgcnn_forward.1} parent=1 // pred_check
      _
    $region7: #{dgcnn_forward.1} parent=1 // pred_check_branch
      %17 = sbr.rel (0) target = $region9
    $region8: #{dgcnn_forward.1} parent=1 // pred_region
      _
    $region9: #{dgcnn_forward.1} parent=1 // pred_fallthru
      _
    // Predicated region
    $region10: #{dgcnn_forward.1} parent=1 // pred_check
      _
    $region11: #{dgcnn_forward.1} parent=1 // pred_check_branch
      %19 = sbr.rel (0) target = $region13
    $region12: #{dgcnn_forward.1} parent=1 // pred_region
      _
    $region13: #{dgcnn_forward.1} parent=1 // pred_fallthru
      _
    // Predicated region
    $region14: #{dgcnn_forward.1} parent=1 // pred_check
      _
    $region15: #{dgcnn_forward.1} parent=1 // pred_check_branch
      %21 = sbr.rel (0) target = $region17
    $region16: #{dgcnn_forward.1} parent=1 // pred_region
      _
    $region17: #{dgcnn_forward.1} parent=1 // pred_fallthru
      _
    // Predicated region
    $region18: #{dgcnn_forward.1} parent=1 // pred_check
      _
    $region19: #{dgcnn_forward.1} parent=1 // pred_check_branch
      %23 = sbr.rel (0) target = $region21
    $region20: #{dgcnn_forward.1} parent=1 // pred_region
      _
    $region21: #{dgcnn_forward.1} parent=1 // pred_fallthru
      _
    // Predicated region
    $region22: #{dgcnn_forward.1} parent=1 // pred_check
      _
    $region23: #{dgcnn_forward.1} parent=1 // pred_check_branch
      %25 = sbr.rel (0) target = $region25
    $region24: #{dgcnn_forward.1} parent=1 // pred_region
      _
    $region25: #{dgcnn_forward.1} parent=1 // pred_fallthru
      _
    // Predicated region
    $region26: #{dgcnn_forward.1} parent=1 // pred_check
      _
    $region27: #{dgcnn_forward.1} parent=1 // pred_check_branch
      %27 = sbr.rel (0) target = $region29
    $region28: #{dgcnn_forward.1} parent=1 // pred_region
      _
    $region29: #{dgcnn_forward.1} parent=1 // pred_fallthru
      _
    // Predicated region
    $region30: #{dgcnn_forward.1} parent=1 // pred_check
      _
    $region31: #{dgcnn_forward.1} parent=1 // pred_check_branch
      %29 = sbr.rel (0) target = $region33
    $region32: #{dgcnn_forward.1} parent=1 // pred_region
      _
    $region33: #{dgcnn_forward.1} parent=1 // pred_fallthru
      _
    %v31 = vld [vmem:[%s0] sm:$0xf]
    %v32 = vld [vmem:[%s0 + $0x4] sm:$0xf]
    %v33 = vld [vmem:[%s0 + $0x8] sm:$0xf]
    %v34 = vld [vmem:[%s0 + $0xc] sm:$0xf]
    %v35 = vld [vmem:[%s0 + $0x10] sm:$0xf]
    %v36 = vld [vmem:[%s0 + $0x14] sm:$0xf]
    %v37 = vld [vmem:[%s0 + $0x18] sm:$0xf]
    %v38 = vld [vmem:[%s0 + $0x1c] sm:$0xf]
    %v39 = vld [vmem:[%s0 + $0x30] sm:$0xf]
    %v40 = vld [vmem:[%s0 + $0x34] sm:$0xf]
    %v41 = vld [vmem:[%s0 + $0x38] sm:$0xf]
    %v42 = vld [vmem:[%s0 + $0x3c] sm:$0xf]
    %v43 = vld [vmem:[%s0 + $0x40] sm:$0xf]
    %v44 = vld [vmem:[%s0 + $0x44] sm:$0xf]
    %v45 = vld [vmem:[%s0 + $0x48] sm:$0xf]
    %v46 = vld [vmem:[%s0 + $0x4c] sm:$0xf]
    %v47 = vld [vmem:[%s2] sm:$0xf]
    %v48 = vld [vmem:[%s2 + $0x4] sm:$0xf]
    %v49 = vld [vmem:[%s2 + $0x8] sm:$0xf]
    %v50 = vld [vmem:[%s0 + $0x20] sm:$0x1]
    %v51 = vld [vmem:[%s0 + $0x50] sm:$0x1]
    %vm52 = vsmask.f32 3328
    %vm53 = vsmask.f32 7440
    %vm54 = vmor %vm52, %vm53
    %v56 = vshrl.u32 %v31, 16
    %v58 = vrot.slane %v56, 4
    %v59 = vshll.u32 %v31, 16
    %v61 = vrot.slane %v59, 5
    %v62 = vor.u32 %v58, %v61
    %v63 = vrot.slane %v62, 4
    %v65 = vshll.u32 %v32, 16
    %v67 = vrot.slane %v65, 5
    %v68 = vsel %vm54, %v63, %v67
    %v69 = vshrl.u32 %v32, 16
    %v71 = vrot.slane %v69, 4
    %v72 = vor.u32 %v71, %v67
    %v73 = vrot.slane %v72, 4
    %v75 = vshll.u32 %v33, 16
    %v77 = vrot.slane %v75, 5
    %v78 = vsel %vm54, %v73, %v77
    %v79 = vshrl.u32 %v33, 16
    %v81 = vrot.slane %v79, 4
    %v82 = vor.u32 %v81, %v77
    %v83 = vrot.slane %v82, 4
    %v85 = vshll.u32 %v34, 16
    %v87 = vrot.slane %v85, 5
    %v88 = vsel %vm54, %v83, %v87
    %v89 = vshrl.u32 %v34, 16
    %v91 = vrot.slane %v89, 4
    %v92 = vor.u32 %v91, %v87
    %v93 = vrot.slane %v92, 4
    %v95 = vshll.u32 %v35, 16
    %v97 = vrot.slane %v95, 5
    %v98 = vsel %vm54, %v93, %v97
    %v99 = vshrl.u32 %v35, 16
    %v101 = vrot.slane %v99, 4
    %v102 = vor.u32 %v101, %v97
    %v103 = vrot.slane %v102, 4
    %v105 = vshll.u32 %v36, 16
    %v107 = vrot.slane %v105, 5
    %v108 = vsel %vm54, %v103, %v107
    %v109 = vshrl.u32 %v36, 16
    %v111 = vrot.slane %v109, 4
    %v112 = vor.u32 %v111, %v107
    %v113 = vrot.slane %v112, 4
    %v115 = vshll.u32 %v37, 16
    %v117 = vrot.slane %v115, 5
    %v118 = vsel %vm54, %v113, %v117
    %v119 = vshrl.u32 %v37, 16
    %v121 = vrot.slane %v119, 4
    %v122 = vor.u32 %v121, %v117
    %v123 = vrot.slane %v122, 4
    %v125 = vshll.u32 %v38, 16
    %v127 = vrot.slane %v125, 5
    %v128 = vsel %vm54, %v123, %v127
    %v129 = vshrl.u32 %v38, 16
    %v131 = vrot.slane %v129, 4
    %v132 = vor.u32 %v131, %v127
    %v133 = vrot.slane %v132, 4
    %v135 = vshll.u32 %v50, 16
    %v137 = vrot.slane %v135, 5
    %v138 = vsel %vm54, %v133, %v137
    %v140 = vshrl.u32 %v39, 16
    %v142 = vrot.slane %v140, 4
    %v143 = vshll.u32 %v39, 16
    %v145 = vrot.slane %v143, 5
    %v146 = vor.u32 %v142, %v145
    %v147 = vrot.slane %v146, 4
    %v149 = vshll.u32 %v40, 16
    %v151 = vrot.slane %v149, 5
    %v152 = vsel %vm54, %v147, %v151
    %v153 = vshrl.u32 %v40, 16
    %v155 = vrot.slane %v153, 4
    %v156 = vor.u32 %v155, %v151
    %v157 = vrot.slane %v156, 4
    %v159 = vshll.u32 %v41, 16
    %v161 = vrot.slane %v159, 5
    %v162 = vsel %vm54, %v157, %v161
    %v163 = vshrl.u32 %v41, 16
    %v165 = vrot.slane %v163, 4
    %v166 = vor.u32 %v165, %v161
    %v167 = vrot.slane %v166, 4
    %v169 = vshll.u32 %v42, 16
    %v171 = vrot.slane %v169, 5
    %v172 = vsel %vm54, %v167, %v171
    %v173 = vshrl.u32 %v42, 16
    %v175 = vrot.slane %v173, 4
    %v176 = vor.u32 %v175, %v171
    %v177 = vrot.slane %v176, 4
    %v179 = vshll.u32 %v43, 16
    %v181 = vrot.slane %v179, 5
    %v182 = vsel %vm54, %v177, %v181
    %v183 = vshrl.u32 %v43, 16
    %v185 = vrot.slane %v183, 4
    %v186 = vor.u32 %v185, %v181
    %v187 = vrot.slane %v186, 4
    %v189 = vshll.u32 %v44, 16
    %v191 = vrot.slane %v189, 5
    %v192 = vsel %vm54, %v187, %v191
    %v193 = vshrl.u32 %v44, 16
    %v195 = vrot.slane %v193, 4
    %v196 = vor.u32 %v195, %v191
    %v197 = vrot.slane %v196, 4
    %v199 = vshll.u32 %v45, 16
    %v201 = vrot.slane %v199, 5
    %v202 = vsel %vm54, %v197, %v201
    %v203 = vshrl.u32 %v45, 16
    %v205 = vrot.slane %v203, 4
    %v206 = vor.u32 %v205, %v201
    %v207 = vrot.slane %v206, 4
    %v209 = vshll.u32 %v46, 16
    %v211 = vrot.slane %v209, 5
    %v212 = vsel %vm54, %v207, %v211
    %v213 = vshrl.u32 %v46, 16
    %v215 = vrot.slane %v213, 4
    %v216 = vor.u32 %v215, %v211
    %v217 = vrot.slane %v216, 4
    %v219 = vshll.u32 %v51, 16
    %v221 = vrot.slane %v219, 5
    %v222 = vsel %vm54, %v217, %v221
    %v223 = vld [vmem:[%s2 + $0xc] sm:$0xf]
    %v224 = vld [vmem:[%s2 + $0x10] sm:$0xf]
    %v225 = vld [vmem:[%s2 + $0x14] sm:$0xf]
    %v226 = vunpack.c.l.b16 %v68
    %v227 = vunpack.c.l.b16 %v78
    %v228 = vunpack.c.l.b16 %v88
    %v229 = vunpack.c.l.b16 %v98
    %v230 = vunpack.c.l.b16 %v108
    %v231 = vunpack.c.l.b16 %v118
    %v232 = vunpack.c.l.b16 %v128
    %v233 = vunpack.c.l.b16 %v138
    %v234 = vunpack.c.l.b16 %v152
    %v235 = vunpack.c.l.b16 %v162
    %v236 = vunpack.c.l.b16 %v172
    %v237 = vunpack.c.l.b16 %v182
    %v238 = vunpack.c.l.b16 %v192
    %v239 = vunpack.c.l.b16 %v202
    %v240 = vunpack.c.l.b16 %v212
    %v241 = vunpack.c.l.b16 %v222
    %v242 = vpack.c.b16 %v227, %v226
    %v243 = vpack.c.b16 %v229, %v228
    %v244 = vpack.c.b16 %v231, %v230
    %v245 = vpack.c.b16 %v233, %v232
    %v246 = vpack.c.b16 %v235, %v234
    %v247 = vpack.c.b16 %v237, %v236
    %v248 = vpack.c.b16 %v239, %v238
    %v249 = vpack.c.b16 %v241, %v240
    %v253 = vunpack.c.l.b16 %v223
    %v254 = vunpack.c.l.b16 %v224
    %v255 = vunpack.c.l.b16 %v225
    %v256 = vpack.c.b16 %v254, %v253
    %v257 = vpack.c.b16 %v255, %v255
    %vm259 = vcmask 195584
    %v261 = vsel %vm259, %v242, 0
    %v264 = vsel %vm259, %v243, 0
    %v267 = vsel %vm259, %v244, 0
    %v270 = vsel %vm259, %v245, 0
    %v273 = vsel %vm259, %v246, 0
    %v276 = vsel %vm259, %v247, 0
    %v279 = vsel %vm259, %v248, 0
    %v282 = vsel %vm259, %v249, 0
    %vm284 = vcmask 1043456
    %v286 = vsel %vm284, %v257, 0
    %288 = vmatprep.subr.bf16.mxu0 0
    %289 = vmatpush1.bf16.msra.mxu0 %v256
    %290 = vmatprep.subr.bf16.mxu0 0
    %291 = vmatpush1.bf16.msra.mxu0 %v286
    %292 = vmatprep.subr.bf16.mxu0 0
    %293 = vmatpush1.bf16.msra.mxu0 0
    %294 = vmatprep.subr.bf16.mxu0 0
    %295 = vmatpush1.bf16.msra.mxu0 0
    %296 = vmatprep.subr.bf16.mxu0 0
    %297 = vmatpush1.bf16.msra.mxu0 0
    %298 = vmatprep.subr.bf16.mxu0 0
    %299 = vmatpush1.bf16.msra.mxu0 0
    %300 = vmatprep.subr.bf16.mxu0 0
    %301 = vmatpush1.bf16.msra.mxu0 0
    %302 = vmatprep.subr.bf16.mxu0 0
    %303 = vmatpush1.bf16.msra.mxu0 0
    %304 = vmatprep.subr.bf16.mxu0 0
    %305 = vmatpush1.bf16.msra.mxu0 0
    %306 = vmatprep.subr.bf16.mxu0 0
    %307 = vmatpush1.bf16.msra.mxu0 0
    %308 = vmatprep.subr.bf16.mxu0 0
    %309 = vmatpush1.bf16.msra.mxu0 0
    %310 = vmatprep.subr.bf16.mxu0 0
    %311 = vmatpush1.bf16.msra.mxu0 0
    %312 = vmatprep.subr.bf16.mxu0 0
    %313 = vmatpush1.bf16.msra.mxu0 0
    %314 = vmatprep.subr.bf16.mxu0 0
    %315 = vmatpush1.bf16.msra.mxu0 0
    %316 = vmatprep.subr.bf16.mxu0 0
    %317 = vmatpush1.bf16.msra.mxu0 0
    %318 = vmatprep.subr.bf16.mxu0 0
    %319 = vmatpush1.bf16.msra.mxu0 0
    %320 = vmatprep.mubr.bf16.mxu0 0
    %321 = vmatmul.mubr.bf16.gmra.mrb[0].mxu0 %v261
    %v322 = vpop.f32.mrb[0].mxu0
    %v323 = vadd.f32 0.0, %v322
    %v324 = vpop.f32.mrb[0].mxu0
    %v325 = vpop.f32.mrb[0].mxu0
    %v326 = vadd.f32 0.0, %v325
    %v327 = vpop.f32.mrb[0].mxu0
    %328 = vmatprep.mubr.bf16.mxu0 0
    %329 = vmatmul.mubr.bf16.gmra.mrb[0].mxu0 %v264
    %v330 = vpop.f32.mrb[0].mxu0
    %v331 = vadd.f32 0.0, %v330
    %v332 = vpop.f32.mrb[0].mxu0
    %v333 = vpop.f32.mrb[0].mxu0
    %v334 = vadd.f32 0.0, %v333
    %v335 = vpop.f32.mrb[0].mxu0
    %336 = vmatprep.mubr.bf16.mxu0 0
    %337 = vmatmul.mubr.bf16.gmra.mrb[0].mxu0 %v267
    %v338 = vpop.f32.mrb[0].mxu0
    %v339 = vadd.f32 0.0, %v338
    %v340 = vpop.f32.mrb[0].mxu0
    %v341 = vpop.f32.mrb[0].mxu0
    %v342 = vadd.f32 0.0, %v341
    %v343 = vpop.f32.mrb[0].mxu0
    %344 = vmatprep.mubr.bf16.mxu0 0
    %345 = vmatmul.mubr.bf16.gmra.mrb[0].mxu0 %v270
    %v346 = vpop.f32.mrb[0].mxu0
    %v347 = vadd.f32 0.0, %v346
    %v348 = vpop.f32.mrb[0].mxu0
    %v349 = vpop.f32.mrb[0].mxu0
    %v350 = vadd.f32 0.0, %v349
    %v351 = vpop.f32.mrb[0].mxu0
    %352 = vmatprep.mubr.bf16.mxu0 0
    %353 = vmatmul.mubr.bf16.gmra.mrb[0].mxu0 %v273
    %v354 = vpop.f32.mrb[0].mxu0
    %v355 = vadd.f32 0.0, %v354
    %v356 = vpop.f32.mrb[0].mxu0
    %v357 = vpop.f32.mrb[0].mxu0
    %v358 = vadd.f32 0.0, %v357
    %v359 = vpop.f32.mrb[0].mxu0
    %360 = vmatprep.mubr.bf16.mxu0 0
    %361 = vmatmul.mubr.bf16.gmra.mrb[0].mxu0 %v276
    %v362 = vpop.f32.mrb[0].mxu0
    %v363 = vadd.f32 0.0, %v362
    %v364 = vpop.f32.mrb[0].mxu0
    %v365 = vpop.f32.mrb[0].mxu0
    %v366 = vadd.f32 0.0, %v365
    %v367 = vpop.f32.mrb[0].mxu0
    %368 = vmatprep.mubr.bf16.mxu0 0
    %369 = vmatmul.mubr.bf16.gmra.mrb[0].mxu0 %v279
    %v370 = vpop.f32.mrb[0].mxu0
    %v371 = vadd.f32 0.0, %v370
    %v372 = vpop.f32.mrb[0].mxu0
    %v373 = vpop.f32.mrb[0].mxu0
    %v374 = vadd.f32 0.0, %v373
    %v375 = vpop.f32.mrb[0].mxu0
    %376 = vmatprep.mubr.bf16.mxu0 0
    %377 = vmatmul.mubr.bf16.gmra.mrb[0].mxu0 %v282
    %v378 = vpop.f32.mrb[0].mxu0
    %v379 = vadd.f32 0.0, %v378
    %v380 = vpop.f32.mrb[0].mxu0
    %v381 = vpop.f32.mrb[0].mxu0
    %v382 = vadd.f32 0.0, %v381
    %v383 = vpop.f32.mrb[0].mxu0
    %384 = vdwg.mxu0
    %v401 = vunpack.c.l.b16 %v31
    %v402 = vunpack.c.l.b16 %v32
    %v403 = vunpack.c.l.b16 %v33
    %v404 = vunpack.c.l.b16 %v34
    %v405 = vunpack.c.l.b16 %v35
    %v406 = vunpack.c.l.b16 %v36
    %v407 = vunpack.c.l.b16 %v37
    %v408 = vunpack.c.l.b16 %v38
    %v409 = vunpack.c.l.b16 %v39
    %v410 = vunpack.c.l.b16 %v40
    %v411 = vunpack.c.l.b16 %v41
    %v412 = vunpack.c.l.b16 %v42
    %v413 = vunpack.c.l.b16 %v43
    %v414 = vunpack.c.l.b16 %v44
    %v415 = vunpack.c.l.b16 %v45
    %v416 = vunpack.c.l.b16 %v46
    %v417 = vpack.c.b16 %v402, %v401
    %v418 = vpack.c.b16 %v404, %v403
    %v419 = vpack.c.b16 %v406, %v405
    %v420 = vpack.c.b16 %v408, %v407
    %v421 = vpack.c.b16 %v410, %v409
    %v422 = vpack.c.b16 %v412, %v411
    %v423 = vpack.c.b16 %v414, %v413
    %v424 = vpack.c.b16 %v416, %v415
    %v428 = vunpack.c.l.b16 %v47
    %v429 = vunpack.c.l.b16 %v48
    %v430 = vunpack.c.l.b16 %v49
    %v431 = vpack.c.b16 %v429, %v428
    %v432 = vpack.c.b16 %v430, %v430
    %v435 = vsel %vm259, %v417, 0
    %v438 = vsel %vm259, %v418, 0
    %v441 = vsel %vm259, %v419, 0
    %v444 = vsel %vm259, %v420, 0
    %v447 = vsel %vm259, %v421, 0
    %v450 = vsel %vm259, %v422, 0
    %v453 = vsel %vm259, %v423, 0
    %v456 = vsel %vm259, %v424, 0
    %v459 = vsel %vm284, %v432, 0
    %461 = vmatprep.subr.bf16.mxu0 0
    %462 = vmatpush1.bf16.msra.mxu0 %v431
    %463 = vmatprep.subr.bf16.mxu0 0
    %464 = vmatpush1.bf16.msra.mxu0 %v459
    %465 = vmatprep.subr.bf16.mxu0 0
    %466 = vmatpush1.bf16.msra.mxu0 0
    %467 = vmatprep.subr.bf16.mxu0 0
    %468 = vmatpush1.bf16.msra.mxu0 0
    %469 = vmatprep.subr.bf16.mxu0 0
    %470 = vmatpush1.bf16.msra.mxu0 0
    %471 = vmatprep.subr.bf16.mxu0 0
    %472 = vmatpush1.bf16.msra.mxu0 0
    %473 = vmatprep.subr.bf16.mxu0 0
    %474 = vmatpush1.bf16.msra.mxu0 0
    %475 = vmatprep.subr.bf16.mxu0 0
    %476 = vmatpush1.bf16.msra.mxu0 0
    %477 = vmatprep.subr.bf16.mxu0 0
    %478 = vmatpush1.bf16.msra.mxu0 0
    %479 = vmatprep.subr.bf16.mxu0 0
    %480 = vmatpush1.bf16.msra.mxu0 0
    %481 = vmatprep.subr.bf16.mxu0 0
    %482 = vmatpush1.bf16.msra.mxu0 0
    %483 = vmatprep.subr.bf16.mxu0 0
    %484 = vmatpush1.bf16.msra.mxu0 0
    %485 = vmatprep.subr.bf16.mxu0 0
    %486 = vmatpush1.bf16.msra.mxu0 0
    %487 = vmatprep.subr.bf16.mxu0 0
    %488 = vmatpush1.bf16.msra.mxu0 0
    %489 = vmatprep.subr.bf16.mxu0 0
    %490 = vmatpush1.bf16.msra.mxu0 0
    %491 = vmatprep.subr.bf16.mxu0 0
    %492 = vmatpush1.bf16.msra.mxu0 0
    %493 = vmatprep.mubr.bf16.mxu0 0
    %494 = vmatmul.mubr.bf16.gmra.mrb[0].mxu0 %v435
    %v495 = vpop.f32.mrb[0].mxu0
    %v496 = vadd.f32 %v323, %v495
    %v497 = vpop.f32.mrb[0].mxu0
    %v498 = vpop.f32.mrb[0].mxu0
    %v499 = vadd.f32 %v326, %v498
    %v500 = vpop.f32.mrb[0].mxu0
    %501 = vmatprep.mubr.bf16.mxu0 0
    %502 = vmatmul.mubr.bf16.gmra.mrb[0].mxu0 %v438
    %v503 = vpop.f32.mrb[0].mxu0
    %v504 = vadd.f32 %v331, %v503
    %v505 = vpop.f32.mrb[0].mxu0
    %v506 = vpop.f32.mrb[0].mxu0
    %v507 = vadd.f32 %v334, %v506
    %v508 = vpop.f32.mrb[0].mxu0
    %509 = vmatprep.mubr.bf16.mxu0 0
    %510 = vmatmul.mubr.bf16.gmra.mrb[0].mxu0 %v441
    %v511 = vpop.f32.mrb[0].mxu0
    %v512 = vadd.f32 %v339, %v511
    %v513 = vpop.f32.mrb[0].mxu0
    %v514 = vpop.f32.mrb[0].mxu0
    %v515 = vadd.f32 %v342, %v514
    %v516 = vpop.f32.mrb[0].mxu0
    %517 = vmatprep.mubr.bf16.mxu0 0
    %518 = vmatmul.mubr.bf16.gmra.mrb[0].mxu0 %v444
    %v519 = vpop.f32.mrb[0].mxu0
    %v520 = vadd.f32 %v347, %v519
    %v521 = vpop.f32.mrb[0].mxu0
    %v522 = vpop.f32.mrb[0].mxu0
    %v523 = vadd.f32 %v350, %v522
    %v524 = vpop.f32.mrb[0].mxu0
    %525 = vmatprep.mubr.bf16.mxu0 0
    %526 = vmatmul.mubr.bf16.gmra.mrb[0].mxu0 %v447
    %v527 = vpop.f32.mrb[0].mxu0
    %v528 = vadd.f32 %v355, %v527
    %v529 = vpop.f32.mrb[0].mxu0
    %v530 = vpop.f32.mrb[0].mxu0
    %v531 = vadd.f32 %v358, %v530
    %v532 = vpop.f32.mrb[0].mxu0
    %533 = vmatprep.mubr.bf16.mxu0 0
    %534 = vmatmul.mubr.bf16.gmra.mrb[0].mxu0 %v450
    %v535 = vpop.f32.mrb[0].mxu0
    %v536 = vadd.f32 %v363, %v535
    %v537 = vpop.f32.mrb[0].mxu0
    %v538 = vpop.f32.mrb[0].mxu0
    %v539 = vadd.f32 %v366, %v538
    %v540 = vpop.f32.mrb[0].mxu0
    %541 = vmatprep.mubr.bf16.mxu0 0
    %542 = vmatmul.mubr.bf16.gmra.mrb[0].mxu0 %v453
    %v543 = vpop.f32.mrb[0].mxu0
    %v544 = vadd.f32 %v371, %v543
    %v545 = vpop.f32.mrb[0].mxu0
    %v546 = vpop.f32.mrb[0].mxu0
    %v547 = vadd.f32 %v374, %v546
    %v548 = vpop.f32.mrb[0].mxu0
    %549 = vmatprep.mubr.bf16.mxu0 0
    %550 = vmatmul.mubr.bf16.gmra.mrb[0].mxu0 %v456
    %v551 = vpop.f32.mrb[0].mxu0
    %v552 = vadd.f32 %v379, %v551
    %v553 = vpop.f32.mrb[0].mxu0
    %v554 = vpop.f32.mrb[0].mxu0
    %v555 = vadd.f32 %v382, %v554
    %v556 = vpop.f32.mrb[0].mxu0
    %557 = vdwg.mxu0
    %v558 = vld [vmem:[%s0] sm:$0xe]
    %v559 = vld [vmem:[%s0 + $0x30] sm:$0xe]
    %vm564 = vcmask 1042432
    %vm565 = vcmask 1046532
    %vm566 = vmor %vm564, %vm565
    %v567 = vrot.slane %v558, 5
    %v568 = vrot.slane %v567, 4
    %v569 = vrot.slane %v32, 5
    %v570 = vsel %vm566, %v568, %v569
    %v571 = vrot.slane %v569, 4
    %v572 = vrot.slane %v33, 5
    %v573 = vsel %vm566, %v571, %v572
    %v574 = vrot.slane %v572, 4
    %v575 = vrot.slane %v34, 5
    %v576 = vsel %vm566, %v574, %v575
    %v577 = vrot.slane %v575, 4
    %v578 = vrot.slane %v35, 5
    %v579 = vsel %vm566, %v577, %v578
    %v580 = vrot.slane %v578, 4
    %v581 = vrot.slane %v36, 5
    %v582 = vsel %vm566, %v580, %v581
    %v583 = vrot.slane %v581, 4
    %v584 = vrot.slane %v37, 5
    %v585 = vsel %vm566, %v583, %v584
    %v586 = vrot.slane %v584, 4
    %v587 = vrot.slane %v38, 5
    %v588 = vsel %vm566, %v586, %v587
    %v589 = vrot.slane %v587, 4
    %v590 = vrot.slane %v50, 5
    %v591 = vsel %vm566, %v589, %v590
    %v592 = vrot.slane %v559, 5
    %v593 = vrot.slane %v592, 4
    %v594 = vrot.slane %v40, 5
    %v595 = vsel %vm566, %v593, %v594
    %v596 = vrot.slane %v594, 4
    %v597 = vrot.slane %v41, 5
    %v598 = vsel %vm566, %v596, %v597
    %v599 = vrot.slane %v597, 4
    %v600 = vrot.slane %v42, 5
    %v601 = vsel %vm566, %v599, %v600
    %v602 = vrot.slane %v600, 4
    %v603 = vrot.slane %v43, 5
    %v604 = vsel %vm566, %v602, %v603
    %v605 = vrot.slane %v603, 4
    %v606 = vrot.slane %v44, 5
    %v607 = vsel %vm566, %v605, %v606
    %v608 = vrot.slane %v606, 4
    %v609 = vrot.slane %v45, 5
    %v610 = vsel %vm566, %v608, %v609
    %v611 = vrot.slane %v609, 4
    %v612 = vrot.slane %v46, 5
    %v613 = vsel %vm566, %v611, %v612
    %v614 = vrot.slane %v612, 4
    %v615 = vrot.slane %v51, 5
    %v616 = vsel %vm566, %v614, %v615
    %v617 = vld [vmem:[%s2 + $0x18] sm:$0xf]
    %v618 = vld [vmem:[%s2 + $0x1c] sm:$0xf]
    %v619 = vld [vmem:[%s2 + $0x20] sm:$0xf]
    %v620 = vunpack.c.l.b16 %v570
    %v621 = vunpack.c.l.b16 %v573
    %v622 = vunpack.c.l.b16 %v576
    %v623 = vunpack.c.l.b16 %v579
    %v624 = vunpack.c.l.b16 %v582
    %v625 = vunpack.c.l.b16 %v585
    %v626 = vunpack.c.l.b16 %v588
    %v627 = vunpack.c.l.b16 %v591
    %v628 = vunpack.c.l.b16 %v595
    %v629 = vunpack.c.l.b16 %v598
    %v630 = vunpack.c.l.b16 %v601
    %v631 = vunpack.c.l.b16 %v604
    %v632 = vunpack.c.l.b16 %v607
    %v633 = vunpack.c.l.b16 %v610
    %v634 = vunpack.c.l.b16 %v613
    %v635 = vunpack.c.l.b16 %v616
    %v636 = vpack.c.b16 %v621, %v620
    %v637 = vpack.c.b16 %v623, %v622
    %v638 = vpack.c.b16 %v625, %v624
    %v639 = vpack.c.b16 %v627, %v626
    %v640 = vpack.c.b16 %v629, %v628
    %v641 = vpack.c.b16 %v631, %v630
    %v642 = vpack.c.b16 %v633, %v632
    %v643 = vpack.c.b16 %v635, %v634
    %v647 = vunpack.c.l.b16 %v617
    %v648 = vunpack.c.l.b16 %v618
    %v649 = vunpack.c.l.b16 %v619
    %v650 = vpack.c.b16 %v648, %v647
    %v651 = vpack.c.b16 %v649, %v649
    %v654 = vsel %vm259, %v636, 0
    %v657 = vsel %vm259, %v637, 0
    %v660 = vsel %vm259, %v638, 0
    %v663 = vsel %vm259, %v639, 0
    %v666 = vsel %vm259, %v640, 0
    %v669 = vsel %vm259, %v641, 0
    %v672 = vsel %vm259, %v642, 0
    %v675 = vsel %vm259, %v643, 0
    %v678 = vsel %vm284, %v651, 0
    %680 = vmatprep.subr.bf16.mxu0 0
    %681 = vmatpush1.bf16.msra.mxu0 %v650
    %682 = vmatprep.subr.bf16.mxu0 0
    %683 = vmatpush1.bf16.msra.mxu0 %v678
    %684 = vmatprep.subr.bf16.mxu0 0
    %685 = vmatpush1.bf16.msra.mxu0 0
    %686 = vmatprep.subr.bf16.mxu0 0
    %687 = vmatpush1.bf16.msra.mxu0 0
    %688 = vmatprep.subr.bf16.mxu0 0
    %689 = vmatpush1.bf16.msra.mxu0 0
    %690 = vmatprep.subr.bf16.mxu0 0
    %691 = vmatpush1.bf16.msra.mxu0 0
    %692 = vmatprep.subr.bf16.mxu0 0
    %693 = vmatpush1.bf16.msra.mxu0 0
    %694 = vmatprep.subr.bf16.mxu0 0
    %695 = vmatpush1.bf16.msra.mxu0 0
    %696 = vmatprep.subr.bf16.mxu0 0
    %697 = vmatpush1.bf16.msra.mxu0 0
    %698 = vmatprep.subr.bf16.mxu0 0
    %699 = vmatpush1.bf16.msra.mxu0 0
    %700 = vmatprep.subr.bf16.mxu0 0
    %701 = vmatpush1.bf16.msra.mxu0 0
    %702 = vmatprep.subr.bf16.mxu0 0
    %703 = vmatpush1.bf16.msra.mxu0 0
    %704 = vmatprep.subr.bf16.mxu0 0
    %705 = vmatpush1.bf16.msra.mxu0 0
    %706 = vmatprep.subr.bf16.mxu0 0
    %707 = vmatpush1.bf16.msra.mxu0 0
    %708 = vmatprep.subr.bf16.mxu0 0
    %709 = vmatpush1.bf16.msra.mxu0 0
    %710 = vmatprep.subr.bf16.mxu0 0
    %711 = vmatpush1.bf16.msra.mxu0 0
    %712 = vmatprep.mubr.bf16.mxu0 0
    %713 = vmatmul.mubr.bf16.gmra.mrb[0].mxu0 %v654
    %v714 = vpop.f32.mrb[0].mxu0
    %v715 = vadd.f32 0.0, %v714
    %v716 = vpop.f32.mrb[0].mxu0
    %v717 = vpop.f32.mrb[0].mxu0
    %v718 = vadd.f32 0.0, %v717
    %v719 = vpop.f32.mrb[0].mxu0
    %720 = vmatprep.mubr.bf16.mxu0 0
    %721 = vmatmul.mubr.bf16.gmra.mrb[0].mxu0 %v657
    %v722 = vpop.f32.mrb[0].mxu0
    %v723 = vadd.f32 0.0, %v722
    %v724 = vpop.f32.mrb[0].mxu0
    %v725 = vpop.f32.mrb[0].mxu0
    %v726 = vadd.f32 0.0, %v725
    %v727 = vpop.f32.mrb[0].mxu0
    %728 = vmatprep.mubr.bf16.mxu0 0
    %729 = vmatmul.mubr.bf16.gmra.mrb[0].mxu0 %v660
    %v730 = vpop.f32.mrb[0].mxu0
    %v731 = vadd.f32 0.0, %v730
    %v732 = vpop.f32.mrb[0].mxu0
    %v733 = vpop.f32.mrb[0].mxu0
    %v734 = vadd.f32 0.0, %v733
    %v735 = vpop.f32.mrb[0].mxu0
    %736 = vmatprep.mubr.bf16.mxu0 0
    %737 = vmatmul.mubr.bf16.gmra.mrb[0].mxu0 %v663
    %v738 = vpop.f32.mrb[0].mxu0
    %v739 = vadd.f32 0.0, %v738
    %v740 = vpop.f32.mrb[0].mxu0
    %v741 = vpop.f32.mrb[0].mxu0
    %v742 = vadd.f32 0.0, %v741
    %v743 = vpop.f32.mrb[0].mxu0
    %744 = vmatprep.mubr.bf16.mxu0 0
    %745 = vmatmul.mubr.bf16.gmra.mrb[0].mxu0 %v666
    %v746 = vpop.f32.mrb[0].mxu0
    %v747 = vadd.f32 0.0, %v746
    %v748 = vpop.f32.mrb[0].mxu0
    %v749 = vpop.f32.mrb[0].mxu0
    %v750 = vadd.f32 0.0, %v749
    %v751 = vpop.f32.mrb[0].mxu0
    %752 = vmatprep.mubr.bf16.mxu0 0
    %753 = vmatmul.mubr.bf16.gmra.mrb[0].mxu0 %v669
    %v754 = vpop.f32.mrb[0].mxu0
    %v755 = vadd.f32 0.0, %v754
    %v756 = vpop.f32.mrb[0].mxu0
    %v757 = vpop.f32.mrb[0].mxu0
    %v758 = vadd.f32 0.0, %v757
    %v759 = vpop.f32.mrb[0].mxu0
    %760 = vmatprep.mubr.bf16.mxu0 0
    %761 = vmatmul.mubr.bf16.gmra.mrb[0].mxu0 %v672
    %v762 = vpop.f32.mrb[0].mxu0
    %v763 = vadd.f32 0.0, %v762
    %v764 = vpop.f32.mrb[0].mxu0
    %v765 = vpop.f32.mrb[0].mxu0
    %v766 = vadd.f32 0.0, %v765
    %v767 = vpop.f32.mrb[0].mxu0
    %768 = vmatprep.mubr.bf16.mxu0 0
    %769 = vmatmul.mubr.bf16.gmra.mrb[0].mxu0 %v675
    %v770 = vpop.f32.mrb[0].mxu0
    %v771 = vadd.f32 0.0, %v770
    %v772 = vpop.f32.mrb[0].mxu0
    %v773 = vpop.f32.mrb[0].mxu0
    %v774 = vadd.f32 0.0, %v773
    %v775 = vpop.f32.mrb[0].mxu0
    %776 = vdwg.mxu0
    %v777 = vadd.f32 %v496, %v715
    %v778 = vadd.f32 %v499, %v718
    %v779 = vadd.f32 %v504, %v723
    %v780 = vadd.f32 %v507, %v726
    %v781 = vadd.f32 %v512, %v731
    %v782 = vadd.f32 %v515, %v734
    %v783 = vadd.f32 %v520, %v739
    %v784 = vadd.f32 %v523, %v742
    %v785 = vadd.f32 %v528, %v747
    %v786 = vadd.f32 %v531, %v750
    %v787 = vadd.f32 %v536, %v755
    %v788 = vadd.f32 %v539, %v758
    %v789 = vadd.f32 %v544, %v763
    %v790 = vadd.f32 %v547, %v766
    %v791 = vadd.f32 %v552, %v771
    %v792 = vadd.f32 %v555, %v774
    %v793 = vld [vmem:[%s0 + $0x20] sm:$0x3]
    %v794 = vld [vmem:[%s0 + $0x50] sm:$0x3]
    %vm795 = vsmask.f32 2304
    %vm796 = vsmask.f32 6416
    %vm797 = vmor %vm795, %vm796
    %v799 = vshrl.u32 %v558, 16
    %v801 = vrot.slane %v799, 5
    %v802 = vshll.u32 %v558, 16
    %v804 = vrot.slane %v802, 6
    %v805 = vor.u32 %v801, %v804
    %v806 = vrot.slane %v805, 4
    %v807 = vrot.slane %v69, 5
    %v808 = vrot.slane %v65, 6
    %v809 = vor.u32 %v807, %v808
    %v810 = vsel %vm797, %v806, %v809
    %v811 = vrot.slane %v809, 4
    %v812 = vrot.slane %v79, 5
    %v813 = vrot.slane %v75, 6
    %v814 = vor.u32 %v812, %v813
    %v815 = vsel %vm797, %v811, %v814
    %v816 = vrot.slane %v814, 4
    %v817 = vrot.slane %v89, 5
    %v818 = vrot.slane %v85, 6
    %v819 = vor.u32 %v817, %v818
    %v820 = vsel %vm797, %v816, %v819
    %v821 = vrot.slane %v819, 4
    %v822 = vrot.slane %v99, 5
    %v823 = vrot.slane %v95, 6
    %v824 = vor.u32 %v822, %v823
    %v825 = vsel %vm797, %v821, %v824
    %v826 = vrot.slane %v824, 4
    %v827 = vrot.slane %v109, 5
    %v828 = vrot.slane %v105, 6
    %v829 = vor.u32 %v827, %v828
    %v830 = vsel %vm797, %v826, %v829
    %v831 = vrot.slane %v829, 4
    %v832 = vrot.slane %v119, 5
    %v833 = vrot.slane %v115, 6
    %v834 = vor.u32 %v832, %v833
    %v835 = vsel %vm797, %v831, %v834
    %v836 = vrot.slane %v834, 4
    %v837 = vrot.slane %v129, 5
    %v838 = vrot.slane %v125, 6
    %v839 = vor.u32 %v837, %v838
    %v840 = vsel %vm797, %v836, %v839
    %v841 = vrot.slane %v839, 4
    %v843 = vshrl.u32 %v793, 16
    %v845 = vrot.slane %v843, 5
    %v846 = vshll.u32 %v793, 16
    %v848 = vrot.slane %v846, 6
    %v849 = vor.u32 %v845, %v848
    %v850 = vsel %vm797, %v841, %v849
    %v852 = vshrl.u32 %v559, 16
    %v854 = vrot.slane %v852, 5
    %v855 = vshll.u32 %v559, 16
    %v857 = vrot.slane %v855, 6
    %v858 = vor.u32 %v854, %v857
    %v859 = vrot.slane %v858, 4
    %v860 = vrot.slane %v153, 5
    %v861 = vrot.slane %v149, 6
    %v862 = vor.u32 %v860, %v861
    %v863 = vsel %vm797, %v859, %v862
    %v864 = vrot.slane %v862, 4
    %v865 = vrot.slane %v163, 5
    %v866 = vrot.slane %v159, 6
    %v867 = vor.u32 %v865, %v866
    %v868 = vsel %vm797, %v864, %v867
    %v869 = vrot.slane %v867, 4
    %v870 = vrot.slane %v173, 5
    %v871 = vrot.slane %v169, 6
    %v872 = vor.u32 %v870, %v871
    %v873 = vsel %vm797, %v869, %v872
    %v874 = vrot.slane %v872, 4
    %v875 = vrot.slane %v183, 5
    %v876 = vrot.slane %v179, 6
    %v877 = vor.u32 %v875, %v876
    %v878 = vsel %vm797, %v874, %v877
    %v879 = vrot.slane %v877, 4
    %v880 = vrot.slane %v193, 5
    %v881 = vrot.slane %v189, 6
    %v882 = vor.u32 %v880, %v881
    %v883 = vsel %vm797, %v879, %v882
    %v884 = vrot.slane %v882, 4
    %v885 = vrot.slane %v203, 5
    %v886 = vrot.slane %v199, 6
    %v887 = vor.u32 %v885, %v886
    %v888 = vsel %vm797, %v884, %v887
    %v889 = vrot.slane %v887, 4
    %v890 = vrot.slane %v213, 5
    %v891 = vrot.slane %v209, 6
    %v892 = vor.u32 %v890, %v891
    %v893 = vsel %vm797, %v889, %v892
    %v894 = vrot.slane %v892, 4
    %v896 = vshrl.u32 %v794, 16
    %v898 = vrot.slane %v896, 5
    %v899 = vshll.u32 %v794, 16
    %v901 = vrot.slane %v899, 6
    %v902 = vor.u32 %v898, %v901
    %v903 = vsel %vm797, %v894, %v902
    %v904 = vld [vmem:[%s2 + $0x24] sm:$0xf]
    %v905 = vld [vmem:[%s2 + $0x28] sm:$0xf]
    %v906 = vld [vmem:[%s2 + $0x2c] sm:$0xf]
    %v907 = vunpack.c.l.b16 %v810
    %v908 = vunpack.c.l.b16 %v815
    %v909 = vunpack.c.l.b16 %v820
    %v910 = vunpack.c.l.b16 %v825
    %v911 = vunpack.c.l.b16 %v830
    %v912 = vunpack.c.l.b16 %v835
    %v913 = vunpack.c.l.b16 %v840
    %v914 = vunpack.c.l.b16 %v850
    %v915 = vunpack.c.l.b16 %v863
    %v916 = vunpack.c.l.b16 %v868
    %v917 = vunpack.c.l.b16 %v873
    %v918 = vunpack.c.l.b16 %v878
    %v919 = vunpack.c.l.b16 %v883
    %v920 = vunpack.c.l.b16 %v888
    %v921 = vunpack.c.l.b16 %v893
    %v922 = vunpack.c.l.b16 %v903
    %v923 = vpack.c.b16 %v908, %v907
    %v924 = vpack.c.b16 %v910, %v909
    %v925 = vpack.c.b16 %v912, %v911
    %v926 = vpack.c.b16 %v914, %v913
    %v927 = vpack.c.b16 %v916, %v915
    %v928 = vpack.c.b16 %v918, %v917
    %v929 = vpack.c.b16 %v920, %v919
    %v930 = vpack.c.b16 %v922, %v921
    %v934 = vunpack.c.l.b16 %v904
    %v935 = vunpack.c.l.b16 %v905
    %v936 = vunpack.c.l.b16 %v906
    %v937 = vpack.c.b16 %v935, %v934
    %v938 = vpack.c.b16 %v936, %v936
    %v941 = vsel %vm259, %v923, 0
    %v944 = vsel %vm259, %v924, 0
    %v947 = vsel %vm259, %v925, 0
    %v950 = vsel %vm259, %v926, 0
    %v953 = vsel %vm259, %v927, 0
    %v956 = vsel %vm259, %v928, 0
    %v959 = vsel %vm259, %v929, 0
    %v962 = vsel %vm259, %v930, 0
    %v965 = vsel %vm284, %v938, 0
    %967 = vmatprep.subr.bf16.mxu0 0
    %968 = vmatpush1.bf16.msra.mxu0 %v937
    %969 = vmatprep.subr.bf16.mxu0 0
    %970 = vmatpush1.bf16.msra.mxu0 %v965
    %971 = vmatprep.subr.bf16.mxu0 0
    %972 = vmatpush1.bf16.msra.mxu0 0
    %973 = vmatprep.subr.bf16.mxu0 0
    %974 = vmatpush1.bf16.msra.mxu0 0
    %975 = vmatprep.subr.bf16.mxu0 0
    %976 = vmatpush1.bf16.msra.mxu0 0
    %977 = vmatprep.subr.bf16.mxu0 0
    %978 = vmatpush1.bf16.msra.mxu0 0
    %979 = vmatprep.subr.bf16.mxu0 0
    %980 = vmatpush1.bf16.msra.mxu0 0
    %981 = vmatprep.subr.bf16.mxu0 0
    %982 = vmatpush1.bf16.msra.mxu0 0
    %983 = vmatprep.subr.bf16.mxu0 0
    %984 = vmatpush1.bf16.msra.mxu0 0
    %985 = vmatprep.subr.bf16.mxu0 0
    %986 = vmatpush1.bf16.msra.mxu0 0
    %987 = vmatprep.subr.bf16.mxu0 0
    %988 = vmatpush1.bf16.msra.mxu0 0
    %989 = vmatprep.subr.bf16.mxu0 0
    %990 = vmatpush1.bf16.msra.mxu0 0
    %991 = vmatprep.subr.bf16.mxu0 0
    %992 = vmatpush1.bf16.msra.mxu0 0
    %993 = vmatprep.subr.bf16.mxu0 0
    %994 = vmatpush1.bf16.msra.mxu0 0
    %995 = vmatprep.subr.bf16.mxu0 0
    %996 = vmatpush1.bf16.msra.mxu0 0
    %997 = vmatprep.subr.bf16.mxu0 0
    %998 = vmatpush1.bf16.msra.mxu0 0
    %999 = vmatprep.mubr.bf16.mxu0 0
    %1000 = vmatmul.mubr.bf16.gmra.mrb[0].mxu0 %v941
    %v1001 = vpop.f32.mrb[0].mxu0
    %v1002 = vadd.f32 0.0, %v1001
    %v1003 = vpop.f32.mrb[0].mxu0
    %v1004 = vpop.f32.mrb[0].mxu0
    %v1005 = vadd.f32 0.0, %v1004
    %v1006 = vpop.f32.mrb[0].mxu0
    %1007 = vmatprep.mubr.bf16.mxu0 0
    %1008 = vmatmul.mubr.bf16.gmra.mrb[0].mxu0 %v944
    %v1009 = vpop.f32.mrb[0].mxu0
    %v1010 = vadd.f32 0.0, %v1009
    %v1011 = vpop.f32.mrb[0].mxu0
    %v1012 = vpop.f32.mrb[0].mxu0
    %v1013 = vadd.f32 0.0, %v1012
    %v1014 = vpop.f32.mrb[0].mxu0
    %1015 = vmatprep.mubr.bf16.mxu0 0
    %1016 = vmatmul.mubr.bf16.gmra.mrb[0].mxu0 %v947
    %v1017 = vpop.f32.mrb[0].mxu0
    %v1018 = vadd.f32 0.0, %v1017
    %v1019 = vpop.f32.mrb[0].mxu0
    %v1020 = vpop.f32.mrb[0].mxu0
    %v1021 = vadd.f32 0.0, %v1020
    %v1022 = vpop.f32.mrb[0].mxu0
    %1023 = vmatprep.mubr.bf16.mxu0 0
    %1024 = vmatmul.mubr.bf16.gmra.mrb[0].mxu0 %v950
    %v1025 = vpop.f32.mrb[0].mxu0
    %v1026 = vadd.f32 0.0, %v1025
    %v1027 = vpop.f32.mrb[0].mxu0
    %v1028 = vpop.f32.mrb[0].mxu0
    %v1029 = vadd.f32 0.0, %v1028
    %v1030 = vpop.f32.mrb[0].mxu0
    %1031 = vmatprep.mubr.bf16.mxu0 0
    %1032 = vmatmul.mubr.bf16.gmra.mrb[0].mxu0 %v953
    %v1033 = vpop.f32.mrb[0].mxu0
    %v1034 = vadd.f32 0.0, %v1033
    %v1035 = vpop.f32.mrb[0].mxu0
    %v1036 = vpop.f32.mrb[0].mxu0
    %v1037 = vadd.f32 0.0, %v1036
    %v1038 = vpop.f32.mrb[0].mxu0
    %1039 = vmatprep.mubr.bf16.mxu0 0
    %1040 = vmatmul.mubr.bf16.gmra.mrb[0].mxu0 %v956
    %v1041 = vpop.f32.mrb[0].mxu0
    %v1042 = vadd.f32 0.0, %v1041
    %v1043 = vpop.f32.mrb[0].mxu0
    %v1044 = vpop.f32.mrb[0].mxu0
    %v1045 = vadd.f32 0.0, %v1044
    %v1046 = vpop.f32.mrb[0].mxu0
    %1047 = vmatprep.mubr.bf16.mxu0 0
    %1048 = vmatmul.mubr.bf16.gmra.mrb[0].mxu0 %v959
    %v1049 = vpop.f32.mrb[0].mxu0
    %v1050 = vadd.f32 0.0, %v1049
    %v1051 = vpop.f32.mrb[0].mxu0
    %v1052 = vpop.f32.mrb[0].mxu0
    %v1053 = vadd.f32 0.0, %v1052
    %v1054 = vpop.f32.mrb[0].mxu0
    %1055 = vmatprep.mubr.bf16.mxu0 0
    %1056 = vmatmul.mubr.bf16.gmra.mrb[0].mxu0 %v962
    %v1057 = vpop.f32.mrb[0].mxu0
    %v1058 = vadd.f32 0.0, %v1057
    %v1059 = vpop.f32.mrb[0].mxu0
    %v1060 = vpop.f32.mrb[0].mxu0
    %v1061 = vadd.f32 0.0, %v1060
    %v1062 = vpop.f32.mrb[0].mxu0
    %1063 = vdwg.mxu0
    %v1064 = vadd.f32 %v777, %v1002
    %v1065 = vadd.f32 %v778, %v1005
    %v1066 = vadd.f32 %v779, %v1010
    %v1067 = vadd.f32 %v780, %v1013
    %v1068 = vadd.f32 %v781, %v1018
    %v1069 = vadd.f32 %v782, %v1021
    %v1070 = vadd.f32 %v783, %v1026
    %v1071 = vadd.f32 %v784, %v1029
    %v1072 = vadd.f32 %v785, %v1034
    %v1073 = vadd.f32 %v786, %v1037
    %v1074 = vadd.f32 %v787, %v1042
    %v1075 = vadd.f32 %v788, %v1045
    %v1076 = vadd.f32 %v789, %v1050
    %v1077 = vadd.f32 %v790, %v1053
    %v1078 = vadd.f32 %v791, %v1058
    %v1079 = vadd.f32 %v792, %v1061
    %v1080 = vld [vmem:[%s0] sm:$0xc]
    %v1081 = vld [vmem:[%s0 + $0x30] sm:$0xc]
    %vm1086 = vcmask 1041408
    %vm1087 = vcmask 1045508
    %vm1088 = vmor %vm1086, %vm1087
    %v1089 = vrot.slane %v1080, 6
    %v1090 = vrot.slane %v1089, 4
    %v1091 = vrot.slane %v32, 6
    %v1092 = vsel %vm1088, %v1090, %v1091
    %v1093 = vrot.slane %v1091, 4
    %v1094 = vrot.slane %v33, 6
    %v1095 = vsel %vm1088, %v1093, %v1094
    %v1096 = vrot.slane %v1094, 4
    %v1097 = vrot.slane %v34, 6
    %v1098 = vsel %vm1088, %v1096, %v1097
    %v1099 = vrot.slane %v1097, 4
    %v1100 = vrot.slane %v35, 6
    %v1101 = vsel %vm1088, %v1099, %v1100
    %v1102 = vrot.slane %v1100, 4
    %v1103 = vrot.slane %v36, 6
    %v1104 = vsel %vm1088, %v1102, %v1103
    %v1105 = vrot.slane %v1103, 4
    %v1106 = vrot.slane %v37, 6
    %v1107 = vsel %vm1088, %v1105, %v1106
    %v1108 = vrot.slane %v1106, 4
    %v1109 = vrot.slane %v38, 6
    %v1110 = vsel %vm1088, %v1108, %v1109
    %v1111 = vrot.slane %v1109, 4
    %v1112 = vrot.slane %v793, 6
    %v1113 = vsel %vm1088, %v1111, %v1112
    %v1114 = vrot.slane %v1081, 6
    %v1115 = vrot.slane %v1114, 4
    %v1116 = vrot.slane %v40, 6
    %v1117 = vsel %vm1088, %v1115, %v1116
    %v1118 = vrot.slane %v1116, 4
    %v1119 = vrot.slane %v41, 6
    %v1120 = vsel %vm1088, %v1118, %v1119
    %v1121 = vrot.slane %v1119, 4
    %v1122 = vrot.slane %v42, 6
    %v1123 = vsel %vm1088, %v1121, %v1122
    %v1124 = vrot.slane %v1122, 4
    %v1125 = vrot.slane %v43, 6
    %v1126 = vsel %vm1088, %v1124, %v1125
    %v1127 = vrot.slane %v1125, 4
    %v1128 = vrot.slane %v44, 6
    %v1129 = vsel %vm1088, %v1127, %v1128
    %v1130 = vrot.slane %v1128, 4
    %v1131 = vrot.slane %v45, 6
    %v1132 = vsel %vm1088, %v1130, %v1131
    %v1133 = vrot.slane %v1131, 4
    %v1134 = vrot.slane %v46, 6
    %v1135 = vsel %vm1088, %v1133, %v1134
    %v1136 = vrot.slane %v1134, 4
    %v1137 = vrot.slane %v794, 6
    %v1138 = vsel %vm1088, %v1136, %v1137
    %v1139 = vld [vmem:[%s2 + $0x30] sm:$0xf]
    %v1140 = vld [vmem:[%s2 + $0x34] sm:$0xf]
    %v1141 = vld [vmem:[%s2 + $0x38] sm:$0xf]
    %v1142 = vunpack.c.l.b16 %v1092
    %v1143 = vunpack.c.l.b16 %v1095
    %v1144 = vunpack.c.l.b16 %v1098
    %v1145 = vunpack.c.l.b16 %v1101
    %v1146 = vunpack.c.l.b16 %v1104
    %v1147 = vunpack.c.l.b16 %v1107
    %v1148 = vunpack.c.l.b16 %v1110
    %v1149 = vunpack.c.l.b16 %v1113
    %v1150 = vunpack.c.l.b16 %v1117
    %v1151 = vunpack.c.l.b16 %v1120
    %v1152 = vunpack.c.l.b16 %v1123
    %v1153 = vunpack.c.l.b16 %v1126
    %v1154 = vunpack.c.l.b16 %v1129
    %v1155 = vunpack.c.l.b16 %v1132
    %v1156 = vunpack.c.l.b16 %v1135
    %v1157 = vunpack.c.l.b16 %v1138
    %v1158 = vpack.c.b16 %v1143, %v1142
    %v1159 = vpack.c.b16 %v1145, %v1144
    %v1160 = vpack.c.b16 %v1147, %v1146
    %v1161 = vpack.c.b16 %v1149, %v1148
    %v1162 = vpack.c.b16 %v1151, %v1150
    %v1163 = vpack.c.b16 %v1153, %v1152
    %v1164 = vpack.c.b16 %v1155, %v1154
    %v1165 = vpack.c.b16 %v1157, %v1156
    %v1169 = vunpack.c.l.b16 %v1139
    %v1170 = vunpack.c.l.b16 %v1140
    %v1171 = vunpack.c.l.b16 %v1141
    %v1172 = vpack.c.b16 %v1170, %v1169
    %v1173 = vpack.c.b16 %v1171, %v1171
    %v1176 = vsel %vm259, %v1158, 0
    %v1179 = vsel %vm259, %v1159, 0
    %v1182 = vsel %vm259, %v1160, 0
    %v1185 = vsel %vm259, %v1161, 0
    %v1188 = vsel %vm259, %v1162, 0
    %v1191 = vsel %vm259, %v1163, 0
    %v1194 = vsel %vm259, %v1164, 0
    %v1197 = vsel %vm259, %v1165, 0
    %v1200 = vsel %vm284, %v1173, 0
    %1202 = vmatprep.subr.bf16.mxu0 0
    %1203 = vmatpush1.bf16.msra.mxu0 %v1172
    %1204 = vmatprep.subr.bf16.mxu0 0
    %1205 = vmatpush1.bf16.msra.mxu0 %v1200
    %1206 = vmatprep.subr.bf16.mxu0 0
    %1207 = vmatpush1.bf16.msra.mxu0 0
    %1208 = vmatprep.subr.bf16.mxu0 0
    %1209 = vmatpush1.bf16.msra.mxu0 0
    %1210 = vmatprep.subr.bf16.mxu0 0
    %1211 = vmatpush1.bf16.msra.mxu0 0
    %1212 = vmatprep.subr.bf16.mxu0 0
    %1213 = vmatpush1.bf16.msra.mxu0 0
    %1214 = vmatprep.subr.bf16.mxu0 0
    %1215 = vmatpush1.bf16.msra.mxu0 0
    %1216 = vmatprep.subr.bf16.mxu0 0
    %1217 = vmatpush1.bf16.msra.mxu0 0
    %1218 = vmatprep.subr.bf16.mxu0 0
    %1219 = vmatpush1.bf16.msra.mxu0 0
    %1220 = vmatprep.subr.bf16.mxu0 0
    %1221 = vmatpush1.bf16.msra.mxu0 0
    %1222 = vmatprep.subr.bf16.mxu0 0
    %1223 = vmatpush1.bf16.msra.mxu0 0
    %1224 = vmatprep.subr.bf16.mxu0 0
    %1225 = vmatpush1.bf16.msra.mxu0 0
    %1226 = vmatprep.subr.bf16.mxu0 0
    %1227 = vmatpush1.bf16.msra.mxu0 0
    %1228 = vmatprep.subr.bf16.mxu0 0
    %1229 = vmatpush1.bf16.msra.mxu0 0
    %1230 = vmatprep.subr.bf16.mxu0 0
    %1231 = vmatpush1.bf16.msra.mxu0 0
    %1232 = vmatprep.subr.bf16.mxu0 0
    %1233 = vmatpush1.bf16.msra.mxu0 0
    %1234 = vmatprep.mubr.bf16.mxu0 0
    %1235 = vmatmul.mubr.bf16.gmra.mrb[0].mxu0 %v1176
    %v1236 = vpop.f32.mrb[0].mxu0
    %v1237 = vadd.f32 0.0, %v1236
    %v1238 = vpop.f32.mrb[0].mxu0
    %v1239 = vpop.f32.mrb[0].mxu0
    %v1240 = vadd.f32 0.0, %v1239
    %v1241 = vpop.f32.mrb[0].mxu0
    %1242 = vmatprep.mubr.bf16.mxu0 0
    %1243 = vmatmul.mubr.bf16.gmra.mrb[0].mxu0 %v1179
    %v1244 = vpop.f32.mrb[0].mxu0
    %v1245 = vadd.f32 0.0, %v1244
    %v1246 = vpop.f32.mrb[0].mxu0
    %v1247 = vpop.f32.mrb[0].mxu0
    %v1248 = vadd.f32 0.0, %v1247
    %v1249 = vpop.f32.mrb[0].mxu0
    %1250 = vmatprep.mubr.bf16.mxu0 0
    %1251 = vmatmul.mubr.bf16.gmra.mrb[0].mxu0 %v1182
    %v1252 = vpop.f32.mrb[0].mxu0
    %v1253 = vadd.f32 0.0, %v1252
    %v1254 = vpop.f32.mrb[0].mxu0
    %v1255 = vpop.f32.mrb[0].mxu0
    %v1256 = vadd.f32 0.0, %v1255
    %v1257 = vpop.f32.mrb[0].mxu0
    %1258 = vmatprep.mubr.bf16.mxu0 0
    %1259 = vmatmul.mubr.bf16.gmra.mrb[0].mxu0 %v1185
    %v1260 = vpop.f32.mrb[0].mxu0
    %v1261 = vadd.f32 0.0, %v1260
    %v1262 = vpop.f32.mrb[0].mxu0
    %v1263 = vpop.f32.mrb[0].mxu0
    %v1264 = vadd.f32 0.0, %v1263
    %v1265 = vpop.f32.mrb[0].mxu0
    %1266 = vmatprep.mubr.bf16.mxu0 0
    %1267 = vmatmul.mubr.bf16.gmra.mrb[0].mxu0 %v1188
    %v1268 = vpop.f32.mrb[0].mxu0
    %v1269 = vadd.f32 0.0, %v1268
    %v1270 = vpop.f32.mrb[0].mxu0
    %v1271 = vpop.f32.mrb[0].mxu0
    %v1272 = vadd.f32 0.0, %v1271
    %v1273 = vpop.f32.mrb[0].mxu0
    %1274 = vmatprep.mubr.bf16.mxu0 0
    %1275 = vmatmul.mubr.bf16.gmra.mrb[0].mxu0 %v1191
    %v1276 = vpop.f32.mrb[0].mxu0
    %v1277 = vadd.f32 0.0, %v1276
    %v1278 = vpop.f32.mrb[0].mxu0
    %v1279 = vpop.f32.mrb[0].mxu0
    %v1280 = vadd.f32 0.0, %v1279
    %v1281 = vpop.f32.mrb[0].mxu0
    %1282 = vmatprep.mubr.bf16.mxu0 0
    %1283 = vmatmul.mubr.bf16.gmra.mrb[0].mxu0 %v1194
    %v1284 = vpop.f32.mrb[0].mxu0
    %v1285 = vadd.f32 0.0, %v1284
    %v1286 = vpop.f32.mrb[0].mxu0
    %v1287 = vpop.f32.mrb[0].mxu0
    %v1288 = vadd.f32 0.0, %v1287
    %v1289 = vpop.f32.mrb[0].mxu0
    %1290 = vmatprep.mubr.bf16.mxu0 0
    %1291 = vmatmul.mubr.bf16.gmra.mrb[0].mxu0 %v1197
    %v1292 = vpop.f32.mrb[0].mxu0
    %v1293 = vadd.f32 0.0, %v1292
    %v1294 = vpop.f32.mrb[0].mxu0
    %v1295 = vpop.f32.mrb[0].mxu0
    %v1296 = vadd.f32 0.0, %v1295
    %v1297 = vpop.f32.mrb[0].mxu0
    %1298 = vdwg.mxu0
    %v1299 = vadd.f32 %v1064, %v1237
    %v1300 = vadd.f32 %v1065, %v1240
    %v1301 = vadd.f32 %v1066, %v1245
    %v1302 = vadd.f32 %v1067, %v1248
    %v1303 = vadd.f32 %v1068, %v1253
    %v1304 = vadd.f32 %v1069, %v1256
    %v1305 = vadd.f32 %v1070, %v1261
    %v1306 = vadd.f32 %v1071, %v1264
    %v1307 = vadd.f32 %v1072, %v1269
    %v1308 = vadd.f32 %v1073, %v1272
    %v1309 = vadd.f32 %v1074, %v1277
    %v1310 = vadd.f32 %v1075, %v1280
    %v1311 = vadd.f32 %v1076, %v1285
    %v1312 = vadd.f32 %v1077, %v1288
    %v1313 = vadd.f32 %v1078, %v1293
    %v1314 = vadd.f32 %v1079, %v1296
    %v1315 = vld [vmem:[%s0 + $0x20] sm:$0x7]
    %v1316 = vld [vmem:[%s0 + $0x50] sm:$0x7]
    %vm1317 = vsmask.f32 1280
    %vm1318 = vsmask.f32 5392
    %vm1319 = vmor %vm1317, %vm1318
    %v1321 = vshrl.u32 %v1080, 16
    %v1323 = vrot.slane %v1321, 6
    %v1324 = vshll.u32 %v1080, 16
    %v1326 = vrot.slane %v1324, 7
    %v1327 = vor.u32 %v1323, %v1326
    %v1328 = vrot.slane %v1327, 4
    %v1329 = vrot.slane %v69, 6
    %v1330 = vrot.slane %v65, 7
    %v1331 = vor.u32 %v1329, %v1330
    %v1332 = vsel %vm1319, %v1328, %v1331
    %v1333 = vrot.slane %v1331, 4
    %v1334 = vrot.slane %v79, 6
    %v1335 = vrot.slane %v75, 7
    %v1336 = vor.u32 %v1334, %v1335
    %v1337 = vsel %vm1319, %v1333, %v1336
    %v1338 = vrot.slane %v1336, 4
    %v1339 = vrot.slane %v89, 6
    %v1340 = vrot.slane %v85, 7
    %v1341 = vor.u32 %v1339, %v1340
    %v1342 = vsel %vm1319, %v1338, %v1341
    %v1343 = vrot.slane %v1341, 4
    %v1344 = vrot.slane %v99, 6
    %v1345 = vrot.slane %v95, 7
    %v1346 = vor.u32 %v1344, %v1345
    %v1347 = vsel %vm1319, %v1343, %v1346
    %v1348 = vrot.slane %v1346, 4
    %v1349 = vrot.slane %v109, 6
    %v1350 = vrot.slane %v105, 7
    %v1351 = vor.u32 %v1349, %v1350
    %v1352 = vsel %vm1319, %v1348, %v1351
    %v1353 = vrot.slane %v1351, 4
    %v1354 = vrot.slane %v119, 6
    %v1355 = vrot.slane %v115, 7
    %v1356 = vor.u32 %v1354, %v1355
    %v1357 = vsel %vm1319, %v1353, %v1356
    %v1358 = vrot.slane %v1356, 4
    %v1359 = vrot.slane %v129, 6
    %v1360 = vrot.slane %v125, 7
    %v1361 = vor.u32 %v1359, %v1360
    %v1362 = vsel %vm1319, %v1358, %v1361
    %v1363 = vrot.slane %v1361, 4
    %v1365 = vshrl.u32 %v1315, 16
    %v1367 = vrot.slane %v1365, 6
    %v1368 = vshll.u32 %v1315, 16
    %v1370 = vrot.slane %v1368, 7
    %v1371 = vor.u32 %v1367, %v1370
    %v1372 = vsel %vm1319, %v1363, %v1371
    %v1374 = vshrl.u32 %v1081, 16
    %v1376 = vrot.slane %v1374, 6
    %v1377 = vshll.u32 %v1081, 16
    %v1379 = vrot.slane %v1377, 7
    %v1380 = vor.u32 %v1376, %v1379
    %v1381 = vrot.slane %v1380, 4
    %v1382 = vrot.slane %v153, 6
    %v1383 = vrot.slane %v149, 7
    %v1384 = vor.u32 %v1382, %v1383
    %v1385 = vsel %vm1319, %v1381, %v1384
    %v1386 = vrot.slane %v1384, 4
    %v1387 = vrot.slane %v163, 6
    %v1388 = vrot.slane %v159, 7
    %v1389 = vor.u32 %v1387, %v1388
    %v1390 = vsel %vm1319, %v1386, %v1389
    %v1391 = vrot.slane %v1389, 4
    %v1392 = vrot.slane %v173, 6
    %v1393 = vrot.slane %v169, 7
    %v1394 = vor.u32 %v1392, %v1393
    %v1395 = vsel %vm1319, %v1391, %v1394
    %v1396 = vrot.slane %v1394, 4
    %v1397 = vrot.slane %v183, 6
    %v1398 = vrot.slane %v179, 7
    %v1399 = vor.u32 %v1397, %v1398
    %v1400 = vsel %vm1319, %v1396, %v1399
    %v1401 = vrot.slane %v1399, 4
    %v1402 = vrot.slane %v193, 6
    %v1403 = vrot.slane %v189, 7
    %v1404 = vor.u32 %v1402, %v1403
    %v1405 = vsel %vm1319, %v1401, %v1404
    %v1406 = vrot.slane %v1404, 4
    %v1407 = vrot.slane %v203, 6
    %v1408 = vrot.slane %v199, 7
    %v1409 = vor.u32 %v1407, %v1408
    %v1410 = vsel %vm1319, %v1406, %v1409
    %v1411 = vrot.slane %v1409, 4
    %v1412 = vrot.slane %v213, 6
    %v1413 = vrot.slane %v209, 7
    %v1414 = vor.u32 %v1412, %v1413
    %v1415 = vsel %vm1319, %v1411, %v1414
    %v1416 = vrot.slane %v1414, 4
    %v1418 = vshrl.u32 %v1316, 16
    %v1420 = vrot.slane %v1418, 6
    %v1421 = vshll.u32 %v1316, 16
    %v1423 = vrot.slane %v1421, 7
    %v1424 = vor.u32 %v1420, %v1423
    %v1425 = vsel %vm1319, %v1416, %v1424
    %v1426 = vld [vmem:[%s2 + $0x3c] sm:$0xf]
    %v1427 = vld [vmem:[%s2 + $0x40] sm:$0xf]
    %v1428 = vld [vmem:[%s2 + $0x44] sm:$0xf]
    %v1429 = vunpack.c.l.b16 %v1332
    %v1430 = vunpack.c.l.b16 %v1337
    %v1431 = vunpack.c.l.b16 %v1342
    %v1432 = vunpack.c.l.b16 %v1347
    %v1433 = vunpack.c.l.b16 %v1352
    %v1434 = vunpack.c.l.b16 %v1357
    %v1435 = vunpack.c.l.b16 %v1362
    %v1436 = vunpack.c.l.b16 %v1372
    %v1437 = vunpack.c.l.b16 %v1385
    %v1438 = vunpack.c.l.b16 %v1390
    %v1439 = vunpack.c.l.b16 %v1395
    %v1440 = vunpack.c.l.b16 %v1400
    %v1441 = vunpack.c.l.b16 %v1405
    %v1442 = vunpack.c.l.b16 %v1410
    %v1443 = vunpack.c.l.b16 %v1415
    %v1444 = vunpack.c.l.b16 %v1425
    %v1445 = vpack.c.b16 %v1430, %v1429
    %v1446 = vpack.c.b16 %v1432, %v1431
    %v1447 = vpack.c.b16 %v1434, %v1433
    %v1448 = vpack.c.b16 %v1436, %v1435
    %v1449 = vpack.c.b16 %v1438, %v1437
    %v1450 = vpack.c.b16 %v1440, %v1439
    %v1451 = vpack.c.b16 %v1442, %v1441
    %v1452 = vpack.c.b16 %v1444, %v1443
    %v1456 = vunpack.c.l.b16 %v1426
    %v1457 = vunpack.c.l.b16 %v1427
    %v1458 = vunpack.c.l.b16 %v1428
    %v1459 = vpack.c.b16 %v1457, %v1456
    %v1460 = vpack.c.b16 %v1458, %v1458
    %v1463 = vsel %vm259, %v1445, 0
    %v1466 = vsel %vm259, %v1446, 0
    %v1469 = vsel %vm259, %v1447, 0
    %v1472 = vsel %vm259, %v1448, 0
    %v1475 = vsel %vm259, %v1449, 0
    %v1478 = vsel %vm259, %v1450, 0
    %v1481 = vsel %vm259, %v1451, 0
    %v1484 = vsel %vm259, %v1452, 0
    %v1487 = vsel %vm284, %v1460, 0
    %1489 = vmatprep.subr.bf16.mxu0 0
    %1490 = vmatpush1.bf16.msra.mxu0 %v1459
    %1491 = vmatprep.subr.bf16.mxu0 0
    %1492 = vmatpush1.bf16.msra.mxu0 %v1487
    %1493 = vmatprep.subr.bf16.mxu0 0
    %1494 = vmatpush1.bf16.msra.mxu0 0
    %1495 = vmatprep.subr.bf16.mxu0 0
    %1496 = vmatpush1.bf16.msra.mxu0 0
    %1497 = vmatprep.subr.bf16.mxu0 0
    %1498 = vmatpush1.bf16.msra.mxu0 0
    %1499 = vmatprep.subr.bf16.mxu0 0
    %1500 = vmatpush1.bf16.msra.mxu0 0
    %1501 = vmatprep.subr.bf16.mxu0 0
    %1502 = vmatpush1.bf16.msra.mxu0 0
    %1503 = vmatprep.subr.bf16.mxu0 0
    %1504 = vmatpush1.bf16.msra.mxu0 0
    %1505 = vmatprep.subr.bf16.mxu0 0
    %1506 = vmatpush1.bf16.msra.mxu0 0
    %1507 = vmatprep.subr.bf16.mxu0 0
    %1508 = vmatpush1.bf16.msra.mxu0 0
    %1509 = vmatprep.subr.bf16.mxu0 0
    %1510 = vmatpush1.bf16.msra.mxu0 0
    %1511 = vmatprep.subr.bf16.mxu0 0
    %1512 = vmatpush1.bf16.msra.mxu0 0
    %1513 = vmatprep.subr.bf16.mxu0 0
    %1514 = vmatpush1.bf16.msra.mxu0 0
    %1515 = vmatprep.subr.bf16.mxu0 0
    %1516 = vmatpush1.bf16.msra.mxu0 0
    %1517 = vmatprep.subr.bf16.mxu0 0
    %1518 = vmatpush1.bf16.msra.mxu0 0
    %1519 = vmatprep.subr.bf16.mxu0 0
    %1520 = vmatpush1.bf16.msra.mxu0 0
    %1521 = vmatprep.mubr.bf16.mxu0 0
    %1522 = vmatmul.mubr.bf16.gmra.mrb[0].mxu0 %v1463
    %v1523 = vpop.f32.mrb[0].mxu0
    %v1524 = vadd.f32 0.0, %v1523
    %v1525 = vpop.f32.mrb[0].mxu0
    %v1526 = vpop.f32.mrb[0].mxu0
    %v1527 = vadd.f32 0.0, %v1526
    %v1528 = vpop.f32.mrb[0].mxu0
    %1529 = vmatprep.mubr.bf16.mxu0 0
    %1530 = vmatmul.mubr.bf16.gmra.mrb[0].mxu0 %v1466
    %v1531 = vpop.f32.mrb[0].mxu0
    %v1532 = vadd.f32 0.0, %v1531
    %v1533 = vpop.f32.mrb[0].mxu0
    %v1534 = vpop.f32.mrb[0].mxu0
    %v1535 = vadd.f32 0.0, %v1534
    %v1536 = vpop.f32.mrb[0].mxu0
    %1537 = vmatprep.mubr.bf16.mxu0 0
    %1538 = vmatmul.mubr.bf16.gmra.mrb[0].mxu0 %v1469
    %v1539 = vpop.f32.mrb[0].mxu0
    %v1540 = vadd.f32 0.0, %v1539
    %v1541 = vpop.f32.mrb[0].mxu0
    %v1542 = vpop.f32.mrb[0].mxu0
    %v1543 = vadd.f32 0.0, %v1542
    %v1544 = vpop.f32.mrb[0].mxu0
    %1545 = vmatprep.mubr.bf16.mxu0 0
    %1546 = vmatmul.mubr.bf16.gmra.mrb[0].mxu0 %v1472
    %v1547 = vpop.f32.mrb[0].mxu0
    %v1548 = vadd.f32 0.0, %v1547
    %v1549 = vpop.f32.mrb[0].mxu0
    %v1550 = vpop.f32.mrb[0].mxu0
    %v1551 = vadd.f32 0.0, %v1550
    %v1552 = vpop.f32.mrb[0].mxu0
    %1553 = vmatprep.mubr.bf16.mxu0 0
    %1554 = vmatmul.mubr.bf16.gmra.mrb[0].mxu0 %v1475
    %v1555 = vpop.f32.mrb[0].mxu0
    %v1556 = vadd.f32 0.0, %v1555
    %v1557 = vpop.f32.mrb[0].mxu0
    %v1558 = vpop.f32.mrb[0].mxu0
    %v1559 = vadd.f32 0.0, %v1558
    %v1560 = vpop.f32.mrb[0].mxu0
    %1561 = vmatprep.mubr.bf16.mxu0 0
    %1562 = vmatmul.mubr.bf16.gmra.mrb[0].mxu0 %v1478
    %v1563 = vpop.f32.mrb[0].mxu0
    %v1564 = vadd.f32 0.0, %v1563
    %v1565 = vpop.f32.mrb[0].mxu0
    %v1566 = vpop.f32.mrb[0].mxu0
    %v1567 = vadd.f32 0.0, %v1566
    %v1568 = vpop.f32.mrb[0].mxu0
    %1569 = vmatprep.mubr.bf16.mxu0 0
    %1570 = vmatmul.mubr.bf16.gmra.mrb[0].mxu0 %v1481
    %v1571 = vpop.f32.mrb[0].mxu0
    %v1572 = vadd.f32 0.0, %v1571
    %v1573 = vpop.f32.mrb[0].mxu0
    %v1574 = vpop.f32.mrb[0].mxu0
    %v1575 = vadd.f32 0.0, %v1574
    %v1576 = vpop.f32.mrb[0].mxu0
    %1577 = vmatprep.mubr.bf16.mxu0 0
    %1578 = vmatmul.mubr.bf16.gmra.mrb[0].mxu0 %v1484
    %v1579 = vpop.f32.mrb[0].mxu0
    %v1580 = vadd.f32 0.0, %v1579
    %v1581 = vpop.f32.mrb[0].mxu0
    %v1582 = vpop.f32.mrb[0].mxu0
    %v1583 = vadd.f32 0.0, %v1582
    %v1584 = vpop.f32.mrb[0].mxu0
    %1585 = vdwg.mxu0
    %v1586 = vadd.f32 %v1299, %v1524
    %v1587 = vadd.f32 %v1300, %v1527
    %v1588 = vadd.f32 %v1301, %v1532
    %v1589 = vadd.f32 %v1302, %v1535
    %v1590 = vadd.f32 %v1303, %v1540
    %v1591 = vadd.f32 %v1304, %v1543
    %v1592 = vadd.f32 %v1305, %v1548
    %v1593 = vadd.f32 %v1306, %v1551
    %v1594 = vadd.f32 %v1307, %v1556
    %v1595 = vadd.f32 %v1308, %v1559
    %v1596 = vadd.f32 %v1309, %v1564
    %v1597 = vadd.f32 %v1310, %v1567
    %v1598 = vadd.f32 %v1311, %v1572
    %v1599 = vadd.f32 %v1312, %v1575
    %v1600 = vadd.f32 %v1313, %v1580
    %v1601 = vadd.f32 %v1314, %v1583
    %v1602 = vld [vmem:[%s0] sm:$0x8]
    %v1603 = vld [vmem:[%s0 + $0x30] sm:$0x8]
    %vm1608 = vcmask 1040384
    %vm1609 = vcmask 1044484
    %vm1610 = vmor %vm1608, %vm1609
    %v1611 = vrot.slane %v1602, 7
    %v1612 = vrot.slane %v1611, 4
    %v1613 = vrot.slane %v32, 7
    %v1614 = vsel %vm1610, %v1612, %v1613
    %v1615 = vrot.slane %v1613, 4
    %v1616 = vrot.slane %v33, 7
    %v1617 = vsel %vm1610, %v1615, %v1616
    %v1618 = vrot.slane %v1616, 4
    %v1619 = vrot.slane %v34, 7
    %v1620 = vsel %vm1610, %v1618, %v1619
    %v1621 = vrot.slane %v1619, 4
    %v1622 = vrot.slane %v35, 7
    %v1623 = vsel %vm1610, %v1621, %v1622
    %v1624 = vrot.slane %v1622, 4
    %v1625 = vrot.slane %v36, 7
    %v1626 = vsel %vm1610, %v1624, %v1625
    %v1627 = vrot.slane %v1625, 4
    %v1628 = vrot.slane %v37, 7
    %v1629 = vsel %vm1610, %v1627, %v1628
    %v1630 = vrot.slane %v1628, 4
    %v1631 = vrot.slane %v38, 7
    %v1632 = vsel %vm1610, %v1630, %v1631
    %v1633 = vrot.slane %v1631, 4
    %v1634 = vrot.slane %v1315, 7
    %v1635 = vsel %vm1610, %v1633, %v1634
    %v1636 = vrot.slane %v1603, 7
    %v1637 = vrot.slane %v1636, 4
    %v1638 = vrot.slane %v40, 7
    %v1639 = vsel %vm1610, %v1637, %v1638
    %v1640 = vrot.slane %v1638, 4
    %v1641 = vrot.slane %v41, 7
    %v1642 = vsel %vm1610, %v1640, %v1641
    %v1643 = vrot.slane %v1641, 4
    %v1644 = vrot.slane %v42, 7
    %v1645 = vsel %vm1610, %v1643, %v1644
    %v1646 = vrot.slane %v1644, 4
    %v1647 = vrot.slane %v43, 7
    %v1648 = vsel %vm1610, %v1646, %v1647
    %v1649 = vrot.slane %v1647, 4
    %v1650 = vrot.slane %v44, 7
    %v1651 = vsel %vm1610, %v1649, %v1650
    %v1652 = vrot.slane %v1650, 4
    %v1653 = vrot.slane %v45, 7
    %v1654 = vsel %vm1610, %v1652, %v1653
    %v1655 = vrot.slane %v1653, 4
    %v1656 = vrot.slane %v46, 7
    %v1657 = vsel %vm1610, %v1655, %v1656
    %v1658 = vrot.slane %v1656, 4
    %v1659 = vrot.slane %v1316, 7
    %v1660 = vsel %vm1610, %v1658, %v1659
    %v1661 = vld [vmem:[%s2 + $0x48] sm:$0xf]
    %v1662 = vld [vmem:[%s2 + $0x4c] sm:$0xf]
    %v1663 = vld [vmem:[%s2 + $0x50] sm:$0xf]
    %v1664 = vunpack.c.l.b16 %v1614
    %v1665 = vunpack.c.l.b16 %v1617
    %v1666 = vunpack.c.l.b16 %v1620
    %v1667 = vunpack.c.l.b16 %v1623
    %v1668 = vunpack.c.l.b16 %v1626
    %v1669 = vunpack.c.l.b16 %v1629
    %v1670 = vunpack.c.l.b16 %v1632
    %v1671 = vunpack.c.l.b16 %v1635
    %v1672 = vunpack.c.l.b16 %v1639
    %v1673 = vunpack.c.l.b16 %v1642
    %v1674 = vunpack.c.l.b16 %v1645
    %v1675 = vunpack.c.l.b16 %v1648
    %v1676 = vunpack.c.l.b16 %v1651
    %v1677 = vunpack.c.l.b16 %v1654
    %v1678 = vunpack.c.l.b16 %v1657
    %v1679 = vunpack.c.l.b16 %v1660
    %v1680 = vpack.c.b16 %v1665, %v1664
    %v1681 = vpack.c.b16 %v1667, %v1666
    %v1682 = vpack.c.b16 %v1669, %v1668
    %v1683 = vpack.c.b16 %v1671, %v1670
    %v1684 = vpack.c.b16 %v1673, %v1672
    %v1685 = vpack.c.b16 %v1675, %v1674
    %v1686 = vpack.c.b16 %v1677, %v1676
    %v1687 = vpack.c.b16 %v1679, %v1678
    %v1691 = vunpack.c.l.b16 %v1661
    %v1692 = vunpack.c.l.b16 %v1662
    %v1693 = vunpack.c.l.b16 %v1663
    %v1694 = vpack.c.b16 %v1692, %v1691
    %v1695 = vpack.c.b16 %v1693, %v1693
    %v1698 = vsel %vm259, %v1680, 0
    %v1701 = vsel %vm259, %v1681, 0
    %v1704 = vsel %vm259, %v1682, 0
    %v1707 = vsel %vm259, %v1683, 0
    %v1710 = vsel %vm259, %v1684, 0
    %v1713 = vsel %vm259, %v1685, 0
    %v1716 = vsel %vm259, %v1686, 0
    %v1719 = vsel %vm259, %v1687, 0
    %v1722 = vsel %vm284, %v1695, 0
    %1724 = vmatprep.subr.bf16.mxu0 0
    %1725 = vmatpush1.bf16.msra.mxu0 %v1694
    %1726 = vmatprep.subr.bf16.mxu0 0
    %1727 = vmatpush1.bf16.msra.mxu0 %v1722
    %1728 = vmatprep.subr.bf16.mxu0 0
    %1729 = vmatpush1.bf16.msra.mxu0 0
    %1730 = vmatprep.subr.bf16.mxu0 0
    %1731 = vmatpush1.bf16.msra.mxu0 0
    %1732 = vmatprep.subr.bf16.mxu0 0
    %1733 = vmatpush1.bf16.msra.mxu0 0
    %1734 = vmatprep.subr.bf16.mxu0 0
    %1735 = vmatpush1.bf16.msra.mxu0 0
    %1736 = vmatprep.subr.bf16.mxu0 0
    %1737 = vmatpush1.bf16.msra.mxu0 0
    %1738 = vmatprep.subr.bf16.mxu0 0
    %1739 = vmatpush1.bf16.msra.mxu0 0
    %1740 = vmatprep.subr.bf16.mxu0 0
    %1741 = vmatpush1.bf16.msra.mxu0 0
    %1742 = vmatprep.subr.bf16.mxu0 0
    %1743 = vmatpush1.bf16.msra.mxu0 0
    %1744 = vmatprep.subr.bf16.mxu0 0
    %1745 = vmatpush1.bf16.msra.mxu0 0
    %1746 = vmatprep.subr.bf16.mxu0 0
    %1747 = vmatpush1.bf16.msra.mxu0 0
    %1748 = vmatprep.subr.bf16.mxu0 0
    %1749 = vmatpush1.bf16.msra.mxu0 0
    %1750 = vmatprep.subr.bf16.mxu0 0
    %1751 = vmatpush1.bf16.msra.mxu0 0
    %1752 = vmatprep.subr.bf16.mxu0 0
    %1753 = vmatpush1.bf16.msra.mxu0 0
    %1754 = vmatprep.subr.bf16.mxu0 0
    %1755 = vmatpush1.bf16.msra.mxu0 0
    %1756 = vmatprep.mubr.bf16.mxu0 0
    %1757 = vmatmul.mubr.bf16.gmra.mrb[0].mxu0 %v1698
    %v1758 = vpop.f32.mrb[0].mxu0
    %v1759 = vadd.f32 0.0, %v1758
    %v1760 = vpop.f32.mrb[0].mxu0
    %v1761 = vpop.f32.mrb[0].mxu0
    %v1762 = vadd.f32 0.0, %v1761
    %v1763 = vpop.f32.mrb[0].mxu0
    %1764 = vmatprep.mubr.bf16.mxu0 0
    %1765 = vmatmul.mubr.bf16.gmra.mrb[0].mxu0 %v1701
    %v1766 = vpop.f32.mrb[0].mxu0
    %v1767 = vadd.f32 0.0, %v1766
    %v1768 = vpop.f32.mrb[0].mxu0
    %v1769 = vpop.f32.mrb[0].mxu0
    %v1770 = vadd.f32 0.0, %v1769
    %v1771 = vpop.f32.mrb[0].mxu0
    %1772 = vmatprep.mubr.bf16.mxu0 0
    %1773 = vmatmul.mubr.bf16.gmra.mrb[0].mxu0 %v1704
    %v1774 = vpop.f32.mrb[0].mxu0
    %v1775 = vadd.f32 0.0, %v1774
    %v1776 = vpop.f32.mrb[0].mxu0
    %v1777 = vpop.f32.mrb[0].mxu0
    %v1778 = vadd.f32 0.0, %v1777
    %v1779 = vpop.f32.mrb[0].mxu0
    %1780 = vmatprep.mubr.bf16.mxu0 0
    %1781 = vmatmul.mubr.bf16.gmra.mrb[0].mxu0 %v1707
    %v1782 = vpop.f32.mrb[0].mxu0
    %v1783 = vadd.f32 0.0, %v1782
    %v1784 = vpop.f32.mrb[0].mxu0
    %v1785 = vpop.f32.mrb[0].mxu0
    %v1786 = vadd.f32 0.0, %v1785
    %v1787 = vpop.f32.mrb[0].mxu0
    %1788 = vmatprep.mubr.bf16.mxu0 0
    %1789 = vmatmul.mubr.bf16.gmra.mrb[0].mxu0 %v1710
    %v1790 = vpop.f32.mrb[0].mxu0
    %v1791 = vadd.f32 0.0, %v1790
    %v1792 = vpop.f32.mrb[0].mxu0
    %v1793 = vpop.f32.mrb[0].mxu0
    %v1794 = vadd.f32 0.0, %v1793
    %v1795 = vpop.f32.mrb[0].mxu0
    %1796 = vmatprep.mubr.bf16.mxu0 0
    %1797 = vmatmul.mubr.bf16.gmra.mrb[0].mxu0 %v1713
    %v1798 = vpop.f32.mrb[0].mxu0
    %v1799 = vadd.f32 0.0, %v1798
    %v1800 = vpop.f32.mrb[0].mxu0
    %v1801 = vpop.f32.mrb[0].mxu0
    %v1802 = vadd.f32 0.0, %v1801
    %v1803 = vpop.f32.mrb[0].mxu0
    %1804 = vmatprep.mubr.bf16.mxu0 0
    %1805 = vmatmul.mubr.bf16.gmra.mrb[0].mxu0 %v1716
    %v1806 = vpop.f32.mrb[0].mxu0
    %v1807 = vadd.f32 0.0, %v1806
    %v1808 = vpop.f32.mrb[0].mxu0
    %v1809 = vpop.f32.mrb[0].mxu0
    %v1810 = vadd.f32 0.0, %v1809
    %v1811 = vpop.f32.mrb[0].mxu0
    %1812 = vmatprep.mubr.bf16.mxu0 0
    %1813 = vmatmul.mubr.bf16.gmra.mrb[0].mxu0 %v1719
    %v1814 = vpop.f32.mrb[0].mxu0
    %v1815 = vadd.f32 0.0, %v1814
    %v1816 = vpop.f32.mrb[0].mxu0
    %v1817 = vpop.f32.mrb[0].mxu0
    %v1818 = vadd.f32 0.0, %v1817
    %v1819 = vpop.f32.mrb[0].mxu0
    %1820 = vdwg.mxu0
    %v1821 = vadd.f32 %v1586, %v1759
    %v1822 = vadd.f32 %v1587, %v1762
    %v1823 = vadd.f32 %v1588, %v1767
    %v1824 = vadd.f32 %v1589, %v1770
    %v1825 = vadd.f32 %v1590, %v1775
    %v1826 = vadd.f32 %v1591, %v1778
    %v1827 = vadd.f32 %v1592, %v1783
    %v1828 = vadd.f32 %v1593, %v1786
    %v1829 = vadd.f32 %v1594, %v1791
    %v1830 = vadd.f32 %v1595, %v1794
    %v1831 = vadd.f32 %v1596, %v1799
    %v1832 = vadd.f32 %v1597, %v1802
    %v1833 = vadd.f32 %v1598, %v1807
    %v1834 = vadd.f32 %v1599, %v1810
    %v1835 = vadd.f32 %v1600, %v1815
    %v1836 = vadd.f32 %v1601, %v1818
    %v1837 = vld [vmem:[%s0 + $0x20] sm:$0xf]
    %v1838 = vld [vmem:[%s0 + $0x50] sm:$0xf]
    %vm1839 = vsmask.f32 256
    %vm1840 = vsmask.f32 4368
    %vm1841 = vmor %vm1839, %vm1840
    %v1843 = vshrl.u32 %v1602, 16
    %v1845 = vrot.slane %v1843, 7
    %v1846 = vrot.slane %v1845, 4
    %v1847 = vrot.slane %v69, 7
    %v1848 = vor.u32 %v1847, %v65
    %v1849 = vsel %vm1841, %v1846, %v1848
    %v1850 = vrot.slane %v1847, 4
    %v1851 = vrot.slane %v79, 7
    %v1852 = vor.u32 %v1851, %v75
    %v1853 = vsel %vm1841, %v1850, %v1852
    %v1854 = vrot.slane %v1851, 4
    %v1855 = vrot.slane %v89, 7
    %v1856 = vor.u32 %v1855, %v85
    %v1857 = vsel %vm1841, %v1854, %v1856
    %v1858 = vrot.slane %v1855, 4
    %v1859 = vrot.slane %v99, 7
    %v1860 = vor.u32 %v1859, %v95
    %v1861 = vsel %vm1841, %v1858, %v1860
    %v1862 = vrot.slane %v1859, 4
    %v1863 = vrot.slane %v109, 7
    %v1864 = vor.u32 %v1863, %v105
    %v1865 = vsel %vm1841, %v1862, %v1864
    %v1866 = vrot.slane %v1863, 4
    %v1867 = vrot.slane %v119, 7
    %v1868 = vor.u32 %v1867, %v115
    %v1869 = vsel %vm1841, %v1866, %v1868
    %v1870 = vrot.slane %v1867, 4
    %v1871 = vrot.slane %v129, 7
    %v1872 = vor.u32 %v1871, %v125
    %v1873 = vsel %vm1841, %v1870, %v1872
    %v1874 = vrot.slane %v1871, 4
    %v1876 = vshrl.u32 %v1837, 16
    %v1878 = vrot.slane %v1876, 7
    %v1879 = vshll.u32 %v1837, 16
    %v1881 = vor.u32 %v1878, %v1879
    %v1882 = vsel %vm1841, %v1874, %v1881
    %v1884 = vshrl.u32 %v1603, 16
    %v1886 = vrot.slane %v1884, 7
    %v1887 = vrot.slane %v1886, 4
    %v1888 = vrot.slane %v153, 7
    %v1889 = vor.u32 %v1888, %v149
    %v1890 = vsel %vm1841, %v1887, %v1889
    %v1891 = vrot.slane %v1888, 4
    %v1892 = vrot.slane %v163, 7
    %v1893 = vor.u32 %v1892, %v159
    %v1894 = vsel %vm1841, %v1891, %v1893
    %v1895 = vrot.slane %v1892, 4
    %v1896 = vrot.slane %v173, 7
    %v1897 = vor.u32 %v1896, %v169
    %v1898 = vsel %vm1841, %v1895, %v1897
    %v1899 = vrot.slane %v1896, 4
    %v1900 = vrot.slane %v183, 7
    %v1901 = vor.u32 %v1900, %v179
    %v1902 = vsel %vm1841, %v1899, %v1901
    %v1903 = vrot.slane %v1900, 4
    %v1904 = vrot.slane %v193, 7
    %v1905 = vor.u32 %v1904, %v189
    %v1906 = vsel %vm1841, %v1903, %v1905
    %v1907 = vrot.slane %v1904, 4
    %v1908 = vrot.slane %v203, 7
    %v1909 = vor.u32 %v1908, %v199
    %v1910 = vsel %vm1841, %v1907, %v1909
    %v1911 = vrot.slane %v1908, 4
    %v1912 = vrot.slane %v213, 7
    %v1913 = vor.u32 %v1912, %v209
    %v1914 = vsel %vm1841, %v1911, %v1913
    %v1915 = vrot.slane %v1912, 4
    %v1917 = vshrl.u32 %v1838, 16
    %v1919 = vrot.slane %v1917, 7
    %v1920 = vshll.u32 %v1838, 16
    %v1922 = vor.u32 %v1919, %v1920
    %v1923 = vsel %vm1841, %v1915, %v1922
    %v1924 = vld [vmem:[%s2 + $0x54] sm:$0xf]
    %v1925 = vld [vmem:[%s2 + $0x58] sm:$0xf]
    %v1926 = vld [vmem:[%s2 + $0x5c] sm:$0xf]
    %v1927 = vunpack.c.l.b16 %v1849
    %v1928 = vunpack.c.l.b16 %v1853
    %v1929 = vunpack.c.l.b16 %v1857
    %v1930 = vunpack.c.l.b16 %v1861
    %v1931 = vunpack.c.l.b16 %v1865
    %v1932 = vunpack.c.l.b16 %v1869
    %v1933 = vunpack.c.l.b16 %v1873
    %v1934 = vunpack.c.l.b16 %v1882
    %v1935 = vunpack.c.l.b16 %v1890
    %v1936 = vunpack.c.l.b16 %v1894
    %v1937 = vunpack.c.l.b16 %v1898
    %v1938 = vunpack.c.l.b16 %v1902
    %v1939 = vunpack.c.l.b16 %v1906
    %v1940 = vunpack.c.l.b16 %v1910
    %v1941 = vunpack.c.l.b16 %v1914
    %v1942 = vunpack.c.l.b16 %v1923
    %v1943 = vpack.c.b16 %v1928, %v1927
    %v1944 = vpack.c.b16 %v1930, %v1929
    %v1945 = vpack.c.b16 %v1932, %v1931
    %v1946 = vpack.c.b16 %v1934, %v1933
    %v1947 = vpack.c.b16 %v1936, %v1935
    %v1948 = vpack.c.b16 %v1938, %v1937
    %v1949 = vpack.c.b16 %v1940, %v1939
    %v1950 = vpack.c.b16 %v1942, %v1941
    %v1954 = vunpack.c.l.b16 %v1924
    %v1955 = vunpack.c.l.b16 %v1925
    %v1956 = vunpack.c.l.b16 %v1926
    %v1957 = vpack.c.b16 %v1955, %v1954
    %v1958 = vpack.c.b16 %v1956, %v1956
    %v1961 = vsel %vm259, %v1943, 0
    %v1964 = vsel %vm259, %v1944, 0
    %v1967 = vsel %vm259, %v1945, 0
    %v1970 = vsel %vm259, %v1946, 0
    %v1973 = vsel %vm259, %v1947, 0
    %v1976 = vsel %vm259, %v1948, 0
    %v1979 = vsel %vm259, %v1949, 0
    %v1982 = vsel %vm259, %v1950, 0
    %v1985 = vsel %vm284, %v1958, 0
    %1987 = vmatprep.subr.bf16.mxu0 0
    %1988 = vmatpush1.bf16.msra.mxu0 %v1957
    %1989 = vmatprep.subr.bf16.mxu0 0
    %1990 = vmatpush1.bf16.msra.mxu0 %v1985
    %1991 = vmatprep.subr.bf16.mxu0 0
    %1992 = vmatpush1.bf16.msra.mxu0 0
    %1993 = vmatprep.subr.bf16.mxu0 0
    %1994 = vmatpush1.bf16.msra.mxu0 0
    %1995 = vmatprep.subr.bf16.mxu0 0
    %1996 = vmatpush1.bf16.msra.mxu0 0
    %1997 = vmatprep.subr.bf16.mxu0 0
    %1998 = vmatpush1.bf16.msra.mxu0 0
    %1999 = vmatprep.subr.bf16.mxu0 0
    %2000 = vmatpush1.bf16.msra.mxu0 0
    %2001 = vmatprep.subr.bf16.mxu0 0
    %2002 = vmatpush1.bf16.msra.mxu0 0
    %2003 = vmatprep.subr.bf16.mxu0 0
    %2004 = vmatpush1.bf16.msra.mxu0 0
    %2005 = vmatprep.subr.bf16.mxu0 0
    %2006 = vmatpush1.bf16.msra.mxu0 0
    %2007 = vmatprep.subr.bf16.mxu0 0
    %2008 = vmatpush1.bf16.msra.mxu0 0
    %2009 = vmatprep.subr.bf16.mxu0 0
    %2010 = vmatpush1.bf16.msra.mxu0 0
    %2011 = vmatprep.subr.bf16.mxu0 0
    %2012 = vmatpush1.bf16.msra.mxu0 0
    %2013 = vmatprep.subr.bf16.mxu0 0
    %2014 = vmatpush1.bf16.msra.mxu0 0
    %2015 = vmatprep.subr.bf16.mxu0 0
    %2016 = vmatpush1.bf16.msra.mxu0 0
    %2017 = vmatprep.subr.bf16.mxu0 0
    %2018 = vmatpush1.bf16.msra.mxu0 0
    %2019 = vmatprep.mubr.bf16.mxu0 0
    %2020 = vmatmul.mubr.bf16.gmra.mrb[0].mxu0 %v1961
    %v2021 = vpop.f32.mrb[0].mxu0
    %v2022 = vadd.f32 0.0, %v2021
    %v2023 = vpop.f32.mrb[0].mxu0
    %v2024 = vpop.f32.mrb[0].mxu0
    %v2025 = vadd.f32 0.0, %v2024
    %v2026 = vpop.f32.mrb[0].mxu0
    %2027 = vmatprep.mubr.bf16.mxu0 0
    %2028 = vmatmul.mubr.bf16.gmra.mrb[0].mxu0 %v1964
    %v2029 = vpop.f32.mrb[0].mxu0
    %v2030 = vadd.f32 0.0, %v2029
    %v2031 = vpop.f32.mrb[0].mxu0
    %v2032 = vpop.f32.mrb[0].mxu0
    %v2033 = vadd.f32 0.0, %v2032
    %v2034 = vpop.f32.mrb[0].mxu0
    %2035 = vmatprep.mubr.bf16.mxu0 0
    %2036 = vmatmul.mubr.bf16.gmra.mrb[0].mxu0 %v1967
    %v2037 = vpop.f32.mrb[0].mxu0
    %v2038 = vadd.f32 0.0, %v2037
    %v2039 = vpop.f32.mrb[0].mxu0
    %v2040 = vpop.f32.mrb[0].mxu0
    %v2041 = vadd.f32 0.0, %v2040
    %v2042 = vpop.f32.mrb[0].mxu0
    %2043 = vmatprep.mubr.bf16.mxu0 0
    %2044 = vmatmul.mubr.bf16.gmra.mrb[0].mxu0 %v1970
    %v2045 = vpop.f32.mrb[0].mxu0
    %v2046 = vadd.f32 0.0, %v2045
    %v2047 = vpop.f32.mrb[0].mxu0
    %v2048 = vpop.f32.mrb[0].mxu0
    %v2049 = vadd.f32 0.0, %v2048
    %v2050 = vpop.f32.mrb[0].mxu0
    %2051 = vmatprep.mubr.bf16.mxu0 0
    %2052 = vmatmul.mubr.bf16.gmra.mrb[0].mxu0 %v1973
    %v2053 = vpop.f32.mrb[0].mxu0
    %v2054 = vadd.f32 0.0, %v2053
    %v2055 = vpop.f32.mrb[0].mxu0
    %v2056 = vpop.f32.mrb[0].mxu0
    %v2057 = vadd.f32 0.0, %v2056
    %v2058 = vpop.f32.mrb[0].mxu0
    %2059 = vmatprep.mubr.bf16.mxu0 0
    %2060 = vmatmul.mubr.bf16.gmra.mrb[0].mxu0 %v1976
    %v2061 = vpop.f32.mrb[0].mxu0
    %v2062 = vadd.f32 0.0, %v2061
    %v2063 = vpop.f32.mrb[0].mxu0
    %v2064 = vpop.f32.mrb[0].mxu0
    %v2065 = vadd.f32 0.0, %v2064
    %v2066 = vpop.f32.mrb[0].mxu0
    %2067 = vmatprep.mubr.bf16.mxu0 0
    %2068 = vmatmul.mubr.bf16.gmra.mrb[0].mxu0 %v1979
    %v2069 = vpop.f32.mrb[0].mxu0
    %v2070 = vadd.f32 0.0, %v2069
    %v2071 = vpop.f32.mrb[0].mxu0
    %v2072 = vpop.f32.mrb[0].mxu0
    %v2073 = vadd.f32 0.0, %v2072
    %v2074 = vpop.f32.mrb[0].mxu0
    %2075 = vmatprep.mubr.bf16.mxu0 0
    %2076 = vmatmul.mubr.bf16.gmra.mrb[0].mxu0 %v1982
    %v2077 = vpop.f32.mrb[0].mxu0
    %v2078 = vadd.f32 0.0, %v2077
    %v2079 = vpop.f32.mrb[0].mxu0
    %v2080 = vpop.f32.mrb[0].mxu0
    %v2081 = vadd.f32 0.0, %v2080
    %v2082 = vpop.f32.mrb[0].mxu0
    %2083 = vdwg.mxu0
    %v2084 = vadd.f32 %v1821, %v2022
    %v2085 = vadd.f32 %v1822, %v2025
    %v2086 = vadd.f32 %v1823, %v2030
    %v2087 = vadd.f32 %v1824, %v2033
    %v2088 = vadd.f32 %v1825, %v2038
    %v2089 = vadd.f32 %v1826, %v2041
    %v2090 = vadd.f32 %v1827, %v2046
    %v2091 = vadd.f32 %v1828, %v2049
    %v2092 = vadd.f32 %v1829, %v2054
    %v2093 = vadd.f32 %v1830, %v2057
    %v2094 = vadd.f32 %v1831, %v2062
    %v2095 = vadd.f32 %v1832, %v2065
    %v2096 = vadd.f32 %v1833, %v2070
    %v2097 = vadd.f32 %v1834, %v2073
    %v2098 = vadd.f32 %v1835, %v2078
    %v2099 = vadd.f32 %v1836, %v2081
    %v2100 = vld [vmem:[%s2 + $0x60] sm:$0xf]
    %v2101 = vld [vmem:[%s2 + $0x64] sm:$0xf]
    %v2102 = vld [vmem:[%s2 + $0x68] sm:$0xf]
    %v2105 = vunpack.c.l.b16 %v1837
    %v2106 = vunpack.c.l.b16 %v1838
    %v2107 = vpack.c.b16 %v403, %v402
    %v2108 = vpack.c.b16 %v405, %v404
    %v2109 = vpack.c.b16 %v407, %v406
    %v2110 = vpack.c.b16 %v2105, %v408
    %v2111 = vpack.c.b16 %v411, %v410
    %v2112 = vpack.c.b16 %v413, %v412
    %v2113 = vpack.c.b16 %v415, %v414
    %v2114 = vpack.c.b16 %v2106, %v416
    %v2118 = vunpack.c.l.b16 %v2100
    %v2119 = vunpack.c.l.b16 %v2101
    %v2120 = vunpack.c.l.b16 %v2102
    %v2121 = vpack.c.b16 %v2119, %v2118
    %v2122 = vpack.c.b16 %v2120, %v2120
    %v2125 = vsel %vm259, %v2107, 0
    %v2128 = vsel %vm259, %v2108, 0
    %v2131 = vsel %vm259, %v2109, 0
    %v2134 = vsel %vm259, %v2110, 0
    %v2137 = vsel %vm259, %v2111, 0
    %v2140 = vsel %vm259, %v2112, 0
    %v2143 = vsel %vm259, %v2113, 0
    %v2146 = vsel %vm259, %v2114, 0
    %v2149 = vsel %vm284, %v2122, 0
    %2151 = vmatprep.subr.bf16.mxu0 0
    %2152 = vmatpush1.bf16.msra.mxu0 %v2121
    %2153 = vmatprep.subr.bf16.mxu0 0
    %2154 = vmatpush1.bf16.msra.mxu0 %v2149
    %2155 = vmatprep.subr.bf16.mxu0 0
    %2156 = vmatpush1.bf16.msra.mxu0 0
    %2157 = vmatprep.subr.bf16.mxu0 0
    %2158 = vmatpush1.bf16.msra.mxu0 0
    %2159 = vmatprep.subr.bf16.mxu0 0
    %2160 = vmatpush1.bf16.msra.mxu0 0
    %2161 = vmatprep.subr.bf16.mxu0 0
    %2162 = vmatpush1.bf16.msra.mxu0 0
    %2163 = vmatprep.subr.bf16.mxu0 0
    %2164 = vmatpush1.bf16.msra.mxu0 0
    %2165 = vmatprep.subr.bf16.mxu0 0
    %2166 = vmatpush1.bf16.msra.mxu0 0
    %2167 = vmatprep.subr.bf16.mxu0 0
    %2168 = vmatpush1.bf16.msra.mxu0 0
    %2169 = vmatprep.subr.bf16.mxu0 0
    %2170 = vmatpush1.bf16.msra.mxu0 0
    %2171 = vmatprep.subr.bf16.mxu0 0
    %2172 = vmatpush1.bf16.msra.mxu0 0
    %2173 = vmatprep.subr.bf16.mxu0 0
    %2174 = vmatpush1.bf16.msra.mxu0 0
    %2175 = vmatprep.subr.bf16.mxu0 0
    %2176 = vmatpush1.bf16.msra.mxu0 0
    %2177 = vmatprep.subr.bf16.mxu0 0
    %2178 = vmatpush1.bf16.msra.mxu0 0
    %2179 = vmatprep.subr.bf16.mxu0 0
    %2180 = vmatpush1.bf16.msra.mxu0 0
    %2181 = vmatprep.subr.bf16.mxu0 0
    %2182 = vmatpush1.bf16.msra.mxu0 0
    %2183 = vmatprep.mubr.bf16.mxu0 0
    %2184 = vmatmul.mubr.bf16.gmra.mrb[0].mxu0 %v2125
    %v2185 = vpop.f32.mrb[0].mxu0
    %v2186 = vadd.f32 0.0, %v2185
    %v2187 = vpop.f32.mrb[0].mxu0
    %v2188 = vpop.f32.mrb[0].mxu0
    %v2189 = vadd.f32 0.0, %v2188
    %v2190 = vpop.f32.mrb[0].mxu0
    %2191 = vmatprep.mubr.bf16.mxu0 0
    %2192 = vmatmul.mubr.bf16.gmra.mrb[0].mxu0 %v2128
    %v2193 = vpop.f32.mrb[0].mxu0
    %v2194 = vadd.f32 0.0, %v2193
    %v2195 = vpop.f32.mrb[0].mxu0
    %v2196 = vpop.f32.mrb[0].mxu0
    %v2197 = vadd.f32 0.0, %v2196
    %v2198 = vpop.f32.mrb[0].mxu0
    %2199 = vmatprep.mubr.bf16.mxu0 0
    %2200 = vmatmul.mubr.bf16.gmra.mrb[0].mxu0 %v2131
    %v2201 = vpop.f32.mrb[0].mxu0
    %v2202 = vadd.f32 0.0, %v2201
    %v2203 = vpop.f32.mrb[0].mxu0
    %v2204 = vpop.f32.mrb[0].mxu0
    %v2205 = vadd.f32 0.0, %v2204
    %v2206 = vpop.f32.mrb[0].mxu0
    %2207 = vmatprep.mubr.bf16.mxu0 0
    %2208 = vmatmul.mubr.bf16.gmra.mrb[0].mxu0 %v2134
    %v2209 = vpop.f32.mrb[0].mxu0
    %v2210 = vadd.f32 0.0, %v2209
    %v2211 = vpop.f32.mrb[0].mxu0
    %v2212 = vpop.f32.mrb[0].mxu0
    %v2213 = vadd.f32 0.0, %v2212
    %v2214 = vpop.f32.mrb[0].mxu0
    %2215 = vmatprep.mubr.bf16.mxu0 0
    %2216 = vmatmul.mubr.bf16.gmra.mrb[0].mxu0 %v2137
    %v2217 = vpop.f32.mrb[0].mxu0
    %v2218 = vadd.f32 0.0, %v2217
    %v2219 = vpop.f32.mrb[0].mxu0
    %v2220 = vpop.f32.mrb[0].mxu0
    %v2221 = vadd.f32 0.0, %v2220
    %v2222 = vpop.f32.mrb[0].mxu0
    %2223 = vmatprep.mubr.bf16.mxu0 0
    %2224 = vmatmul.mubr.bf16.gmra.mrb[0].mxu0 %v2140
    %v2225 = vpop.f32.mrb[0].mxu0
    %v2226 = vadd.f32 0.0, %v2225
    %v2227 = vpop.f32.mrb[0].mxu0
    %v2228 = vpop.f32.mrb[0].mxu0
    %v2229 = vadd.f32 0.0, %v2228
    %v2230 = vpop.f32.mrb[0].mxu0
    %2231 = vmatprep.mubr.bf16.mxu0 0
    %2232 = vmatmul.mubr.bf16.gmra.mrb[0].mxu0 %v2143
    %v2233 = vpop.f32.mrb[0].mxu0
    %v2234 = vadd.f32 0.0, %v2233
    %v2235 = vpop.f32.mrb[0].mxu0
    %v2236 = vpop.f32.mrb[0].mxu0
    %v2237 = vadd.f32 0.0, %v2236
    %v2238 = vpop.f32.mrb[0].mxu0
    %2239 = vmatprep.mubr.bf16.mxu0 0
    %2240 = vmatmul.mubr.bf16.gmra.mrb[0].mxu0 %v2146
    %v2241 = vpop.f32.mrb[0].mxu0
    %v2242 = vadd.f32 0.0, %v2241
    %v2243 = vpop.f32.mrb[0].mxu0
    %v2244 = vpop.f32.mrb[0].mxu0
    %v2245 = vadd.f32 0.0, %v2244
    %v2246 = vpop.f32.mrb[0].mxu0
    %2247 = vdwg.mxu0
    %v2248 = vadd.f32 %v2084, %v2186
    %v2249 = vadd.f32 %v2085, %v2189
    %v2250 = vadd.f32 %v2086, %v2194
    %v2251 = vadd.f32 %v2087, %v2197
    %v2252 = vadd.f32 %v2088, %v2202
    %v2253 = vadd.f32 %v2089, %v2205
    %v2254 = vadd.f32 %v2090, %v2210
    %v2255 = vadd.f32 %v2091, %v2213
    %v2256 = vadd.f32 %v2092, %v2218
    %v2257 = vadd.f32 %v2093, %v2221
    %v2258 = vadd.f32 %v2094, %v2226
    %v2259 = vadd.f32 %v2095, %v2229
    %v2260 = vadd.f32 %v2096, %v2234
    %v2261 = vadd.f32 %v2097, %v2237
    %v2262 = vadd.f32 %v2098, %v2242
    %v2263 = vadd.f32 %v2099, %v2245
    %v2264 = vld [vmem:[%s0 + $0x4] sm:$0xf]
    %v2265 = vld [vmem:[%s0 + $0x8] sm:$0xf]
    %v2266 = vld [vmem:[%s0 + $0xc] sm:$0xf]
    %v2267 = vld [vmem:[%s0 + $0x10] sm:$0xf]
    %v2268 = vld [vmem:[%s0 + $0x14] sm:$0xf]
    %v2269 = vld [vmem:[%s0 + $0x18] sm:$0xf]
    %v2270 = vld [vmem:[%s0 + $0x1c] sm:$0xf]
    %v2271 = vld [vmem:[%s0 + $0x20] sm:$0xf]
    %v2272 = vld [vmem:[%s0 + $0x24] sm:$0x1]
    %v2273 = vld [vmem:[%s0 + $0x34] sm:$0xf]
    %v2274 = vld [vmem:[%s0 + $0x38] sm:$0xf]
    %v2275 = vld [vmem:[%s0 + $0x3c] sm:$0xf]
    %v2276 = vld [vmem:[%s0 + $0x40] sm:$0xf]
    %v2277 = vld [vmem:[%s0 + $0x44] sm:$0xf]
    %v2278 = vld [vmem:[%s0 + $0x48] sm:$0xf]
    %v2279 = vld [vmem:[%s0 + $0x4c] sm:$0xf]
    %v2280 = vld [vmem:[%s0 + $0x50] sm:$0xf]
    %v2281 = vld [vmem:[%s0 + $0x54] sm:$0x1]
    %v2283 = vshrl.u32 %v2264, 16
    %v2285 = vrot.slane %v2283, 4
    %v2286 = vshll.u32 %v2264, 16
    %v2288 = vrot.slane %v2286, 5
    %v2289 = vor.u32 %v2285, %v2288
    %v2290 = vrot.slane %v2289, 4
    %v2292 = vshll.u32 %v2265, 16
    %v2294 = vrot.slane %v2292, 5
    %v2295 = vsel %vm54, %v2290, %v2294
    %v2296 = vshrl.u32 %v2265, 16
    %v2298 = vrot.slane %v2296, 4
    %v2299 = vor.u32 %v2298, %v2294
    %v2300 = vrot.slane %v2299, 4
    %v2302 = vshll.u32 %v2266, 16
    %v2304 = vrot.slane %v2302, 5
    %v2305 = vsel %vm54, %v2300, %v2304
    %v2306 = vshrl.u32 %v2266, 16
    %v2308 = vrot.slane %v2306, 4
    %v2309 = vor.u32 %v2308, %v2304
    %v2310 = vrot.slane %v2309, 4
    %v2312 = vshll.u32 %v2267, 16
    %v2314 = vrot.slane %v2312, 5
    %v2315 = vsel %vm54, %v2310, %v2314
    %v2316 = vshrl.u32 %v2267, 16
    %v2318 = vrot.slane %v2316, 4
    %v2319 = vor.u32 %v2318, %v2314
    %v2320 = vrot.slane %v2319, 4
    %v2322 = vshll.u32 %v2268, 16
    %v2324 = vrot.slane %v2322, 5
    %v2325 = vsel %vm54, %v2320, %v2324
    %v2326 = vshrl.u32 %v2268, 16
    %v2328 = vrot.slane %v2326, 4
    %v2329 = vor.u32 %v2328, %v2324
    %v2330 = vrot.slane %v2329, 4
    %v2332 = vshll.u32 %v2269, 16
    %v2334 = vrot.slane %v2332, 5
    %v2335 = vsel %vm54, %v2330, %v2334
    %v2336 = vshrl.u32 %v2269, 16
    %v2338 = vrot.slane %v2336, 4
    %v2339 = vor.u32 %v2338, %v2334
    %v2340 = vrot.slane %v2339, 4
    %v2342 = vshll.u32 %v2270, 16
    %v2344 = vrot.slane %v2342, 5
    %v2345 = vsel %vm54, %v2340, %v2344
    %v2346 = vshrl.u32 %v2270, 16
    %v2348 = vrot.slane %v2346, 4
    %v2349 = vor.u32 %v2348, %v2344
    %v2350 = vrot.slane %v2349, 4
    %v2352 = vshll.u32 %v2271, 16
    %v2354 = vrot.slane %v2352, 5
    %v2355 = vsel %vm54, %v2350, %v2354
    %v2356 = vshrl.u32 %v2271, 16
    %v2358 = vrot.slane %v2356, 4
    %v2359 = vor.u32 %v2358, %v2354
    %v2360 = vrot.slane %v2359, 4
    %v2362 = vshll.u32 %v2272, 16
    %v2364 = vrot.slane %v2362, 5
    %v2365 = vsel %vm54, %v2360, %v2364
    %v2367 = vshrl.u32 %v2273, 16
    %v2369 = vrot.slane %v2367, 4
    %v2370 = vshll.u32 %v2273, 16
    %v2372 = vrot.slane %v2370, 5
    %v2373 = vor.u32 %v2369, %v2372
    %v2374 = vrot.slane %v2373, 4
    %v2376 = vshll.u32 %v2274, 16
    %v2378 = vrot.slane %v2376, 5
    %v2379 = vsel %vm54, %v2374, %v2378
    %v2380 = vshrl.u32 %v2274, 16
    %v2382 = vrot.slane %v2380, 4
    %v2383 = vor.u32 %v2382, %v2378
    %v2384 = vrot.slane %v2383, 4
    %v2386 = vshll.u32 %v2275, 16
    %v2388 = vrot.slane %v2386, 5
    %v2389 = vsel %vm54, %v2384, %v2388
    %v2390 = vshrl.u32 %v2275, 16
    %v2392 = vrot.slane %v2390, 4
    %v2393 = vor.u32 %v2392, %v2388
    %v2394 = vrot.slane %v2393, 4
    %v2396 = vshll.u32 %v2276, 16
    %v2398 = vrot.slane %v2396, 5
    %v2399 = vsel %vm54, %v2394, %v2398
    %v2400 = vshrl.u32 %v2276, 16
    %v2402 = vrot.slane %v2400, 4
    %v2403 = vor.u32 %v2402, %v2398
    %v2404 = vrot.slane %v2403, 4
    %v2406 = vshll.u32 %v2277, 16
    %v2408 = vrot.slane %v2406, 5
    %v2409 = vsel %vm54, %v2404, %v2408
    %v2410 = vshrl.u32 %v2277, 16
    %v2412 = vrot.slane %v2410, 4
    %v2413 = vor.u32 %v2412, %v2408
    %v2414 = vrot.slane %v2413, 4
    %v2416 = vshll.u32 %v2278, 16
    %v2418 = vrot.slane %v2416, 5
    %v2419 = vsel %vm54, %v2414, %v2418
    %v2420 = vshrl.u32 %v2278, 16
    %v2422 = vrot.slane %v2420, 4
    %v2423 = vor.u32 %v2422, %v2418
    %v2424 = vrot.slane %v2423, 4
    %v2426 = vshll.u32 %v2279, 16
    %v2428 = vrot.slane %v2426, 5
    %v2429 = vsel %vm54, %v2424, %v2428
    %v2430 = vshrl.u32 %v2279, 16
    %v2432 = vrot.slane %v2430, 4
    %v2433 = vor.u32 %v2432, %v2428
    %v2434 = vrot.slane %v2433, 4
    %v2436 = vshll.u32 %v2280, 16
    %v2438 = vrot.slane %v2436, 5
    %v2439 = vsel %vm54, %v2434, %v2438
    %v2440 = vshrl.u32 %v2280, 16
    %v2442 = vrot.slane %v2440, 4
    %v2443 = vor.u32 %v2442, %v2438
    %v2444 = vrot.slane %v2443, 4
    %v2446 = vshll.u32 %v2281, 16
    %v2448 = vrot.slane %v2446, 5
    %v2449 = vsel %vm54, %v2444, %v2448
    %v2450 = vld [vmem:[%s2 + $0x6c] sm:$0xf]
    %v2451 = vld [vmem:[%s2 + $0x70] sm:$0xf]
    %v2452 = vld [vmem:[%s2 + $0x74] sm:$0xf]
    %v2453 = vunpack.c.l.b16 %v2295
    %v2454 = vunpack.c.l.b16 %v2305
    %v2455 = vunpack.c.l.b16 %v2315
    %v2456 = vunpack.c.l.b16 %v2325
    %v2457 = vunpack.c.l.b16 %v2335
    %v2458 = vunpack.c.l.b16 %v2345
    %v2459 = vunpack.c.l.b16 %v2355
    %v2460 = vunpack.c.l.b16 %v2365
    %v2461 = vunpack.c.l.b16 %v2379
    %v2462 = vunpack.c.l.b16 %v2389
    %v2463 = vunpack.c.l.b16 %v2399
    %v2464 = vunpack.c.l.b16 %v2409
    %v2465 = vunpack.c.l.b16 %v2419
    %v2466 = vunpack.c.l.b16 %v2429
    %v2467 = vunpack.c.l.b16 %v2439
    %v2468 = vunpack.c.l.b16 %v2449
    %v2469 = vpack.c.b16 %v2454, %v2453
    %v2470 = vpack.c.b16 %v2456, %v2455
    %v2471 = vpack.c.b16 %v2458, %v2457
    %v2472 = vpack.c.b16 %v2460, %v2459
    %v2473 = vpack.c.b16 %v2462, %v2461
    %v2474 = vpack.c.b16 %v2464, %v2463
    %v2475 = vpack.c.b16 %v2466, %v2465
    %v2476 = vpack.c.b16 %v2468, %v2467
    %v2480 = vunpack.c.l.b16 %v2450
    %v2481 = vunpack.c.l.b16 %v2451
    %v2482 = vunpack.c.l.b16 %v2452
    %v2483 = vpack.c.b16 %v2481, %v2480
    %v2484 = vpack.c.b16 %v2482, %v2482
    %v2487 = vsel %vm259, %v2469, 0
    %v2490 = vsel %vm259, %v2470, 0
    %v2493 = vsel %vm259, %v2471, 0
    %v2496 = vsel %vm259, %v2472, 0
    %v2499 = vsel %vm259, %v2473, 0
    %v2502 = vsel %vm259, %v2474, 0
    %v2505 = vsel %vm259, %v2475, 0
    %v2508 = vsel %vm259, %v2476, 0
    %v2511 = vsel %vm284, %v2484, 0
    %2513 = vmatprep.subr.bf16.mxu0 0
    %2514 = vmatpush1.bf16.msra.mxu0 %v2483
    %2515 = vmatprep.subr.bf16.mxu0 0
    %2516 = vmatpush1.bf16.msra.mxu0 %v2511
    %2517 = vmatprep.subr.bf16.mxu0 0
    %2518 = vmatpush1.bf16.msra.mxu0 0
    %2519 = vmatprep.subr.bf16.mxu0 0
    %2520 = vmatpush1.bf16.msra.mxu0 0
    %2521 = vmatprep.subr.bf16.mxu0 0
    %2522 = vmatpush1.bf16.msra.mxu0 0
    %2523 = vmatprep.subr.bf16.mxu0 0
    %2524 = vmatpush1.bf16.msra.mxu0 0
    %2525 = vmatprep.subr.bf16.mxu0 0
    %2526 = vmatpush1.bf16.msra.mxu0 0
    %2527 = vmatprep.subr.bf16.mxu0 0
    %2528 = vmatpush1.bf16.msra.mxu0 0
    %2529 = vmatprep.subr.bf16.mxu0 0
    %2530 = vmatpush1.bf16.msra.mxu0 0
    %2531 = vmatprep.subr.bf16.mxu0 0
    %2532 = vmatpush1.bf16.msra.mxu0 0
    %2533 = vmatprep.subr.bf16.mxu0 0
    %2534 = vmatpush1.bf16.msra.mxu0 0
    %2535 = vmatprep.subr.bf16.mxu0 0
    %2536 = vmatpush1.bf16.msra.mxu0 0
    %2537 = vmatprep.subr.bf16.mxu0 0
    %2538 = vmatpush1.bf16.msra.mxu0 0
    %2539 = vmatprep.subr.bf16.mxu0 0
    %2540 = vmatpush1.bf16.msra.mxu0 0
    %2541 = vmatprep.subr.bf16.mxu0 0
    %2542 = vmatpush1.bf16.msra.mxu0 0
    %2543 = vmatprep.subr.bf16.mxu0 0
    %2544 = vmatpush1.bf16.msra.mxu0 0
    %2545 = vmatprep.mubr.bf16.mxu0 0
    %2546 = vmatmul.mubr.bf16.gmra.mrb[0].mxu0 %v2487
    %v2547 = vpop.f32.mrb[0].mxu0
    %v2548 = vadd.f32 0.0, %v2547
    %v2549 = vpop.f32.mrb[0].mxu0
    %v2550 = vpop.f32.mrb[0].mxu0
    %v2551 = vadd.f32 0.0, %v2550
    %v2552 = vpop.f32.mrb[0].mxu0
    %2553 = vmatprep.mubr.bf16.mxu0 0
    %2554 = vmatmul.mubr.bf16.gmra.mrb[0].mxu0 %v2490
    %v2555 = vpop.f32.mrb[0].mxu0
    %v2556 = vadd.f32 0.0, %v2555
    %v2557 = vpop.f32.mrb[0].mxu0
    %v2558 = vpop.f32.mrb[0].mxu0
    %v2559 = vadd.f32 0.0, %v2558
    %v2560 = vpop.f32.mrb[0].mxu0
    %2561 = vmatprep.mubr.bf16.mxu0 0
    %2562 = vmatmul.mubr.bf16.gmra.mrb[0].mxu0 %v2493
    %v2563 = vpop.f32.mrb[0].mxu0
    %v2564 = vadd.f32 0.0, %v2563
    %v2565 = vpop.f32.mrb[0].mxu0
    %v2566 = vpop.f32.mrb[0].mxu0
    %v2567 = vadd.f32 0.0, %v2566
    %v2568 = vpop.f32.mrb[0].mxu0
    %2569 = vmatprep.mubr.bf16.mxu0 0
    %2570 = vmatmul.mubr.bf16.gmra.mrb[0].mxu0 %v2496
    %v2571 = vpop.f32.mrb[0].mxu0
    %v2572 = vadd.f32 0.0, %v2571
    %v2573 = vpop.f32.mrb[0].mxu0
    %v2574 = vpop.f32.mrb[0].mxu0
    %v2575 = vadd.f32 0.0, %v2574
    %v2576 = vpop.f32.mrb[0].mxu0
    %2577 = vmatprep.mubr.bf16.mxu0 0
    %2578 = vmatmul.mubr.bf16.gmra.mrb[0].mxu0 %v2499
    %v2579 = vpop.f32.mrb[0].mxu0
    %v2580 = vadd.f32 0.0, %v2579
    %v2581 = vpop.f32.mrb[0].mxu0
    %v2582 = vpop.f32.mrb[0].mxu0
    %v2583 = vadd.f32 0.0, %v2582
    %v2584 = vpop.f32.mrb[0].mxu0
    %2585 = vmatprep.mubr.bf16.mxu0 0
    %2586 = vmatmul.mubr.bf16.gmra.mrb[0].mxu0 %v2502
    %v2587 = vpop.f32.mrb[0].mxu0
    %v2588 = vadd.f32 0.0, %v2587
    %v2589 = vpop.f32.mrb[0].mxu0
    %v2590 = vpop.f32.mrb[0].mxu0
    %v2591 = vadd.f32 0.0, %v2590
    %v2592 = vpop.f32.mrb[0].mxu0
    %2593 = vmatprep.mubr.bf16.mxu0 0
    %2594 = vmatmul.mubr.bf16.gmra.mrb[0].mxu0 %v2505
    %v2595 = vpop.f32.mrb[0].mxu0
    %v2596 = vadd.f32 0.0, %v2595
    %v2597 = vpop.f32.mrb[0].mxu0
    %v2598 = vpop.f32.mrb[0].mxu0
    %v2599 = vadd.f32 0.0, %v2598
    %v2600 = vpop.f32.mrb[0].mxu0
    %2601 = vmatprep.mubr.bf16.mxu0 0
    %2602 = vmatmul.mubr.bf16.gmra.mrb[0].mxu0 %v2508
    %v2603 = vpop.f32.mrb[0].mxu0
    %v2604 = vadd.f32 0.0, %v2603
    %v2605 = vpop.f32.mrb[0].mxu0
    %v2606 = vpop.f32.mrb[0].mxu0
    %v2607 = vadd.f32 0.0, %v2606
    %v2608 = vpop.f32.mrb[0].mxu0
    %2609 = vdwg.mxu0
    %v2610 = vadd.f32 %v2248, %v2548
    %v2611 = vadd.f32 %v2249, %v2551
    %v2612 = vadd.f32 %v2250, %v2556
    %v2613 = vadd.f32 %v2251, %v2559
    %v2614 = vadd.f32 %v2252, %v2564
    %v2615 = vadd.f32 %v2253, %v2567
    %v2616 = vadd.f32 %v2254, %v2572
    %v2617 = vadd.f32 %v2255, %v2575
    %v2618 = vadd.f32 %v2256, %v2580
    %v2619 = vadd.f32 %v2257, %v2583
    %v2620 = vadd.f32 %v2258, %v2588
    %v2621 = vadd.f32 %v2259, %v2591
    %v2622 = vadd.f32 %v2260, %v2596
    %v2623 = vadd.f32 %v2261, %v2599
    %v2624 = vadd.f32 %v2262, %v2604
    %v2625 = vadd.f32 %v2263, %v2607
    %v2626 = vld [vmem:[%s0 + $0x4] sm:$0xe]
    %v2627 = vld [vmem:[%s0 + $0x34] sm:$0xe]
    %v2646 = vrot.slane %v2626, 5
    %v2647 = vrot.slane %v2646, 4
    %v2648 = vrot.slane %v2265, 5
    %v2649 = vsel %vm566, %v2647, %v2648
    %v2650 = vrot.slane %v2648, 4
    %v2651 = vrot.slane %v2266, 5
    %v2652 = vsel %vm566, %v2650, %v2651
    %v2653 = vrot.slane %v2651, 4
    %v2654 = vrot.slane %v2267, 5
    %v2655 = vsel %vm566, %v2653, %v2654
    %v2656 = vrot.slane %v2654, 4
    %v2657 = vrot.slane %v2268, 5
    %v2658 = vsel %vm566, %v2656, %v2657
    %v2659 = vrot.slane %v2657, 4
    %v2660 = vrot.slane %v2269, 5
    %v2661 = vsel %vm566, %v2659, %v2660
    %v2662 = vrot.slane %v2660, 4
    %v2663 = vrot.slane %v2270, 5
    %v2664 = vsel %vm566, %v2662, %v2663
    %v2665 = vrot.slane %v2663, 4
    %v2666 = vrot.slane %v2271, 5
    %v2667 = vsel %vm566, %v2665, %v2666
    %v2668 = vrot.slane %v2666, 4
    %v2669 = vrot.slane %v2272, 5
    %v2670 = vsel %vm566, %v2668, %v2669
    %v2671 = vrot.slane %v2627, 5
    %v2672 = vrot.slane %v2671, 4
    %v2673 = vrot.slane %v2274, 5
    %v2674 = vsel %vm566, %v2672, %v2673
    %v2675 = vrot.slane %v2673, 4
    %v2676 = vrot.slane %v2275, 5
    %v2677 = vsel %vm566, %v2675, %v2676
    %v2678 = vrot.slane %v2676, 4
    %v2679 = vrot.slane %v2276, 5
    %v2680 = vsel %vm566, %v2678, %v2679
    %v2681 = vrot.slane %v2679, 4
    %v2682 = vrot.slane %v2277, 5
    %v2683 = vsel %vm566, %v2681, %v2682
    %v2684 = vrot.slane %v2682, 4
    %v2685 = vrot.slane %v2278, 5
    %v2686 = vsel %vm566, %v2684, %v2685
    %v2687 = vrot.slane %v2685, 4
    %v2688 = vrot.slane %v2279, 5
    %v2689 = vsel %vm566, %v2687, %v2688
    %v2690 = vrot.slane %v2688, 4
    %v2691 = vrot.slane %v2280, 5
    %v2692 = vsel %vm566, %v2690, %v2691
    %v2693 = vrot.slane %v2691, 4
    %v2694 = vrot.slane %v2281, 5
    %v2695 = vsel %vm566, %v2693, %v2694
    %v2696 = vld [vmem:[%s2 + $0x78] sm:$0xf]
    %v2697 = vld [vmem:[%s2 + $0x7c] sm:$0xf]
    %v2698 = vld [vmem:[%s2 + $0x80] sm:$0xf]
    %v2699 = vunpack.c.l.b16 %v2649
    %v2700 = vunpack.c.l.b16 %v2652
    %v2701 = vunpack.c.l.b16 %v2655
    %v2702 = vunpack.c.l.b16 %v2658
    %v2703 = vunpack.c.l.b16 %v2661
    %v2704 = vunpack.c.l.b16 %v2664
    %v2705 = vunpack.c.l.b16 %v2667
    %v2706 = vunpack.c.l.b16 %v2670
    %v2707 = vunpack.c.l.b16 %v2674
    %v2708 = vunpack.c.l.b16 %v2677
    %v2709 = vunpack.c.l.b16 %v2680
    %v2710 = vunpack.c.l.b16 %v2683
    %v2711 = vunpack.c.l.b16 %v2686
    %v2712 = vunpack.c.l.b16 %v2689
    %v2713 = vunpack.c.l.b16 %v2692
    %v2714 = vunpack.c.l.b16 %v2695
    %v2715 = vpack.c.b16 %v2700, %v2699
    %v2716 = vpack.c.b16 %v2702, %v2701
    %v2717 = vpack.c.b16 %v2704, %v2703
    %v2718 = vpack.c.b16 %v2706, %v2705
    %v2719 = vpack.c.b16 %v2708, %v2707
    %v2720 = vpack.c.b16 %v2710, %v2709
    %v2721 = vpack.c.b16 %v2712, %v2711
    %v2722 = vpack.c.b16 %v2714, %v2713
    %v2726 = vunpack.c.l.b16 %v2696
    %v2727 = vunpack.c.l.b16 %v2697
    %v2728 = vunpack.c.l.b16 %v2698
    %v2729 = vpack.c.b16 %v2727, %v2726
    %v2730 = vpack.c.b16 %v2728, %v2728
    %v2733 = vsel %vm259, %v2715, 0
    %v2736 = vsel %vm259, %v2716, 0
    %v2739 = vsel %vm259, %v2717, 0
    %v2742 = vsel %vm259, %v2718, 0
    %v2745 = vsel %vm259, %v2719, 0
    %v2748 = vsel %vm259, %v2720, 0
    %v2751 = vsel %vm259, %v2721, 0
    %v2754 = vsel %vm259, %v2722, 0
    %v2757 = vsel %vm284, %v2730, 0
    %2759 = vmatprep.subr.bf16.mxu0 0
    %2760 = vmatpush1.bf16.msra.mxu0 %v2729
    %2761 = vmatprep.subr.bf16.mxu0 0
    %2762 = vmatpush1.bf16.msra.mxu0 %v2757
    %2763 = vmatprep.subr.bf16.mxu0 0
    %2764 = vmatpush1.bf16.msra.mxu0 0
    %2765 = vmatprep.subr.bf16.mxu0 0
    %2766 = vmatpush1.bf16.msra.mxu0 0
    %2767 = vmatprep.subr.bf16.mxu0 0
    %2768 = vmatpush1.bf16.msra.mxu0 0
    %2769 = vmatprep.subr.bf16.mxu0 0
    %2770 = vmatpush1.bf16.msra.mxu0 0
    %2771 = vmatprep.subr.bf16.mxu0 0
    %2772 = vmatpush1.bf16.msra.mxu0 0
    %2773 = vmatprep.subr.bf16.mxu0 0
    %2774 = vmatpush1.bf16.msra.mxu0 0
    %2775 = vmatprep.subr.bf16.mxu0 0
    %2776 = vmatpush1.bf16.msra.mxu0 0
    %2777 = vmatprep.subr.bf16.mxu0 0
    %2778 = vmatpush1.bf16.msra.mxu0 0
    %2779 = vmatprep.subr.bf16.mxu0 0
    %2780 = vmatpush1.bf16.msra.mxu0 0
    %2781 = vmatprep.subr.bf16.mxu0 0
    %2782 = vmatpush1.bf16.msra.mxu0 0
    %2783 = vmatprep.subr.bf16.mxu0 0
    %2784 = vmatpush1.bf16.msra.mxu0 0
    %2785 = vmatprep.subr.bf16.mxu0 0
    %2786 = vmatpush1.bf16.msra.mxu0 0
    %2787 = vmatprep.subr.bf16.mxu0 0
    %2788 = vmatpush1.bf16.msra.mxu0 0
    %2789 = vmatprep.subr.bf16.mxu0 0
    %2790 = vmatpush1.bf16.msra.mxu0 0
    %2791 = vmatprep.mubr.bf16.mxu0 0
    %2792 = vmatmul.mubr.bf16.gmra.mrb[0].mxu0 %v2733
    %v2793 = vpop.f32.mrb[0].mxu0
    %v2794 = vadd.f32 0.0, %v2793
    %v2795 = vpop.f32.mrb[0].mxu0
    %v2796 = vpop.f32.mrb[0].mxu0
    %v2797 = vadd.f32 0.0, %v2796
    %v2798 = vpop.f32.mrb[0].mxu0
    %2799 = vmatprep.mubr.bf16.mxu0 0
    %2800 = vmatmul.mubr.bf16.gmra.mrb[0].mxu0 %v2736
    %v2801 = vpop.f32.mrb[0].mxu0
    %v2802 = vadd.f32 0.0, %v2801
    %v2803 = vpop.f32.mrb[0].mxu0
    %v2804 = vpop.f32.mrb[0].mxu0
    %v2805 = vadd.f32 0.0, %v2804
    %v2806 = vpop.f32.mrb[0].mxu0
    %2807 = vmatprep.mubr.bf16.mxu0 0
    %2808 = vmatmul.mubr.bf16.gmra.mrb[0].mxu0 %v2739
    %v2809 = vpop.f32.mrb[0].mxu0
    %v2810 = vadd.f32 0.0, %v2809
    %v2811 = vpop.f32.mrb[0].mxu0
    %v2812 = vpop.f32.mrb[0].mxu0
    %v2813 = vadd.f32 0.0, %v2812
    %v2814 = vpop.f32.mrb[0].mxu0
    %2815 = vmatprep.mubr.bf16.mxu0 0
    %2816 = vmatmul.mubr.bf16.gmra.mrb[0].mxu0 %v2742
    %v2817 = vpop.f32.mrb[0].mxu0
    %v2818 = vadd.f32 0.0, %v2817
    %v2819 = vpop.f32.mrb[0].mxu0
    %v2820 = vpop.f32.mrb[0].mxu0
    %v2821 = vadd.f32 0.0, %v2820
    %v2822 = vpop.f32.mrb[0].mxu0
    %2823 = vmatprep.mubr.bf16.mxu0 0
    %2824 = vmatmul.mubr.bf16.gmra.mrb[0].mxu0 %v2745
    %v2825 = vpop.f32.mrb[0].mxu0
    %v2826 = vadd.f32 0.0, %v2825
    %v2827 = vpop.f32.mrb[0].mxu0
    %v2828 = vpop.f32.mrb[0].mxu0
    %v2829 = vadd.f32 0.0, %v2828
    %v2830 = vpop.f32.mrb[0].mxu0
    %2831 = vmatprep.mubr.bf16.mxu0 0
    %2832 = vmatmul.mubr.bf16.gmra.mrb[0].mxu0 %v2748
    %v2833 = vpop.f32.mrb[0].mxu0
    %v2834 = vadd.f32 0.0, %v2833
    %v2835 = vpop.f32.mrb[0].mxu0
    %v2836 = vpop.f32.mrb[0].mxu0
    %v2837 = vadd.f32 0.0, %v2836
    %v2838 = vpop.f32.mrb[0].mxu0
    %2839 = vmatprep.mubr.bf16.mxu0 0
    %2840 = vmatmul.mubr.bf16.gmra.mrb[0].mxu0 %v2751
    %v2841 = vpop.f32.mrb[0].mxu0
    %v2842 = vadd.f32 0.0, %v2841
    %v2843 = vpop.f32.mrb[0].mxu0
    %v2844 = vpop.f32.mrb[0].mxu0
    %v2845 = vadd.f32 0.0, %v2844
    %v2846 = vpop.f32.mrb[0].mxu0
    %2847 = vmatprep.mubr.bf16.mxu0 0
    %2848 = vmatmul.mubr.bf16.gmra.mrb[0].mxu0 %v2754
    %v2849 = vpop.f32.mrb[0].mxu0
    %v2850 = vadd.f32 0.0, %v2849
    %v2851 = vpop.f32.mrb[0].mxu0
    %v2852 = vpop.f32.mrb[0].mxu0
    %v2853 = vadd.f32 0.0, %v2852
    %v2854 = vpop.f32.mrb[0].mxu0
    %2855 = vdwg.mxu0
    %v2856 = vadd.f32 %v2610, %v2794
    %v2857 = vadd.f32 %v2611, %v2797
    %v2858 = vadd.f32 %v2612, %v2802
    %v2859 = vadd.f32 %v2613, %v2805
    %v2860 = vadd.f32 %v2614, %v2810
    %v2861 = vadd.f32 %v2615, %v2813
    %v2862 = vadd.f32 %v2616, %v2818
    %v2863 = vadd.f32 %v2617, %v2821
    %v2864 = vadd.f32 %v2618, %v2826
    %v2865 = vadd.f32 %v2619, %v2829
    %v2866 = vadd.f32 %v2620, %v2834
    %v2867 = vadd.f32 %v2621, %v2837
    %v2868 = vadd.f32 %v2622, %v2842
    %v2869 = vadd.f32 %v2623, %v2845
    %v2870 = vadd.f32 %v2624, %v2850
    %v2871 = vadd.f32 %v2625, %v2853
    %v2872 = vld [vmem:[%s0 + $0x24] sm:$0x3]
    %v2873 = vld [vmem:[%s0 + $0x54] sm:$0x3]
    %v2875 = vshrl.u32 %v2626, 16
    %v2877 = vrot.slane %v2875, 5
    %v2878 = vshll.u32 %v2626, 16
    %v2880 = vrot.slane %v2878, 6
    %v2881 = vor.u32 %v2877, %v2880
    %v2882 = vrot.slane %v2881, 4
    %v2883 = vrot.slane %v2296, 5
    %v2884 = vrot.slane %v2292, 6
    %v2885 = vor.u32 %v2883, %v2884
    %v2886 = vsel %vm797, %v2882, %v2885
    %v2887 = vrot.slane %v2885, 4
    %v2888 = vrot.slane %v2306, 5
    %v2889 = vrot.slane %v2302, 6
    %v2890 = vor.u32 %v2888, %v2889
    %v2891 = vsel %vm797, %v2887, %v2890
    %v2892 = vrot.slane %v2890, 4
    %v2893 = vrot.slane %v2316, 5
    %v2894 = vrot.slane %v2312, 6
    %v2895 = vor.u32 %v2893, %v2894
    %v2896 = vsel %vm797, %v2892, %v2895
    %v2897 = vrot.slane %v2895, 4
    %v2898 = vrot.slane %v2326, 5
    %v2899 = vrot.slane %v2322, 6
    %v2900 = vor.u32 %v2898, %v2899
    %v2901 = vsel %vm797, %v2897, %v2900
    %v2902 = vrot.slane %v2900, 4
    %v2903 = vrot.slane %v2336, 5
    %v2904 = vrot.slane %v2332, 6
    %v2905 = vor.u32 %v2903, %v2904
    %v2906 = vsel %vm797, %v2902, %v2905
    %v2907 = vrot.slane %v2905, 4
    %v2908 = vrot.slane %v2346, 5
    %v2909 = vrot.slane %v2342, 6
    %v2910 = vor.u32 %v2908, %v2909
    %v2911 = vsel %vm797, %v2907, %v2910
    %v2912 = vrot.slane %v2910, 4
    %v2913 = vrot.slane %v2356, 5
    %v2914 = vrot.slane %v2352, 6
    %v2915 = vor.u32 %v2913, %v2914
    %v2916 = vsel %vm797, %v2912, %v2915
    %v2917 = vrot.slane %v2915, 4
    %v2919 = vshrl.u32 %v2872, 16
    %v2921 = vrot.slane %v2919, 5
    %v2922 = vshll.u32 %v2872, 16
    %v2924 = vrot.slane %v2922, 6
    %v2925 = vor.u32 %v2921, %v2924
    %v2926 = vsel %vm797, %v2917, %v2925
    %v2928 = vshrl.u32 %v2627, 16
    %v2930 = vrot.slane %v2928, 5
    %v2931 = vshll.u32 %v2627, 16
    %v2933 = vrot.slane %v2931, 6
    %v2934 = vor.u32 %v2930, %v2933
    %v2935 = vrot.slane %v2934, 4
    %v2936 = vrot.slane %v2380, 5
    %v2937 = vrot.slane %v2376, 6
    %v2938 = vor.u32 %v2936, %v2937
    %v2939 = vsel %vm797, %v2935, %v2938
    %v2940 = vrot.slane %v2938, 4
    %v2941 = vrot.slane %v2390, 5
    %v2942 = vrot.slane %v2386, 6
    %v2943 = vor.u32 %v2941, %v2942
    %v2944 = vsel %vm797, %v2940, %v2943
    %v2945 = vrot.slane %v2943, 4
    %v2946 = vrot.slane %v2400, 5
    %v2947 = vrot.slane %v2396, 6
    %v2948 = vor.u32 %v2946, %v2947
    %v2949 = vsel %vm797, %v2945, %v2948
    %v2950 = vrot.slane %v2948, 4
    %v2951 = vrot.slane %v2410, 5
    %v2952 = vrot.slane %v2406, 6
    %v2953 = vor.u32 %v2951, %v2952
    %v2954 = vsel %vm797, %v2950, %v2953
    %v2955 = vrot.slane %v2953, 4
    %v2956 = vrot.slane %v2420, 5
    %v2957 = vrot.slane %v2416, 6
    %v2958 = vor.u32 %v2956, %v2957
    %v2959 = vsel %vm797, %v2955, %v2958
    %v2960 = vrot.slane %v2958, 4
    %v2961 = vrot.slane %v2430, 5
    %v2962 = vrot.slane %v2426, 6
    %v2963 = vor.u32 %v2961, %v2962
    %v2964 = vsel %vm797, %v2960, %v2963
    %v2965 = vrot.slane %v2963, 4
    %v2966 = vrot.slane %v2440, 5
    %v2967 = vrot.slane %v2436, 6
    %v2968 = vor.u32 %v2966, %v2967
    %v2969 = vsel %vm797, %v2965, %v2968
    %v2970 = vrot.slane %v2968, 4
    %v2972 = vshrl.u32 %v2873, 16
    %v2974 = vrot.slane %v2972, 5
    %v2975 = vshll.u32 %v2873, 16
    %v2977 = vrot.slane %v2975, 6
    %v2978 = vor.u32 %v2974, %v2977
    %v2979 = vsel %vm797, %v2970, %v2978
    %v2980 = vld [vmem:[%s2 + $0x84] sm:$0xf]
    %v2981 = vld [vmem:[%s2 + $0x88] sm:$0xf]
    %v2982 = vld [vmem:[%s2 + $0x8c] sm:$0xf]
    %v2983 = vunpack.c.l.b16 %v2886
    %v2984 = vunpack.c.l.b16 %v2891
    %v2985 = vunpack.c.l.b16 %v2896
    %v2986 = vunpack.c.l.b16 %v2901
    %v2987 = vunpack.c.l.b16 %v2906
    %v2988 = vunpack.c.l.b16 %v2911
    %v2989 = vunpack.c.l.b16 %v2916
    %v2990 = vunpack.c.l.b16 %v2926
    %v2991 = vunpack.c.l.b16 %v2939
    %v2992 = vunpack.c.l.b16 %v2944
    %v2993 = vunpack.c.l.b16 %v2949
    %v2994 = vunpack.c.l.b16 %v2954
    %v2995 = vunpack.c.l.b16 %v2959
    %v2996 = vunpack.c.l.b16 %v2964
    %v2997 = vunpack.c.l.b16 %v2969
    %v2998 = vunpack.c.l.b16 %v2979
    %v2999 = vpack.c.b16 %v2984, %v2983
    %v3000 = vpack.c.b16 %v2986, %v2985
    %v3001 = vpack.c.b16 %v2988, %v2987
    %v3002 = vpack.c.b16 %v2990, %v2989
    %v3003 = vpack.c.b16 %v2992, %v2991
    %v3004 = vpack.c.b16 %v2994, %v2993
    %v3005 = vpack.c.b16 %v2996, %v2995
    %v3006 = vpack.c.b16 %v2998, %v2997
    %v3010 = vunpack.c.l.b16 %v2980
    %v3011 = vunpack.c.l.b16 %v2981
    %v3012 = vunpack.c.l.b16 %v2982
    %v3013 = vpack.c.b16 %v3011, %v3010
    %v3014 = vpack.c.b16 %v3012, %v3012
    %v3017 = vsel %vm259, %v2999, 0
    %v3020 = vsel %vm259, %v3000, 0
    %v3023 = vsel %vm259, %v3001, 0
    %v3026 = vsel %vm259, %v3002, 0
    %v3029 = vsel %vm259, %v3003, 0
    %v3032 = vsel %vm259, %v3004, 0
    %v3035 = vsel %vm259, %v3005, 0
    %v3038 = vsel %vm259, %v3006, 0
    %v3041 = vsel %vm284, %v3014, 0
    %3043 = vmatprep.subr.bf16.mxu0 0
    %3044 = vmatpush1.bf16.msra.mxu0 %v3013
    %3045 = vmatprep.subr.bf16.mxu0 0
    %3046 = vmatpush1.bf16.msra.mxu0 %v3041
    %3047 = vmatprep.subr.bf16.mxu0 0
    %3048 = vmatpush1.bf16.msra.mxu0 0
    %3049 = vmatprep.subr.bf16.mxu0 0
    %3050 = vmatpush1.bf16.msra.mxu0 0
    %3051 = vmatprep.subr.bf16.mxu0 0
    %3052 = vmatpush1.bf16.msra.mxu0 0
    %3053 = vmatprep.subr.bf16.mxu0 0
    %3054 = vmatpush1.bf16.msra.mxu0 0
    %3055 = vmatprep.subr.bf16.mxu0 0
    %3056 = vmatpush1.bf16.msra.mxu0 0
    %3057 = vmatprep.subr.bf16.mxu0 0
    %3058 = vmatpush1.bf16.msra.mxu0 0
    %3059 = vmatprep.subr.bf16.mxu0 0
    %3060 = vmatpush1.bf16.msra.mxu0 0
    %3061 = vmatprep.subr.bf16.mxu0 0
    %3062 = vmatpush1.bf16.msra.mxu0 0
    %3063 = vmatprep.subr.bf16.mxu0 0
    %3064 = vmatpush1.bf16.msra.mxu0 0
    %3065 = vmatprep.subr.bf16.mxu0 0
    %3066 = vmatpush1.bf16.msra.mxu0 0
    %3067 = vmatprep.subr.bf16.mxu0 0
    %3068 = vmatpush1.bf16.msra.mxu0 0
    %3069 = vmatprep.subr.bf16.mxu0 0
    %3070 = vmatpush1.bf16.msra.mxu0 0
    %3071 = vmatprep.subr.bf16.mxu0 0
    %3072 = vmatpush1.bf16.msra.mxu0 0
    %3073 = vmatprep.subr.bf16.mxu0 0
    %3074 = vmatpush1.bf16.msra.mxu0 0
    %3075 = vmatprep.mubr.bf16.mxu0 0
    %3076 = vmatmul.mubr.bf16.gmra.mrb[0].mxu0 %v3017
    %v3077 = vpop.f32.mrb[0].mxu0
    %v3078 = vadd.f32 0.0, %v3077
    %v3079 = vpop.f32.mrb[0].mxu0
    %v3080 = vpop.f32.mrb[0].mxu0
    %v3081 = vadd.f32 0.0, %v3080
    %v3082 = vpop.f32.mrb[0].mxu0
    %3083 = vmatprep.mubr.bf16.mxu0 0
    %3084 = vmatmul.mubr.bf16.gmra.mrb[0].mxu0 %v3020
    %v3085 = vpop.f32.mrb[0].mxu0
    %v3086 = vadd.f32 0.0, %v3085
    %v3087 = vpop.f32.mrb[0].mxu0
    %v3088 = vpop.f32.mrb[0].mxu0
    %v3089 = vadd.f32 0.0, %v3088
    %v3090 = vpop.f32.mrb[0].mxu0
    %3091 = vmatprep.mubr.bf16.mxu0 0
    %3092 = vmatmul.mubr.bf16.gmra.mrb[0].mxu0 %v3023
    %v3093 = vpop.f32.mrb[0].mxu0
    %v3094 = vadd.f32 0.0, %v3093
    %v3095 = vpop.f32.mrb[0].mxu0
    %v3096 = vpop.f32.mrb[0].mxu0
    %v3097 = vadd.f32 0.0, %v3096
    %v3098 = vpop.f32.mrb[0].mxu0
    %3099 = vmatprep.mubr.bf16.mxu0 0
    %3100 = vmatmul.mubr.bf16.gmra.mrb[0].mxu0 %v3026
    %v3101 = vpop.f32.mrb[0].mxu0
    %v3102 = vadd.f32 0.0, %v3101
    %v3103 = vpop.f32.mrb[0].mxu0
    %v3104 = vpop.f32.mrb[0].mxu0
    %v3105 = vadd.f32 0.0, %v3104
    %v3106 = vpop.f32.mrb[0].mxu0
    %3107 = vmatprep.mubr.bf16.mxu0 0
    %3108 = vmatmul.mubr.bf16.gmra.mrb[0].mxu0 %v3029
    %v3109 = vpop.f32.mrb[0].mxu0
    %v3110 = vadd.f32 0.0, %v3109
    %v3111 = vpop.f32.mrb[0].mxu0
    %v3112 = vpop.f32.mrb[0].mxu0
    %v3113 = vadd.f32 0.0, %v3112
    %v3114 = vpop.f32.mrb[0].mxu0
    %3115 = vmatprep.mubr.bf16.mxu0 0
    %3116 = vmatmul.mubr.bf16.gmra.mrb[0].mxu0 %v3032
    %v3117 = vpop.f32.mrb[0].mxu0
    %v3118 = vadd.f32 0.0, %v3117
    %v3119 = vpop.f32.mrb[0].mxu0
    %v3120 = vpop.f32.mrb[0].mxu0
    %v3121 = vadd.f32 0.0, %v3120
    %v3122 = vpop.f32.mrb[0].mxu0
    %3123 = vmatprep.mubr.bf16.mxu0 0
    %3124 = vmatmul.mubr.bf16.gmra.mrb[0].mxu0 %v3035
    %v3125 = vpop.f32.mrb[0].mxu0
    %v3126 = vadd.f32 0.0, %v3125
    %v3127 = vpop.f32.mrb[0].mxu0
    %v3128 = vpop.f32.mrb[0].mxu0
    %v3129 = vadd.f32 0.0, %v3128
    %v3130 = vpop.f32.mrb[0].mxu0
    %3131 = vmatprep.mubr.bf16.mxu0 0
    %3132 = vmatmul.mubr.bf16.gmra.mrb[0].mxu0 %v3038
    %v3133 = vpop.f32.mrb[0].mxu0
    %v3134 = vadd.f32 0.0, %v3133
    %v3135 = vpop.f32.mrb[0].mxu0
    %v3136 = vpop.f32.mrb[0].mxu0
    %v3137 = vadd.f32 0.0, %v3136
    %v3138 = vpop.f32.mrb[0].mxu0
    %3139 = vdwg.mxu0
    %v3140 = vadd.f32 %v2856, %v3078
    %v3141 = vadd.f32 %v2857, %v3081
    %v3142 = vadd.f32 %v2858, %v3086
    %v3143 = vadd.f32 %v2859, %v3089
    %v3144 = vadd.f32 %v2860, %v3094
    %v3145 = vadd.f32 %v2861, %v3097
    %v3146 = vadd.f32 %v2862, %v3102
    %v3147 = vadd.f32 %v2863, %v3105
    %v3148 = vadd.f32 %v2864, %v3110
    %v3149 = vadd.f32 %v2865, %v3113
    %v3150 = vadd.f32 %v2866, %v3118
    %v3151 = vadd.f32 %v2867, %v3121
    %v3152 = vadd.f32 %v2868, %v3126
    %v3153 = vadd.f32 %v2869, %v3129
    %v3154 = vadd.f32 %v2870, %v3134
    %v3155 = vadd.f32 %v2871, %v3137
    %v3156 = vld [vmem:[%s0 + $0x4] sm:$0xc]
    %v3157 = vld [vmem:[%s0 + $0x34] sm:$0xc]
    %v3162 = vrot.slane %v3156, 6
    %v3163 = vrot.slane %v3162, 4
    %v3164 = vrot.slane %v2265, 6
    %v3165 = vsel %vm1088, %v3163, %v3164
    %v3166 = vrot.slane %v3164, 4
    %v3167 = vrot.slane %v2266, 6
    %v3168 = vsel %vm1088, %v3166, %v3167
    %v3169 = vrot.slane %v3167, 4
    %v3170 = vrot.slane %v2267, 6
    %v3171 = vsel %vm1088, %v3169, %v3170
    %v3172 = vrot.slane %v3170, 4
    %v3173 = vrot.slane %v2268, 6
    %v3174 = vsel %vm1088, %v3172, %v3173
    %v3175 = vrot.slane %v3173, 4
    %v3176 = vrot.slane %v2269, 6
    %v3177 = vsel %vm1088, %v3175, %v3176
    %v3178 = vrot.slane %v3176, 4
    %v3179 = vrot.slane %v2270, 6
    %v3180 = vsel %vm1088, %v3178, %v3179
    %v3181 = vrot.slane %v3179, 4
    %v3182 = vrot.slane %v2271, 6
    %v3183 = vsel %vm1088, %v3181, %v3182
    %v3184 = vrot.slane %v3182, 4
    %v3185 = vrot.slane %v2872, 6
    %v3186 = vsel %vm1088, %v3184, %v3185
    %v3187 = vrot.slane %v3157, 6
    %v3188 = vrot.slane %v3187, 4
    %v3189 = vrot.slane %v2274, 6
    %v3190 = vsel %vm1088, %v3188, %v3189
    %v3191 = vrot.slane %v3189, 4
    %v3192 = vrot.slane %v2275, 6
    %v3193 = vsel %vm1088, %v3191, %v3192
    %v3194 = vrot.slane %v3192, 4
    %v3195 = vrot.slane %v2276, 6
    %v3196 = vsel %vm1088, %v3194, %v3195
    %v3197 = vrot.slane %v3195, 4
    %v3198 = vrot.slane %v2277, 6
    %v3199 = vsel %vm1088, %v3197, %v3198
    %v3200 = vrot.slane %v3198, 4
    %v3201 = vrot.slane %v2278, 6
    %v3202 = vsel %vm1088, %v3200, %v3201
    %v3203 = vrot.slane %v3201, 4
    %v3204 = vrot.slane %v2279, 6
    %v3205 = vsel %vm1088, %v3203, %v3204
    %v3206 = vrot.slane %v3204, 4
    %v3207 = vrot.slane %v2280, 6
    %v3208 = vsel %vm1088, %v3206, %v3207
    %v3209 = vrot.slane %v3207, 4
    %v3210 = vrot.slane %v2873, 6
    %v3211 = vsel %vm1088, %v3209, %v3210
    %v3212 = vld [vmem:[%s2 + $0x90] sm:$0xf]
    %v3213 = vld [vmem:[%s2 + $0x94] sm:$0xf]
    %v3214 = vld [vmem:[%s2 + $0x98] sm:$0xf]
    %v3215 = vunpack.c.l.b16 %v3165
    %v3216 = vunpack.c.l.b16 %v3168
    %v3217 = vunpack.c.l.b16 %v3171
    %v3218 = vunpack.c.l.b16 %v3174
    %v3219 = vunpack.c.l.b16 %v3177
    %v3220 = vunpack.c.l.b16 %v3180
    %v3221 = vunpack.c.l.b16 %v3183
    %v3222 = vunpack.c.l.b16 %v3186
    %v3223 = vunpack.c.l.b16 %v3190
    %v3224 = vunpack.c.l.b16 %v3193
    %v3225 = vunpack.c.l.b16 %v3196
    %v3226 = vunpack.c.l.b16 %v3199
    %v3227 = vunpack.c.l.b16 %v3202
    %v3228 = vunpack.c.l.b16 %v3205
    %v3229 = vunpack.c.l.b16 %v3208
    %v3230 = vunpack.c.l.b16 %v3211
    %v3231 = vpack.c.b16 %v3216, %v3215
    %v3232 = vpack.c.b16 %v3218, %v3217
    %v3233 = vpack.c.b16 %v3220, %v3219
    %v3234 = vpack.c.b16 %v3222, %v3221
    %v3235 = vpack.c.b16 %v3224, %v3223
    %v3236 = vpack.c.b16 %v3226, %v3225
    %v3237 = vpack.c.b16 %v3228, %v3227
    %v3238 = vpack.c.b16 %v3230, %v3229
    %v3242 = vunpack.c.l.b16 %v3212
    %v3243 = vunpack.c.l.b16 %v3213
    %v3244 = vunpack.c.l.b16 %v3214
    %v3245 = vpack.c.b16 %v3243, %v3242
    %v3246 = vpack.c.b16 %v3244, %v3244
    %v3249 = vsel %vm259, %v3231, 0
    %v3252 = vsel %vm259, %v3232, 0
    %v3255 = vsel %vm259, %v3233, 0
    %v3258 = vsel %vm259, %v3234, 0
    %v3261 = vsel %vm259, %v3235, 0
    %v3264 = vsel %vm259, %v3236, 0
    %v3267 = vsel %vm259, %v3237, 0
    %v3270 = vsel %vm259, %v3238, 0
    %v3273 = vsel %vm284, %v3246, 0
    %3275 = vmatprep.subr.bf16.mxu0 0
    %3276 = vmatpush1.bf16.msra.mxu0 %v3245
    %3277 = vmatprep.subr.bf16.mxu0 0
    %3278 = vmatpush1.bf16.msra.mxu0 %v3273
    %3279 = vmatprep.subr.bf16.mxu0 0
    %3280 = vmatpush1.bf16.msra.mxu0 0
    %3281 = vmatprep.subr.bf16.mxu0 0
    %3282 = vmatpush1.bf16.msra.mxu0 0
    %3283 = vmatprep.subr.bf16.mxu0 0
    %3284 = vmatpush1.bf16.msra.mxu0 0
    %3285 = vmatprep.subr.bf16.mxu0 0
    %3286 = vmatpush1.bf16.msra.mxu0 0
    %3287 = vmatprep.subr.bf16.mxu0 0
    %3288 = vmatpush1.bf16.msra.mxu0 0
    %3289 = vmatprep.subr.bf16.mxu0 0
    %3290 = vmatpush1.bf16.msra.mxu0 0
    %3291 = vmatprep.subr.bf16.mxu0 0
    %3292 = vmatpush1.bf16.msra.mxu0 0
    %3293 = vmatprep.subr.bf16.mxu0 0
    %3294 = vmatpush1.bf16.msra.mxu0 0
    %3295 = vmatprep.subr.bf16.mxu0 0
    %3296 = vmatpush1.bf16.msra.mxu0 0
    %3297 = vmatprep.subr.bf16.mxu0 0
    %3298 = vmatpush1.bf16.msra.mxu0 0
    %3299 = vmatprep.subr.bf16.mxu0 0
    %3300 = vmatpush1.bf16.msra.mxu0 0
    %3301 = vmatprep.subr.bf16.mxu0 0
    %3302 = vmatpush1.bf16.msra.mxu0 0
    %3303 = vmatprep.subr.bf16.mxu0 0
    %3304 = vmatpush1.bf16.msra.mxu0 0
    %3305 = vmatprep.subr.bf16.mxu0 0
    %3306 = vmatpush1.bf16.msra.mxu0 0
    %3307 = vmatprep.mubr.bf16.mxu0 0
    %3308 = vmatmul.mubr.bf16.gmra.mrb[0].mxu0 %v3249
    %v3309 = vpop.f32.mrb[0].mxu0
    %v3310 = vadd.f32 0.0, %v3309
    %v3311 = vpop.f32.mrb[0].mxu0
    %v3312 = vpop.f32.mrb[0].mxu0
    %v3313 = vadd.f32 0.0, %v3312
    %v3314 = vpop.f32.mrb[0].mxu0
    %3315 = vmatprep.mubr.bf16.mxu0 0
    %3316 = vmatmul.mubr.bf16.gmra.mrb[0].mxu0 %v3252
    %v3317 = vpop.f32.mrb[0].mxu0
    %v3318 = vadd.f32 0.0, %v3317
    %v3319 = vpop.f32.mrb[0].mxu0
    %v3320 = vpop.f32.mrb[0].mxu0
    %v3321 = vadd.f32 0.0, %v3320
    %v3322 = vpop.f32.mrb[0].mxu0
    %3323 = vmatprep.mubr.bf16.mxu0 0
    %3324 = vmatmul.mubr.bf16.gmra.mrb[0].mxu0 %v3255
    %v3325 = vpop.f32.mrb[0].mxu0
    %v3326 = vadd.f32 0.0, %v3325
    %v3327 = vpop.f32.mrb[0].mxu0
    %v3328 = vpop.f32.mrb[0].mxu0
    %v3329 = vadd.f32 0.0, %v3328
    %v3330 = vpop.f32.mrb[0].mxu0
    %3331 = vmatprep.mubr.bf16.mxu0 0
    %3332 = vmatmul.mubr.bf16.gmra.mrb[0].mxu0 %v3258
    %v3333 = vpop.f32.mrb[0].mxu0
    %v3334 = vadd.f32 0.0, %v3333
    %v3335 = vpop.f32.mrb[0].mxu0
    %v3336 = vpop.f32.mrb[0].mxu0
    %v3337 = vadd.f32 0.0, %v3336
    %v3338 = vpop.f32.mrb[0].mxu0
    %3339 = vmatprep.mubr.bf16.mxu0 0
    %3340 = vmatmul.mubr.bf16.gmra.mrb[0].mxu0 %v3261
    %v3341 = vpop.f32.mrb[0].mxu0
    %v3342 = vadd.f32 0.0, %v3341
    %v3343 = vpop.f32.mrb[0].mxu0
    %v3344 = vpop.f32.mrb[0].mxu0
    %v3345 = vadd.f32 0.0, %v3344
    %v3346 = vpop.f32.mrb[0].mxu0
    %3347 = vmatprep.mubr.bf16.mxu0 0
    %3348 = vmatmul.mubr.bf16.gmra.mrb[0].mxu0 %v3264
    %v3349 = vpop.f32.mrb[0].mxu0
    %v3350 = vadd.f32 0.0, %v3349
    %v3351 = vpop.f32.mrb[0].mxu0
    %v3352 = vpop.f32.mrb[0].mxu0
    %v3353 = vadd.f32 0.0, %v3352
    %v3354 = vpop.f32.mrb[0].mxu0
    %3355 = vmatprep.mubr.bf16.mxu0 0
    %3356 = vmatmul.mubr.bf16.gmra.mrb[0].mxu0 %v3267
    %v3357 = vpop.f32.mrb[0].mxu0
    %v3358 = vadd.f32 0.0, %v3357
    %v3359 = vpop.f32.mrb[0].mxu0
    %v3360 = vpop.f32.mrb[0].mxu0
    %v3361 = vadd.f32 0.0, %v3360
    %v3362 = vpop.f32.mrb[0].mxu0
    %3363 = vmatprep.mubr.bf16.mxu0 0
    %3364 = vmatmul.mubr.bf16.gmra.mrb[0].mxu0 %v3270
    %v3365 = vpop.f32.mrb[0].mxu0
    %v3366 = vadd.f32 0.0, %v3365
    %v3367 = vpop.f32.mrb[0].mxu0
    %v3368 = vpop.f32.mrb[0].mxu0
    %v3369 = vadd.f32 0.0, %v3368
    %v3370 = vpop.f32.mrb[0].mxu0
    %3371 = vdwg.mxu0
    %v3372 = vadd.f32 %v3140, %v3310
    %v3373 = vadd.f32 %v3141, %v3313
    %v3374 = vadd.f32 %v3142, %v3318
    %v3375 = vadd.f32 %v3143, %v3321
    %v3376 = vadd.f32 %v3144, %v3326
    %v3377 = vadd.f32 %v3145, %v3329
    %v3378 = vadd.f32 %v3146, %v3334
    %v3379 = vadd.f32 %v3147, %v3337
    %v3380 = vadd.f32 %v3148, %v3342
    %v3381 = vadd.f32 %v3149, %v3345
    %v3382 = vadd.f32 %v3150, %v3350
    %v3383 = vadd.f32 %v3151, %v3353
    %v3384 = vadd.f32 %v3152, %v3358
    %v3385 = vadd.f32 %v3153, %v3361
    %v3386 = vadd.f32 %v3154, %v3366
    %v3387 = vadd.f32 %v3155, %v3369
    %v3388 = vld [vmem:[%s0 + $0x24] sm:$0x7]
    %v3389 = vld [vmem:[%s0 + $0x54] sm:$0x7]
    %v3391 = vshrl.u32 %v3156, 16
    %v3393 = vrot.slane %v3391, 6
    %v3394 = vshll.u32 %v3156, 16
    %v3396 = vrot.slane %v3394, 7
    %v3397 = vor.u32 %v3393, %v3396
    %v3398 = vrot.slane %v3397, 4
    %v3399 = vrot.slane %v2296, 6
    %v3400 = vrot.slane %v2292, 7
    %v3401 = vor.u32 %v3399, %v3400
    %v3402 = vsel %vm1319, %v3398, %v3401
    %v3403 = vrot.slane %v3401, 4
    %v3404 = vrot.slane %v2306, 6
    %v3405 = vrot.slane %v2302, 7
    %v3406 = vor.u32 %v3404, %v3405
    %v3407 = vsel %vm1319, %v3403, %v3406
    %v3408 = vrot.slane %v3406, 4
    %v3409 = vrot.slane %v2316, 6
    %v3410 = vrot.slane %v2312, 7
    %v3411 = vor.u32 %v3409, %v3410
    %v3412 = vsel %vm1319, %v3408, %v3411
    %v3413 = vrot.slane %v3411, 4
    %v3414 = vrot.slane %v2326, 6
    %v3415 = vrot.slane %v2322, 7
    %v3416 = vor.u32 %v3414, %v3415
    %v3417 = vsel %vm1319, %v3413, %v3416
    %v3418 = vrot.slane %v3416, 4
    %v3419 = vrot.slane %v2336, 6
    %v3420 = vrot.slane %v2332, 7
    %v3421 = vor.u32 %v3419, %v3420
    %v3422 = vsel %vm1319, %v3418, %v3421
    %v3423 = vrot.slane %v3421, 4
    %v3424 = vrot.slane %v2346, 6
    %v3425 = vrot.slane %v2342, 7
    %v3426 = vor.u32 %v3424, %v3425
    %v3427 = vsel %vm1319, %v3423, %v3426
    %v3428 = vrot.slane %v3426, 4
    %v3429 = vrot.slane %v2356, 6
    %v3430 = vrot.slane %v2352, 7
    %v3431 = vor.u32 %v3429, %v3430
    %v3432 = vsel %vm1319, %v3428, %v3431
    %v3433 = vrot.slane %v3431, 4
    %v3435 = vshrl.u32 %v3388, 16
    %v3437 = vrot.slane %v3435, 6
    %v3438 = vshll.u32 %v3388, 16
    %v3440 = vrot.slane %v3438, 7
    %v3441 = vor.u32 %v3437, %v3440
    %v3442 = vsel %vm1319, %v3433, %v3441
    %v3444 = vshrl.u32 %v3157, 16
    %v3446 = vrot.slane %v3444, 6
    %v3447 = vshll.u32 %v3157, 16
    %v3449 = vrot.slane %v3447, 7
    %v3450 = vor.u32 %v3446, %v3449
    %v3451 = vrot.slane %v3450, 4
    %v3452 = vrot.slane %v2380, 6
    %v3453 = vrot.slane %v2376, 7
    %v3454 = vor.u32 %v3452, %v3453
    %v3455 = vsel %vm1319, %v3451, %v3454
    %v3456 = vrot.slane %v3454, 4
    %v3457 = vrot.slane %v2390, 6
    %v3458 = vrot.slane %v2386, 7
    %v3459 = vor.u32 %v3457, %v3458
    %v3460 = vsel %vm1319, %v3456, %v3459
    %v3461 = vrot.slane %v3459, 4
    %v3462 = vrot.slane %v2400, 6
    %v3463 = vrot.slane %v2396, 7
    %v3464 = vor.u32 %v3462, %v3463
    %v3465 = vsel %vm1319, %v3461, %v3464
    %v3466 = vrot.slane %v3464, 4
    %v3467 = vrot.slane %v2410, 6
    %v3468 = vrot.slane %v2406, 7
    %v3469 = vor.u32 %v3467, %v3468
    %v3470 = vsel %vm1319, %v3466, %v3469
    %v3471 = vrot.slane %v3469, 4
    %v3472 = vrot.slane %v2420, 6
    %v3473 = vrot.slane %v2416, 7
    %v3474 = vor.u32 %v3472, %v3473
    %v3475 = vsel %vm1319, %v3471, %v3474
    %v3476 = vrot.slane %v3474, 4
    %v3477 = vrot.slane %v2430, 6
    %v3478 = vrot.slane %v2426, 7
    %v3479 = vor.u32 %v3477, %v3478
    %v3480 = vsel %vm1319, %v3476, %v3479
    %v3481 = vrot.slane %v3479, 4
    %v3482 = vrot.slane %v2440, 6
    %v3483 = vrot.slane %v2436, 7
    %v3484 = vor.u32 %v3482, %v3483
    %v3485 = vsel %vm1319, %v3481, %v3484
    %v3486 = vrot.slane %v3484, 4
    %v3488 = vshrl.u32 %v3389, 16
    %v3490 = vrot.slane %v3488, 6
    %v3491 = vshll.u32 %v3389, 16
    %v3493 = vrot.slane %v3491, 7
    %v3494 = vor.u32 %v3490, %v3493
    %v3495 = vsel %vm1319, %v3486, %v3494
    %v3496 = vld [vmem:[%s2 + $0x9c] sm:$0xf]
    %v3497 = vld [vmem:[%s2 + $0xa0] sm:$0xf]
    %v3498 = vld [vmem:[%s2 + $0xa4] sm:$0xf]
    %v3499 = vunpack.c.l.b16 %v3402
    %v3500 = vunpack.c.l.b16 %v3407
    %v3501 = vunpack.c.l.b16 %v3412
    %v3502 = vunpack.c.l.b16 %v3417
    %v3503 = vunpack.c.l.b16 %v3422
    %v3504 = vunpack.c.l.b16 %v3427
    %v3505 = vunpack.c.l.b16 %v3432
    %v3506 = vunpack.c.l.b16 %v3442
    %v3507 = vunpack.c.l.b16 %v3455
    %v3508 = vunpack.c.l.b16 %v3460
    %v3509 = vunpack.c.l.b16 %v3465
    %v3510 = vunpack.c.l.b16 %v3470
    %v3511 = vunpack.c.l.b16 %v3475
    %v3512 = vunpack.c.l.b16 %v3480
    %v3513 = vunpack.c.l.b16 %v3485
    %v3514 = vunpack.c.l.b16 %v3495
    %v3515 = vpack.c.b16 %v3500, %v3499
    %v3516 = vpack.c.b16 %v3502, %v3501
    %v3517 = vpack.c.b16 %v3504, %v3503
    %v3518 = vpack.c.b16 %v3506, %v3505
    %v3519 = vpack.c.b16 %v3508, %v3507
    %v3520 = vpack.c.b16 %v3510, %v3509
    %v3521 = vpack.c.b16 %v3512, %v3511
    %v3522 = vpack.c.b16 %v3514, %v3513
    %v3526 = vunpack.c.l.b16 %v3496
    %v3527 = vunpack.c.l.b16 %v3497
    %v3528 = vunpack.c.l.b16 %v3498
    %v3529 = vpack.c.b16 %v3527, %v3526
    %v3530 = vpack.c.b16 %v3528, %v3528
    %v3533 = vsel %vm259, %v3515, 0
    %v3536 = vsel %vm259, %v3516, 0
    %v3539 = vsel %vm259, %v3517, 0
    %v3542 = vsel %vm259, %v3518, 0
    %v3545 = vsel %vm259, %v3519, 0
    %v3548 = vsel %vm259, %v3520, 0
    %v3551 = vsel %vm259, %v3521, 0
    %v3554 = vsel %vm259, %v3522, 0
    %v3557 = vsel %vm284, %v3530, 0
    %3559 = vmatprep.subr.bf16.mxu0 0
    %3560 = vmatpush1.bf16.msra.mxu0 %v3529
    %3561 = vmatprep.subr.bf16.mxu0 0
    %3562 = vmatpush1.bf16.msra.mxu0 %v3557
    %3563 = vmatprep.subr.bf16.mxu0 0
    %3564 = vmatpush1.bf16.msra.mxu0 0
    %3565 = vmatprep.subr.bf16.mxu0 0
    %3566 = vmatpush1.bf16.msra.mxu0 0
    %3567 = vmatprep.subr.bf16.mxu0 0
    %3568 = vmatpush1.bf16.msra.mxu0 0
    %3569 = vmatprep.subr.bf16.mxu0 0
    %3570 = vmatpush1.bf16.msra.mxu0 0
    %3571 = vmatprep.subr.bf16.mxu0 0
    %3572 = vmatpush1.bf16.msra.mxu0 0
    %3573 = vmatprep.subr.bf16.mxu0 0
    %3574 = vmatpush1.bf16.msra.mxu0 0
    %3575 = vmatprep.subr.bf16.mxu0 0
    %3576 = vmatpush1.bf16.msra.mxu0 0
    %3577 = vmatprep.subr.bf16.mxu0 0
    %3578 = vmatpush1.bf16.msra.mxu0 0
    %3579 = vmatprep.subr.bf16.mxu0 0
    %3580 = vmatpush1.bf16.msra.mxu0 0
    %3581 = vmatprep.subr.bf16.mxu0 0
    %3582 = vmatpush1.bf16.msra.mxu0 0
    %3583 = vmatprep.subr.bf16.mxu0 0
    %3584 = vmatpush1.bf16.msra.mxu0 0
    %3585 = vmatprep.subr.bf16.mxu0 0
    %3586 = vmatpush1.bf16.msra.mxu0 0
    %3587 = vmatprep.subr.bf16.mxu0 0
    %3588 = vmatpush1.bf16.msra.mxu0 0
    %3589 = vmatprep.subr.bf16.mxu0 0
    %3590 = vmatpush1.bf16.msra.mxu0 0
    %3591 = vmatprep.mubr.bf16.mxu0 0
    %3592 = vmatmul.mubr.bf16.gmra.mrb[0].mxu0 %v3533
    %v3593 = vpop.f32.mrb[0].mxu0
    %v3594 = vadd.f32 0.0, %v3593
    %v3595 = vpop.f32.mrb[0].mxu0
    %v3596 = vpop.f32.mrb[0].mxu0
    %v3597 = vadd.f32 0.0, %v3596
    %v3598 = vpop.f32.mrb[0].mxu0
    %3599 = vmatprep.mubr.bf16.mxu0 0
    %3600 = vmatmul.mubr.bf16.gmra.mrb[0].mxu0 %v3536
    %v3601 = vpop.f32.mrb[0].mxu0
    %v3602 = vadd.f32 0.0, %v3601
    %v3603 = vpop.f32.mrb[0].mxu0
    %v3604 = vpop.f32.mrb[0].mxu0
    %v3605 = vadd.f32 0.0, %v3604
    %v3606 = vpop.f32.mrb[0].mxu0
    %3607 = vmatprep.mubr.bf16.mxu0 0
    %3608 = vmatmul.mubr.bf16.gmra.mrb[0].mxu0 %v3539
    %v3609 = vpop.f32.mrb[0].mxu0
    %v3610 = vadd.f32 0.0, %v3609
    %v3611 = vpop.f32.mrb[0].mxu0
    %v3612 = vpop.f32.mrb[0].mxu0
    %v3613 = vadd.f32 0.0, %v3612
    %v3614 = vpop.f32.mrb[0].mxu0
    %3615 = vmatprep.mubr.bf16.mxu0 0
    %3616 = vmatmul.mubr.bf16.gmra.mrb[0].mxu0 %v3542
    %v3617 = vpop.f32.mrb[0].mxu0
    %v3618 = vadd.f32 0.0, %v3617
    %v3619 = vpop.f32.mrb[0].mxu0
    %v3620 = vpop.f32.mrb[0].mxu0
    %v3621 = vadd.f32 0.0, %v3620
    %v3622 = vpop.f32.mrb[0].mxu0
    %3623 = vmatprep.mubr.bf16.mxu0 0
    %3624 = vmatmul.mubr.bf16.gmra.mrb[0].mxu0 %v3545
    %v3625 = vpop.f32.mrb[0].mxu0
    %v3626 = vadd.f32 0.0, %v3625
    %v3627 = vpop.f32.mrb[0].mxu0
    %v3628 = vpop.f32.mrb[0].mxu0
    %v3629 = vadd.f32 0.0, %v3628
    %v3630 = vpop.f32.mrb[0].mxu0
    %3631 = vmatprep.mubr.bf16.mxu0 0
    %3632 = vmatmul.mubr.bf16.gmra.mrb[0].mxu0 %v3548
    %v3633 = vpop.f32.mrb[0].mxu0
    %v3634 = vadd.f32 0.0, %v3633
    %v3635 = vpop.f32.mrb[0].mxu0
    %v3636 = vpop.f32.mrb[0].mxu0
    %v3637 = vadd.f32 0.0, %v3636
    %v3638 = vpop.f32.mrb[0].mxu0
    %3639 = vmatprep.mubr.bf16.mxu0 0
    %3640 = vmatmul.mubr.bf16.gmra.mrb[0].mxu0 %v3551
    %v3641 = vpop.f32.mrb[0].mxu0
    %v3642 = vadd.f32 0.0, %v3641
    %v3643 = vpop.f32.mrb[0].mxu0
    %v3644 = vpop.f32.mrb[0].mxu0
    %v3645 = vadd.f32 0.0, %v3644
    %v3646 = vpop.f32.mrb[0].mxu0
    %3647 = vmatprep.mubr.bf16.mxu0 0
    %3648 = vmatmul.mubr.bf16.gmra.mrb[0].mxu0 %v3554
    %v3649 = vpop.f32.mrb[0].mxu0
    %v3650 = vadd.f32 0.0, %v3649
    %v3651 = vpop.f32.mrb[0].mxu0
    %v3652 = vpop.f32.mrb[0].mxu0
    %v3653 = vadd.f32 0.0, %v3652
    %v3654 = vpop.f32.mrb[0].mxu0
    %3655 = vdwg.mxu0
    %v3656 = vadd.f32 %v3372, %v3594
    %v3657 = vadd.f32 %v3373, %v3597
    %v3658 = vadd.f32 %v3374, %v3602
    %v3659 = vadd.f32 %v3375, %v3605
    %v3660 = vadd.f32 %v3376, %v3610
    %v3661 = vadd.f32 %v3377, %v3613
    %v3662 = vadd.f32 %v3378, %v3618
    %v3663 = vadd.f32 %v3379, %v3621
    %v3664 = vadd.f32 %v3380, %v3626
    %v3665 = vadd.f32 %v3381, %v3629
    %v3666 = vadd.f32 %v3382, %v3634
    %v3667 = vadd.f32 %v3383, %v3637
    %v3668 = vadd.f32 %v3384, %v3642
    %v3669 = vadd.f32 %v3385, %v3645
    %v3670 = vadd.f32 %v3386, %v3650
    %v3671 = vadd.f32 %v3387, %v3653
    %v3672 = vld [vmem:[%s0 + $0x4] sm:$0x8]
    %v3673 = vld [vmem:[%s0 + $0x34] sm:$0x8]
    %v3678 = vrot.slane %v3672, 7
    %v3679 = vrot.slane %v3678, 4
    %v3680 = vrot.slane %v2265, 7
    %v3681 = vsel %vm1610, %v3679, %v3680
    %v3682 = vrot.slane %v3680, 4
    %v3683 = vrot.slane %v2266, 7
    %v3684 = vsel %vm1610, %v3682, %v3683
    %v3685 = vrot.slane %v3683, 4
    %v3686 = vrot.slane %v2267, 7
    %v3687 = vsel %vm1610, %v3685, %v3686
    %v3688 = vrot.slane %v3686, 4
    %v3689 = vrot.slane %v2268, 7
    %v3690 = vsel %vm1610, %v3688, %v3689
    %v3691 = vrot.slane %v3689, 4
    %v3692 = vrot.slane %v2269, 7
    %v3693 = vsel %vm1610, %v3691, %v3692
    %v3694 = vrot.slane %v3692, 4
    %v3695 = vrot.slane %v2270, 7
    %v3696 = vsel %vm1610, %v3694, %v3695
    %v3697 = vrot.slane %v3695, 4
    %v3698 = vrot.slane %v2271, 7
    %v3699 = vsel %vm1610, %v3697, %v3698
    %v3700 = vrot.slane %v3698, 4
    %v3701 = vrot.slane %v3388, 7
    %v3702 = vsel %vm1610, %v3700, %v3701
    %v3703 = vrot.slane %v3673, 7
    %v3704 = vrot.slane %v3703, 4
    %v3705 = vrot.slane %v2274, 7
    %v3706 = vsel %vm1610, %v3704, %v3705
    %v3707 = vrot.slane %v3705, 4
    %v3708 = vrot.slane %v2275, 7
    %v3709 = vsel %vm1610, %v3707, %v3708
    %v3710 = vrot.slane %v3708, 4
    %v3711 = vrot.slane %v2276, 7
    %v3712 = vsel %vm1610, %v3710, %v3711
    %v3713 = vrot.slane %v3711, 4
    %v3714 = vrot.slane %v2277, 7
    %v3715 = vsel %vm1610, %v3713, %v3714
    %v3716 = vrot.slane %v3714, 4
    %v3717 = vrot.slane %v2278, 7
    %v3718 = vsel %vm1610, %v3716, %v3717
    %v3719 = vrot.slane %v3717, 4
    %v3720 = vrot.slane %v2279, 7
    %v3721 = vsel %vm1610, %v3719, %v3720
    %v3722 = vrot.slane %v3720, 4
    %v3723 = vrot.slane %v2280, 7
    %v3724 = vsel %vm1610, %v3722, %v3723
    %v3725 = vrot.slane %v3723, 4
    %v3726 = vrot.slane %v3389, 7
    %v3727 = vsel %vm1610, %v3725, %v3726
    %v3728 = vld [vmem:[%s2 + $0xa8] sm:$0xf]
    %v3729 = vld [vmem:[%s2 + $0xac] sm:$0xf]
    %v3730 = vld [vmem:[%s2 + $0xb0] sm:$0xf]
    %v3731 = vunpack.c.l.b16 %v3681
    %v3732 = vunpack.c.l.b16 %v3684
    %v3733 = vunpack.c.l.b16 %v3687
    %v3734 = vunpack.c.l.b16 %v3690
    %v3735 = vunpack.c.l.b16 %v3693
    %v3736 = vunpack.c.l.b16 %v3696
    %v3737 = vunpack.c.l.b16 %v3699
    %v3738 = vunpack.c.l.b16 %v3702
    %v3739 = vunpack.c.l.b16 %v3706
    %v3740 = vunpack.c.l.b16 %v3709
    %v3741 = vunpack.c.l.b16 %v3712
    %v3742 = vunpack.c.l.b16 %v3715
    %v3743 = vunpack.c.l.b16 %v3718
    %v3744 = vunpack.c.l.b16 %v3721
    %v3745 = vunpack.c.l.b16 %v3724
    %v3746 = vunpack.c.l.b16 %v3727
    %v3747 = vpack.c.b16 %v3732, %v3731
    %v3748 = vpack.c.b16 %v3734, %v3733
    %v3749 = vpack.c.b16 %v3736, %v3735
    %v3750 = vpack.c.b16 %v3738, %v3737
    %v3751 = vpack.c.b16 %v3740, %v3739
    %v3752 = vpack.c.b16 %v3742, %v3741
    %v3753 = vpack.c.b16 %v3744, %v3743
    %v3754 = vpack.c.b16 %v3746, %v3745
    %v3758 = vunpack.c.l.b16 %v3728
    %v3759 = vunpack.c.l.b16 %v3729
    %v3760 = vunpack.c.l.b16 %v3730
    %v3761 = vpack.c.b16 %v3759, %v3758
    %v3762 = vpack.c.b16 %v3760, %v3760
    %v3765 = vsel %vm259, %v3747, 0
    %v3768 = vsel %vm259, %v3748, 0
    %v3771 = vsel %vm259, %v3749, 0
    %v3774 = vsel %vm259, %v3750, 0
    %v3777 = vsel %vm259, %v3751, 0
    %v3780 = vsel %vm259, %v3752, 0
    %v3783 = vsel %vm259, %v3753, 0
    %v3786 = vsel %vm259, %v3754, 0
    %v3789 = vsel %vm284, %v3762, 0
    %3791 = vmatprep.subr.bf16.mxu0 0
    %3792 = vmatpush1.bf16.msra.mxu0 %v3761
    %3793 = vmatprep.subr.bf16.mxu0 0
    %3794 = vmatpush1.bf16.msra.mxu0 %v3789
    %3795 = vmatprep.subr.bf16.mxu0 0
    %3796 = vmatpush1.bf16.msra.mxu0 0
    %3797 = vmatprep.subr.bf16.mxu0 0
    %3798 = vmatpush1.bf16.msra.mxu0 0
    %3799 = vmatprep.subr.bf16.mxu0 0
    %3800 = vmatpush1.bf16.msra.mxu0 0
    %3801 = vmatprep.subr.bf16.mxu0 0
    %3802 = vmatpush1.bf16.msra.mxu0 0
    %3803 = vmatprep.subr.bf16.mxu0 0
    %3804 = vmatpush1.bf16.msra.mxu0 0
    %3805 = vmatprep.subr.bf16.mxu0 0
    %3806 = vmatpush1.bf16.msra.mxu0 0
    %3807 = vmatprep.subr.bf16.mxu0 0
    %3808 = vmatpush1.bf16.msra.mxu0 0
    %3809 = vmatprep.subr.bf16.mxu0 0
    %3810 = vmatpush1.bf16.msra.mxu0 0
    %3811 = vmatprep.subr.bf16.mxu0 0
    %3812 = vmatpush1.bf16.msra.mxu0 0
    %3813 = vmatprep.subr.bf16.mxu0 0
    %3814 = vmatpush1.bf16.msra.mxu0 0
    %3815 = vmatprep.subr.bf16.mxu0 0
    %3816 = vmatpush1.bf16.msra.mxu0 0
    %3817 = vmatprep.subr.bf16.mxu0 0
    %3818 = vmatpush1.bf16.msra.mxu0 0
    %3819 = vmatprep.subr.bf16.mxu0 0
    %3820 = vmatpush1.bf16.msra.mxu0 0
    %3821 = vmatprep.subr.bf16.mxu0 0
    %3822 = vmatpush1.bf16.msra.mxu0 0
    %3823 = vmatprep.mubr.bf16.mxu0 0
    %3824 = vmatmul.mubr.bf16.gmra.mrb[0].mxu0 %v3765
    %v3825 = vpop.f32.mrb[0].mxu0
    %v3826 = vadd.f32 0.0, %v3825
    %v3827 = vpop.f32.mrb[0].mxu0
    %v3828 = vpop.f32.mrb[0].mxu0
    %v3829 = vadd.f32 0.0, %v3828
    %v3830 = vpop.f32.mrb[0].mxu0
    %3831 = vmatprep.mubr.bf16.mxu0 0
    %3832 = vmatmul.mubr.bf16.gmra.mrb[0].mxu0 %v3768
    %v3833 = vpop.f32.mrb[0].mxu0
    %v3834 = vadd.f32 0.0, %v3833
    %v3835 = vpop.f32.mrb[0].mxu0
    %v3836 = vpop.f32.mrb[0].mxu0
    %v3837 = vadd.f32 0.0, %v3836
    %v3838 = vpop.f32.mrb[0].mxu0
    %3839 = vmatprep.mubr.bf16.mxu0 0
    %3840 = vmatmul.mubr.bf16.gmra.mrb[0].mxu0 %v3771
    %v3841 = vpop.f32.mrb[0].mxu0
    %v3842 = vadd.f32 0.0, %v3841
    %v3843 = vpop.f32.mrb[0].mxu0
    %v3844 = vpop.f32.mrb[0].mxu0
    %v3845 = vadd.f32 0.0, %v3844
    %v3846 = vpop.f32.mrb[0].mxu0
    %3847 = vmatprep.mubr.bf16.mxu0 0
    %3848 = vmatmul.mubr.bf16.gmra.mrb[0].mxu0 %v3774
    %v3849 = vpop.f32.mrb[0].mxu0
    %v3850 = vadd.f32 0.0, %v3849
    %v3851 = vpop.f32.mrb[0].mxu0
    %v3852 = vpop.f32.mrb[0].mxu0
    %v3853 = vadd.f32 0.0, %v3852
    %v3854 = vpop.f32.mrb[0].mxu0
    %3855 = vmatprep.mubr.bf16.mxu0 0
    %3856 = vmatmul.mubr.bf16.gmra.mrb[0].mxu0 %v3777
    %v3857 = vpop.f32.mrb[0].mxu0
    %v3858 = vadd.f32 0.0, %v3857
    %v3859 = vpop.f32.mrb[0].mxu0
    %v3860 = vpop.f32.mrb[0].mxu0
    %v3861 = vadd.f32 0.0, %v3860
    %v3862 = vpop.f32.mrb[0].mxu0
    %3863 = vmatprep.mubr.bf16.mxu0 0
    %3864 = vmatmul.mubr.bf16.gmra.mrb[0].mxu0 %v3780
    %v3865 = vpop.f32.mrb[0].mxu0
    %v3866 = vadd.f32 0.0, %v3865
    %v3867 = vpop.f32.mrb[0].mxu0
    %v3868 = vpop.f32.mrb[0].mxu0
    %v3869 = vadd.f32 0.0, %v3868
    %v3870 = vpop.f32.mrb[0].mxu0
    %3871 = vmatprep.mubr.bf16.mxu0 0
    %3872 = vmatmul.mubr.bf16.gmra.mrb[0].mxu0 %v3783
    %v3873 = vpop.f32.mrb[0].mxu0
    %v3874 = vadd.f32 0.0, %v3873
    %v3875 = vpop.f32.mrb[0].mxu0
    %v3876 = vpop.f32.mrb[0].mxu0
    %v3877 = vadd.f32 0.0, %v3876
    %v3878 = vpop.f32.mrb[0].mxu0
    %3879 = vmatprep.mubr.bf16.mxu0 0
    %3880 = vmatmul.mubr.bf16.gmra.mrb[0].mxu0 %v3786
    %v3881 = vpop.f32.mrb[0].mxu0
    %v3882 = vadd.f32 0.0, %v3881
    %v3883 = vpop.f32.mrb[0].mxu0
    %v3884 = vpop.f32.mrb[0].mxu0
    %v3885 = vadd.f32 0.0, %v3884
    %v3886 = vpop.f32.mrb[0].mxu0
    %3887 = vdwg.mxu0
    %v3888 = vadd.f32 %v3656, %v3826
    %v3889 = vadd.f32 %v3657, %v3829
    %v3890 = vadd.f32 %v3658, %v3834
    %v3891 = vadd.f32 %v3659, %v3837
    %v3892 = vadd.f32 %v3660, %v3842
    %v3893 = vadd.f32 %v3661, %v3845
    %v3894 = vadd.f32 %v3662, %v3850
    %v3895 = vadd.f32 %v3663, %v3853
    %v3896 = vadd.f32 %v3664, %v3858
    %v3897 = vadd.f32 %v3665, %v3861
    %v3898 = vadd.f32 %v3666, %v3866
    %v3899 = vadd.f32 %v3667, %v3869
    %v3900 = vadd.f32 %v3668, %v3874
    %v3901 = vadd.f32 %v3669, %v3877
    %v3902 = vadd.f32 %v3670, %v3882
    %v3903 = vadd.f32 %v3671, %v3885
    %v3904 = vld [vmem:[%s0 + $0x24] sm:$0xf]
    %v3905 = vld [vmem:[%s0 + $0x54] sm:$0xf]
    %v3907 = vshrl.u32 %v3672, 16
    %v3909 = vrot.slane %v3907, 7
    %v3910 = vrot.slane %v3909, 4
    %v3911 = vrot.slane %v2296, 7
    %v3912 = vor.u32 %v3911, %v2292
    %v3913 = vsel %vm1841, %v3910, %v3912
    %v3914 = vrot.slane %v3911, 4
    %v3915 = vrot.slane %v2306, 7
    %v3916 = vor.u32 %v3915, %v2302
    %v3917 = vsel %vm1841, %v3914, %v3916
    %v3918 = vrot.slane %v3915, 4
    %v3919 = vrot.slane %v2316, 7
    %v3920 = vor.u32 %v3919, %v2312
    %v3921 = vsel %vm1841, %v3918, %v3920
    %v3922 = vrot.slane %v3919, 4
    %v3923 = vrot.slane %v2326, 7
    %v3924 = vor.u32 %v3923, %v2322
    %v3925 = vsel %vm1841, %v3922, %v3924
    %v3926 = vrot.slane %v3923, 4
    %v3927 = vrot.slane %v2336, 7
    %v3928 = vor.u32 %v3927, %v2332
    %v3929 = vsel %vm1841, %v3926, %v3928
    %v3930 = vrot.slane %v3927, 4
    %v3931 = vrot.slane %v2346, 7
    %v3932 = vor.u32 %v3931, %v2342
    %v3933 = vsel %vm1841, %v3930, %v3932
    %v3934 = vrot.slane %v3931, 4
    %v3935 = vrot.slane %v2356, 7
    %v3936 = vor.u32 %v3935, %v2352
    %v3937 = vsel %vm1841, %v3934, %v3936
    %v3938 = vrot.slane %v3935, 4
    %v3940 = vshrl.u32 %v3904, 16
    %v3942 = vrot.slane %v3940, 7
    %v3943 = vshll.u32 %v3904, 16
    %v3945 = vor.u32 %v3942, %v3943
    %v3946 = vsel %vm1841, %v3938, %v3945
    %v3948 = vshrl.u32 %v3673, 16
    %v3950 = vrot.slane %v3948, 7
    %v3951 = vrot.slane %v3950, 4
    %v3952 = vrot.slane %v2380, 7
    %v3953 = vor.u32 %v3952, %v2376
    %v3954 = vsel %vm1841, %v3951, %v3953
    %v3955 = vrot.slane %v3952, 4
    %v3956 = vrot.slane %v2390, 7
    %v3957 = vor.u32 %v3956, %v2386
    %v3958 = vsel %vm1841, %v3955, %v3957
    %v3959 = vrot.slane %v3956, 4
    %v3960 = vrot.slane %v2400, 7
    %v3961 = vor.u32 %v3960, %v2396
    %v3962 = vsel %vm1841, %v3959, %v3961
    %v3963 = vrot.slane %v3960, 4
    %v3964 = vrot.slane %v2410, 7
    %v3965 = vor.u32 %v3964, %v2406
    %v3966 = vsel %vm1841, %v3963, %v3965
    %v3967 = vrot.slane %v3964, 4
    %v3968 = vrot.slane %v2420, 7
    %v3969 = vor.u32 %v3968, %v2416
    %v3970 = vsel %vm1841, %v3967, %v3969
    %v3971 = vrot.slane %v3968, 4
    %v3972 = vrot.slane %v2430, 7
    %v3973 = vor.u32 %v3972, %v2426
    %v3974 = vsel %vm1841, %v3971, %v3973
    %v3975 = vrot.slane %v3972, 4
    %v3976 = vrot.slane %v2440, 7
    %v3977 = vor.u32 %v3976, %v2436
    %v3978 = vsel %vm1841, %v3975, %v3977
    %v3979 = vrot.slane %v3976, 4
    %v3981 = vshrl.u32 %v3905, 16
    %v3983 = vrot.slane %v3981, 7
    %v3984 = vshll.u32 %v3905, 16
    %v3986 = vor.u32 %v3983, %v3984
    %v3987 = vsel %vm1841, %v3979, %v3986
    %v3988 = vld [vmem:[%s2 + $0xb4] sm:$0xf]
    %v3989 = vld [vmem:[%s2 + $0xb8] sm:$0xf]
    %v3990 = vld [vmem:[%s2 + $0xbc] sm:$0xf]
    %v3991 = vunpack.c.l.b16 %v3913
    %v3992 = vunpack.c.l.b16 %v3917
    %v3993 = vunpack.c.l.b16 %v3921
    %v3994 = vunpack.c.l.b16 %v3925
    %v3995 = vunpack.c.l.b16 %v3929
    %v3996 = vunpack.c.l.b16 %v3933
    %v3997 = vunpack.c.l.b16 %v3937
    %v3998 = vunpack.c.l.b16 %v3946
    %v3999 = vunpack.c.l.b16 %v3954
    %v4000 = vunpack.c.l.b16 %v3958
    %v4001 = vunpack.c.l.b16 %v3962
    %v4002 = vunpack.c.l.b16 %v3966
    %v4003 = vunpack.c.l.b16 %v3970
    %v4004 = vunpack.c.l.b16 %v3974
    %v4005 = vunpack.c.l.b16 %v3978
    %v4006 = vunpack.c.l.b16 %v3987
    %v4007 = vpack.c.b16 %v3992, %v3991
    %v4008 = vpack.c.b16 %v3994, %v3993
    %v4009 = vpack.c.b16 %v3996, %v3995
    %v4010 = vpack.c.b16 %v3998, %v3997
    %v4011 = vpack.c.b16 %v4000, %v3999
    %v4012 = vpack.c.b16 %v4002, %v4001
    %v4013 = vpack.c.b16 %v4004, %v4003
    %v4014 = vpack.c.b16 %v4006, %v4005
    %v4018 = vunpack.c.l.b16 %v3988
    %v4019 = vunpack.c.l.b16 %v3989
    %v4020 = vunpack.c.l.b16 %v3990
    %v4021 = vpack.c.b16 %v4019, %v4018
    %v4022 = vpack.c.b16 %v4020, %v4020
    %v4025 = vsel %vm259, %v4007, 0
    %v4028 = vsel %vm259, %v4008, 0
    %v4031 = vsel %vm259, %v4009, 0
    %v4034 = vsel %vm259, %v4010, 0
    %v4037 = vsel %vm259, %v4011, 0
    %v4040 = vsel %vm259, %v4012, 0
    %v4043 = vsel %vm259, %v4013, 0
    %v4046 = vsel %vm259, %v4014, 0
    %v4049 = vsel %vm284, %v4022, 0
    %4051 = vmatprep.subr.bf16.mxu0 0
    %4052 = vmatpush1.bf16.msra.mxu0 %v4021
    %4053 = vmatprep.subr.bf16.mxu0 0
    %4054 = vmatpush1.bf16.msra.mxu0 %v4049
    %4055 = vmatprep.subr.bf16.mxu0 0
    %4056 = vmatpush1.bf16.msra.mxu0 0
    %4057 = vmatprep.subr.bf16.mxu0 0
    %4058 = vmatpush1.bf16.msra.mxu0 0
    %4059 = vmatprep.subr.bf16.mxu0 0
    %4060 = vmatpush1.bf16.msra.mxu0 0
    %4061 = vmatprep.subr.bf16.mxu0 0
    %4062 = vmatpush1.bf16.msra.mxu0 0
    %4063 = vmatprep.subr.bf16.mxu0 0
    %4064 = vmatpush1.bf16.msra.mxu0 0
    %4065 = vmatprep.subr.bf16.mxu0 0
    %4066 = vmatpush1.bf16.msra.mxu0 0
    %4067 = vmatprep.subr.bf16.mxu0 0
    %4068 = vmatpush1.bf16.msra.mxu0 0
    %4069 = vmatprep.subr.bf16.mxu0 0
    %4070 = vmatpush1.bf16.msra.mxu0 0
    %4071 = vmatprep.subr.bf16.mxu0 0
    %4072 = vmatpush1.bf16.msra.mxu0 0
    %4073 = vmatprep.subr.bf16.mxu0 0
    %4074 = vmatpush1.bf16.msra.mxu0 0
    %4075 = vmatprep.subr.bf16.mxu0 0
    %4076 = vmatpush1.bf16.msra.mxu0 0
    %4077 = vmatprep.subr.bf16.mxu0 0
    %4078 = vmatpush1.bf16.msra.mxu0 0
    %4079 = vmatprep.subr.bf16.mxu0 0
    %4080 = vmatpush1.bf16.msra.mxu0 0
    %4081 = vmatprep.subr.bf16.mxu0 0
    %4082 = vmatpush1.bf16.msra.mxu0 0
    %4083 = vmatprep.mubr.bf16.mxu0 0
    %4084 = vmatmul.mubr.bf16.gmra.mrb[0].mxu0 %v4025
    %v4085 = vpop.f32.mrb[0].mxu0
    %v4086 = vadd.f32 0.0, %v4085
    %v4087 = vpop.f32.mrb[0].mxu0
    %v4088 = vpop.f32.mrb[0].mxu0
    %v4089 = vadd.f32 0.0, %v4088
    %v4090 = vpop.f32.mrb[0].mxu0
    %4091 = vmatprep.mubr.bf16.mxu0 0
    %4092 = vmatmul.mubr.bf16.gmra.mrb[0].mxu0 %v4028
    %v4093 = vpop.f32.mrb[0].mxu0
    %v4094 = vadd.f32 0.0, %v4093
    %v4095 = vpop.f32.mrb[0].mxu0
    %v4096 = vpop.f32.mrb[0].mxu0
    %v4097 = vadd.f32 0.0, %v4096
    %v4098 = vpop.f32.mrb[0].mxu0
    %4099 = vmatprep.mubr.bf16.mxu0 0
    %4100 = vmatmul.mubr.bf16.gmra.mrb[0].mxu0 %v4031
    %v4101 = vpop.f32.mrb[0].mxu0
    %v4102 = vadd.f32 0.0, %v4101
    %v4103 = vpop.f32.mrb[0].mxu0
    %v4104 = vpop.f32.mrb[0].mxu0
    %v4105 = vadd.f32 0.0, %v4104
    %v4106 = vpop.f32.mrb[0].mxu0
    %4107 = vmatprep.mubr.bf16.mxu0 0
    %4108 = vmatmul.mubr.bf16.gmra.mrb[0].mxu0 %v4034
    %v4109 = vpop.f32.mrb[0].mxu0
    %v4110 = vadd.f32 0.0, %v4109
    %v4111 = vpop.f32.mrb[0].mxu0
    %v4112 = vpop.f32.mrb[0].mxu0
    %v4113 = vadd.f32 0.0, %v4112
    %v4114 = vpop.f32.mrb[0].mxu0
    %4115 = vmatprep.mubr.bf16.mxu0 0
    %4116 = vmatmul.mubr.bf16.gmra.mrb[0].mxu0 %v4037
    %v4117 = vpop.f32.mrb[0].mxu0
    %v4118 = vadd.f32 0.0, %v4117
    %v4119 = vpop.f32.mrb[0].mxu0
    %v4120 = vpop.f32.mrb[0].mxu0
    %v4121 = vadd.f32 0.0, %v4120
    %v4122 = vpop.f32.mrb[0].mxu0
    %4123 = vmatprep.mubr.bf16.mxu0 0
    %4124 = vmatmul.mubr.bf16.gmra.mrb[0].mxu0 %v4040
    %v4125 = vpop.f32.mrb[0].mxu0
    %v4126 = vadd.f32 0.0, %v4125
    %v4127 = vpop.f32.mrb[0].mxu0
    %v4128 = vpop.f32.mrb[0].mxu0
    %v4129 = vadd.f32 0.0, %v4128
    %v4130 = vpop.f32.mrb[0].mxu0
    %4131 = vmatprep.mubr.bf16.mxu0 0
    %4132 = vmatmul.mubr.bf16.gmra.mrb[0].mxu0 %v4043
    %v4133 = vpop.f32.mrb[0].mxu0
    %v4134 = vadd.f32 0.0, %v4133
    %v4135 = vpop.f32.mrb[0].mxu0
    %v4136 = vpop.f32.mrb[0].mxu0
    %v4137 = vadd.f32 0.0, %v4136
    %v4138 = vpop.f32.mrb[0].mxu0
    %4139 = vmatprep.mubr.bf16.mxu0 0
    %4140 = vmatmul.mubr.bf16.gmra.mrb[0].mxu0 %v4046
    %v4141 = vpop.f32.mrb[0].mxu0
    %v4142 = vadd.f32 0.0, %v4141
    %v4143 = vpop.f32.mrb[0].mxu0
    %v4144 = vpop.f32.mrb[0].mxu0
    %v4145 = vadd.f32 0.0, %v4144
    %v4146 = vpop.f32.mrb[0].mxu0
    %4147 = vdwg.mxu0
    %v4148 = vadd.f32 %v3888, %v4086
    %v4149 = vadd.f32 %v3889, %v4089
    %v4150 = vadd.f32 %v3890, %v4094
    %v4151 = vadd.f32 %v3891, %v4097
    %v4152 = vadd.f32 %v3892, %v4102
    %v4153 = vadd.f32 %v3893, %v4105
    %v4154 = vadd.f32 %v3894, %v4110
    %v4155 = vadd.f32 %v3895, %v4113
    %v4156 = vadd.f32 %v3896, %v4118
    %v4157 = vadd.f32 %v3897, %v4121
    %v4158 = vadd.f32 %v3898, %v4126
    %v4159 = vadd.f32 %v3899, %v4129
    %v4160 = vadd.f32 %v3900, %v4134
    %v4161 = vadd.f32 %v3901, %v4137
    %v4162 = vadd.f32 %v3902, %v4142
    %v4163 = vadd.f32 %v3903, %v4145
    %v4164 = vld [vmem:[%s2 + $0xc0] sm:$0xf]
    %v4165 = vld [vmem:[%s2 + $0xc4] sm:$0xf]
    %v4166 = vld [vmem:[%s2 + $0xc8] sm:$0xf]
    %v4169 = vunpack.c.l.b16 %v2265
    %v4170 = vunpack.c.l.b16 %v2266
    %v4171 = vunpack.c.l.b16 %v2267
    %v4172 = vunpack.c.l.b16 %v2268
    %v4173 = vunpack.c.l.b16 %v2269
    %v4174 = vunpack.c.l.b16 %v2270
    %v4175 = vunpack.c.l.b16 %v2271
    %v4176 = vunpack.c.l.b16 %v3904
    %v4177 = vunpack.c.l.b16 %v2274
    %v4178 = vunpack.c.l.b16 %v2275
    %v4179 = vunpack.c.l.b16 %v2276
    %v4180 = vunpack.c.l.b16 %v2277
    %v4181 = vunpack.c.l.b16 %v2278
    %v4182 = vunpack.c.l.b16 %v2279
    %v4183 = vunpack.c.l.b16 %v2280
    %v4184 = vunpack.c.l.b16 %v3905
    %v4185 = vpack.c.b16 %v4170, %v4169
    %v4186 = vpack.c.b16 %v4172, %v4171
    %v4187 = vpack.c.b16 %v4174, %v4173
    %v4188 = vpack.c.b16 %v4176, %v4175
    %v4189 = vpack.c.b16 %v4178, %v4177
    %v4190 = vpack.c.b16 %v4180, %v4179
    %v4191 = vpack.c.b16 %v4182, %v4181
    %v4192 = vpack.c.b16 %v4184, %v4183
    %v4196 = vunpack.c.l.b16 %v4164
    %v4197 = vunpack.c.l.b16 %v4165
    %v4198 = vunpack.c.l.b16 %v4166
    %v4199 = vpack.c.b16 %v4197, %v4196
    %v4200 = vpack.c.b16 %v4198, %v4198
    %v4203 = vsel %vm259, %v4185, 0
    %v4206 = vsel %vm259, %v4186, 0
    %v4209 = vsel %vm259, %v4187, 0
    %v4212 = vsel %vm259, %v4188, 0
    %v4215 = vsel %vm259, %v4189, 0
    %v4218 = vsel %vm259, %v4190, 0
    %v4221 = vsel %vm259, %v4191, 0
    %v4224 = vsel %vm259, %v4192, 0
    %v4227 = vsel %vm284, %v4200, 0
    %4229 = vmatprep.subr.bf16.mxu0 0
    %4230 = vmatpush1.bf16.msra.mxu0 %v4199
    %4231 = vmatprep.subr.bf16.mxu0 0
    %4232 = vmatpush1.bf16.msra.mxu0 %v4227
    %4233 = vmatprep.subr.bf16.mxu0 0
    %4234 = vmatpush1.bf16.msra.mxu0 0
    %4235 = vmatprep.subr.bf16.mxu0 0
    %4236 = vmatpush1.bf16.msra.mxu0 0
    %4237 = vmatprep.subr.bf16.mxu0 0
    %4238 = vmatpush1.bf16.msra.mxu0 0
    %4239 = vmatprep.subr.bf16.mxu0 0
    %4240 = vmatpush1.bf16.msra.mxu0 0
    %4241 = vmatprep.subr.bf16.mxu0 0
    %4242 = vmatpush1.bf16.msra.mxu0 0
    %4243 = vmatprep.subr.bf16.mxu0 0
    %4244 = vmatpush1.bf16.msra.mxu0 0
    %4245 = vmatprep.subr.bf16.mxu0 0
    %4246 = vmatpush1.bf16.msra.mxu0 0
    %4247 = vmatprep.subr.bf16.mxu0 0
    %4248 = vmatpush1.bf16.msra.mxu0 0
    %4249 = vmatprep.subr.bf16.mxu0 0
    %4250 = vmatpush1.bf16.msra.mxu0 0
    %4251 = vmatprep.subr.bf16.mxu0 0
    %4252 = vmatpush1.bf16.msra.mxu0 0
    %4253 = vmatprep.subr.bf16.mxu0 0
    %4254 = vmatpush1.bf16.msra.mxu0 0
    %4255 = vmatprep.subr.bf16.mxu0 0
    %4256 = vmatpush1.bf16.msra.mxu0 0
    %4257 = vmatprep.subr.bf16.mxu0 0
    %4258 = vmatpush1.bf16.msra.mxu0 0
    %4259 = vmatprep.subr.bf16.mxu0 0
    %4260 = vmatpush1.bf16.msra.mxu0 0
    %4261 = vmatprep.mubr.bf16.mxu0 0
    %4262 = vmatmul.mubr.bf16.gmra.mrb[0].mxu0 %v4203
    %v4263 = vpop.f32.mrb[0].mxu0
    %v4264 = vadd.f32 0.0, %v4263
    %v4265 = vpop.f32.mrb[0].mxu0
    %v4266 = vpop.f32.mrb[0].mxu0
    %v4267 = vadd.f32 0.0, %v4266
    %v4268 = vpop.f32.mrb[0].mxu0
    %4269 = vmatprep.mubr.bf16.mxu0 0
    %4270 = vmatmul.mubr.bf16.gmra.mrb[0].mxu0 %v4206
    %v4271 = vpop.f32.mrb[0].mxu0
    %v4272 = vadd.f32 0.0, %v4271
    %v4273 = vpop.f32.mrb[0].mxu0
    %v4274 = vpop.f32.mrb[0].mxu0
    %v4275 = vadd.f32 0.0, %v4274
    %v4276 = vpop.f32.mrb[0].mxu0
    %4277 = vmatprep.mubr.bf16.mxu0 0
    %4278 = vmatmul.mubr.bf16.gmra.mrb[0].mxu0 %v4209
    %v4279 = vpop.f32.mrb[0].mxu0
    %v4280 = vadd.f32 0.0, %v4279
    %v4281 = vpop.f32.mrb[0].mxu0
    %v4282 = vpop.f32.mrb[0].mxu0
    %v4283 = vadd.f32 0.0, %v4282
    %v4284 = vpop.f32.mrb[0].mxu0
    %4285 = vmatprep.mubr.bf16.mxu0 0
    %4286 = vmatmul.mubr.bf16.gmra.mrb[0].mxu0 %v4212
    %v4287 = vpop.f32.mrb[0].mxu0
    %v4288 = vadd.f32 0.0, %v4287
    %v4289 = vpop.f32.mrb[0].mxu0
    %v4290 = vpop.f32.mrb[0].mxu0
    %v4291 = vadd.f32 0.0, %v4290
    %v4292 = vpop.f32.mrb[0].mxu0
    %4293 = vmatprep.mubr.bf16.mxu0 0
    %4294 = vmatmul.mubr.bf16.gmra.mrb[0].mxu0 %v4215
    %v4295 = vpop.f32.mrb[0].mxu0
    %v4296 = vadd.f32 0.0, %v4295
    %v4297 = vpop.f32.mrb[0].mxu0
    %v4298 = vpop.f32.mrb[0].mxu0
    %v4299 = vadd.f32 0.0, %v4298
    %v4300 = vpop.f32.mrb[0].mxu0
    %4301 = vmatprep.mubr.bf16.mxu0 0
    %4302 = vmatmul.mubr.bf16.gmra.mrb[0].mxu0 %v4218
    %v4303 = vpop.f32.mrb[0].mxu0
    %v4304 = vadd.f32 0.0, %v4303
    %v4305 = vpop.f32.mrb[0].mxu0
    %v4306 = vpop.f32.mrb[0].mxu0
    %v4307 = vadd.f32 0.0, %v4306
    %v4308 = vpop.f32.mrb[0].mxu0
    %4309 = vmatprep.mubr.bf16.mxu0 0
    %4310 = vmatmul.mubr.bf16.gmra.mrb[0].mxu0 %v4221
    %v4311 = vpop.f32.mrb[0].mxu0
    %v4312 = vadd.f32 0.0, %v4311
    %v4313 = vpop.f32.mrb[0].mxu0
    %v4314 = vpop.f32.mrb[0].mxu0
    %v4315 = vadd.f32 0.0, %v4314
    %v4316 = vpop.f32.mrb[0].mxu0
    %4317 = vmatprep.mubr.bf16.mxu0 0
    %4318 = vmatmul.mubr.bf16.gmra.mrb[0].mxu0 %v4224
    %v4319 = vpop.f32.mrb[0].mxu0
    %v4320 = vadd.f32 0.0, %v4319
    %v4321 = vpop.f32.mrb[0].mxu0
    %v4322 = vpop.f32.mrb[0].mxu0
    %v4323 = vadd.f32 0.0, %v4322
    %v4324 = vpop.f32.mrb[0].mxu0
    %4325 = vdwg.mxu0
    %v4326 = vadd.f32 %v4148, %v4264
    %v4327 = vadd.f32 %v4149, %v4267
    %v4328 = vadd.f32 %v4150, %v4272
    %v4329 = vadd.f32 %v4151, %v4275
    %v4330 = vadd.f32 %v4152, %v4280
    %v4331 = vadd.f32 %v4153, %v4283
    %v4332 = vadd.f32 %v4154, %v4288
    %v4333 = vadd.f32 %v4155, %v4291
    %v4334 = vadd.f32 %v4156, %v4296
    %v4335 = vadd.f32 %v4157, %v4299
    %v4336 = vadd.f32 %v4158, %v4304
    %v4337 = vadd.f32 %v4159, %v4307
    %v4338 = vadd.f32 %v4160, %v4312
    %v4339 = vadd.f32 %v4161, %v4315
    %v4340 = vadd.f32 %v4162, %v4320
    %v4341 = vadd.f32 %v4163, %v4323
    %v4342 = vld [vmem:[%s0 + $0x8] sm:$0xf]
    %v4343 = vld [vmem:[%s0 + $0xc] sm:$0xf]
    %v4344 = vld [vmem:[%s0 + $0x10] sm:$0xf]
    %v4345 = vld [vmem:[%s0 + $0x14] sm:$0xf]
    %v4346 = vld [vmem:[%s0 + $0x18] sm:$0xf]
    %v4347 = vld [vmem:[%s0 + $0x1c] sm:$0xf]
    %v4348 = vld [vmem:[%s0 + $0x20] sm:$0xf]
    %v4349 = vld [vmem:[%s0 + $0x24] sm:$0xf]
    %v4350 = vld [vmem:[%s0 + $0x28] sm:$0x1]
    %v4351 = vld [vmem:[%s0 + $0x38] sm:$0xf]
    %v4352 = vld [vmem:[%s0 + $0x3c] sm:$0xf]
    %v4353 = vld [vmem:[%s0 + $0x40] sm:$0xf]
    %v4354 = vld [vmem:[%s0 + $0x44] sm:$0xf]
    %v4355 = vld [vmem:[%s0 + $0x48] sm:$0xf]
    %v4356 = vld [vmem:[%s0 + $0x4c] sm:$0xf]
    %v4357 = vld [vmem:[%s0 + $0x50] sm:$0xf]
    %v4358 = vld [vmem:[%s0 + $0x54] sm:$0xf]
    %v4359 = vld [vmem:[%s0 + $0x58] sm:$0x1]
    %v4361 = vshrl.u32 %v4342, 16
    %v4363 = vrot.slane %v4361, 4
    %v4364 = vshll.u32 %v4342, 16
    %v4366 = vrot.slane %v4364, 5
    %v4367 = vor.u32 %v4363, %v4366
    %v4368 = vrot.slane %v4367, 4
    %v4370 = vshll.u32 %v4343, 16
    %v4372 = vrot.slane %v4370, 5
    %v4373 = vsel %vm54, %v4368, %v4372
    %v4374 = vshrl.u32 %v4343, 16
    %v4376 = vrot.slane %v4374, 4
    %v4377 = vor.u32 %v4376, %v4372
    %v4378 = vrot.slane %v4377, 4
    %v4380 = vshll.u32 %v4344, 16
    %v4382 = vrot.slane %v4380, 5
    %v4383 = vsel %vm54, %v4378, %v4382
    %v4384 = vshrl.u32 %v4344, 16
    %v4386 = vrot.slane %v4384, 4
    %v4387 = vor.u32 %v4386, %v4382
    %v4388 = vrot.slane %v4387, 4
    %v4390 = vshll.u32 %v4345, 16
    %v4392 = vrot.slane %v4390, 5
    %v4393 = vsel %vm54, %v4388, %v4392
    %v4394 = vshrl.u32 %v4345, 16
    %v4396 = vrot.slane %v4394, 4
    %v4397 = vor.u32 %v4396, %v4392
    %v4398 = vrot.slane %v4397, 4
    %v4400 = vshll.u32 %v4346, 16
    %v4402 = vrot.slane %v4400, 5
    %v4403 = vsel %vm54, %v4398, %v4402
    %v4404 = vshrl.u32 %v4346, 16
    %v4406 = vrot.slane %v4404, 4
    %v4407 = vor.u32 %v4406, %v4402
    %v4408 = vrot.slane %v4407, 4
    %v4410 = vshll.u32 %v4347, 16
    %v4412 = vrot.slane %v4410, 5
    %v4413 = vsel %vm54, %v4408, %v4412
    %v4414 = vshrl.u32 %v4347, 16
    %v4416 = vrot.slane %v4414, 4
    %v4417 = vor.u32 %v4416, %v4412
    %v4418 = vrot.slane %v4417, 4
    %v4420 = vshll.u32 %v4348, 16
    %v4422 = vrot.slane %v4420, 5
    %v4423 = vsel %vm54, %v4418, %v4422
    %v4424 = vshrl.u32 %v4348, 16
    %v4426 = vrot.slane %v4424, 4
    %v4427 = vor.u32 %v4426, %v4422
    %v4428 = vrot.slane %v4427, 4
    %v4430 = vshll.u32 %v4349, 16
    %v4432 = vrot.slane %v4430, 5
    %v4433 = vsel %vm54, %v4428, %v4432
    %v4434 = vshrl.u32 %v4349, 16
    %v4436 = vrot.slane %v4434, 4
    %v4437 = vor.u32 %v4436, %v4432
    %v4438 = vrot.slane %v4437, 4
    %v4440 = vshll.u32 %v4350, 16
    %v4442 = vrot.slane %v4440, 5
    %v4443 = vsel %vm54, %v4438, %v4442
    %v4445 = vshrl.u32 %v4351, 16
    %v4447 = vrot.slane %v4445, 4
    %v4448 = vshll.u32 %v4351, 16
    %v4450 = vrot.slane %v4448, 5
    %v4451 = vor.u32 %v4447, %v4450
    %v4452 = vrot.slane %v4451, 4
    %v4454 = vshll.u32 %v4352, 16
    %v4456 = vrot.slane %v4454, 5
    %v4457 = vsel %vm54, %v4452, %v4456
    %v4458 = vshrl.u32 %v4352, 16
    %v4460 = vrot.slane %v4458, 4
    %v4461 = vor.u32 %v4460, %v4456
    %v4462 = vrot.slane %v4461, 4
    %v4464 = vshll.u32 %v4353, 16
    %v4466 = vrot.slane %v4464, 5
    %v4467 = vsel %vm54, %v4462, %v4466
    %v4468 = vshrl.u32 %v4353, 16
    %v4470 = vrot.slane %v4468, 4
    %v4471 = vor.u32 %v4470, %v4466
    %v4472 = vrot.slane %v4471, 4
    %v4474 = vshll.u32 %v4354, 16
    %v4476 = vrot.slane %v4474, 5
    %v4477 = vsel %vm54, %v4472, %v4476
    %v4478 = vshrl.u32 %v4354, 16
    %v4480 = vrot.slane %v4478, 4
    %v4481 = vor.u32 %v4480, %v4476
    %v4482 = vrot.slane %v4481, 4
    %v4484 = vshll.u32 %v4355, 16
    %v4486 = vrot.slane %v4484, 5
    %v4487 = vsel %vm54, %v4482, %v4486
    %v4488 = vshrl.u32 %v4355, 16
    %v4490 = vrot.slane %v4488, 4
    %v4491 = vor.u32 %v4490, %v4486
    %v4492 = vrot.slane %v4491, 4
    %v4494 = vshll.u32 %v4356, 16
    %v4496 = vrot.slane %v4494, 5
    %v4497 = vsel %vm54, %v4492, %v4496
    %v4498 = vshrl.u32 %v4356, 16
    %v4500 = vrot.slane %v4498, 4
    %v4501 = vor.u32 %v4500, %v4496
    %v4502 = vrot.slane %v4501, 4
    %v4504 = vshll.u32 %v4357, 16
    %v4506 = vrot.slane %v4504, 5
    %v4507 = vsel %vm54, %v4502, %v4506
    %v4508 = vshrl.u32 %v4357, 16
    %v4510 = vrot.slane %v4508, 4
    %v4511 = vor.u32 %v4510, %v4506
    %v4512 = vrot.slane %v4511, 4
    %v4514 = vshll.u32 %v4358, 16
    %v4516 = vrot.slane %v4514, 5
    %v4517 = vsel %vm54, %v4512, %v4516
    %v4518 = vshrl.u32 %v4358, 16
    %v4520 = vrot.slane %v4518, 4
    %v4521 = vor.u32 %v4520, %v4516
    %v4522 = vrot.slane %v4521, 4
    %v4524 = vshll.u32 %v4359, 16
    %v4526 = vrot.slane %v4524, 5
    %v4527 = vsel %vm54, %v4522, %v4526
    %v4528 = vld [vmem:[%s2 + $0xcc] sm:$0xf]
    %v4529 = vld [vmem:[%s2 + $0xd0] sm:$0xf]
    %v4530 = vld [vmem:[%s2 + $0xd4] sm:$0xf]
    %v4531 = vunpack.c.l.b16 %v4373
    %v4532 = vunpack.c.l.b16 %v4383
    %v4533 = vunpack.c.l.b16 %v4393
    %v4534 = vunpack.c.l.b16 %v4403
    %v4535 = vunpack.c.l.b16 %v4413
    %v4536 = vunpack.c.l.b16 %v4423
    %v4537 = vunpack.c.l.b16 %v4433
    %v4538 = vunpack.c.l.b16 %v4443
    %v4539 = vunpack.c.l.b16 %v4457
    %v4540 = vunpack.c.l.b16 %v4467
    %v4541 = vunpack.c.l.b16 %v4477
    %v4542 = vunpack.c.l.b16 %v4487
    %v4543 = vunpack.c.l.b16 %v4497
    %v4544 = vunpack.c.l.b16 %v4507
    %v4545 = vunpack.c.l.b16 %v4517
    %v4546 = vunpack.c.l.b16 %v4527
    %v4547 = vpack.c.b16 %v4532, %v4531
    %v4548 = vpack.c.b16 %v4534, %v4533
    %v4549 = vpack.c.b16 %v4536, %v4535
    %v4550 = vpack.c.b16 %v4538, %v4537
    %v4551 = vpack.c.b16 %v4540, %v4539
    %v4552 = vpack.c.b16 %v4542, %v4541
    %v4553 = vpack.c.b16 %v4544, %v4543
    %v4554 = vpack.c.b16 %v4546, %v4545
    %v4558 = vunpack.c.l.b16 %v4528
    %v4559 = vunpack.c.l.b16 %v4529
    %v4560 = vunpack.c.l.b16 %v4530
    %v4561 = vpack.c.b16 %v4559, %v4558
    %v4562 = vpack.c.b16 %v4560, %v4560
    %v4565 = vsel %vm259, %v4547, 0
    %v4568 = vsel %vm259, %v4548, 0
    %v4571 = vsel %vm259, %v4549, 0
    %v4574 = vsel %vm259, %v4550, 0
    %v4577 = vsel %vm259, %v4551, 0
    %v4580 = vsel %vm259, %v4552, 0
    %v4583 = vsel %vm259, %v4553, 0
    %v4586 = vsel %vm259, %v4554, 0
    %v4589 = vsel %vm284, %v4562, 0
    %4591 = vmatprep.subr.bf16.mxu0 0
    %4592 = vmatpush1.bf16.msra.mxu0 %v4561
    %4593 = vmatprep.subr.bf16.mxu0 0
    %4594 = vmatpush1.bf16.msra.mxu0 %v4589
    %4595 = vmatprep.subr.bf16.mxu0 0
    %4596 = vmatpush1.bf16.msra.mxu0 0
    %4597 = vmatprep.subr.bf16.mxu0 0
    %4598 = vmatpush1.bf16.msra.mxu0 0
    %4599 = vmatprep.subr.bf16.mxu0 0
    %4600 = vmatpush1.bf16.msra.mxu0 0
    %4601 = vmatprep.subr.bf16.mxu0 0
    %4602 = vmatpush1.bf16.msra.mxu0 0
    %4603 = vmatprep.subr.bf16.mxu0 0
    %4604 = vmatpush1.bf16.msra.mxu0 0
    %4605 = vmatprep.subr.bf16.mxu0 0
    %4606 = vmatpush1.bf16.msra.mxu0 0
    %4607 = vmatprep.subr.bf16.mxu0 0
    %4608 = vmatpush1.bf16.msra.mxu0 0
    %4609 = vmatprep.subr.bf16.mxu0 0
    %4610 = vmatpush1.bf16.msra.mxu0 0
    %4611 = vmatprep.subr.bf16.mxu0 0
    %4612 = vmatpush1.bf16.msra.mxu0 0
    %4613 = vmatprep.subr.bf16.mxu0 0
    %4614 = vmatpush1.bf16.msra.mxu0 0
    %4615 = vmatprep.subr.bf16.mxu0 0
    %4616 = vmatpush1.bf16.msra.mxu0 0
    %4617 = vmatprep.subr.bf16.mxu0 0
    %4618 = vmatpush1.bf16.msra.mxu0 0
    %4619 = vmatprep.subr.bf16.mxu0 0
    %4620 = vmatpush1.bf16.msra.mxu0 0
    %4621 = vmatprep.subr.bf16.mxu0 0
    %4622 = vmatpush1.bf16.msra.mxu0 0
    %4623 = vmatprep.mubr.bf16.mxu0 0
    %4624 = vmatmul.mubr.bf16.gmra.mrb[0].mxu0 %v4565
    %v4625 = vpop.f32.mrb[0].mxu0
    %v4626 = vadd.f32 0.0, %v4625
    %v4627 = vpop.f32.mrb[0].mxu0
    %v4628 = vpop.f32.mrb[0].mxu0
    %v4629 = vadd.f32 0.0, %v4628
    %v4630 = vpop.f32.mrb[0].mxu0
    %4631 = vmatprep.mubr.bf16.mxu0 0
    %4632 = vmatmul.mubr.bf16.gmra.mrb[0].mxu0 %v4568
    %v4633 = vpop.f32.mrb[0].mxu0
    %v4634 = vadd.f32 0.0, %v4633
    %v4635 = vpop.f32.mrb[0].mxu0
    %v4636 = vpop.f32.mrb[0].mxu0
    %v4637 = vadd.f32 0.0, %v4636
    %v4638 = vpop.f32.mrb[0].mxu0
    %4639 = vmatprep.mubr.bf16.mxu0 0
    %4640 = vmatmul.mubr.bf16.gmra.mrb[0].mxu0 %v4571
    %v4641 = vpop.f32.mrb[0].mxu0
    %v4642 = vadd.f32 0.0, %v4641
    %v4643 = vpop.f32.mrb[0].mxu0
    %v4644 = vpop.f32.mrb[0].mxu0
    %v4645 = vadd.f32 0.0, %v4644
    %v4646 = vpop.f32.mrb[0].mxu0
    %4647 = vmatprep.mubr.bf16.mxu0 0
    %4648 = vmatmul.mubr.bf16.gmra.mrb[0].mxu0 %v4574
    %v4649 = vpop.f32.mrb[0].mxu0
    %v4650 = vadd.f32 0.0, %v4649
    %v4651 = vpop.f32.mrb[0].mxu0
    %v4652 = vpop.f32.mrb[0].mxu0
    %v4653 = vadd.f32 0.0, %v4652
    %v4654 = vpop.f32.mrb[0].mxu0
    %4655 = vmatprep.mubr.bf16.mxu0 0
    %4656 = vmatmul.mubr.bf16.gmra.mrb[0].mxu0 %v4577
    %v4657 = vpop.f32.mrb[0].mxu0
    %v4658 = vadd.f32 0.0, %v4657
    %v4659 = vpop.f32.mrb[0].mxu0
    %v4660 = vpop.f32.mrb[0].mxu0
    %v4661 = vadd.f32 0.0, %v4660
    %v4662 = vpop.f32.mrb[0].mxu0
    %4663 = vmatprep.mubr.bf16.mxu0 0
    %4664 = vmatmul.mubr.bf16.gmra.mrb[0].mxu0 %v4580
    %v4665 = vpop.f32.mrb[0].mxu0
    %v4666 = vadd.f32 0.0, %v4665
    %v4667 = vpop.f32.mrb[0].mxu0
    %v4668 = vpop.f32.mrb[0].mxu0
    %v4669 = vadd.f32 0.0, %v4668
    %v4670 = vpop.f32.mrb[0].mxu0
    %4671 = vmatprep.mubr.bf16.mxu0 0
    %4672 = vmatmul.mubr.bf16.gmra.mrb[0].mxu0 %v4583
    %v4673 = vpop.f32.mrb[0].mxu0
    %v4674 = vadd.f32 0.0, %v4673
    %v4675 = vpop.f32.mrb[0].mxu0
    %v4676 = vpop.f32.mrb[0].mxu0
    %v4677 = vadd.f32 0.0, %v4676
    %v4678 = vpop.f32.mrb[0].mxu0
    %4679 = vmatprep.mubr.bf16.mxu0 0
    %4680 = vmatmul.mubr.bf16.gmra.mrb[0].mxu0 %v4586
    %v4681 = vpop.f32.mrb[0].mxu0
    %v4682 = vadd.f32 0.0, %v4681
    %v4683 = vpop.f32.mrb[0].mxu0
    %v4684 = vpop.f32.mrb[0].mxu0
    %v4685 = vadd.f32 0.0, %v4684
    %v4686 = vpop.f32.mrb[0].mxu0
    %4687 = vdwg.mxu0
    %v4688 = vadd.f32 %v4326, %v4626
    %v4689 = vadd.f32 %v4327, %v4629
    %v4690 = vadd.f32 %v4328, %v4634
    %v4691 = vadd.f32 %v4329, %v4637
    %v4692 = vadd.f32 %v4330, %v4642
    %v4693 = vadd.f32 %v4331, %v4645
    %v4694 = vadd.f32 %v4332, %v4650
    %v4695 = vadd.f32 %v4333, %v4653
    %v4696 = vadd.f32 %v4334, %v4658
    %v4697 = vadd.f32 %v4335, %v4661
    %v4698 = vadd.f32 %v4336, %v4666
    %v4699 = vadd.f32 %v4337, %v4669
    %v4700 = vadd.f32 %v4338, %v4674
    %v4701 = vadd.f32 %v4339, %v4677
    %v4702 = vadd.f32 %v4340, %v4682
    %v4703 = vadd.f32 %v4341, %v4685
    %v4704 = vld [vmem:[%s0 + $0x8] sm:$0xe]
    %v4705 = vld [vmem:[%s0 + $0x38] sm:$0xe]
    %v4724 = vrot.slane %v4704, 5
    %v4725 = vrot.slane %v4724, 4
    %v4726 = vrot.slane %v4343, 5
    %v4727 = vsel %vm566, %v4725, %v4726
    %v4728 = vrot.slane %v4726, 4
    %v4729 = vrot.slane %v4344, 5
    %v4730 = vsel %vm566, %v4728, %v4729
    %v4731 = vrot.slane %v4729, 4
    %v4732 = vrot.slane %v4345, 5
    %v4733 = vsel %vm566, %v4731, %v4732
    %v4734 = vrot.slane %v4732, 4
    %v4735 = vrot.slane %v4346, 5
    %v4736 = vsel %vm566, %v4734, %v4735
    %v4737 = vrot.slane %v4735, 4
    %v4738 = vrot.slane %v4347, 5
    %v4739 = vsel %vm566, %v4737, %v4738
    %v4740 = vrot.slane %v4738, 4
    %v4741 = vrot.slane %v4348, 5
    %v4742 = vsel %vm566, %v4740, %v4741
    %v4743 = vrot.slane %v4741, 4
    %v4744 = vrot.slane %v4349, 5
    %v4745 = vsel %vm566, %v4743, %v4744
    %v4746 = vrot.slane %v4744, 4
    %v4747 = vrot.slane %v4350, 5
    %v4748 = vsel %vm566, %v4746, %v4747
    %v4749 = vrot.slane %v4705, 5
    %v4750 = vrot.slane %v4749, 4
    %v4751 = vrot.slane %v4352, 5
    %v4752 = vsel %vm566, %v4750, %v4751
    %v4753 = vrot.slane %v4751, 4
    %v4754 = vrot.slane %v4353, 5
    %v4755 = vsel %vm566, %v4753, %v4754
    %v4756 = vrot.slane %v4754, 4
    %v4757 = vrot.slane %v4354, 5
    %v4758 = vsel %vm566, %v4756, %v4757
    %v4759 = vrot.slane %v4757, 4
    %v4760 = vrot.slane %v4355, 5
    %v4761 = vsel %vm566, %v4759, %v4760
    %v4762 = vrot.slane %v4760, 4
    %v4763 = vrot.slane %v4356, 5
    %v4764 = vsel %vm566, %v4762, %v4763
    %v4765 = vrot.slane %v4763, 4
    %v4766 = vrot.slane %v4357, 5
    %v4767 = vsel %vm566, %v4765, %v4766
    %v4768 = vrot.slane %v4766, 4
    %v4769 = vrot.slane %v4358, 5
    %v4770 = vsel %vm566, %v4768, %v4769
    %v4771 = vrot.slane %v4769, 4
    %v4772 = vrot.slane %v4359, 5
    %v4773 = vsel %vm566, %v4771, %v4772
    %v4774 = vld [vmem:[%s2 + $0xd8] sm:$0xf]
    %v4775 = vld [vmem:[%s2 + $0xdc] sm:$0xf]
    %v4776 = vld [vmem:[%s2 + $0xe0] sm:$0xf]
    %v4777 = vunpack.c.l.b16 %v4727
    %v4778 = vunpack.c.l.b16 %v4730
    %v4779 = vunpack.c.l.b16 %v4733
    %v4780 = vunpack.c.l.b16 %v4736
    %v4781 = vunpack.c.l.b16 %v4739
    %v4782 = vunpack.c.l.b16 %v4742
    %v4783 = vunpack.c.l.b16 %v4745
    %v4784 = vunpack.c.l.b16 %v4748
    %v4785 = vunpack.c.l.b16 %v4752
    %v4786 = vunpack.c.l.b16 %v4755
    %v4787 = vunpack.c.l.b16 %v4758
    %v4788 = vunpack.c.l.b16 %v4761
    %v4789 = vunpack.c.l.b16 %v4764
    %v4790 = vunpack.c.l.b16 %v4767
    %v4791 = vunpack.c.l.b16 %v4770
    %v4792 = vunpack.c.l.b16 %v4773
    %v4793 = vpack.c.b16 %v4778, %v4777
    %v4794 = vpack.c.b16 %v4780, %v4779
    %v4795 = vpack.c.b16 %v4782, %v4781
    %v4796 = vpack.c.b16 %v4784, %v4783
    %v4797 = vpack.c.b16 %v4786, %v4785
    %v4798 = vpack.c.b16 %v4788, %v4787
    %v4799 = vpack.c.b16 %v4790, %v4789
    %v4800 = vpack.c.b16 %v4792, %v4791
    %v4804 = vunpack.c.l.b16 %v4774
    %v4805 = vunpack.c.l.b16 %v4775
    %v4806 = vunpack.c.l.b16 %v4776
    %v4807 = vpack.c.b16 %v4805, %v4804
    %v4808 = vpack.c.b16 %v4806, %v4806
    %v4811 = vsel %vm259, %v4793, 0
    %v4814 = vsel %vm259, %v4794, 0
    %v4817 = vsel %vm259, %v4795, 0
    %v4820 = vsel %vm259, %v4796, 0
    %v4823 = vsel %vm259, %v4797, 0
    %v4826 = vsel %vm259, %v4798, 0
    %v4829 = vsel %vm259, %v4799, 0
    %v4832 = vsel %vm259, %v4800, 0
    %v4835 = vsel %vm284, %v4808, 0
    %4837 = vmatprep.subr.bf16.mxu0 0
    %4838 = vmatpush1.bf16.msra.mxu0 %v4807
    %4839 = vmatprep.subr.bf16.mxu0 0
    %4840 = vmatpush1.bf16.msra.mxu0 %v4835
    %4841 = vmatprep.subr.bf16.mxu0 0
    %4842 = vmatpush1.bf16.msra.mxu0 0
    %4843 = vmatprep.subr.bf16.mxu0 0
    %4844 = vmatpush1.bf16.msra.mxu0 0
    %4845 = vmatprep.subr.bf16.mxu0 0
    %4846 = vmatpush1.bf16.msra.mxu0 0
    %4847 = vmatprep.subr.bf16.mxu0 0
    %4848 = vmatpush1.bf16.msra.mxu0 0
    %4849 = vmatprep.subr.bf16.mxu0 0
    %4850 = vmatpush1.bf16.msra.mxu0 0
    %4851 = vmatprep.subr.bf16.mxu0 0
    %4852 = vmatpush1.bf16.msra.mxu0 0
    %4853 = vmatprep.subr.bf16.mxu0 0
    %4854 = vmatpush1.bf16.msra.mxu0 0
    %4855 = vmatprep.subr.bf16.mxu0 0
    %4856 = vmatpush1.bf16.msra.mxu0 0
    %4857 = vmatprep.subr.bf16.mxu0 0
    %4858 = vmatpush1.bf16.msra.mxu0 0
    %4859 = vmatprep.subr.bf16.mxu0 0
    %4860 = vmatpush1.bf16.msra.mxu0 0
    %4861 = vmatprep.subr.bf16.mxu0 0
    %4862 = vmatpush1.bf16.msra.mxu0 0
    %4863 = vmatprep.subr.bf16.mxu0 0
    %4864 = vmatpush1.bf16.msra.mxu0 0
    %4865 = vmatprep.subr.bf16.mxu0 0
    %4866 = vmatpush1.bf16.msra.mxu0 0
    %4867 = vmatprep.subr.bf16.mxu0 0
    %4868 = vmatpush1.bf16.msra.mxu0 0
    %4869 = vmatprep.mubr.bf16.mxu0 0
    %4870 = vmatmul.mubr.bf16.gmra.mrb[0].mxu0 %v4811
    %v4871 = vpop.f32.mrb[0].mxu0
    %v4872 = vadd.f32 0.0, %v4871
    %v4873 = vpop.f32.mrb[0].mxu0
    %v4874 = vpop.f32.mrb[0].mxu0
    %v4875 = vadd.f32 0.0, %v4874
    %v4876 = vpop.f32.mrb[0].mxu0
    %4877 = vmatprep.mubr.bf16.mxu0 0
    %4878 = vmatmul.mubr.bf16.gmra.mrb[0].mxu0 %v4814
    %v4879 = vpop.f32.mrb[0].mxu0
    %v4880 = vadd.f32 0.0, %v4879
    %v4881 = vpop.f32.mrb[0].mxu0
    %v4882 = vpop.f32.mrb[0].mxu0
    %v4883 = vadd.f32 0.0, %v4882
    %v4884 = vpop.f32.mrb[0].mxu0
    %4885 = vmatprep.mubr.bf16.mxu0 0
    %4886 = vmatmul.mubr.bf16.gmra.mrb[0].mxu0 %v4817
    %v4887 = vpop.f32.mrb[0].mxu0
    %v4888 = vadd.f32 0.0, %v4887
    %v4889 = vpop.f32.mrb[0].mxu0
    %v4890 = vpop.f32.mrb[0].mxu0
    %v4891 = vadd.f32 0.0, %v4890
    %v4892 = vpop.f32.mrb[0].mxu0
    %4893 = vmatprep.mubr.bf16.mxu0 0
    %4894 = vmatmul.mubr.bf16.gmra.mrb[0].mxu0 %v4820
    %v4895 = vpop.f32.mrb[0].mxu0
    %v4896 = vadd.f32 0.0, %v4895
    %v4897 = vpop.f32.mrb[0].mxu0
    %v4898 = vpop.f32.mrb[0].mxu0
    %v4899 = vadd.f32 0.0, %v4898
    %v4900 = vpop.f32.mrb[0].mxu0
    %4901 = vmatprep.mubr.bf16.mxu0 0
    %4902 = vmatmul.mubr.bf16.gmra.mrb[0].mxu0 %v4823
    %v4903 = vpop.f32.mrb[0].mxu0
    %v4904 = vadd.f32 0.0, %v4903
    %v4905 = vpop.f32.mrb[0].mxu0
    %v4906 = vpop.f32.mrb[0].mxu0
    %v4907 = vadd.f32 0.0, %v4906
    %v4908 = vpop.f32.mrb[0].mxu0
    %4909 = vmatprep.mubr.bf16.mxu0 0
    %4910 = vmatmul.mubr.bf16.gmra.mrb[0].mxu0 %v4826
    %v4911 = vpop.f32.mrb[0].mxu0
    %v4912 = vadd.f32 0.0, %v4911
    %v4913 = vpop.f32.mrb[0].mxu0
    %v4914 = vpop.f32.mrb[0].mxu0
    %v4915 = vadd.f32 0.0, %v4914
    %v4916 = vpop.f32.mrb[0].mxu0
    %4917 = vmatprep.mubr.bf16.mxu0 0
    %4918 = vmatmul.mubr.bf16.gmra.mrb[0].mxu0 %v4829
    %v4919 = vpop.f32.mrb[0].mxu0
    %v4920 = vadd.f32 0.0, %v4919
    %v4921 = vpop.f32.mrb[0].mxu0
    %v4922 = vpop.f32.mrb[0].mxu0
    %v4923 = vadd.f32 0.0, %v4922
    %v4924 = vpop.f32.mrb[0].mxu0
    %4925 = vmatprep.mubr.bf16.mxu0 0
    %4926 = vmatmul.mubr.bf16.gmra.mrb[0].mxu0 %v4832
    %v4927 = vpop.f32.mrb[0].mxu0
    %v4928 = vadd.f32 0.0, %v4927
    %v4929 = vpop.f32.mrb[0].mxu0
    %v4930 = vpop.f32.mrb[0].mxu0
    %v4931 = vadd.f32 0.0, %v4930
    %v4932 = vpop.f32.mrb[0].mxu0
    %4933 = vdwg.mxu0
    %v4934 = vadd.f32 %v4688, %v4872
    %v4935 = vadd.f32 %v4689, %v4875
    %v4936 = vadd.f32 %v4690, %v4880
    %v4937 = vadd.f32 %v4691, %v4883
    %v4938 = vadd.f32 %v4692, %v4888
    %v4939 = vadd.f32 %v4693, %v4891
    %v4940 = vadd.f32 %v4694, %v4896
    %v4941 = vadd.f32 %v4695, %v4899
    %v4942 = vadd.f32 %v4696, %v4904
    %v4943 = vadd.f32 %v4697, %v4907
    %v4944 = vadd.f32 %v4698, %v4912
    %v4945 = vadd.f32 %v4699, %v4915
    %v4946 = vadd.f32 %v4700, %v4920
    %v4947 = vadd.f32 %v4701, %v4923
    %v4948 = vadd.f32 %v4702, %v4928
    %v4949 = vadd.f32 %v4703, %v4931
    %v4950 = vld [vmem:[%s0 + $0x28] sm:$0x3]
    %v4951 = vld [vmem:[%s0 + $0x58] sm:$0x3]
    %v4953 = vshrl.u32 %v4704, 16
    %v4955 = vrot.slane %v4953, 5
    %v4956 = vshll.u32 %v4704, 16
    %v4958 = vrot.slane %v4956, 6
    %v4959 = vor.u32 %v4955, %v4958
    %v4960 = vrot.slane %v4959, 4
    %v4961 = vrot.slane %v4374, 5
    %v4962 = vrot.slane %v4370, 6
    %v4963 = vor.u32 %v4961, %v4962
    %v4964 = vsel %vm797, %v4960, %v4963
    %v4965 = vrot.slane %v4963, 4
    %v4966 = vrot.slane %v4384, 5
    %v4967 = vrot.slane %v4380, 6
    %v4968 = vor.u32 %v4966, %v4967
    %v4969 = vsel %vm797, %v4965, %v4968
    %v4970 = vrot.slane %v4968, 4
    %v4971 = vrot.slane %v4394, 5
    %v4972 = vrot.slane %v4390, 6
    %v4973 = vor.u32 %v4971, %v4972
    %v4974 = vsel %vm797, %v4970, %v4973
    %v4975 = vrot.slane %v4973, 4
    %v4976 = vrot.slane %v4404, 5
    %v4977 = vrot.slane %v4400, 6
    %v4978 = vor.u32 %v4976, %v4977
    %v4979 = vsel %vm797, %v4975, %v4978
    %v4980 = vrot.slane %v4978, 4
    %v4981 = vrot.slane %v4414, 5
    %v4982 = vrot.slane %v4410, 6
    %v4983 = vor.u32 %v4981, %v4982
    %v4984 = vsel %vm797, %v4980, %v4983
    %v4985 = vrot.slane %v4983, 4
    %v4986 = vrot.slane %v4424, 5
    %v4987 = vrot.slane %v4420, 6
    %v4988 = vor.u32 %v4986, %v4987
    %v4989 = vsel %vm797, %v4985, %v4988
    %v4990 = vrot.slane %v4988, 4
    %v4991 = vrot.slane %v4434, 5
    %v4992 = vrot.slane %v4430, 6
    %v4993 = vor.u32 %v4991, %v4992
    %v4994 = vsel %vm797, %v4990, %v4993
    %v4995 = vrot.slane %v4993, 4
    %v4997 = vshrl.u32 %v4950, 16
    %v4999 = vrot.slane %v4997, 5
    %v5000 = vshll.u32 %v4950, 16
    %v5002 = vrot.slane %v5000, 6
    %v5003 = vor.u32 %v4999, %v5002
    %v5004 = vsel %vm797, %v4995, %v5003
    %v5006 = vshrl.u32 %v4705, 16
    %v5008 = vrot.slane %v5006, 5
    %v5009 = vshll.u32 %v4705, 16
    %v5011 = vrot.slane %v5009, 6
    %v5012 = vor.u32 %v5008, %v5011
    %v5013 = vrot.slane %v5012, 4
    %v5014 = vrot.slane %v4458, 5
    %v5015 = vrot.slane %v4454, 6
    %v5016 = vor.u32 %v5014, %v5015
    %v5017 = vsel %vm797, %v5013, %v5016
    %v5018 = vrot.slane %v5016, 4
    %v5019 = vrot.slane %v4468, 5
    %v5020 = vrot.slane %v4464, 6
    %v5021 = vor.u32 %v5019, %v5020
    %v5022 = vsel %vm797, %v5018, %v5021
    %v5023 = vrot.slane %v5021, 4
    %v5024 = vrot.slane %v4478, 5
    %v5025 = vrot.slane %v4474, 6
    %v5026 = vor.u32 %v5024, %v5025
    %v5027 = vsel %vm797, %v5023, %v5026
    %v5028 = vrot.slane %v5026, 4
    %v5029 = vrot.slane %v4488, 5
    %v5030 = vrot.slane %v4484, 6
    %v5031 = vor.u32 %v5029, %v5030
    %v5032 = vsel %vm797, %v5028, %v5031
    %v5033 = vrot.slane %v5031, 4
    %v5034 = vrot.slane %v4498, 5
    %v5035 = vrot.slane %v4494, 6
    %v5036 = vor.u32 %v5034, %v5035
    %v5037 = vsel %vm797, %v5033, %v5036
    %v5038 = vrot.slane %v5036, 4
    %v5039 = vrot.slane %v4508, 5
    %v5040 = vrot.slane %v4504, 6
    %v5041 = vor.u32 %v5039, %v5040
    %v5042 = vsel %vm797, %v5038, %v5041
    %v5043 = vrot.slane %v5041, 4
    %v5044 = vrot.slane %v4518, 5
    %v5045 = vrot.slane %v4514, 6
    %v5046 = vor.u32 %v5044, %v5045
    %v5047 = vsel %vm797, %v5043, %v5046
    %v5048 = vrot.slane %v5046, 4
    %v5050 = vshrl.u32 %v4951, 16
    %v5052 = vrot.slane %v5050, 5
    %v5053 = vshll.u32 %v4951, 16
    %v5055 = vrot.slane %v5053, 6
    %v5056 = vor.u32 %v5052, %v5055
    %v5057 = vsel %vm797, %v5048, %v5056
    %v5058 = vld [vmem:[%s2 + $0xe4] sm:$0xf]
    %v5059 = vld [vmem:[%s2 + $0xe8] sm:$0xf]
    %v5060 = vld [vmem:[%s2 + $0xec] sm:$0xf]
    %v5061 = vunpack.c.l.b16 %v4964
    %v5062 = vunpack.c.l.b16 %v4969
    %v5063 = vunpack.c.l.b16 %v4974
    %v5064 = vunpack.c.l.b16 %v4979
    %v5065 = vunpack.c.l.b16 %v4984
    %v5066 = vunpack.c.l.b16 %v4989
    %v5067 = vunpack.c.l.b16 %v4994
    %v5068 = vunpack.c.l.b16 %v5004
    %v5069 = vunpack.c.l.b16 %v5017
    %v5070 = vunpack.c.l.b16 %v5022
    %v5071 = vunpack.c.l.b16 %v5027
    %v5072 = vunpack.c.l.b16 %v5032
    %v5073 = vunpack.c.l.b16 %v5037
    %v5074 = vunpack.c.l.b16 %v5042
    %v5075 = vunpack.c.l.b16 %v5047
    %v5076 = vunpack.c.l.b16 %v5057
    %v5077 = vpack.c.b16 %v5062, %v5061
    %v5078 = vpack.c.b16 %v5064, %v5063
    %v5079 = vpack.c.b16 %v5066, %v5065
    %v5080 = vpack.c.b16 %v5068, %v5067
    %v5081 = vpack.c.b16 %v5070, %v5069
    %v5082 = vpack.c.b16 %v5072, %v5071
    %v5083 = vpack.c.b16 %v5074, %v5073
    %v5084 = vpack.c.b16 %v5076, %v5075
    %v5088 = vunpack.c.l.b16 %v5058
    %v5089 = vunpack.c.l.b16 %v5059
    %v5090 = vunpack.c.l.b16 %v5060
    %v5091 = vpack.c.b16 %v5089, %v5088
    %v5092 = vpack.c.b16 %v5090, %v5090
    %v5095 = vsel %vm259, %v5077, 0
    %v5098 = vsel %vm259, %v5078, 0
    %v5101 = vsel %vm259, %v5079, 0
    %v5104 = vsel %vm259, %v5080, 0
    %v5107 = vsel %vm259, %v5081, 0
    %v5110 = vsel %vm259, %v5082, 0
    %v5113 = vsel %vm259, %v5083, 0
    %v5116 = vsel %vm259, %v5084, 0
    %v5119 = vsel %vm284, %v5092, 0
    %5121 = vmatprep.subr.bf16.mxu0 0
    %5122 = vmatpush1.bf16.msra.mxu0 %v5091
    %5123 = vmatprep.subr.bf16.mxu0 0
    %5124 = vmatpush1.bf16.msra.mxu0 %v5119
    %5125 = vmatprep.subr.bf16.mxu0 0
    %5126 = vmatpush1.bf16.msra.mxu0 0
    %5127 = vmatprep.subr.bf16.mxu0 0
    %5128 = vmatpush1.bf16.msra.mxu0 0
    %5129 = vmatprep.subr.bf16.mxu0 0
    %5130 = vmatpush1.bf16.msra.mxu0 0
    %5131 = vmatprep.subr.bf16.mxu0 0
    %5132 = vmatpush1.bf16.msra.mxu0 0
    %5133 = vmatprep.subr.bf16.mxu0 0
    %5134 = vmatpush1.bf16.msra.mxu0 0
    %5135 = vmatprep.subr.bf16.mxu0 0
    %5136 = vmatpush1.bf16.msra.mxu0 0
    %5137 = vmatprep.subr.bf16.mxu0 0
    %5138 = vmatpush1.bf16.msra.mxu0 0
    %5139 = vmatprep.subr.bf16.mxu0 0
    %5140 = vmatpush1.bf16.msra.mxu0 0
    %5141 = vmatprep.subr.bf16.mxu0 0
    %5142 = vmatpush1.bf16.msra.mxu0 0
    %5143 = vmatprep.subr.bf16.mxu0 0
    %5144 = vmatpush1.bf16.msra.mxu0 0
    %5145 = vmatprep.subr.bf16.mxu0 0
    %5146 = vmatpush1.bf16.msra.mxu0 0
    %5147 = vmatprep.subr.bf16.mxu0 0
    %5148 = vmatpush1.bf16.msra.mxu0 0
    %5149 = vmatprep.subr.bf16.mxu0 0
    %5150 = vmatpush1.bf16.msra.mxu0 0
    %5151 = vmatprep.subr.bf16.mxu0 0
    %5152 = vmatpush1.bf16.msra.mxu0 0
    %5153 = vmatprep.mubr.bf16.mxu0 0
    %5154 = vmatmul.mubr.bf16.gmra.mrb[0].mxu0 %v5095
    %v5155 = vpop.f32.mrb[0].mxu0
    %v5156 = vadd.f32 0.0, %v5155
    %v5157 = vpop.f32.mrb[0].mxu0
    %v5158 = vpop.f32.mrb[0].mxu0
    %v5159 = vadd.f32 0.0, %v5158
    %v5160 = vpop.f32.mrb[0].mxu0
    %5161 = vmatprep.mubr.bf16.mxu0 0
    %5162 = vmatmul.mubr.bf16.gmra.mrb[0].mxu0 %v5098
    %v5163 = vpop.f32.mrb[0].mxu0
    %v5164 = vadd.f32 0.0, %v5163
    %v5165 = vpop.f32.mrb[0].mxu0
    %v5166 = vpop.f32.mrb[0].mxu0
    %v5167 = vadd.f32 0.0, %v5166
    %v5168 = vpop.f32.mrb[0].mxu0
    %5169 = vmatprep.mubr.bf16.mxu0 0
    %5170 = vmatmul.mubr.bf16.gmra.mrb[0].mxu0 %v5101
    %v5171 = vpop.f32.mrb[0].mxu0
    %v5172 = vadd.f32 0.0, %v5171
    %v5173 = vpop.f32.mrb[0].mxu0
    %v5174 = vpop.f32.mrb[0].mxu0
    %v5175 = vadd.f32 0.0, %v5174
    %v5176 = vpop.f32.mrb[0].mxu0
    %5177 = vmatprep.mubr.bf16.mxu0 0
    %5178 = vmatmul.mubr.bf16.gmra.mrb[0].mxu0 %v5104
    %v5179 = vpop.f32.mrb[0].mxu0
    %v5180 = vadd.f32 0.0, %v5179
    %v5181 = vpop.f32.mrb[0].mxu0
    %v5182 = vpop.f32.mrb[0].mxu0
    %v5183 = vadd.f32 0.0, %v5182
    %v5184 = vpop.f32.mrb[0].mxu0
    %5185 = vmatprep.mubr.bf16.mxu0 0
    %5186 = vmatmul.mubr.bf16.gmra.mrb[0].mxu0 %v5107
    %v5187 = vpop.f32.mrb[0].mxu0
    %v5188 = vadd.f32 0.0, %v5187
    %v5189 = vpop.f32.mrb[0].mxu0
    %v5190 = vpop.f32.mrb[0].mxu0
    %v5191 = vadd.f32 0.0, %v5190
    %v5192 = vpop.f32.mrb[0].mxu0
    %5193 = vmatprep.mubr.bf16.mxu0 0
    %5194 = vmatmul.mubr.bf16.gmra.mrb[0].mxu0 %v5110
    %v5195 = vpop.f32.mrb[0].mxu0
    %v5196 = vadd.f32 0.0, %v5195
    %v5197 = vpop.f32.mrb[0].mxu0
    %v5198 = vpop.f32.mrb[0].mxu0
    %v5199 = vadd.f32 0.0, %v5198
    %v5200 = vpop.f32.mrb[0].mxu0
    %5201 = vmatprep.mubr.bf16.mxu0 0
    %5202 = vmatmul.mubr.bf16.gmra.mrb[0].mxu0 %v5113
    %v5203 = vpop.f32.mrb[0].mxu0
    %v5204 = vadd.f32 0.0, %v5203
    %v5205 = vpop.f32.mrb[0].mxu0
    %v5206 = vpop.f32.mrb[0].mxu0
    %v5207 = vadd.f32 0.0, %v5206
    %v5208 = vpop.f32.mrb[0].mxu0
    %5209 = vmatprep.mubr.bf16.mxu0 0
    %5210 = vmatmul.mubr.bf16.gmra.mrb[0].mxu0 %v5116
    %v5211 = vpop.f32.mrb[0].mxu0
    %v5212 = vadd.f32 0.0, %v5211
    %v5213 = vpop.f32.mrb[0].mxu0
    %v5214 = vpop.f32.mrb[0].mxu0
    %v5215 = vadd.f32 0.0, %v5214
    %v5216 = vpop.f32.mrb[0].mxu0
    %5217 = vdwg.mxu0
    %v5218 = vadd.f32 %v4934, %v5156
    %v5219 = vadd.f32 %v4935, %v5159
    %v5220 = vadd.f32 %v4936, %v5164
    %v5221 = vadd.f32 %v4937, %v5167
    %v5222 = vadd.f32 %v4938, %v5172
    %v5223 = vadd.f32 %v4939, %v5175
    %v5224 = vadd.f32 %v4940, %v5180
    %v5225 = vadd.f32 %v4941, %v5183
    %v5226 = vadd.f32 %v4942, %v5188
    %v5227 = vadd.f32 %v4943, %v5191
    %v5228 = vadd.f32 %v4944, %v5196
    %v5229 = vadd.f32 %v4945, %v5199
    %v5230 = vadd.f32 %v4946, %v5204
    %v5231 = vadd.f32 %v4947, %v5207
    %v5232 = vadd.f32 %v4948, %v5212
    %v5233 = vadd.f32 %v4949, %v5215
    %v5234 = vld [vmem:[%s0 + $0x8] sm:$0xc]
    %v5235 = vld [vmem:[%s0 + $0x38] sm:$0xc]
    %v5240 = vrot.slane %v5234, 6
    %v5241 = vrot.slane %v5240, 4
    %v5242 = vrot.slane %v4343, 6
    %v5243 = vsel %vm1088, %v5241, %v5242
    %v5244 = vrot.slane %v5242, 4
    %v5245 = vrot.slane %v4344, 6
    %v5246 = vsel %vm1088, %v5244, %v5245
    %v5247 = vrot.slane %v5245, 4
    %v5248 = vrot.slane %v4345, 6
    %v5249 = vsel %vm1088, %v5247, %v5248
    %v5250 = vrot.slane %v5248, 4
    %v5251 = vrot.slane %v4346, 6
    %v5252 = vsel %vm1088, %v5250, %v5251
    %v5253 = vrot.slane %v5251, 4
    %v5254 = vrot.slane %v4347, 6
    %v5255 = vsel %vm1088, %v5253, %v5254
    %v5256 = vrot.slane %v5254, 4
    %v5257 = vrot.slane %v4348, 6
    %v5258 = vsel %vm1088, %v5256, %v5257
    %v5259 = vrot.slane %v5257, 4
    %v5260 = vrot.slane %v4349, 6
    %v5261 = vsel %vm1088, %v5259, %v5260
    %v5262 = vrot.slane %v5260, 4
    %v5263 = vrot.slane %v4950, 6
    %v5264 = vsel %vm1088, %v5262, %v5263
    %v5265 = vrot.slane %v5235, 6
    %v5266 = vrot.slane %v5265, 4
    %v5267 = vrot.slane %v4352, 6
    %v5268 = vsel %vm1088, %v5266, %v5267
    %v5269 = vrot.slane %v5267, 4
    %v5270 = vrot.slane %v4353, 6
    %v5271 = vsel %vm1088, %v5269, %v5270
    %v5272 = vrot.slane %v5270, 4
    %v5273 = vrot.slane %v4354, 6
    %v5274 = vsel %vm1088, %v5272, %v5273
    %v5275 = vrot.slane %v5273, 4
    %v5276 = vrot.slane %v4355, 6
    %v5277 = vsel %vm1088, %v5275, %v5276
    %v5278 = vrot.slane %v5276, 4
    %v5279 = vrot.slane %v4356, 6
    %v5280 = vsel %vm1088, %v5278, %v5279
    %v5281 = vrot.slane %v5279, 4
    %v5282 = vrot.slane %v4357, 6
    %v5283 = vsel %vm1088, %v5281, %v5282
    %v5284 = vrot.slane %v5282, 4
    %v5285 = vrot.slane %v4358, 6
    %v5286 = vsel %vm1088, %v5284, %v5285
    %v5287 = vrot.slane %v5285, 4
    %v5288 = vrot.slane %v4951, 6
    %v5289 = vsel %vm1088, %v5287, %v5288
    %v5290 = vld [vmem:[%s2 + $0xf0] sm:$0xf]
    %v5291 = vld [vmem:[%s2 + $0xf4] sm:$0xf]
    %v5292 = vld [vmem:[%s2 + $0xf8] sm:$0xf]
    %v5293 = vunpack.c.l.b16 %v5243
    %v5294 = vunpack.c.l.b16 %v5246
    %v5295 = vunpack.c.l.b16 %v5249
    %v5296 = vunpack.c.l.b16 %v5252
    %v5297 = vunpack.c.l.b16 %v5255
    %v5298 = vunpack.c.l.b16 %v5258
    %v5299 = vunpack.c.l.b16 %v5261
    %v5300 = vunpack.c.l.b16 %v5264
    %v5301 = vunpack.c.l.b16 %v5268
    %v5302 = vunpack.c.l.b16 %v5271
    %v5303 = vunpack.c.l.b16 %v5274
    %v5304 = vunpack.c.l.b16 %v5277
    %v5305 = vunpack.c.l.b16 %v5280
    %v5306 = vunpack.c.l.b16 %v5283
    %v5307 = vunpack.c.l.b16 %v5286
    %v5308 = vunpack.c.l.b16 %v5289
    %v5309 = vpack.c.b16 %v5294, %v5293
    %v5310 = vpack.c.b16 %v5296, %v5295
    %v5311 = vpack.c.b16 %v5298, %v5297
    %v5312 = vpack.c.b16 %v5300, %v5299
    %v5313 = vpack.c.b16 %v5302, %v5301
    %v5314 = vpack.c.b16 %v5304, %v5303
    %v5315 = vpack.c.b16 %v5306, %v5305
    %v5316 = vpack.c.b16 %v5308, %v5307
    %v5320 = vunpack.c.l.b16 %v5290
    %v5321 = vunpack.c.l.b16 %v5291
    %v5322 = vunpack.c.l.b16 %v5292
    %v5323 = vpack.c.b16 %v5321, %v5320
    %v5324 = vpack.c.b16 %v5322, %v5322
    %v5327 = vsel %vm259, %v5309, 0
    %v5330 = vsel %vm259, %v5310, 0
    %v5333 = vsel %vm259, %v5311, 0
    %v5336 = vsel %vm259, %v5312, 0
    %v5339 = vsel %vm259, %v5313, 0
    %v5342 = vsel %vm259, %v5314, 0
    %v5345 = vsel %vm259, %v5315, 0
    %v5348 = vsel %vm259, %v5316, 0
    %v5351 = vsel %vm284, %v5324, 0
    %5353 = vmatprep.subr.bf16.mxu0 0
    %5354 = vmatpush1.bf16.msra.mxu0 %v5323
    %5355 = vmatprep.subr.bf16.mxu0 0
    %5356 = vmatpush1.bf16.msra.mxu0 %v5351
    %5357 = vmatprep.subr.bf16.mxu0 0
    %5358 = vmatpush1.bf16.msra.mxu0 0
    %5359 = vmatprep.subr.bf16.mxu0 0
    %5360 = vmatpush1.bf16.msra.mxu0 0
    %5361 = vmatprep.subr.bf16.mxu0 0
    %5362 = vmatpush1.bf16.msra.mxu0 0
    %5363 = vmatprep.subr.bf16.mxu0 0
    %5364 = vmatpush1.bf16.msra.mxu0 0
    %5365 = vmatprep.subr.bf16.mxu0 0
    %5366 = vmatpush1.bf16.msra.mxu0 0
    %5367 = vmatprep.subr.bf16.mxu0 0
    %5368 = vmatpush1.bf16.msra.mxu0 0
    %5369 = vmatprep.subr.bf16.mxu0 0
    %5370 = vmatpush1.bf16.msra.mxu0 0
    %5371 = vmatprep.subr.bf16.mxu0 0
    %5372 = vmatpush1.bf16.msra.mxu0 0
    %5373 = vmatprep.subr.bf16.mxu0 0
    %5374 = vmatpush1.bf16.msra.mxu0 0
    %5375 = vmatprep.subr.bf16.mxu0 0
    %5376 = vmatpush1.bf16.msra.mxu0 0
    %5377 = vmatprep.subr.bf16.mxu0 0
    %5378 = vmatpush1.bf16.msra.mxu0 0
    %5379 = vmatprep.subr.bf16.mxu0 0
    %5380 = vmatpush1.bf16.msra.mxu0 0
    %5381 = vmatprep.subr.bf16.mxu0 0
    %5382 = vmatpush1.bf16.msra.mxu0 0
    %5383 = vmatprep.subr.bf16.mxu0 0
    %5384 = vmatpush1.bf16.msra.mxu0 0
    %5385 = vmatprep.mubr.bf16.mxu0 0
    %5386 = vmatmul.mubr.bf16.gmra.mrb[0].mxu0 %v5327
    %v5387 = vpop.f32.mrb[0].mxu0
    %v5388 = vadd.f32 0.0, %v5387
    %v5389 = vpop.f32.mrb[0].mxu0
    %v5390 = vpop.f32.mrb[0].mxu0
    %v5391 = vadd.f32 0.0, %v5390
    %v5392 = vpop.f32.mrb[0].mxu0
    %5393 = vmatprep.mubr.bf16.mxu0 0
    %5394 = vmatmul.mubr.bf16.gmra.mrb[0].mxu0 %v5330
    %v5395 = vpop.f32.mrb[0].mxu0
    %v5396 = vadd.f32 0.0, %v5395
    %v5397 = vpop.f32.mrb[0].mxu0
    %v5398 = vpop.f32.mrb[0].mxu0
    %v5399 = vadd.f32 0.0, %v5398
    %v5400 = vpop.f32.mrb[0].mxu0
    %5401 = vmatprep.mubr.bf16.mxu0 0
    %5402 = vmatmul.mubr.bf16.gmra.mrb[0].mxu0 %v5333
    %v5403 = vpop.f32.mrb[0].mxu0
    %v5404 = vadd.f32 0.0, %v5403
    %v5405 = vpop.f32.mrb[0].mxu0
    %v5406 = vpop.f32.mrb[0].mxu0
    %v5407 = vadd.f32 0.0, %v5406
    %v5408 = vpop.f32.mrb[0].mxu0
    %5409 = vmatprep.mubr.bf16.mxu0 0
    %5410 = vmatmul.mubr.bf16.gmra.mrb[0].mxu0 %v5336
    %v5411 = vpop.f32.mrb[0].mxu0
    %v5412 = vadd.f32 0.0, %v5411
    %v5413 = vpop.f32.mrb[0].mxu0
    %v5414 = vpop.f32.mrb[0].mxu0
    %v5415 = vadd.f32 0.0, %v5414
    %v5416 = vpop.f32.mrb[0].mxu0
    %5417 = vmatprep.mubr.bf16.mxu0 0
    %5418 = vmatmul.mubr.bf16.gmra.mrb[0].mxu0 %v5339
    %v5419 = vpop.f32.mrb[0].mxu0
    %v5420 = vadd.f32 0.0, %v5419
    %v5421 = vpop.f32.mrb[0].mxu0
    %v5422 = vpop.f32.mrb[0].mxu0
    %v5423 = vadd.f32 0.0, %v5422
    %v5424 = vpop.f32.mrb[0].mxu0
    %5425 = vmatprep.mubr.bf16.mxu0 0
    %5426 = vmatmul.mubr.bf16.gmra.mrb[0].mxu0 %v5342
    %v5427 = vpop.f32.mrb[0].mxu0
    %v5428 = vadd.f32 0.0, %v5427
    %v5429 = vpop.f32.mrb[0].mxu0
    %v5430 = vpop.f32.mrb[0].mxu0
    %v5431 = vadd.f32 0.0, %v5430
    %v5432 = vpop.f32.mrb[0].mxu0
    %5433 = vmatprep.mubr.bf16.mxu0 0
    %5434 = vmatmul.mubr.bf16.gmra.mrb[0].mxu0 %v5345
    %v5435 = vpop.f32.mrb[0].mxu0
    %v5436 = vadd.f32 0.0, %v5435
    %v5437 = vpop.f32.mrb[0].mxu0
    %v5438 = vpop.f32.mrb[0].mxu0
    %v5439 = vadd.f32 0.0, %v5438
    %v5440 = vpop.f32.mrb[0].mxu0
    %5441 = vmatprep.mubr.bf16.mxu0 0
    %5442 = vmatmul.mubr.bf16.gmra.mrb[0].mxu0 %v5348
    %v5443 = vpop.f32.mrb[0].mxu0
    %v5444 = vadd.f32 0.0, %v5443
    %v5445 = vpop.f32.mrb[0].mxu0
    %v5446 = vpop.f32.mrb[0].mxu0
    %v5447 = vadd.f32 0.0, %v5446
    %v5448 = vpop.f32.mrb[0].mxu0
    %5449 = vdwg.mxu0
    %v5450 = vadd.f32 %v5218, %v5388
    %v5451 = vadd.f32 %v5219, %v5391
    %v5452 = vadd.f32 %v5220, %v5396
    %v5453 = vadd.f32 %v5221, %v5399
    %v5454 = vadd.f32 %v5222, %v5404
    %v5455 = vadd.f32 %v5223, %v5407
    %v5456 = vadd.f32 %v5224, %v5412
    %v5457 = vadd.f32 %v5225, %v5415
    %v5458 = vadd.f32 %v5226, %v5420
    %v5459 = vadd.f32 %v5227, %v5423
    %v5460 = vadd.f32 %v5228, %v5428
    %v5461 = vadd.f32 %v5229, %v5431
    %v5462 = vadd.f32 %v5230, %v5436
    %v5463 = vadd.f32 %v5231, %v5439
    %v5464 = vadd.f32 %v5232, %v5444
    %v5465 = vadd.f32 %v5233, %v5447
    %v5466 = vld [vmem:[%s0 + $0x28] sm:$0x7]
    %v5467 = vld [vmem:[%s0 + $0x58] sm:$0x7]
    %v5469 = vshrl.u32 %v5234, 16
    %v5471 = vrot.slane %v5469, 6
    %v5472 = vshll.u32 %v5234, 16
    %v5474 = vrot.slane %v5472, 7
    %v5475 = vor.u32 %v5471, %v5474
    %v5476 = vrot.slane %v5475, 4
    %v5477 = vrot.slane %v4374, 6
    %v5478 = vrot.slane %v4370, 7
    %v5479 = vor.u32 %v5477, %v5478
    %v5480 = vsel %vm1319, %v5476, %v5479
    %v5481 = vrot.slane %v5479, 4
    %v5482 = vrot.slane %v4384, 6
    %v5483 = vrot.slane %v4380, 7
    %v5484 = vor.u32 %v5482, %v5483
    %v5485 = vsel %vm1319, %v5481, %v5484
    %v5486 = vrot.slane %v5484, 4
    %v5487 = vrot.slane %v4394, 6
    %v5488 = vrot.slane %v4390, 7
    %v5489 = vor.u32 %v5487, %v5488
    %v5490 = vsel %vm1319, %v5486, %v5489
    %v5491 = vrot.slane %v5489, 4
    %v5492 = vrot.slane %v4404, 6
    %v5493 = vrot.slane %v4400, 7
    %v5494 = vor.u32 %v5492, %v5493
    %v5495 = vsel %vm1319, %v5491, %v5494
    %v5496 = vrot.slane %v5494, 4
    %v5497 = vrot.slane %v4414, 6
    %v5498 = vrot.slane %v4410, 7
    %v5499 = vor.u32 %v5497, %v5498
    %v5500 = vsel %vm1319, %v5496, %v5499
    %v5501 = vrot.slane %v5499, 4
    %v5502 = vrot.slane %v4424, 6
    %v5503 = vrot.slane %v4420, 7
    %v5504 = vor.u32 %v5502, %v5503
    %v5505 = vsel %vm1319, %v5501, %v5504
    %v5506 = vrot.slane %v5504, 4
    %v5507 = vrot.slane %v4434, 6
    %v5508 = vrot.slane %v4430, 7
    %v5509 = vor.u32 %v5507, %v5508
    %v5510 = vsel %vm1319, %v5506, %v5509
    %v5511 = vrot.slane %v5509, 4
    %v5513 = vshrl.u32 %v5466, 16
    %v5515 = vrot.slane %v5513, 6
    %v5516 = vshll.u32 %v5466, 16
    %v5518 = vrot.slane %v5516, 7
    %v5519 = vor.u32 %v5515, %v5518
    %v5520 = vsel %vm1319, %v5511, %v5519
    %v5522 = vshrl.u32 %v5235, 16
    %v5524 = vrot.slane %v5522, 6
    %v5525 = vshll.u32 %v5235, 16
    %v5527 = vrot.slane %v5525, 7
    %v5528 = vor.u32 %v5524, %v5527
    %v5529 = vrot.slane %v5528, 4
    %v5530 = vrot.slane %v4458, 6
    %v5531 = vrot.slane %v4454, 7
    %v5532 = vor.u32 %v5530, %v5531
    %v5533 = vsel %vm1319, %v5529, %v5532
    %v5534 = vrot.slane %v5532, 4
    %v5535 = vrot.slane %v4468, 6
    %v5536 = vrot.slane %v4464, 7
    %v5537 = vor.u32 %v5535, %v5536
    %v5538 = vsel %vm1319, %v5534, %v5537
    %v5539 = vrot.slane %v5537, 4
    %v5540 = vrot.slane %v4478, 6
    %v5541 = vrot.slane %v4474, 7
    %v5542 = vor.u32 %v5540, %v5541
    %v5543 = vsel %vm1319, %v5539, %v5542
    %v5544 = vrot.slane %v5542, 4
    %v5545 = vrot.slane %v4488, 6
    %v5546 = vrot.slane %v4484, 7
    %v5547 = vor.u32 %v5545, %v5546
    %v5548 = vsel %vm1319, %v5544, %v5547
    %v5549 = vrot.slane %v5547, 4
    %v5550 = vrot.slane %v4498, 6
    %v5551 = vrot.slane %v4494, 7
    %v5552 = vor.u32 %v5550, %v5551
    %v5553 = vsel %vm1319, %v5549, %v5552
    %v5554 = vrot.slane %v5552, 4
    %v5555 = vrot.slane %v4508, 6
    %v5556 = vrot.slane %v4504, 7
    %v5557 = vor.u32 %v5555, %v5556
    %v5558 = vsel %vm1319, %v5554, %v5557
    %v5559 = vrot.slane %v5557, 4
    %v5560 = vrot.slane %v4518, 6
    %v5561 = vrot.slane %v4514, 7
    %v5562 = vor.u32 %v5560, %v5561
    %v5563 = vsel %vm1319, %v5559, %v5562
    %v5564 = vrot.slane %v5562, 4
    %v5566 = vshrl.u32 %v5467, 16
    %v5568 = vrot.slane %v5566, 6
    %v5569 = vshll.u32 %v5467, 16
    %v5571 = vrot.slane %v5569, 7
    %v5572 = vor.u32 %v5568, %v5571
    %v5573 = vsel %vm1319, %v5564, %v5572
    %v5574 = vld [vmem:[%s2 + $0xfc] sm:$0xf]
    %v5575 = vld [vmem:[%s2 + $0x100] sm:$0xf]
    %v5576 = vld [vmem:[%s2 + $0x104] sm:$0xf]
    %v5577 = vunpack.c.l.b16 %v5480
    %v5578 = vunpack.c.l.b16 %v5485
    %v5579 = vunpack.c.l.b16 %v5490
    %v5580 = vunpack.c.l.b16 %v5495
    %v5581 = vunpack.c.l.b16 %v5500
    %v5582 = vunpack.c.l.b16 %v5505
    %v5583 = vunpack.c.l.b16 %v5510
    %v5584 = vunpack.c.l.b16 %v5520
    %v5585 = vunpack.c.l.b16 %v5533
    %v5586 = vunpack.c.l.b16 %v5538
    %v5587 = vunpack.c.l.b16 %v5543
    %v5588 = vunpack.c.l.b16 %v5548
    %v5589 = vunpack.c.l.b16 %v5553
    %v5590 = vunpack.c.l.b16 %v5558
    %v5591 = vunpack.c.l.b16 %v5563
    %v5592 = vunpack.c.l.b16 %v5573
    %v5593 = vpack.c.b16 %v5578, %v5577
    %v5594 = vpack.c.b16 %v5580, %v5579
    %v5595 = vpack.c.b16 %v5582, %v5581
    %v5596 = vpack.c.b16 %v5584, %v5583
    %v5597 = vpack.c.b16 %v5586, %v5585
    %v5598 = vpack.c.b16 %v5588, %v5587
    %v5599 = vpack.c.b16 %v5590, %v5589
    %v5600 = vpack.c.b16 %v5592, %v5591
    %v5604 = vunpack.c.l.b16 %v5574
    %v5605 = vunpack.c.l.b16 %v5575
    %v5606 = vunpack.c.l.b16 %v5576
    %v5607 = vpack.c.b16 %v5605, %v5604
    %v5608 = vpack.c.b16 %v5606, %v5606
    %v5611 = vsel %vm259, %v5593, 0
    %v5614 = vsel %vm259, %v5594, 0
    %v5617 = vsel %vm259, %v5595, 0
    %v5620 = vsel %vm259, %v5596, 0
    %v5623 = vsel %vm259, %v5597, 0
    %v5626 = vsel %vm259, %v5598, 0
    %v5629 = vsel %vm259, %v5599, 0
    %v5632 = vsel %vm259, %v5600, 0
    %v5635 = vsel %vm284, %v5608, 0
    %5637 = vmatprep.subr.bf16.mxu0 0
    %5638 = vmatpush1.bf16.msra.mxu0 %v5607
    %5639 = vmatprep.subr.bf16.mxu0 0
    %5640 = vmatpush1.bf16.msra.mxu0 %v5635
    %5641 = vmatprep.subr.bf16.mxu0 0
    %5642 = vmatpush1.bf16.msra.mxu0 0
    %5643 = vmatprep.subr.bf16.mxu0 0
    %5644 = vmatpush1.bf16.msra.mxu0 0
    %5645 = vmatprep.subr.bf16.mxu0 0
    %5646 = vmatpush1.bf16.msra.mxu0 0
    %5647 = vmatprep.subr.bf16.mxu0 0
    %5648 = vmatpush1.bf16.msra.mxu0 0
    %5649 = vmatprep.subr.bf16.mxu0 0
    %5650 = vmatpush1.bf16.msra.mxu0 0
    %5651 = vmatprep.subr.bf16.mxu0 0
    %5652 = vmatpush1.bf16.msra.mxu0 0
    %5653 = vmatprep.subr.bf16.mxu0 0
    %5654 = vmatpush1.bf16.msra.mxu0 0
    %5655 = vmatprep.subr.bf16.mxu0 0
    %5656 = vmatpush1.bf16.msra.mxu0 0
    %5657 = vmatprep.subr.bf16.mxu0 0
    %5658 = vmatpush1.bf16.msra.mxu0 0
    %5659 = vmatprep.subr.bf16.mxu0 0
    %5660 = vmatpush1.bf16.msra.mxu0 0
    %5661 = vmatprep.subr.bf16.mxu0 0
    %5662 = vmatpush1.bf16.msra.mxu0 0
    %5663 = vmatprep.subr.bf16.mxu0 0
    %5664 = vmatpush1.bf16.msra.mxu0 0
    %5665 = vmatprep.subr.bf16.mxu0 0
    %5666 = vmatpush1.bf16.msra.mxu0 0
    %5667 = vmatprep.subr.bf16.mxu0 0
    %5668 = vmatpush1.bf16.msra.mxu0 0
    %5669 = vmatprep.mubr.bf16.mxu0 0
    %5670 = vmatmul.mubr.bf16.gmra.mrb[0].mxu0 %v5611
    %v5671 = vpop.f32.mrb[0].mxu0
    %v5672 = vadd.f32 0.0, %v5671
    %v5673 = vpop.f32.mrb[0].mxu0
    %v5674 = vpop.f32.mrb[0].mxu0
    %v5675 = vadd.f32 0.0, %v5674
    %v5676 = vpop.f32.mrb[0].mxu0
    %5677 = vmatprep.mubr.bf16.mxu0 0
    %5678 = vmatmul.mubr.bf16.gmra.mrb[0].mxu0 %v5614
    %v5679 = vpop.f32.mrb[0].mxu0
    %v5680 = vadd.f32 0.0, %v5679
    %v5681 = vpop.f32.mrb[0].mxu0
    %v5682 = vpop.f32.mrb[0].mxu0
    %v5683 = vadd.f32 0.0, %v5682
    %v5684 = vpop.f32.mrb[0].mxu0
    %5685 = vmatprep.mubr.bf16.mxu0 0
    %5686 = vmatmul.mubr.bf16.gmra.mrb[0].mxu0 %v5617
    %v5687 = vpop.f32.mrb[0].mxu0
    %v5688 = vadd.f32 0.0, %v5687
    %v5689 = vpop.f32.mrb[0].mxu0
    %v5690 = vpop.f32.mrb[0].mxu0
    %v5691 = vadd.f32 0.0, %v5690
    %v5692 = vpop.f32.mrb[0].mxu0
    %5693 = vmatprep.mubr.bf16.mxu0 0
    %5694 = vmatmul.mubr.bf16.gmra.mrb[0].mxu0 %v5620
    %v5695 = vpop.f32.mrb[0].mxu0
    %v5696 = vadd.f32 0.0, %v5695
    %v5697 = vpop.f32.mrb[0].mxu0
    %v5698 = vpop.f32.mrb[0].mxu0
    %v5699 = vadd.f32 0.0, %v5698
    %v5700 = vpop.f32.mrb[0].mxu0
    %5701 = vmatprep.mubr.bf16.mxu0 0
    %5702 = vmatmul.mubr.bf16.gmra.mrb[0].mxu0 %v5623
    %v5703 = vpop.f32.mrb[0].mxu0
    %v5704 = vadd.f32 0.0, %v5703
    %v5705 = vpop.f32.mrb[0].mxu0
    %v5706 = vpop.f32.mrb[0].mxu0
    %v5707 = vadd.f32 0.0, %v5706
    %v5708 = vpop.f32.mrb[0].mxu0
    %5709 = vmatprep.mubr.bf16.mxu0 0
    %5710 = vmatmul.mubr.bf16.gmra.mrb[0].mxu0 %v5626
    %v5711 = vpop.f32.mrb[0].mxu0
    %v5712 = vadd.f32 0.0, %v5711
    %v5713 = vpop.f32.mrb[0].mxu0
    %v5714 = vpop.f32.mrb[0].mxu0
    %v5715 = vadd.f32 0.0, %v5714
    %v5716 = vpop.f32.mrb[0].mxu0
    %5717 = vmatprep.mubr.bf16.mxu0 0
    %5718 = vmatmul.mubr.bf16.gmra.mrb[0].mxu0 %v5629
    %v5719 = vpop.f32.mrb[0].mxu0
    %v5720 = vadd.f32 0.0, %v5719
    %v5721 = vpop.f32.mrb[0].mxu0
    %v5722 = vpop.f32.mrb[0].mxu0
    %v5723 = vadd.f32 0.0, %v5722
    %v5724 = vpop.f32.mrb[0].mxu0
    %5725 = vmatprep.mubr.bf16.mxu0 0
    %5726 = vmatmul.mubr.bf16.gmra.mrb[0].mxu0 %v5632
    %v5727 = vpop.f32.mrb[0].mxu0
    %v5728 = vadd.f32 0.0, %v5727
    %v5729 = vpop.f32.mrb[0].mxu0
    %v5730 = vpop.f32.mrb[0].mxu0
    %v5731 = vadd.f32 0.0, %v5730
    %v5732 = vpop.f32.mrb[0].mxu0
    %5733 = vdwg.mxu0
    %v5734 = vadd.f32 %v5450, %v5672
    %v5735 = vadd.f32 %v5451, %v5675
    %v5736 = vadd.f32 %v5452, %v5680
    %v5737 = vadd.f32 %v5453, %v5683
    %v5738 = vadd.f32 %v5454, %v5688
    %v5739 = vadd.f32 %v5455, %v5691
    %v5740 = vadd.f32 %v5456, %v5696
    %v5741 = vadd.f32 %v5457, %v5699
    %v5742 = vadd.f32 %v5458, %v5704
    %v5743 = vadd.f32 %v5459, %v5707
    %v5744 = vadd.f32 %v5460, %v5712
    %v5745 = vadd.f32 %v5461, %v5715
    %v5746 = vadd.f32 %v5462, %v5720
    %v5747 = vadd.f32 %v5463, %v5723
    %v5748 = vadd.f32 %v5464, %v5728
    %v5749 = vadd.f32 %v5465, %v5731
    %v5750 = vld [vmem:[%s0 + $0x8] sm:$0x8]
    %v5751 = vld [vmem:[%s0 + $0x38] sm:$0x8]
    %v5756 = vrot.slane %v5750, 7
    %v5757 = vrot.slane %v5756, 4
    %v5758 = vrot.slane %v4343, 7
    %v5759 = vsel %vm1610, %v5757, %v5758
    %v5760 = vrot.slane %v5758, 4
    %v5761 = vrot.slane %v4344, 7
    %v5762 = vsel %vm1610, %v5760, %v5761
    %v5763 = vrot.slane %v5761, 4
    %v5764 = vrot.slane %v4345, 7
    %v5765 = vsel %vm1610, %v5763, %v5764
    %v5766 = vrot.slane %v5764, 4
    %v5767 = vrot.slane %v4346, 7
    %v5768 = vsel %vm1610, %v5766, %v5767
    %v5769 = vrot.slane %v5767, 4
    %v5770 = vrot.slane %v4347, 7
    %v5771 = vsel %vm1610, %v5769, %v5770
    %v5772 = vrot.slane %v5770, 4
    %v5773 = vrot.slane %v4348, 7
    %v5774 = vsel %vm1610, %v5772, %v5773
    %v5775 = vrot.slane %v5773, 4
    %v5776 = vrot.slane %v4349, 7
    %v5777 = vsel %vm1610, %v5775, %v5776
    %v5778 = vrot.slane %v5776, 4
    %v5779 = vrot.slane %v5466, 7
    %v5780 = vsel %vm1610, %v5778, %v5779
    %v5781 = vrot.slane %v5751, 7
    %v5782 = vrot.slane %v5781, 4
    %v5783 = vrot.slane %v4352, 7
    %v5784 = vsel %vm1610, %v5782, %v5783
    %v5785 = vrot.slane %v5783, 4
    %v5786 = vrot.slane %v4353, 7
    %v5787 = vsel %vm1610, %v5785, %v5786
    %v5788 = vrot.slane %v5786, 4
    %v5789 = vrot.slane %v4354, 7
    %v5790 = vsel %vm1610, %v5788, %v5789
    %v5791 = vrot.slane %v5789, 4
    %v5792 = vrot.slane %v4355, 7
    %v5793 = vsel %vm1610, %v5791, %v5792
    %v5794 = vrot.slane %v5792, 4
    %v5795 = vrot.slane %v4356, 7
    %v5796 = vsel %vm1610, %v5794, %v5795
    %v5797 = vrot.slane %v5795, 4
    %v5798 = vrot.slane %v4357, 7
    %v5799 = vsel %vm1610, %v5797, %v5798
    %v5800 = vrot.slane %v5798, 4
    %v5801 = vrot.slane %v4358, 7
    %v5802 = vsel %vm1610, %v5800, %v5801
    %v5803 = vrot.slane %v5801, 4
    %v5804 = vrot.slane %v5467, 7
    %v5805 = vsel %vm1610, %v5803, %v5804
    %v5806 = vld [vmem:[%s2 + $0x108] sm:$0xf]
    %v5807 = vld [vmem:[%s2 + $0x10c] sm:$0xf]
    %v5808 = vld [vmem:[%s2 + $0x110] sm:$0xf]
    %v5809 = vunpack.c.l.b16 %v5759
    %v5810 = vunpack.c.l.b16 %v5762
    %v5811 = vunpack.c.l.b16 %v5765
    %v5812 = vunpack.c.l.b16 %v5768
    %v5813 = vunpack.c.l.b16 %v5771
    %v5814 = vunpack.c.l.b16 %v5774
    %v5815 = vunpack.c.l.b16 %v5777
    %v5816 = vunpack.c.l.b16 %v5780
    %v5817 = vunpack.c.l.b16 %v5784
    %v5818 = vunpack.c.l.b16 %v5787
    %v5819 = vunpack.c.l.b16 %v5790
    %v5820 = vunpack.c.l.b16 %v5793
    %v5821 = vunpack.c.l.b16 %v5796
    %v5822 = vunpack.c.l.b16 %v5799
    %v5823 = vunpack.c.l.b16 %v5802
    %v5824 = vunpack.c.l.b16 %v5805
    %v5825 = vpack.c.b16 %v5810, %v5809
    %v5826 = vpack.c.b16 %v5812, %v5811
    %v5827 = vpack.c.b16 %v5814, %v5813
    %v5828 = vpack.c.b16 %v5816, %v5815
    %v5829 = vpack.c.b16 %v5818, %v5817
    %v5830 = vpack.c.b16 %v5820, %v5819
    %v5831 = vpack.c.b16 %v5822, %v5821
    %v5832 = vpack.c.b16 %v5824, %v5823
    %v5836 = vunpack.c.l.b16 %v5806
    %v5837 = vunpack.c.l.b16 %v5807
    %v5838 = vunpack.c.l.b16 %v5808
    %v5839 = vpack.c.b16 %v5837, %v5836
    %v5840 = vpack.c.b16 %v5838, %v5838
    %v5843 = vsel %vm259, %v5825, 0
    %v5846 = vsel %vm259, %v5826, 0
    %v5849 = vsel %vm259, %v5827, 0
    %v5852 = vsel %vm259, %v5828, 0
    %v5855 = vsel %vm259, %v5829, 0
    %v5858 = vsel %vm259, %v5830, 0
    %v5861 = vsel %vm259, %v5831, 0
    %v5864 = vsel %vm259, %v5832, 0
    %v5867 = vsel %vm284, %v5840, 0
    %5869 = vmatprep.subr.bf16.mxu0 0
    %5870 = vmatpush1.bf16.msra.mxu0 %v5839
    %5871 = vmatprep.subr.bf16.mxu0 0
    %5872 = vmatpush1.bf16.msra.mxu0 %v5867
    %5873 = vmatprep.subr.bf16.mxu0 0
    %5874 = vmatpush1.bf16.msra.mxu0 0
    %5875 = vmatprep.subr.bf16.mxu0 0
    %5876 = vmatpush1.bf16.msra.mxu0 0
    %5877 = vmatprep.subr.bf16.mxu0 0
    %5878 = vmatpush1.bf16.msra.mxu0 0
    %5879 = vmatprep.subr.bf16.mxu0 0
    %5880 = vmatpush1.bf16.msra.mxu0 0
    %5881 = vmatprep.subr.bf16.mxu0 0
    %5882 = vmatpush1.bf16.msra.mxu0 0
    %5883 = vmatprep.subr.bf16.mxu0 0
    %5884 = vmatpush1.bf16.msra.mxu0 0
    %5885 = vmatprep.subr.bf16.mxu0 0
    %5886 = vmatpush1.bf16.msra.mxu0 0
    %5887 = vmatprep.subr.bf16.mxu0 0
    %5888 = vmatpush1.bf16.msra.mxu0 0
    %5889 = vmatprep.subr.bf16.mxu0 0
    %5890 = vmatpush1.bf16.msra.mxu0 0
    %5891 = vmatprep.subr.bf16.mxu0 0
    %5892 = vmatpush1.bf16.msra.mxu0 0
    %5893 = vmatprep.subr.bf16.mxu0 0
    %5894 = vmatpush1.bf16.msra.mxu0 0
    %5895 = vmatprep.subr.bf16.mxu0 0
    %5896 = vmatpush1.bf16.msra.mxu0 0
    %5897 = vmatprep.subr.bf16.mxu0 0
    %5898 = vmatpush1.bf16.msra.mxu0 0
    %5899 = vmatprep.subr.bf16.mxu0 0
    %5900 = vmatpush1.bf16.msra.mxu0 0
    %5901 = vmatprep.mubr.bf16.mxu0 0
    %5902 = vmatmul.mubr.bf16.gmra.mrb[0].mxu0 %v5843
    %v5903 = vpop.f32.mrb[0].mxu0
    %v5904 = vadd.f32 0.0, %v5903
    %v5905 = vpop.f32.mrb[0].mxu0
    %v5906 = vpop.f32.mrb[0].mxu0
    %v5907 = vadd.f32 0.0, %v5906
    %v5908 = vpop.f32.mrb[0].mxu0
    %5909 = vmatprep.mubr.bf16.mxu0 0
    %5910 = vmatmul.mubr.bf16.gmra.mrb[0].mxu0 %v5846
    %v5911 = vpop.f32.mrb[0].mxu0
    %v5912 = vadd.f32 0.0, %v5911
    %v5913 = vpop.f32.mrb[0].mxu0
    %v5914 = vpop.f32.mrb[0].mxu0
    %v5915 = vadd.f32 0.0, %v5914
    %v5916 = vpop.f32.mrb[0].mxu0
    %5917 = vmatprep.mubr.bf16.mxu0 0
    %5918 = vmatmul.mubr.bf16.gmra.mrb[0].mxu0 %v5849
    %v5919 = vpop.f32.mrb[0].mxu0
    %v5920 = vadd.f32 0.0, %v5919
    %v5921 = vpop.f32.mrb[0].mxu0
    %v5922 = vpop.f32.mrb[0].mxu0
    %v5923 = vadd.f32 0.0, %v5922
    %v5924 = vpop.f32.mrb[0].mxu0
    %5925 = vmatprep.mubr.bf16.mxu0 0
    %5926 = vmatmul.mubr.bf16.gmra.mrb[0].mxu0 %v5852
    %v5927 = vpop.f32.mrb[0].mxu0
    %v5928 = vadd.f32 0.0, %v5927
    %v5929 = vpop.f32.mrb[0].mxu0
    %v5930 = vpop.f32.mrb[0].mxu0
    %v5931 = vadd.f32 0.0, %v5930
    %v5932 = vpop.f32.mrb[0].mxu0
    %5933 = vmatprep.mubr.bf16.mxu0 0
    %5934 = vmatmul.mubr.bf16.gmra.mrb[0].mxu0 %v5855
    %v5935 = vpop.f32.mrb[0].mxu0
    %v5936 = vadd.f32 0.0, %v5935
    %v5937 = vpop.f32.mrb[0].mxu0
    %v5938 = vpop.f32.mrb[0].mxu0
    %v5939 = vadd.f32 0.0, %v5938
    %v5940 = vpop.f32.mrb[0].mxu0
    %5941 = vmatprep.mubr.bf16.mxu0 0
    %5942 = vmatmul.mubr.bf16.gmra.mrb[0].mxu0 %v5858
    %v5943 = vpop.f32.mrb[0].mxu0
    %v5944 = vadd.f32 0.0, %v5943
    %v5945 = vpop.f32.mrb[0].mxu0
    %v5946 = vpop.f32.mrb[0].mxu0
    %v5947 = vadd.f32 0.0, %v5946
    %v5948 = vpop.f32.mrb[0].mxu0
    %5949 = vmatprep.mubr.bf16.mxu0 0
    %5950 = vmatmul.mubr.bf16.gmra.mrb[0].mxu0 %v5861
    %v5951 = vpop.f32.mrb[0].mxu0
    %v5952 = vadd.f32 0.0, %v5951
    %v5953 = vpop.f32.mrb[0].mxu0
    %v5954 = vpop.f32.mrb[0].mxu0
    %v5955 = vadd.f32 0.0, %v5954
    %v5956 = vpop.f32.mrb[0].mxu0
    %5957 = vmatprep.mubr.bf16.mxu0 0
    %5958 = vmatmul.mubr.bf16.gmra.mrb[0].mxu0 %v5864
    %v5959 = vpop.f32.mrb[0].mxu0
    %v5960 = vadd.f32 0.0, %v5959
    %v5961 = vpop.f32.mrb[0].mxu0
    %v5962 = vpop.f32.mrb[0].mxu0
    %v5963 = vadd.f32 0.0, %v5962
    %v5964 = vpop.f32.mrb[0].mxu0
    %5965 = vdwg.mxu0
    %v5966 = vadd.f32 %v5734, %v5904
    %v5967 = vadd.f32 %v5735, %v5907
    %v5968 = vadd.f32 %v5736, %v5912
    %v5969 = vadd.f32 %v5737, %v5915
    %v5970 = vadd.f32 %v5738, %v5920
    %v5971 = vadd.f32 %v5739, %v5923
    %v5972 = vadd.f32 %v5740, %v5928
    %v5973 = vadd.f32 %v5741, %v5931
    %v5974 = vadd.f32 %v5742, %v5936
    %v5975 = vadd.f32 %v5743, %v5939
    %v5976 = vadd.f32 %v5744, %v5944
    %v5977 = vadd.f32 %v5745, %v5947
    %v5978 = vadd.f32 %v5746, %v5952
    %v5979 = vadd.f32 %v5747, %v5955
    %v5980 = vadd.f32 %v5748, %v5960
    %v5981 = vadd.f32 %v5749, %v5963
    %v5982 = vld [vmem:[%s0 + $0x28] sm:$0xf]
    %v5983 = vld [vmem:[%s0 + $0x58] sm:$0xf]
    %v5985 = vshrl.u32 %v5750, 16
    %v5987 = vrot.slane %v5985, 7
    %v5988 = vrot.slane %v5987, 4
    %v5989 = vrot.slane %v4374, 7
    %v5990 = vor.u32 %v5989, %v4370
    %v5991 = vsel %vm1841, %v5988, %v5990
    %v5992 = vrot.slane %v5989, 4
    %v5993 = vrot.slane %v4384, 7
    %v5994 = vor.u32 %v5993, %v4380
    %v5995 = vsel %vm1841, %v5992, %v5994
    %v5996 = vrot.slane %v5993, 4
    %v5997 = vrot.slane %v4394, 7
    %v5998 = vor.u32 %v5997, %v4390
    %v5999 = vsel %vm1841, %v5996, %v5998
    %v6000 = vrot.slane %v5997, 4
    %v6001 = vrot.slane %v4404, 7
    %v6002 = vor.u32 %v6001, %v4400
    %v6003 = vsel %vm1841, %v6000, %v6002
    %v6004 = vrot.slane %v6001, 4
    %v6005 = vrot.slane %v4414, 7
    %v6006 = vor.u32 %v6005, %v4410
    %v6007 = vsel %vm1841, %v6004, %v6006
    %v6008 = vrot.slane %v6005, 4
    %v6009 = vrot.slane %v4424, 7
    %v6010 = vor.u32 %v6009, %v4420
    %v6011 = vsel %vm1841, %v6008, %v6010
    %v6012 = vrot.slane %v6009, 4
    %v6013 = vrot.slane %v4434, 7
    %v6014 = vor.u32 %v6013, %v4430
    %v6015 = vsel %vm1841, %v6012, %v6014
    %v6016 = vrot.slane %v6013, 4
    %v6018 = vshrl.u32 %v5982, 16
    %v6020 = vrot.slane %v6018, 7
    %v6021 = vshll.u32 %v5982, 16
    %v6023 = vor.u32 %v6020, %v6021
    %v6024 = vsel %vm1841, %v6016, %v6023
    %v6026 = vshrl.u32 %v5751, 16
    %v6028 = vrot.slane %v6026, 7
    %v6029 = vrot.slane %v6028, 4
    %v6030 = vrot.slane %v4458, 7
    %v6031 = vor.u32 %v6030, %v4454
    %v6032 = vsel %vm1841, %v6029, %v6031
    %v6033 = vrot.slane %v6030, 4
    %v6034 = vrot.slane %v4468, 7
    %v6035 = vor.u32 %v6034, %v4464
    %v6036 = vsel %vm1841, %v6033, %v6035
    %v6037 = vrot.slane %v6034, 4
    %v6038 = vrot.slane %v4478, 7
    %v6039 = vor.u32 %v6038, %v4474
    %v6040 = vsel %vm1841, %v6037, %v6039
    %v6041 = vrot.slane %v6038, 4
    %v6042 = vrot.slane %v4488, 7
    %v6043 = vor.u32 %v6042, %v4484
    %v6044 = vsel %vm1841, %v6041, %v6043
    %v6045 = vrot.slane %v6042, 4
    %v6046 = vrot.slane %v4498, 7
    %v6047 = vor.u32 %v6046, %v4494
    %v6048 = vsel %vm1841, %v6045, %v6047
    %v6049 = vrot.slane %v6046, 4
    %v6050 = vrot.slane %v4508, 7
    %v6051 = vor.u32 %v6050, %v4504
    %v6052 = vsel %vm1841, %v6049, %v6051
    %v6053 = vrot.slane %v6050, 4
    %v6054 = vrot.slane %v4518, 7
    %v6055 = vor.u32 %v6054, %v4514
    %v6056 = vsel %vm1841, %v6053, %v6055
    %v6057 = vrot.slane %v6054, 4
    %v6059 = vshrl.u32 %v5983, 16
    %v6061 = vrot.slane %v6059, 7
    %v6062 = vshll.u32 %v5983, 16
    %v6064 = vor.u32 %v6061, %v6062
    %v6065 = vsel %vm1841, %v6057, %v6064
    %v6066 = vld [vmem:[%s2 + $0x114] sm:$0xf]
    %v6067 = vld [vmem:[%s2 + $0x118] sm:$0xf]
    %v6068 = vld [vmem:[%s2 + $0x11c] sm:$0xf]
    %v6069 = vunpack.c.l.b16 %v5991
    %v6070 = vunpack.c.l.b16 %v5995
    %v6071 = vunpack.c.l.b16 %v5999
    %v6072 = vunpack.c.l.b16 %v6003
    %v6073 = vunpack.c.l.b16 %v6007
    %v6074 = vunpack.c.l.b16 %v6011
    %v6075 = vunpack.c.l.b16 %v6015
    %v6076 = vunpack.c.l.b16 %v6024
    %v6077 = vunpack.c.l.b16 %v6032
    %v6078 = vunpack.c.l.b16 %v6036
    %v6079 = vunpack.c.l.b16 %v6040
    %v6080 = vunpack.c.l.b16 %v6044
    %v6081 = vunpack.c.l.b16 %v6048
    %v6082 = vunpack.c.l.b16 %v6052
    %v6083 = vunpack.c.l.b16 %v6056
    %v6084 = vunpack.c.l.b16 %v6065
    %v6085 = vpack.c.b16 %v6070, %v6069
    %v6086 = vpack.c.b16 %v6072, %v6071
    %v6087 = vpack.c.b16 %v6074, %v6073
    %v6088 = vpack.c.b16 %v6076, %v6075
    %v6089 = vpack.c.b16 %v6078, %v6077
    %v6090 = vpack.c.b16 %v6080, %v6079
    %v6091 = vpack.c.b16 %v6082, %v6081
    %v6092 = vpack.c.b16 %v6084, %v6083
    %v6096 = vunpack.c.l.b16 %v6066
    %v6097 = vunpack.c.l.b16 %v6067
    %v6098 = vunpack.c.l.b16 %v6068
    %v6099 = vpack.c.b16 %v6097, %v6096
    %v6100 = vpack.c.b16 %v6098, %v6098
    %v6103 = vsel %vm259, %v6085, 0
    %v6106 = vsel %vm259, %v6086, 0
    %v6109 = vsel %vm259, %v6087, 0
    %v6112 = vsel %vm259, %v6088, 0
    %v6115 = vsel %vm259, %v6089, 0
    %v6118 = vsel %vm259, %v6090, 0
    %v6121 = vsel %vm259, %v6091, 0
    %v6124 = vsel %vm259, %v6092, 0
    %v6127 = vsel %vm284, %v6100, 0
    %6129 = vmatprep.subr.bf16.mxu0 0
    %6130 = vmatpush1.bf16.msra.mxu0 %v6099
    %6131 = vmatprep.subr.bf16.mxu0 0
    %6132 = vmatpush1.bf16.msra.mxu0 %v6127
    %6133 = vmatprep.subr.bf16.mxu0 0
    %6134 = vmatpush1.bf16.msra.mxu0 0
    %6135 = vmatprep.subr.bf16.mxu0 0
    %6136 = vmatpush1.bf16.msra.mxu0 0
    %6137 = vmatprep.subr.bf16.mxu0 0
    %6138 = vmatpush1.bf16.msra.mxu0 0
    %6139 = vmatprep.subr.bf16.mxu0 0
    %6140 = vmatpush1.bf16.msra.mxu0 0
    %6141 = vmatprep.subr.bf16.mxu0 0
    %6142 = vmatpush1.bf16.msra.mxu0 0
    %6143 = vmatprep.subr.bf16.mxu0 0
    %6144 = vmatpush1.bf16.msra.mxu0 0
    %6145 = vmatprep.subr.bf16.mxu0 0
    %6146 = vmatpush1.bf16.msra.mxu0 0
    %6147 = vmatprep.subr.bf16.mxu0 0
    %6148 = vmatpush1.bf16.msra.mxu0 0
    %6149 = vmatprep.subr.bf16.mxu0 0
    %6150 = vmatpush1.bf16.msra.mxu0 0
    %6151 = vmatprep.subr.bf16.mxu0 0
    %6152 = vmatpush1.bf16.msra.mxu0 0
    %6153 = vmatprep.subr.bf16.mxu0 0
    %6154 = vmatpush1.bf16.msra.mxu0 0
    %6155 = vmatprep.subr.bf16.mxu0 0
    %6156 = vmatpush1.bf16.msra.mxu0 0
    %6157 = vmatprep.subr.bf16.mxu0 0
    %6158 = vmatpush1.bf16.msra.mxu0 0
    %6159 = vmatprep.subr.bf16.mxu0 0
    %6160 = vmatpush1.bf16.msra.mxu0 0
    %6161 = vmatprep.mubr.bf16.mxu0 0
    %6162 = vmatmul.mubr.bf16.gmra.mrb[0].mxu0 %v6103
    %v6163 = vpop.f32.mrb[0].mxu0
    %v6164 = vadd.f32 0.0, %v6163
    %v6165 = vpop.f32.mrb[0].mxu0
    %v6166 = vpop.f32.mrb[0].mxu0
    %v6167 = vadd.f32 0.0, %v6166
    %v6168 = vpop.f32.mrb[0].mxu0
    %6169 = vmatprep.mubr.bf16.mxu0 0
    %6170 = vmatmul.mubr.bf16.gmra.mrb[0].mxu0 %v6106
    %v6171 = vpop.f32.mrb[0].mxu0
    %v6172 = vadd.f32 0.0, %v6171
    %v6173 = vpop.f32.mrb[0].mxu0
    %v6174 = vpop.f32.mrb[0].mxu0
    %v6175 = vadd.f32 0.0, %v6174
    %v6176 = vpop.f32.mrb[0].mxu0
    %6177 = vmatprep.mubr.bf16.mxu0 0
    %6178 = vmatmul.mubr.bf16.gmra.mrb[0].mxu0 %v6109
    %v6179 = vpop.f32.mrb[0].mxu0
    %v6180 = vadd.f32 0.0, %v6179
    %v6181 = vpop.f32.mrb[0].mxu0
    %v6182 = vpop.f32.mrb[0].mxu0
    %v6183 = vadd.f32 0.0, %v6182
    %v6184 = vpop.f32.mrb[0].mxu0
    %6185 = vmatprep.mubr.bf16.mxu0 0
    %6186 = vmatmul.mubr.bf16.gmra.mrb[0].mxu0 %v6112
    %v6187 = vpop.f32.mrb[0].mxu0
    %v6188 = vadd.f32 0.0, %v6187
    %v6189 = vpop.f32.mrb[0].mxu0
    %v6190 = vpop.f32.mrb[0].mxu0
    %v6191 = vadd.f32 0.0, %v6190
    %v6192 = vpop.f32.mrb[0].mxu0
    %6193 = vmatprep.mubr.bf16.mxu0 0
    %6194 = vmatmul.mubr.bf16.gmra.mrb[0].mxu0 %v6115
    %v6195 = vpop.f32.mrb[0].mxu0
    %v6196 = vadd.f32 0.0, %v6195
    %v6197 = vpop.f32.mrb[0].mxu0
    %v6198 = vpop.f32.mrb[0].mxu0
    %v6199 = vadd.f32 0.0, %v6198
    %v6200 = vpop.f32.mrb[0].mxu0
    %6201 = vmatprep.mubr.bf16.mxu0 0
    %6202 = vmatmul.mubr.bf16.gmra.mrb[0].mxu0 %v6118
    %v6203 = vpop.f32.mrb[0].mxu0
    %v6204 = vadd.f32 0.0, %v6203
    %v6205 = vpop.f32.mrb[0].mxu0
    %v6206 = vpop.f32.mrb[0].mxu0
    %v6207 = vadd.f32 0.0, %v6206
    %v6208 = vpop.f32.mrb[0].mxu0
    %6209 = vmatprep.mubr.bf16.mxu0 0
    %6210 = vmatmul.mubr.bf16.gmra.mrb[0].mxu0 %v6121
    %v6211 = vpop.f32.mrb[0].mxu0
    %v6212 = vadd.f32 0.0, %v6211
    %v6213 = vpop.f32.mrb[0].mxu0
    %v6214 = vpop.f32.mrb[0].mxu0
    %v6215 = vadd.f32 0.0, %v6214
    %v6216 = vpop.f32.mrb[0].mxu0
    %6217 = vmatprep.mubr.bf16.mxu0 0
    %6218 = vmatmul.mubr.bf16.gmra.mrb[0].mxu0 %v6124
    %v6219 = vpop.f32.mrb[0].mxu0
    %v6220 = vadd.f32 0.0, %v6219
    %v6221 = vpop.f32.mrb[0].mxu0
    %v6222 = vpop.f32.mrb[0].mxu0
    %v6223 = vadd.f32 0.0, %v6222
    %v6224 = vpop.f32.mrb[0].mxu0
    %6225 = vdwg.mxu0
    %v6226 = vadd.f32 %v5966, %v6164
    %v6227 = vadd.f32 %v5967, %v6167
    %v6228 = vadd.f32 %v5968, %v6172
    %v6229 = vadd.f32 %v5969, %v6175
    %v6230 = vadd.f32 %v5970, %v6180
    %v6231 = vadd.f32 %v5971, %v6183
    %v6232 = vadd.f32 %v5972, %v6188
    %v6233 = vadd.f32 %v5973, %v6191
    %v6234 = vadd.f32 %v5974, %v6196
    %v6235 = vadd.f32 %v5975, %v6199
    %v6236 = vadd.f32 %v5976, %v6204
    %v6237 = vadd.f32 %v5977, %v6207
    %v6238 = vadd.f32 %v5978, %v6212
    %v6239 = vadd.f32 %v5979, %v6215
    %v6240 = vadd.f32 %v5980, %v6220
    %v6241 = vadd.f32 %v5981, %v6223
    %v6242 = vld [vmem:[%s2 + $0x120] sm:$0xf]
    %v6243 = vld [vmem:[%s2 + $0x124] sm:$0xf]
    %v6244 = vld [vmem:[%s2 + $0x128] sm:$0xf]
    %v6247 = vunpack.c.l.b16 %v4343
    %v6248 = vunpack.c.l.b16 %v4344
    %v6249 = vunpack.c.l.b16 %v4345
    %v6250 = vunpack.c.l.b16 %v4346
    %v6251 = vunpack.c.l.b16 %v4347
    %v6252 = vunpack.c.l.b16 %v4348
    %v6253 = vunpack.c.l.b16 %v4349
    %v6254 = vunpack.c.l.b16 %v5982
    %v6255 = vunpack.c.l.b16 %v4352
    %v6256 = vunpack.c.l.b16 %v4353
    %v6257 = vunpack.c.l.b16 %v4354
    %v6258 = vunpack.c.l.b16 %v4355
    %v6259 = vunpack.c.l.b16 %v4356
    %v6260 = vunpack.c.l.b16 %v4357
    %v6261 = vunpack.c.l.b16 %v4358
    %v6262 = vunpack.c.l.b16 %v5983
    %v6263 = vpack.c.b16 %v6248, %v6247
    %v6264 = vpack.c.b16 %v6250, %v6249
    %v6265 = vpack.c.b16 %v6252, %v6251
    %v6266 = vpack.c.b16 %v6254, %v6253
    %v6267 = vpack.c.b16 %v6256, %v6255
    %v6268 = vpack.c.b16 %v6258, %v6257
    %v6269 = vpack.c.b16 %v6260, %v6259
    %v6270 = vpack.c.b16 %v6262, %v6261
    %v6274 = vunpack.c.l.b16 %v6242
    %v6275 = vunpack.c.l.b16 %v6243
    %v6276 = vunpack.c.l.b16 %v6244
    %v6277 = vpack.c.b16 %v6275, %v6274
    %v6278 = vpack.c.b16 %v6276, %v6276
    %v6281 = vsel %vm259, %v6263, 0
    %v6284 = vsel %vm259, %v6264, 0
    %v6287 = vsel %vm259, %v6265, 0
    %v6290 = vsel %vm259, %v6266, 0
    %v6293 = vsel %vm259, %v6267, 0
    %v6296 = vsel %vm259, %v6268, 0
    %v6299 = vsel %vm259, %v6269, 0
    %v6302 = vsel %vm259, %v6270, 0
    %v6305 = vsel %vm284, %v6278, 0
    %6307 = vmatprep.subr.bf16.mxu0 0
    %6308 = vmatpush1.bf16.msra.mxu0 %v6277
    %6309 = vmatprep.subr.bf16.mxu0 0
    %6310 = vmatpush1.bf16.msra.mxu0 %v6305
    %6311 = vmatprep.subr.bf16.mxu0 0
    %6312 = vmatpush1.bf16.msra.mxu0 0
    %6313 = vmatprep.subr.bf16.mxu0 0
    %6314 = vmatpush1.bf16.msra.mxu0 0
    %6315 = vmatprep.subr.bf16.mxu0 0
    %6316 = vmatpush1.bf16.msra.mxu0 0
    %6317 = vmatprep.subr.bf16.mxu0 0
    %6318 = vmatpush1.bf16.msra.mxu0 0
    %6319 = vmatprep.subr.bf16.mxu0 0
    %6320 = vmatpush1.bf16.msra.mxu0 0
    %6321 = vmatprep.subr.bf16.mxu0 0
    %6322 = vmatpush1.bf16.msra.mxu0 0
    %6323 = vmatprep.subr.bf16.mxu0 0
    %6324 = vmatpush1.bf16.msra.mxu0 0
    %6325 = vmatprep.subr.bf16.mxu0 0
    %6326 = vmatpush1.bf16.msra.mxu0 0
    %6327 = vmatprep.subr.bf16.mxu0 0
    %6328 = vmatpush1.bf16.msra.mxu0 0
    %6329 = vmatprep.subr.bf16.mxu0 0
    %6330 = vmatpush1.bf16.msra.mxu0 0
    %6331 = vmatprep.subr.bf16.mxu0 0
    %6332 = vmatpush1.bf16.msra.mxu0 0
    %6333 = vmatprep.subr.bf16.mxu0 0
    %6334 = vmatpush1.bf16.msra.mxu0 0
    %6335 = vmatprep.subr.bf16.mxu0 0
    %6336 = vmatpush1.bf16.msra.mxu0 0
    %6337 = vmatprep.subr.bf16.mxu0 0
    %6338 = vmatpush1.bf16.msra.mxu0 0
    %6339 = vmatprep.mubr.bf16.mxu0 0
    %6340 = vmatmul.mubr.bf16.gmra.mrb[0].mxu0 %v6281
    %v6341 = vpop.f32.mrb[0].mxu0
    %v6342 = vadd.f32 0.0, %v6341
    %v6343 = vpop.f32.mrb[0].mxu0
    %v6344 = vpop.f32.mrb[0].mxu0
    %v6345 = vadd.f32 0.0, %v6344
    %v6346 = vpop.f32.mrb[0].mxu0
    %6347 = vmatprep.mubr.bf16.mxu0 0
    %6348 = vmatmul.mubr.bf16.gmra.mrb[0].mxu0 %v6284
    %v6349 = vpop.f32.mrb[0].mxu0
    %v6350 = vadd.f32 0.0, %v6349
    %v6351 = vpop.f32.mrb[0].mxu0
    %v6352 = vpop.f32.mrb[0].mxu0
    %v6353 = vadd.f32 0.0, %v6352
    %v6354 = vpop.f32.mrb[0].mxu0
    %6355 = vmatprep.mubr.bf16.mxu0 0
    %6356 = vmatmul.mubr.bf16.gmra.mrb[0].mxu0 %v6287
    %v6357 = vpop.f32.mrb[0].mxu0
    %v6358 = vadd.f32 0.0, %v6357
    %v6359 = vpop.f32.mrb[0].mxu0
    %v6360 = vpop.f32.mrb[0].mxu0
    %v6361 = vadd.f32 0.0, %v6360
    %v6362 = vpop.f32.mrb[0].mxu0
    %6363 = vmatprep.mubr.bf16.mxu0 0
    %6364 = vmatmul.mubr.bf16.gmra.mrb[0].mxu0 %v6290
    %v6365 = vpop.f32.mrb[0].mxu0
    %v6366 = vadd.f32 0.0, %v6365
    %v6367 = vpop.f32.mrb[0].mxu0
    %v6368 = vpop.f32.mrb[0].mxu0
    %v6369 = vadd.f32 0.0, %v6368
    %v6370 = vpop.f32.mrb[0].mxu0
    %6371 = vmatprep.mubr.bf16.mxu0 0
    %6372 = vmatmul.mubr.bf16.gmra.mrb[0].mxu0 %v6293
    %v6373 = vpop.f32.mrb[0].mxu0
    %v6374 = vadd.f32 0.0, %v6373
    %v6375 = vpop.f32.mrb[0].mxu0
    %v6376 = vpop.f32.mrb[0].mxu0
    %v6377 = vadd.f32 0.0, %v6376
    %v6378 = vpop.f32.mrb[0].mxu0
    %6379 = vmatprep.mubr.bf16.mxu0 0
    %6380 = vmatmul.mubr.bf16.gmra.mrb[0].mxu0 %v6296
    %v6381 = vpop.f32.mrb[0].mxu0
    %v6382 = vadd.f32 0.0, %v6381
    %v6383 = vpop.f32.mrb[0].mxu0
    %v6384 = vpop.f32.mrb[0].mxu0
    %v6385 = vadd.f32 0.0, %v6384
    %v6386 = vpop.f32.mrb[0].mxu0
    %6387 = vmatprep.mubr.bf16.mxu0 0
    %6388 = vmatmul.mubr.bf16.gmra.mrb[0].mxu0 %v6299
    %v6389 = vpop.f32.mrb[0].mxu0
    %v6390 = vadd.f32 0.0, %v6389
    %v6391 = vpop.f32.mrb[0].mxu0
    %v6392 = vpop.f32.mrb[0].mxu0
    %v6393 = vadd.f32 0.0, %v6392
    %v6394 = vpop.f32.mrb[0].mxu0
    %6395 = vmatprep.mubr.bf16.mxu0 0
    %6396 = vmatmul.mubr.bf16.gmra.mrb[0].mxu0 %v6302
    %v6397 = vpop.f32.mrb[0].mxu0
    %v6398 = vadd.f32 0.0, %v6397
    %v6399 = vpop.f32.mrb[0].mxu0
    %v6400 = vpop.f32.mrb[0].mxu0
    %v6401 = vadd.f32 0.0, %v6400
    %v6402 = vpop.f32.mrb[0].mxu0
    %6403 = vdwg.mxu0
    %v6404 = vadd.f32 %v6226, %v6342
    %v6405 = vadd.f32 %v6227, %v6345
    %v6406 = vadd.f32 %v6228, %v6350
    %v6407 = vadd.f32 %v6229, %v6353
    %v6408 = vadd.f32 %v6230, %v6358
    %v6409 = vadd.f32 %v6231, %v6361
    %v6410 = vadd.f32 %v6232, %v6366
    %v6411 = vadd.f32 %v6233, %v6369
    %v6412 = vadd.f32 %v6234, %v6374
    %v6413 = vadd.f32 %v6235, %v6377
    %v6414 = vadd.f32 %v6236, %v6382
    %v6415 = vadd.f32 %v6237, %v6385
    %v6416 = vadd.f32 %v6238, %v6390
    %v6417 = vadd.f32 %v6239, %v6393
    %v6418 = vadd.f32 %v6240, %v6398
    %v6419 = vadd.f32 %v6241, %v6401
    %v6420 = vld [vmem:[%s0 + $0xc] sm:$0xf]
    %v6421 = vld [vmem:[%s0 + $0x10] sm:$0xf]
    %v6422 = vld [vmem:[%s0 + $0x14] sm:$0xf]
    %v6423 = vld [vmem:[%s0 + $0x18] sm:$0xf]
    %v6424 = vld [vmem:[%s0 + $0x1c] sm:$0xf]
    %v6425 = vld [vmem:[%s0 + $0x20] sm:$0xf]
    %v6426 = vld [vmem:[%s0 + $0x24] sm:$0xf]
    %v6427 = vld [vmem:[%s0 + $0x28] sm:$0xf]
    %v6428 = vld [vmem:[%s0 + $0x2c] sm:$0x1]
    %v6429 = vld [vmem:[%s0 + $0x3c] sm:$0xf]
    %v6430 = vld [vmem:[%s0 + $0x40] sm:$0xf]
    %v6431 = vld [vmem:[%s0 + $0x44] sm:$0xf]
    %v6432 = vld [vmem:[%s0 + $0x48] sm:$0xf]
    %v6433 = vld [vmem:[%s0 + $0x4c] sm:$0xf]
    %v6434 = vld [vmem:[%s0 + $0x50] sm:$0xf]
    %v6435 = vld [vmem:[%s0 + $0x54] sm:$0xf]
    %v6436 = vld [vmem:[%s0 + $0x58] sm:$0xf]
    %v6437 = vld [vmem:[%s0 + $0x5c] sm:$0x1]
    %v6439 = vshrl.u32 %v6420, 16
    %v6441 = vrot.slane %v6439, 4
    %v6442 = vshll.u32 %v6420, 16
    %v6444 = vrot.slane %v6442, 5
    %v6445 = vor.u32 %v6441, %v6444
    %v6446 = vrot.slane %v6445, 4
    %v6448 = vshll.u32 %v6421, 16
    %v6450 = vrot.slane %v6448, 5
    %v6451 = vsel %vm54, %v6446, %v6450
    %v6452 = vshrl.u32 %v6421, 16
    %v6454 = vrot.slane %v6452, 4
    %v6455 = vor.u32 %v6454, %v6450
    %v6456 = vrot.slane %v6455, 4
    %v6458 = vshll.u32 %v6422, 16
    %v6460 = vrot.slane %v6458, 5
    %v6461 = vsel %vm54, %v6456, %v6460
    %v6462 = vshrl.u32 %v6422, 16
    %v6464 = vrot.slane %v6462, 4
    %v6465 = vor.u32 %v6464, %v6460
    %v6466 = vrot.slane %v6465, 4
    %v6468 = vshll.u32 %v6423, 16
    %v6470 = vrot.slane %v6468, 5
    %v6471 = vsel %vm54, %v6466, %v6470
    %v6472 = vshrl.u32 %v6423, 16
    %v6474 = vrot.slane %v6472, 4
    %v6475 = vor.u32 %v6474, %v6470
    %v6476 = vrot.slane %v6475, 4
    %v6478 = vshll.u32 %v6424, 16
    %v6480 = vrot.slane %v6478, 5
    %v6481 = vsel %vm54, %v6476, %v6480
    %v6482 = vshrl.u32 %v6424, 16
    %v6484 = vrot.slane %v6482, 4
    %v6485 = vor.u32 %v6484, %v6480
    %v6486 = vrot.slane %v6485, 4
    %v6488 = vshll.u32 %v6425, 16
    %v6490 = vrot.slane %v6488, 5
    %v6491 = vsel %vm54, %v6486, %v6490
    %v6492 = vshrl.u32 %v6425, 16
    %v6494 = vrot.slane %v6492, 4
    %v6495 = vor.u32 %v6494, %v6490
    %v6496 = vrot.slane %v6495, 4
    %v6498 = vshll.u32 %v6426, 16
    %v6500 = vrot.slane %v6498, 5
    %v6501 = vsel %vm54, %v6496, %v6500
    %v6502 = vshrl.u32 %v6426, 16
    %v6504 = vrot.slane %v6502, 4
    %v6505 = vor.u32 %v6504, %v6500
    %v6506 = vrot.slane %v6505, 4
    %v6508 = vshll.u32 %v6427, 16
    %v6510 = vrot.slane %v6508, 5
    %v6511 = vsel %vm54, %v6506, %v6510
    %v6512 = vshrl.u32 %v6427, 16
    %v6514 = vrot.slane %v6512, 4
    %v6515 = vor.u32 %v6514, %v6510
    %v6516 = vrot.slane %v6515, 4
    %v6518 = vshll.u32 %v6428, 16
    %v6520 = vrot.slane %v6518, 5
    %v6521 = vsel %vm54, %v6516, %v6520
    %v6523 = vshrl.u32 %v6429, 16
    %v6525 = vrot.slane %v6523, 4
    %v6526 = vshll.u32 %v6429, 16
    %v6528 = vrot.slane %v6526, 5
    %v6529 = vor.u32 %v6525, %v6528
    %v6530 = vrot.slane %v6529, 4
    %v6532 = vshll.u32 %v6430, 16
    %v6534 = vrot.slane %v6532, 5
    %v6535 = vsel %vm54, %v6530, %v6534
    %v6536 = vshrl.u32 %v6430, 16
    %v6538 = vrot.slane %v6536, 4
    %v6539 = vor.u32 %v6538, %v6534
    %v6540 = vrot.slane %v6539, 4
    %v6542 = vshll.u32 %v6431, 16
    %v6544 = vrot.slane %v6542, 5
    %v6545 = vsel %vm54, %v6540, %v6544
    %v6546 = vshrl.u32 %v6431, 16
    %v6548 = vrot.slane %v6546, 4
    %v6549 = vor.u32 %v6548, %v6544
    %v6550 = vrot.slane %v6549, 4
    %v6552 = vshll.u32 %v6432, 16
    %v6554 = vrot.slane %v6552, 5
    %v6555 = vsel %vm54, %v6550, %v6554
    %v6556 = vshrl.u32 %v6432, 16
    %v6558 = vrot.slane %v6556, 4
    %v6559 = vor.u32 %v6558, %v6554
    %v6560 = vrot.slane %v6559, 4
    %v6562 = vshll.u32 %v6433, 16
    %v6564 = vrot.slane %v6562, 5
    %v6565 = vsel %vm54, %v6560, %v6564
    %v6566 = vshrl.u32 %v6433, 16
    %v6568 = vrot.slane %v6566, 4
    %v6569 = vor.u32 %v6568, %v6564
    %v6570 = vrot.slane %v6569, 4
    %v6572 = vshll.u32 %v6434, 16
    %v6574 = vrot.slane %v6572, 5
    %v6575 = vsel %vm54, %v6570, %v6574
    %v6576 = vshrl.u32 %v6434, 16
    %v6578 = vrot.slane %v6576, 4
    %v6579 = vor.u32 %v6578, %v6574
    %v6580 = vrot.slane %v6579, 4
    %v6582 = vshll.u32 %v6435, 16
    %v6584 = vrot.slane %v6582, 5
    %v6585 = vsel %vm54, %v6580, %v6584
    %v6586 = vshrl.u32 %v6435, 16
    %v6588 = vrot.slane %v6586, 4
    %v6589 = vor.u32 %v6588, %v6584
    %v6590 = vrot.slane %v6589, 4
    %v6592 = vshll.u32 %v6436, 16
    %v6594 = vrot.slane %v6592, 5
    %v6595 = vsel %vm54, %v6590, %v6594
    %v6596 = vshrl.u32 %v6436, 16
    %v6598 = vrot.slane %v6596, 4
    %v6599 = vor.u32 %v6598, %v6594
    %v6600 = vrot.slane %v6599, 4
    %v6602 = vshll.u32 %v6437, 16
    %v6604 = vrot.slane %v6602, 5
    %v6605 = vsel %vm54, %v6600, %v6604
    %v6606 = vld [vmem:[%s2 + $0x12c] sm:$0xf]
    %v6607 = vld [vmem:[%s2 + $0x130] sm:$0xf]
    %v6608 = vld [vmem:[%s2 + $0x134] sm:$0xf]
    %v6609 = vunpack.c.l.b16 %v6451
    %v6610 = vunpack.c.l.b16 %v6461
    %v6611 = vunpack.c.l.b16 %v6471
    %v6612 = vunpack.c.l.b16 %v6481
    %v6613 = vunpack.c.l.b16 %v6491
    %v6614 = vunpack.c.l.b16 %v6501
    %v6615 = vunpack.c.l.b16 %v6511
    %v6616 = vunpack.c.l.b16 %v6521
    %v6617 = vunpack.c.l.b16 %v6535
    %v6618 = vunpack.c.l.b16 %v6545
    %v6619 = vunpack.c.l.b16 %v6555
    %v6620 = vunpack.c.l.b16 %v6565
    %v6621 = vunpack.c.l.b16 %v6575
    %v6622 = vunpack.c.l.b16 %v6585
    %v6623 = vunpack.c.l.b16 %v6595
    %v6624 = vunpack.c.l.b16 %v6605
    %v6625 = vpack.c.b16 %v6610, %v6609
    %v6626 = vpack.c.b16 %v6612, %v6611
    %v6627 = vpack.c.b16 %v6614, %v6613
    %v6628 = vpack.c.b16 %v6616, %v6615
    %v6629 = vpack.c.b16 %v6618, %v6617
    %v6630 = vpack.c.b16 %v6620, %v6619
    %v6631 = vpack.c.b16 %v6622, %v6621
    %v6632 = vpack.c.b16 %v6624, %v6623
    %v6636 = vunpack.c.l.b16 %v6606
    %v6637 = vunpack.c.l.b16 %v6607
    %v6638 = vunpack.c.l.b16 %v6608
    %v6639 = vpack.c.b16 %v6637, %v6636
    %v6640 = vpack.c.b16 %v6638, %v6638
    %v6643 = vsel %vm259, %v6625, 0
    %v6646 = vsel %vm259, %v6626, 0
    %v6649 = vsel %vm259, %v6627, 0
    %v6652 = vsel %vm259, %v6628, 0
    %v6655 = vsel %vm259, %v6629, 0
    %v6658 = vsel %vm259, %v6630, 0
    %v6661 = vsel %vm259, %v6631, 0
    %v6664 = vsel %vm259, %v6632, 0
    %v6667 = vsel %vm284, %v6640, 0
    %6669 = vmatprep.subr.bf16.mxu0 0
    %6670 = vmatpush1.bf16.msra.mxu0 %v6639
    %6671 = vmatprep.subr.bf16.mxu0 0
    %6672 = vmatpush1.bf16.msra.mxu0 %v6667
    %6673 = vmatprep.subr.bf16.mxu0 0
    %6674 = vmatpush1.bf16.msra.mxu0 0
    %6675 = vmatprep.subr.bf16.mxu0 0
    %6676 = vmatpush1.bf16.msra.mxu0 0
    %6677 = vmatprep.subr.bf16.mxu0 0
    %6678 = vmatpush1.bf16.msra.mxu0 0
    %6679 = vmatprep.subr.bf16.mxu0 0
    %6680 = vmatpush1.bf16.msra.mxu0 0
    %6681 = vmatprep.subr.bf16.mxu0 0
    %6682 = vmatpush1.bf16.msra.mxu0 0
    %6683 = vmatprep.subr.bf16.mxu0 0
    %6684 = vmatpush1.bf16.msra.mxu0 0
    %6685 = vmatprep.subr.bf16.mxu0 0
    %6686 = vmatpush1.bf16.msra.mxu0 0
    %6687 = vmatprep.subr.bf16.mxu0 0
    %6688 = vmatpush1.bf16.msra.mxu0 0
    %6689 = vmatprep.subr.bf16.mxu0 0
    %6690 = vmatpush1.bf16.msra.mxu0 0
    %6691 = vmatprep.subr.bf16.mxu0 0
    %6692 = vmatpush1.bf16.msra.mxu0 0
    %6693 = vmatprep.subr.bf16.mxu0 0
    %6694 = vmatpush1.bf16.msra.mxu0 0
    %6695 = vmatprep.subr.bf16.mxu0 0
    %6696 = vmatpush1.bf16.msra.mxu0 0
    %6697 = vmatprep.subr.bf16.mxu0 0
    %6698 = vmatpush1.bf16.msra.mxu0 0
    %6699 = vmatprep.subr.bf16.mxu0 0
    %6700 = vmatpush1.bf16.msra.mxu0 0
    %6701 = vmatprep.mubr.bf16.mxu0 0
    %6702 = vmatmul.mubr.bf16.gmra.mrb[0].mxu0 %v6643
    %v6703 = vpop.f32.mrb[0].mxu0
    %v6704 = vadd.f32 0.0, %v6703
    %v6705 = vpop.f32.mrb[0].mxu0
    %v6706 = vpop.f32.mrb[0].mxu0
    %v6707 = vadd.f32 0.0, %v6706
    %v6708 = vpop.f32.mrb[0].mxu0
    %6709 = vmatprep.mubr.bf16.mxu0 0
    %6710 = vmatmul.mubr.bf16.gmra.mrb[0].mxu0 %v6646
    %v6711 = vpop.f32.mrb[0].mxu0
    %v6712 = vadd.f32 0.0, %v6711
    %v6713 = vpop.f32.mrb[0].mxu0
    %v6714 = vpop.f32.mrb[0].mxu0
    %v6715 = vadd.f32 0.0, %v6714
    %v6716 = vpop.f32.mrb[0].mxu0
    %6717 = vmatprep.mubr.bf16.mxu0 0
    %6718 = vmatmul.mubr.bf16.gmra.mrb[0].mxu0 %v6649
    %v6719 = vpop.f32.mrb[0].mxu0
    %v6720 = vadd.f32 0.0, %v6719
    %v6721 = vpop.f32.mrb[0].mxu0
    %v6722 = vpop.f32.mrb[0].mxu0
    %v6723 = vadd.f32 0.0, %v6722
    %v6724 = vpop.f32.mrb[0].mxu0
    %6725 = vmatprep.mubr.bf16.mxu0 0
    %6726 = vmatmul.mubr.bf16.gmra.mrb[0].mxu0 %v6652
    %v6727 = vpop.f32.mrb[0].mxu0
    %v6728 = vadd.f32 0.0, %v6727
    %v6729 = vpop.f32.mrb[0].mxu0
    %v6730 = vpop.f32.mrb[0].mxu0
    %v6731 = vadd.f32 0.0, %v6730
    %v6732 = vpop.f32.mrb[0].mxu0
    %6733 = vmatprep.mubr.bf16.mxu0 0
    %6734 = vmatmul.mubr.bf16.gmra.mrb[0].mxu0 %v6655
    %v6735 = vpop.f32.mrb[0].mxu0
    %v6736 = vadd.f32 0.0, %v6735
    %v6737 = vpop.f32.mrb[0].mxu0
    %v6738 = vpop.f32.mrb[0].mxu0
    %v6739 = vadd.f32 0.0, %v6738
    %v6740 = vpop.f32.mrb[0].mxu0
    %6741 = vmatprep.mubr.bf16.mxu0 0
    %6742 = vmatmul.mubr.bf16.gmra.mrb[0].mxu0 %v6658
    %v6743 = vpop.f32.mrb[0].mxu0
    %v6744 = vadd.f32 0.0, %v6743
    %v6745 = vpop.f32.mrb[0].mxu0
    %v6746 = vpop.f32.mrb[0].mxu0
    %v6747 = vadd.f32 0.0, %v6746
    %v6748 = vpop.f32.mrb[0].mxu0
    %6749 = vmatprep.mubr.bf16.mxu0 0
    %6750 = vmatmul.mubr.bf16.gmra.mrb[0].mxu0 %v6661
    %v6751 = vpop.f32.mrb[0].mxu0
    %v6752 = vadd.f32 0.0, %v6751
    %v6753 = vpop.f32.mrb[0].mxu0
    %v6754 = vpop.f32.mrb[0].mxu0
    %v6755 = vadd.f32 0.0, %v6754
    %v6756 = vpop.f32.mrb[0].mxu0
    %6757 = vmatprep.mubr.bf16.mxu0 0
    %6758 = vmatmul.mubr.bf16.gmra.mrb[0].mxu0 %v6664
    %v6759 = vpop.f32.mrb[0].mxu0
    %v6760 = vadd.f32 0.0, %v6759
    %v6761 = vpop.f32.mrb[0].mxu0
    %v6762 = vpop.f32.mrb[0].mxu0
    %v6763 = vadd.f32 0.0, %v6762
    %v6764 = vpop.f32.mrb[0].mxu0
    %6765 = vdwg.mxu0
    %v6766 = vadd.f32 %v6404, %v6704
    %v6767 = vadd.f32 %v6405, %v6707
    %v6768 = vadd.f32 %v6406, %v6712
    %v6769 = vadd.f32 %v6407, %v6715
    %v6770 = vadd.f32 %v6408, %v6720
    %v6771 = vadd.f32 %v6409, %v6723
    %v6772 = vadd.f32 %v6410, %v6728
    %v6773 = vadd.f32 %v6411, %v6731
    %v6774 = vadd.f32 %v6412, %v6736
    %v6775 = vadd.f32 %v6413, %v6739
    %v6776 = vadd.f32 %v6414, %v6744
    %v6777 = vadd.f32 %v6415, %v6747
    %v6778 = vadd.f32 %v6416, %v6752
    %v6779 = vadd.f32 %v6417, %v6755
    %v6780 = vadd.f32 %v6418, %v6760
    %v6781 = vadd.f32 %v6419, %v6763
    %v6782 = vld [vmem:[%s0 + $0xc] sm:$0xe]
    %v6783 = vld [vmem:[%s0 + $0x3c] sm:$0xe]
    %v6802 = vrot.slane %v6782, 5
    %v6803 = vrot.slane %v6802, 4
    %v6804 = vrot.slane %v6421, 5
    %v6805 = vsel %vm566, %v6803, %v6804
    %v6806 = vrot.slane %v6804, 4
    %v6807 = vrot.slane %v6422, 5
    %v6808 = vsel %vm566, %v6806, %v6807
    %v6809 = vrot.slane %v6807, 4
    %v6810 = vrot.slane %v6423, 5
    %v6811 = vsel %vm566, %v6809, %v6810
    %v6812 = vrot.slane %v6810, 4
    %v6813 = vrot.slane %v6424, 5
    %v6814 = vsel %vm566, %v6812, %v6813
    %v6815 = vrot.slane %v6813, 4
    %v6816 = vrot.slane %v6425, 5
    %v6817 = vsel %vm566, %v6815, %v6816
    %v6818 = vrot.slane %v6816, 4
    %v6819 = vrot.slane %v6426, 5
    %v6820 = vsel %vm566, %v6818, %v6819
    %v6821 = vrot.slane %v6819, 4
    %v6822 = vrot.slane %v6427, 5
    %v6823 = vsel %vm566, %v6821, %v6822
    %v6824 = vrot.slane %v6822, 4
    %v6825 = vrot.slane %v6428, 5
    %v6826 = vsel %vm566, %v6824, %v6825
    %v6827 = vrot.slane %v6783, 5
    %v6828 = vrot.slane %v6827, 4
    %v6829 = vrot.slane %v6430, 5
    %v6830 = vsel %vm566, %v6828, %v6829
    %v6831 = vrot.slane %v6829, 4
    %v6832 = vrot.slane %v6431, 5
    %v6833 = vsel %vm566, %v6831, %v6832
    %v6834 = vrot.slane %v6832, 4
    %v6835 = vrot.slane %v6432, 5
    %v6836 = vsel %vm566, %v6834, %v6835
    %v6837 = vrot.slane %v6835, 4
    %v6838 = vrot.slane %v6433, 5
    %v6839 = vsel %vm566, %v6837, %v6838
    %v6840 = vrot.slane %v6838, 4
    %v6841 = vrot.slane %v6434, 5
    %v6842 = vsel %vm566, %v6840, %v6841
    %v6843 = vrot.slane %v6841, 4
    %v6844 = vrot.slane %v6435, 5
    %v6845 = vsel %vm566, %v6843, %v6844
    %v6846 = vrot.slane %v6844, 4
    %v6847 = vrot.slane %v6436, 5
    %v6848 = vsel %vm566, %v6846, %v6847
    %v6849 = vrot.slane %v6847, 4
    %v6850 = vrot.slane %v6437, 5
    %v6851 = vsel %vm566, %v6849, %v6850
    %v6852 = vld [vmem:[%s2 + $0x138] sm:$0xf]
    %v6853 = vld [vmem:[%s2 + $0x13c] sm:$0xf]
    %v6854 = vld [vmem:[%s2 + $0x140] sm:$0xf]
    %v6855 = vunpack.c.l.b16 %v6805
    %v6856 = vunpack.c.l.b16 %v6808
    %v6857 = vunpack.c.l.b16 %v6811
    %v6858 = vunpack.c.l.b16 %v6814
    %v6859 = vunpack.c.l.b16 %v6817
    %v6860 = vunpack.c.l.b16 %v6820
    %v6861 = vunpack.c.l.b16 %v6823
    %v6862 = vunpack.c.l.b16 %v6826
    %v6863 = vunpack.c.l.b16 %v6830
    %v6864 = vunpack.c.l.b16 %v6833
    %v6865 = vunpack.c.l.b16 %v6836
    %v6866 = vunpack.c.l.b16 %v6839
    %v6867 = vunpack.c.l.b16 %v6842
    %v6868 = vunpack.c.l.b16 %v6845
    %v6869 = vunpack.c.l.b16 %v6848
    %v6870 = vunpack.c.l.b16 %v6851
    %v6871 = vpack.c.b16 %v6856, %v6855
    %v6872 = vpack.c.b16 %v6858, %v6857
    %v6873 = vpack.c.b16 %v6860, %v6859
    %v6874 = vpack.c.b16 %v6862, %v6861
    %v6875 = vpack.c.b16 %v6864, %v6863
    %v6876 = vpack.c.b16 %v6866, %v6865
    %v6877 = vpack.c.b16 %v6868, %v6867
    %v6878 = vpack.c.b16 %v6870, %v6869
    %v6882 = vunpack.c.l.b16 %v6852
    %v6883 = vunpack.c.l.b16 %v6853
    %v6884 = vunpack.c.l.b16 %v6854
    %v6885 = vpack.c.b16 %v6883, %v6882
    %v6886 = vpack.c.b16 %v6884, %v6884
    %v6889 = vsel %vm259, %v6871, 0
    %v6892 = vsel %vm259, %v6872, 0
    %v6895 = vsel %vm259, %v6873, 0
    %v6898 = vsel %vm259, %v6874, 0
    %v6901 = vsel %vm259, %v6875, 0
    %v6904 = vsel %vm259, %v6876, 0
    %v6907 = vsel %vm259, %v6877, 0
    %v6910 = vsel %vm259, %v6878, 0
    %v6913 = vsel %vm284, %v6886, 0
    %6915 = vmatprep.subr.bf16.mxu0 0
    %6916 = vmatpush1.bf16.msra.mxu0 %v6885
    %6917 = vmatprep.subr.bf16.mxu0 0
    %6918 = vmatpush1.bf16.msra.mxu0 %v6913
    %6919 = vmatprep.subr.bf16.mxu0 0
    %6920 = vmatpush1.bf16.msra.mxu0 0
    %6921 = vmatprep.subr.bf16.mxu0 0
    %6922 = vmatpush1.bf16.msra.mxu0 0
    %6923 = vmatprep.subr.bf16.mxu0 0
    %6924 = vmatpush1.bf16.msra.mxu0 0
    %6925 = vmatprep.subr.bf16.mxu0 0
    %6926 = vmatpush1.bf16.msra.mxu0 0
    %6927 = vmatprep.subr.bf16.mxu0 0
    %6928 = vmatpush1.bf16.msra.mxu0 0
    %6929 = vmatprep.subr.bf16.mxu0 0
    %6930 = vmatpush1.bf16.msra.mxu0 0
    %6931 = vmatprep.subr.bf16.mxu0 0
    %6932 = vmatpush1.bf16.msra.mxu0 0
    %6933 = vmatprep.subr.bf16.mxu0 0
    %6934 = vmatpush1.bf16.msra.mxu0 0
    %6935 = vmatprep.subr.bf16.mxu0 0
    %6936 = vmatpush1.bf16.msra.mxu0 0
    %6937 = vmatprep.subr.bf16.mxu0 0
    %6938 = vmatpush1.bf16.msra.mxu0 0
    %6939 = vmatprep.subr.bf16.mxu0 0
    %6940 = vmatpush1.bf16.msra.mxu0 0
    %6941 = vmatprep.subr.bf16.mxu0 0
    %6942 = vmatpush1.bf16.msra.mxu0 0
    %6943 = vmatprep.subr.bf16.mxu0 0
    %6944 = vmatpush1.bf16.msra.mxu0 0
    %6945 = vmatprep.subr.bf16.mxu0 0
    %6946 = vmatpush1.bf16.msra.mxu0 0
    %6947 = vmatprep.mubr.bf16.mxu0 0
    %6948 = vmatmul.mubr.bf16.gmra.mrb[0].mxu0 %v6889
    %v6949 = vpop.f32.mrb[0].mxu0
    %v6950 = vadd.f32 0.0, %v6949
    %v6951 = vpop.f32.mrb[0].mxu0
    %v6952 = vpop.f32.mrb[0].mxu0
    %v6953 = vadd.f32 0.0, %v6952
    %v6954 = vpop.f32.mrb[0].mxu0
    %6955 = vmatprep.mubr.bf16.mxu0 0
    %6956 = vmatmul.mubr.bf16.gmra.mrb[0].mxu0 %v6892
    %v6957 = vpop.f32.mrb[0].mxu0
    %v6958 = vadd.f32 0.0, %v6957
    %v6959 = vpop.f32.mrb[0].mxu0
    %v6960 = vpop.f32.mrb[0].mxu0
    %v6961 = vadd.f32 0.0, %v6960
    %v6962 = vpop.f32.mrb[0].mxu0
    %6963 = vmatprep.mubr.bf16.mxu0 0
    %6964 = vmatmul.mubr.bf16.gmra.mrb[0].mxu0 %v6895
    %v6965 = vpop.f32.mrb[0].mxu0
    %v6966 = vadd.f32 0.0, %v6965
    %v6967 = vpop.f32.mrb[0].mxu0
    %v6968 = vpop.f32.mrb[0].mxu0
    %v6969 = vadd.f32 0.0, %v6968
    %v6970 = vpop.f32.mrb[0].mxu0
    %6971 = vmatprep.mubr.bf16.mxu0 0
    %6972 = vmatmul.mubr.bf16.gmra.mrb[0].mxu0 %v6898
    %v6973 = vpop.f32.mrb[0].mxu0
    %v6974 = vadd.f32 0.0, %v6973
    %v6975 = vpop.f32.mrb[0].mxu0
    %v6976 = vpop.f32.mrb[0].mxu0
    %v6977 = vadd.f32 0.0, %v6976
    %v6978 = vpop.f32.mrb[0].mxu0
    %6979 = vmatprep.mubr.bf16.mxu0 0
    %6980 = vmatmul.mubr.bf16.gmra.mrb[0].mxu0 %v6901
    %v6981 = vpop.f32.mrb[0].mxu0
    %v6982 = vadd.f32 0.0, %v6981
    %v6983 = vpop.f32.mrb[0].mxu0
    %v6984 = vpop.f32.mrb[0].mxu0
    %v6985 = vadd.f32 0.0, %v6984
    %v6986 = vpop.f32.mrb[0].mxu0
    %6987 = vmatprep.mubr.bf16.mxu0 0
    %6988 = vmatmul.mubr.bf16.gmra.mrb[0].mxu0 %v6904
    %v6989 = vpop.f32.mrb[0].mxu0
    %v6990 = vadd.f32 0.0, %v6989
    %v6991 = vpop.f32.mrb[0].mxu0
    %v6992 = vpop.f32.mrb[0].mxu0
    %v6993 = vadd.f32 0.0, %v6992
    %v6994 = vpop.f32.mrb[0].mxu0
    %6995 = vmatprep.mubr.bf16.mxu0 0
    %6996 = vmatmul.mubr.bf16.gmra.mrb[0].mxu0 %v6907
    %v6997 = vpop.f32.mrb[0].mxu0
    %v6998 = vadd.f32 0.0, %v6997
    %v6999 = vpop.f32.mrb[0].mxu0
    %v7000 = vpop.f32.mrb[0].mxu0
    %v7001 = vadd.f32 0.0, %v7000
    %v7002 = vpop.f32.mrb[0].mxu0
    %7003 = vmatprep.mubr.bf16.mxu0 0
    %7004 = vmatmul.mubr.bf16.gmra.mrb[0].mxu0 %v6910
    %v7005 = vpop.f32.mrb[0].mxu0
    %v7006 = vadd.f32 0.0, %v7005
    %v7007 = vpop.f32.mrb[0].mxu0
    %v7008 = vpop.f32.mrb[0].mxu0
    %v7009 = vadd.f32 0.0, %v7008
    %v7010 = vpop.f32.mrb[0].mxu0
    %7011 = vdwg.mxu0
    %v7012 = vadd.f32 %v6766, %v6950
    %v7013 = vadd.f32 %v6767, %v6953
    %v7014 = vadd.f32 %v6768, %v6958
    %v7015 = vadd.f32 %v6769, %v6961
    %v7016 = vadd.f32 %v6770, %v6966
    %v7017 = vadd.f32 %v6771, %v6969
    %v7018 = vadd.f32 %v6772, %v6974
    %v7019 = vadd.f32 %v6773, %v6977
    %v7020 = vadd.f32 %v6774, %v6982
    %v7021 = vadd.f32 %v6775, %v6985
    %v7022 = vadd.f32 %v6776, %v6990
    %v7023 = vadd.f32 %v6777, %v6993
    %v7024 = vadd.f32 %v6778, %v6998
    %v7025 = vadd.f32 %v6779, %v7001
    %v7026 = vadd.f32 %v6780, %v7006
    %v7027 = vadd.f32 %v6781, %v7009
    %v7028 = vld [vmem:[%s0 + $0x2c] sm:$0x3]
    %v7029 = vld [vmem:[%s0 + $0x5c] sm:$0x3]
    %v7031 = vshrl.u32 %v6782, 16
    %v7033 = vrot.slane %v7031, 5
    %v7034 = vshll.u32 %v6782, 16
    %v7036 = vrot.slane %v7034, 6
    %v7037 = vor.u32 %v7033, %v7036
    %v7038 = vrot.slane %v7037, 4
    %v7039 = vrot.slane %v6452, 5
    %v7040 = vrot.slane %v6448, 6
    %v7041 = vor.u32 %v7039, %v7040
    %v7042 = vsel %vm797, %v7038, %v7041
    %v7043 = vrot.slane %v7041, 4
    %v7044 = vrot.slane %v6462, 5
    %v7045 = vrot.slane %v6458, 6
    %v7046 = vor.u32 %v7044, %v7045
    %v7047 = vsel %vm797, %v7043, %v7046
    %v7048 = vrot.slane %v7046, 4
    %v7049 = vrot.slane %v6472, 5
    %v7050 = vrot.slane %v6468, 6
    %v7051 = vor.u32 %v7049, %v7050
    %v7052 = vsel %vm797, %v7048, %v7051
    %v7053 = vrot.slane %v7051, 4
    %v7054 = vrot.slane %v6482, 5
    %v7055 = vrot.slane %v6478, 6
    %v7056 = vor.u32 %v7054, %v7055
    %v7057 = vsel %vm797, %v7053, %v7056
    %v7058 = vrot.slane %v7056, 4
    %v7059 = vrot.slane %v6492, 5
    %v7060 = vrot.slane %v6488, 6
    %v7061 = vor.u32 %v7059, %v7060
    %v7062 = vsel %vm797, %v7058, %v7061
    %v7063 = vrot.slane %v7061, 4
    %v7064 = vrot.slane %v6502, 5
    %v7065 = vrot.slane %v6498, 6
    %v7066 = vor.u32 %v7064, %v7065
    %v7067 = vsel %vm797, %v7063, %v7066
    %v7068 = vrot.slane %v7066, 4
    %v7069 = vrot.slane %v6512, 5
    %v7070 = vrot.slane %v6508, 6
    %v7071 = vor.u32 %v7069, %v7070
    %v7072 = vsel %vm797, %v7068, %v7071
    %v7073 = vrot.slane %v7071, 4
    %v7075 = vshrl.u32 %v7028, 16
    %v7077 = vrot.slane %v7075, 5
    %v7078 = vshll.u32 %v7028, 16
    %v7080 = vrot.slane %v7078, 6
    %v7081 = vor.u32 %v7077, %v7080
    %v7082 = vsel %vm797, %v7073, %v7081
    %v7084 = vshrl.u32 %v6783, 16
    %v7086 = vrot.slane %v7084, 5
    %v7087 = vshll.u32 %v6783, 16
    %v7089 = vrot.slane %v7087, 6
    %v7090 = vor.u32 %v7086, %v7089
    %v7091 = vrot.slane %v7090, 4
    %v7092 = vrot.slane %v6536, 5
    %v7093 = vrot.slane %v6532, 6
    %v7094 = vor.u32 %v7092, %v7093
    %v7095 = vsel %vm797, %v7091, %v7094
    %v7096 = vrot.slane %v7094, 4
    %v7097 = vrot.slane %v6546, 5
    %v7098 = vrot.slane %v6542, 6
    %v7099 = vor.u32 %v7097, %v7098
    %v7100 = vsel %vm797, %v7096, %v7099
    %v7101 = vrot.slane %v7099, 4
    %v7102 = vrot.slane %v6556, 5
    %v7103 = vrot.slane %v6552, 6
    %v7104 = vor.u32 %v7102, %v7103
    %v7105 = vsel %vm797, %v7101, %v7104
    %v7106 = vrot.slane %v7104, 4
    %v7107 = vrot.slane %v6566, 5
    %v7108 = vrot.slane %v6562, 6
    %v7109 = vor.u32 %v7107, %v7108
    %v7110 = vsel %vm797, %v7106, %v7109
    %v7111 = vrot.slane %v7109, 4
    %v7112 = vrot.slane %v6576, 5
    %v7113 = vrot.slane %v6572, 6
    %v7114 = vor.u32 %v7112, %v7113
    %v7115 = vsel %vm797, %v7111, %v7114
    %v7116 = vrot.slane %v7114, 4
    %v7117 = vrot.slane %v6586, 5
    %v7118 = vrot.slane %v6582, 6
    %v7119 = vor.u32 %v7117, %v7118
    %v7120 = vsel %vm797, %v7116, %v7119
    %v7121 = vrot.slane %v7119, 4
    %v7122 = vrot.slane %v6596, 5
    %v7123 = vrot.slane %v6592, 6
    %v7124 = vor.u32 %v7122, %v7123
    %v7125 = vsel %vm797, %v7121, %v7124
    %v7126 = vrot.slane %v7124, 4
    %v7128 = vshrl.u32 %v7029, 16
    %v7130 = vrot.slane %v7128, 5
    %v7131 = vshll.u32 %v7029, 16
    %v7133 = vrot.slane %v7131, 6
    %v7134 = vor.u32 %v7130, %v7133
    %v7135 = vsel %vm797, %v7126, %v7134
    %v7136 = vld [vmem:[%s2 + $0x144] sm:$0xf]
    %v7137 = vld [vmem:[%s2 + $0x148] sm:$0xf]
    %v7138 = vld [vmem:[%s2 + $0x14c] sm:$0xf]
    %v7139 = vunpack.c.l.b16 %v7042
    %v7140 = vunpack.c.l.b16 %v7047
    %v7141 = vunpack.c.l.b16 %v7052
    %v7142 = vunpack.c.l.b16 %v7057
    %v7143 = vunpack.c.l.b16 %v7062
    %v7144 = vunpack.c.l.b16 %v7067
    %v7145 = vunpack.c.l.b16 %v7072
    %v7146 = vunpack.c.l.b16 %v7082
    %v7147 = vunpack.c.l.b16 %v7095
    %v7148 = vunpack.c.l.b16 %v7100
    %v7149 = vunpack.c.l.b16 %v7105
    %v7150 = vunpack.c.l.b16 %v7110
    %v7151 = vunpack.c.l.b16 %v7115
    %v7152 = vunpack.c.l.b16 %v7120
    %v7153 = vunpack.c.l.b16 %v7125
    %v7154 = vunpack.c.l.b16 %v7135
    %v7155 = vpack.c.b16 %v7140, %v7139
    %v7156 = vpack.c.b16 %v7142, %v7141
    %v7157 = vpack.c.b16 %v7144, %v7143
    %v7158 = vpack.c.b16 %v7146, %v7145
    %v7159 = vpack.c.b16 %v7148, %v7147
    %v7160 = vpack.c.b16 %v7150, %v7149
    %v7161 = vpack.c.b16 %v7152, %v7151
    %v7162 = vpack.c.b16 %v7154, %v7153
    %v7166 = vunpack.c.l.b16 %v7136
    %v7167 = vunpack.c.l.b16 %v7137
    %v7168 = vunpack.c.l.b16 %v7138
    %v7169 = vpack.c.b16 %v7167, %v7166
    %v7170 = vpack.c.b16 %v7168, %v7168
    %v7173 = vsel %vm259, %v7155, 0
    %v7176 = vsel %vm259, %v7156, 0
    %v7179 = vsel %vm259, %v7157, 0
    %v7182 = vsel %vm259, %v7158, 0
    %v7185 = vsel %vm259, %v7159, 0
    %v7188 = vsel %vm259, %v7160, 0
    %v7191 = vsel %vm259, %v7161, 0
    %v7194 = vsel %vm259, %v7162, 0
    %v7197 = vsel %vm284, %v7170, 0
    %7199 = vmatprep.subr.bf16.mxu0 0
    %7200 = vmatpush1.bf16.msra.mxu0 %v7169
    %7201 = vmatprep.subr.bf16.mxu0 0
    %7202 = vmatpush1.bf16.msra.mxu0 %v7197
    %7203 = vmatprep.subr.bf16.mxu0 0
    %7204 = vmatpush1.bf16.msra.mxu0 0
    %7205 = vmatprep.subr.bf16.mxu0 0
    %7206 = vmatpush1.bf16.msra.mxu0 0
    %7207 = vmatprep.subr.bf16.mxu0 0
    %7208 = vmatpush1.bf16.msra.mxu0 0
    %7209 = vmatprep.subr.bf16.mxu0 0
    %7210 = vmatpush1.bf16.msra.mxu0 0
    %7211 = vmatprep.subr.bf16.mxu0 0
    %7212 = vmatpush1.bf16.msra.mxu0 0
    %7213 = vmatprep.subr.bf16.mxu0 0
    %7214 = vmatpush1.bf16.msra.mxu0 0
    %7215 = vmatprep.subr.bf16.mxu0 0
    %7216 = vmatpush1.bf16.msra.mxu0 0
    %7217 = vmatprep.subr.bf16.mxu0 0
    %7218 = vmatpush1.bf16.msra.mxu0 0
    %7219 = vmatprep.subr.bf16.mxu0 0
    %7220 = vmatpush1.bf16.msra.mxu0 0
    %7221 = vmatprep.subr.bf16.mxu0 0
    %7222 = vmatpush1.bf16.msra.mxu0 0
    %7223 = vmatprep.subr.bf16.mxu0 0
    %7224 = vmatpush1.bf16.msra.mxu0 0
    %7225 = vmatprep.subr.bf16.mxu0 0
    %7226 = vmatpush1.bf16.msra.mxu0 0
    %7227 = vmatprep.subr.bf16.mxu0 0
    %7228 = vmatpush1.bf16.msra.mxu0 0
    %7229 = vmatprep.subr.bf16.mxu0 0
    %7230 = vmatpush1.bf16.msra.mxu0 0
    %7231 = vmatprep.mubr.bf16.mxu0 0
    %7232 = vmatmul.mubr.bf16.gmra.mrb[0].mxu0 %v7173
    %v7233 = vpop.f32.mrb[0].mxu0
    %v7234 = vadd.f32 0.0, %v7233
    %v7235 = vpop.f32.mrb[0].mxu0
    %v7236 = vpop.f32.mrb[0].mxu0
    %v7237 = vadd.f32 0.0, %v7236
    %v7238 = vpop.f32.mrb[0].mxu0
    %7239 = vmatprep.mubr.bf16.mxu0 0
    %7240 = vmatmul.mubr.bf16.gmra.mrb[0].mxu0 %v7176
    %v7241 = vpop.f32.mrb[0].mxu0
    %v7242 = vadd.f32 0.0, %v7241
    %v7243 = vpop.f32.mrb[0].mxu0
    %v7244 = vpop.f32.mrb[0].mxu0
    %v7245 = vadd.f32 0.0, %v7244
    %v7246 = vpop.f32.mrb[0].mxu0
    %7247 = vmatprep.mubr.bf16.mxu0 0
    %7248 = vmatmul.mubr.bf16.gmra.mrb[0].mxu0 %v7179
    %v7249 = vpop.f32.mrb[0].mxu0
    %v7250 = vadd.f32 0.0, %v7249
    %v7251 = vpop.f32.mrb[0].mxu0
    %v7252 = vpop.f32.mrb[0].mxu0
    %v7253 = vadd.f32 0.0, %v7252
    %v7254 = vpop.f32.mrb[0].mxu0
    %7255 = vmatprep.mubr.bf16.mxu0 0
    %7256 = vmatmul.mubr.bf16.gmra.mrb[0].mxu0 %v7182
    %v7257 = vpop.f32.mrb[0].mxu0
    %v7258 = vadd.f32 0.0, %v7257
    %v7259 = vpop.f32.mrb[0].mxu0
    %v7260 = vpop.f32.mrb[0].mxu0
    %v7261 = vadd.f32 0.0, %v7260
    %v7262 = vpop.f32.mrb[0].mxu0
    %7263 = vmatprep.mubr.bf16.mxu0 0
    %7264 = vmatmul.mubr.bf16.gmra.mrb[0].mxu0 %v7185
    %v7265 = vpop.f32.mrb[0].mxu0
    %v7266 = vadd.f32 0.0, %v7265
    %v7267 = vpop.f32.mrb[0].mxu0
    %v7268 = vpop.f32.mrb[0].mxu0
    %v7269 = vadd.f32 0.0, %v7268
    %v7270 = vpop.f32.mrb[0].mxu0
    %7271 = vmatprep.mubr.bf16.mxu0 0
    %7272 = vmatmul.mubr.bf16.gmra.mrb[0].mxu0 %v7188
    %v7273 = vpop.f32.mrb[0].mxu0
    %v7274 = vadd.f32 0.0, %v7273
    %v7275 = vpop.f32.mrb[0].mxu0
    %v7276 = vpop.f32.mrb[0].mxu0
    %v7277 = vadd.f32 0.0, %v7276
    %v7278 = vpop.f32.mrb[0].mxu0
    %7279 = vmatprep.mubr.bf16.mxu0 0
    %7280 = vmatmul.mubr.bf16.gmra.mrb[0].mxu0 %v7191
    %v7281 = vpop.f32.mrb[0].mxu0
    %v7282 = vadd.f32 0.0, %v7281
    %v7283 = vpop.f32.mrb[0].mxu0
    %v7284 = vpop.f32.mrb[0].mxu0
    %v7285 = vadd.f32 0.0, %v7284
    %v7286 = vpop.f32.mrb[0].mxu0
    %7287 = vmatprep.mubr.bf16.mxu0 0
    %7288 = vmatmul.mubr.bf16.gmra.mrb[0].mxu0 %v7194
    %v7289 = vpop.f32.mrb[0].mxu0
    %v7290 = vadd.f32 0.0, %v7289
    %v7291 = vpop.f32.mrb[0].mxu0
    %v7292 = vpop.f32.mrb[0].mxu0
    %v7293 = vadd.f32 0.0, %v7292
    %v7294 = vpop.f32.mrb[0].mxu0
    %7295 = vdwg.mxu0
    %v7296 = vadd.f32 %v7012, %v7234
    %v7297 = vadd.f32 %v7013, %v7237
    %v7298 = vadd.f32 %v7014, %v7242
    %v7299 = vadd.f32 %v7015, %v7245
    %v7300 = vadd.f32 %v7016, %v7250
    %v7301 = vadd.f32 %v7017, %v7253
    %v7302 = vadd.f32 %v7018, %v7258
    %v7303 = vadd.f32 %v7019, %v7261
    %v7304 = vadd.f32 %v7020, %v7266
    %v7305 = vadd.f32 %v7021, %v7269
    %v7306 = vadd.f32 %v7022, %v7274
    %v7307 = vadd.f32 %v7023, %v7277
    %v7308 = vadd.f32 %v7024, %v7282
    %v7309 = vadd.f32 %v7025, %v7285
    %v7310 = vadd.f32 %v7026, %v7290
    %v7311 = vadd.f32 %v7027, %v7293
    %v7312 = vld [vmem:[%s0 + $0xc] sm:$0xc]
    %v7313 = vld [vmem:[%s0 + $0x3c] sm:$0xc]
    %v7318 = vrot.slane %v7312, 6
    %v7319 = vrot.slane %v7318, 4
    %v7320 = vrot.slane %v6421, 6
    %v7321 = vsel %vm1088, %v7319, %v7320
    %v7322 = vrot.slane %v7320, 4
    %v7323 = vrot.slane %v6422, 6
    %v7324 = vsel %vm1088, %v7322, %v7323
    %v7325 = vrot.slane %v7323, 4
    %v7326 = vrot.slane %v6423, 6
    %v7327 = vsel %vm1088, %v7325, %v7326
    %v7328 = vrot.slane %v7326, 4
    %v7329 = vrot.slane %v6424, 6
    %v7330 = vsel %vm1088, %v7328, %v7329
    %v7331 = vrot.slane %v7329, 4
    %v7332 = vrot.slane %v6425, 6
    %v7333 = vsel %vm1088, %v7331, %v7332
    %v7334 = vrot.slane %v7332, 4
    %v7335 = vrot.slane %v6426, 6
    %v7336 = vsel %vm1088, %v7334, %v7335
    %v7337 = vrot.slane %v7335, 4
    %v7338 = vrot.slane %v6427, 6
    %v7339 = vsel %vm1088, %v7337, %v7338
    %v7340 = vrot.slane %v7338, 4
    %v7341 = vrot.slane %v7028, 6
    %v7342 = vsel %vm1088, %v7340, %v7341
    %v7343 = vrot.slane %v7313, 6
    %v7344 = vrot.slane %v7343, 4
    %v7345 = vrot.slane %v6430, 6
    %v7346 = vsel %vm1088, %v7344, %v7345
    %v7347 = vrot.slane %v7345, 4
    %v7348 = vrot.slane %v6431, 6
    %v7349 = vsel %vm1088, %v7347, %v7348
    %v7350 = vrot.slane %v7348, 4
    %v7351 = vrot.slane %v6432, 6
    %v7352 = vsel %vm1088, %v7350, %v7351
    %v7353 = vrot.slane %v7351, 4
    %v7354 = vrot.slane %v6433, 6
    %v7355 = vsel %vm1088, %v7353, %v7354
    %v7356 = vrot.slane %v7354, 4
    %v7357 = vrot.slane %v6434, 6
    %v7358 = vsel %vm1088, %v7356, %v7357
    %v7359 = vrot.slane %v7357, 4
    %v7360 = vrot.slane %v6435, 6
    %v7361 = vsel %vm1088, %v7359, %v7360
    %v7362 = vrot.slane %v7360, 4
    %v7363 = vrot.slane %v6436, 6
    %v7364 = vsel %vm1088, %v7362, %v7363
    %v7365 = vrot.slane %v7363, 4
    %v7366 = vrot.slane %v7029, 6
    %v7367 = vsel %vm1088, %v7365, %v7366
    %v7368 = vld [vmem:[%s2 + $0x150] sm:$0xf]
    %v7369 = vld [vmem:[%s2 + $0x154] sm:$0xf]
    %v7370 = vld [vmem:[%s2 + $0x158] sm:$0xf]
    %v7371 = vunpack.c.l.b16 %v7321
    %v7372 = vunpack.c.l.b16 %v7324
    %v7373 = vunpack.c.l.b16 %v7327
    %v7374 = vunpack.c.l.b16 %v7330
    %v7375 = vunpack.c.l.b16 %v7333
    %v7376 = vunpack.c.l.b16 %v7336
    %v7377 = vunpack.c.l.b16 %v7339
    %v7378 = vunpack.c.l.b16 %v7342
    %v7379 = vunpack.c.l.b16 %v7346
    %v7380 = vunpack.c.l.b16 %v7349
    %v7381 = vunpack.c.l.b16 %v7352
    %v7382 = vunpack.c.l.b16 %v7355
    %v7383 = vunpack.c.l.b16 %v7358
    %v7384 = vunpack.c.l.b16 %v7361
    %v7385 = vunpack.c.l.b16 %v7364
    %v7386 = vunpack.c.l.b16 %v7367
    %v7387 = vpack.c.b16 %v7372, %v7371
    %v7388 = vpack.c.b16 %v7374, %v7373
    %v7389 = vpack.c.b16 %v7376, %v7375
    %v7390 = vpack.c.b16 %v7378, %v7377
    %v7391 = vpack.c.b16 %v7380, %v7379
    %v7392 = vpack.c.b16 %v7382, %v7381
    %v7393 = vpack.c.b16 %v7384, %v7383
    %v7394 = vpack.c.b16 %v7386, %v7385
    %v7398 = vunpack.c.l.b16 %v7368
    %v7399 = vunpack.c.l.b16 %v7369
    %v7400 = vunpack.c.l.b16 %v7370
    %v7401 = vpack.c.b16 %v7399, %v7398
    %v7402 = vpack.c.b16 %v7400, %v7400
    %v7405 = vsel %vm259, %v7387, 0
    %v7408 = vsel %vm259, %v7388, 0
    %v7411 = vsel %vm259, %v7389, 0
    %v7414 = vsel %vm259, %v7390, 0
    %v7417 = vsel %vm259, %v7391, 0
    %v7420 = vsel %vm259, %v7392, 0
    %v7423 = vsel %vm259, %v7393, 0
    %v7426 = vsel %vm259, %v7394, 0
    %v7429 = vsel %vm284, %v7402, 0
    %7431 = vmatprep.subr.bf16.mxu0 0
    %7432 = vmatpush1.bf16.msra.mxu0 %v7401
    %7433 = vmatprep.subr.bf16.mxu0 0
    %7434 = vmatpush1.bf16.msra.mxu0 %v7429
    %7435 = vmatprep.subr.bf16.mxu0 0
    %7436 = vmatpush1.bf16.msra.mxu0 0
    %7437 = vmatprep.subr.bf16.mxu0 0
    %7438 = vmatpush1.bf16.msra.mxu0 0
    %7439 = vmatprep.subr.bf16.mxu0 0
    %7440 = vmatpush1.bf16.msra.mxu0 0
    %7441 = vmatprep.subr.bf16.mxu0 0
    %7442 = vmatpush1.bf16.msra.mxu0 0
    %7443 = vmatprep.subr.bf16.mxu0 0
    %7444 = vmatpush1.bf16.msra.mxu0 0
    %7445 = vmatprep.subr.bf16.mxu0 0
    %7446 = vmatpush1.bf16.msra.mxu0 0
    %7447 = vmatprep.subr.bf16.mxu0 0
    %7448 = vmatpush1.bf16.msra.mxu0 0
    %7449 = vmatprep.subr.bf16.mxu0 0
    %7450 = vmatpush1.bf16.msra.mxu0 0
    %7451 = vmatprep.subr.bf16.mxu0 0
    %7452 = vmatpush1.bf16.msra.mxu0 0
    %7453 = vmatprep.subr.bf16.mxu0 0
    %7454 = vmatpush1.bf16.msra.mxu0 0
    %7455 = vmatprep.subr.bf16.mxu0 0
    %7456 = vmatpush1.bf16.msra.mxu0 0
    %7457 = vmatprep.subr.bf16.mxu0 0
    %7458 = vmatpush1.bf16.msra.mxu0 0
    %7459 = vmatprep.subr.bf16.mxu0 0
    %7460 = vmatpush1.bf16.msra.mxu0 0
    %7461 = vmatprep.subr.bf16.mxu0 0
    %7462 = vmatpush1.bf16.msra.mxu0 0
    %7463 = vmatprep.mubr.bf16.mxu0 0
    %7464 = vmatmul.mubr.bf16.gmra.mrb[0].mxu0 %v7405
    %v7465 = vpop.f32.mrb[0].mxu0
    %v7466 = vadd.f32 0.0, %v7465
    %v7467 = vpop.f32.mrb[0].mxu0
    %v7468 = vpop.f32.mrb[0].mxu0
    %v7469 = vadd.f32 0.0, %v7468
    %v7470 = vpop.f32.mrb[0].mxu0
    %7471 = vmatprep.mubr.bf16.mxu0 0
    %7472 = vmatmul.mubr.bf16.gmra.mrb[0].mxu0 %v7408
    %v7473 = vpop.f32.mrb[0].mxu0
    %v7474 = vadd.f32 0.0, %v7473
    %v7475 = vpop.f32.mrb[0].mxu0
    %v7476 = vpop.f32.mrb[0].mxu0
    %v7477 = vadd.f32 0.0, %v7476
    %v7478 = vpop.f32.mrb[0].mxu0
    %7479 = vmatprep.mubr.bf16.mxu0 0
    %7480 = vmatmul.mubr.bf16.gmra.mrb[0].mxu0 %v7411
    %v7481 = vpop.f32.mrb[0].mxu0
    %v7482 = vadd.f32 0.0, %v7481
    %v7483 = vpop.f32.mrb[0].mxu0
    %v7484 = vpop.f32.mrb[0].mxu0
    %v7485 = vadd.f32 0.0, %v7484
    %v7486 = vpop.f32.mrb[0].mxu0
    %7487 = vmatprep.mubr.bf16.mxu0 0
    %7488 = vmatmul.mubr.bf16.gmra.mrb[0].mxu0 %v7414
    %v7489 = vpop.f32.mrb[0].mxu0
    %v7490 = vadd.f32 0.0, %v7489
    %v7491 = vpop.f32.mrb[0].mxu0
    %v7492 = vpop.f32.mrb[0].mxu0
    %v7493 = vadd.f32 0.0, %v7492
    %v7494 = vpop.f32.mrb[0].mxu0
    %7495 = vmatprep.mubr.bf16.mxu0 0
    %7496 = vmatmul.mubr.bf16.gmra.mrb[0].mxu0 %v7417
    %v7497 = vpop.f32.mrb[0].mxu0
    %v7498 = vadd.f32 0.0, %v7497
    %v7499 = vpop.f32.mrb[0].mxu0
    %v7500 = vpop.f32.mrb[0].mxu0
    %v7501 = vadd.f32 0.0, %v7500
    %v7502 = vpop.f32.mrb[0].mxu0
    %7503 = vmatprep.mubr.bf16.mxu0 0
    %7504 = vmatmul.mubr.bf16.gmra.mrb[0].mxu0 %v7420
    %v7505 = vpop.f32.mrb[0].mxu0
    %v7506 = vadd.f32 0.0, %v7505
    %v7507 = vpop.f32.mrb[0].mxu0
    %v7508 = vpop.f32.mrb[0].mxu0
    %v7509 = vadd.f32 0.0, %v7508
    %v7510 = vpop.f32.mrb[0].mxu0
    %7511 = vmatprep.mubr.bf16.mxu0 0
    %7512 = vmatmul.mubr.bf16.gmra.mrb[0].mxu0 %v7423
    %v7513 = vpop.f32.mrb[0].mxu0
    %v7514 = vadd.f32 0.0, %v7513
    %v7515 = vpop.f32.mrb[0].mxu0
    %v7516 = vpop.f32.mrb[0].mxu0
    %v7517 = vadd.f32 0.0, %v7516
    %v7518 = vpop.f32.mrb[0].mxu0
    %7519 = vmatprep.mubr.bf16.mxu0 0
    %7520 = vmatmul.mubr.bf16.gmra.mrb[0].mxu0 %v7426
    %v7521 = vpop.f32.mrb[0].mxu0
    %v7522 = vadd.f32 0.0, %v7521
    %v7523 = vpop.f32.mrb[0].mxu0
    %v7524 = vpop.f32.mrb[0].mxu0
    %v7525 = vadd.f32 0.0, %v7524
    %v7526 = vpop.f32.mrb[0].mxu0
    %7527 = vdwg.mxu0
    %v7528 = vadd.f32 %v7296, %v7466
    %v7529 = vadd.f32 %v7297, %v7469
    %v7530 = vadd.f32 %v7298, %v7474
    %v7531 = vadd.f32 %v7299, %v7477
    %v7532 = vadd.f32 %v7300, %v7482
    %v7533 = vadd.f32 %v7301, %v7485
    %v7534 = vadd.f32 %v7302, %v7490
    %v7535 = vadd.f32 %v7303, %v7493
    %v7536 = vadd.f32 %v7304, %v7498
    %v7537 = vadd.f32 %v7305, %v7501
    %v7538 = vadd.f32 %v7306, %v7506
    %v7539 = vadd.f32 %v7307, %v7509
    %v7540 = vadd.f32 %v7308, %v7514
    %v7541 = vadd.f32 %v7309, %v7517
    %v7542 = vadd.f32 %v7310, %v7522
    %v7543 = vadd.f32 %v7311, %v7525
    %v7544 = vld [vmem:[%s0 + $0x2c] sm:$0x7]
    %v7545 = vld [vmem:[%s0 + $0x5c] sm:$0x7]
    %v7547 = vshrl.u32 %v7312, 16
    %v7549 = vrot.slane %v7547, 6
    %v7550 = vshll.u32 %v7312, 16
    %v7552 = vrot.slane %v7550, 7
    %v7553 = vor.u32 %v7549, %v7552
    %v7554 = vrot.slane %v7553, 4
    %v7555 = vrot.slane %v6452, 6
    %v7556 = vrot.slane %v6448, 7
    %v7557 = vor.u32 %v7555, %v7556
    %v7558 = vsel %vm1319, %v7554, %v7557
    %v7559 = vrot.slane %v7557, 4
    %v7560 = vrot.slane %v6462, 6
    %v7561 = vrot.slane %v6458, 7
    %v7562 = vor.u32 %v7560, %v7561
    %v7563 = vsel %vm1319, %v7559, %v7562
    %v7564 = vrot.slane %v7562, 4
    %v7565 = vrot.slane %v6472, 6
    %v7566 = vrot.slane %v6468, 7
    %v7567 = vor.u32 %v7565, %v7566
    %v7568 = vsel %vm1319, %v7564, %v7567
    %v7569 = vrot.slane %v7567, 4
    %v7570 = vrot.slane %v6482, 6
    %v7571 = vrot.slane %v6478, 7
    %v7572 = vor.u32 %v7570, %v7571
    %v7573 = vsel %vm1319, %v7569, %v7572
    %v7574 = vrot.slane %v7572, 4
    %v7575 = vrot.slane %v6492, 6
    %v7576 = vrot.slane %v6488, 7
    %v7577 = vor.u32 %v7575, %v7576
    %v7578 = vsel %vm1319, %v7574, %v7577
    %v7579 = vrot.slane %v7577, 4
    %v7580 = vrot.slane %v6502, 6
    %v7581 = vrot.slane %v6498, 7
    %v7582 = vor.u32 %v7580, %v7581
    %v7583 = vsel %vm1319, %v7579, %v7582
    %v7584 = vrot.slane %v7582, 4
    %v7585 = vrot.slane %v6512, 6
    %v7586 = vrot.slane %v6508, 7
    %v7587 = vor.u32 %v7585, %v7586
    %v7588 = vsel %vm1319, %v7584, %v7587
    %v7589 = vrot.slane %v7587, 4
    %v7591 = vshrl.u32 %v7544, 16
    %v7593 = vrot.slane %v7591, 6
    %v7594 = vshll.u32 %v7544, 16
    %v7596 = vrot.slane %v7594, 7
    %v7597 = vor.u32 %v7593, %v7596
    %v7598 = vsel %vm1319, %v7589, %v7597
    %v7600 = vshrl.u32 %v7313, 16
    %v7602 = vrot.slane %v7600, 6
    %v7603 = vshll.u32 %v7313, 16
    %v7605 = vrot.slane %v7603, 7
    %v7606 = vor.u32 %v7602, %v7605
    %v7607 = vrot.slane %v7606, 4
    %v7608 = vrot.slane %v6536, 6
    %v7609 = vrot.slane %v6532, 7
    %v7610 = vor.u32 %v7608, %v7609
    %v7611 = vsel %vm1319, %v7607, %v7610
    %v7612 = vrot.slane %v7610, 4
    %v7613 = vrot.slane %v6546, 6
    %v7614 = vrot.slane %v6542, 7
    %v7615 = vor.u32 %v7613, %v7614
    %v7616 = vsel %vm1319, %v7612, %v7615
    %v7617 = vrot.slane %v7615, 4
    %v7618 = vrot.slane %v6556, 6
    %v7619 = vrot.slane %v6552, 7
    %v7620 = vor.u32 %v7618, %v7619
    %v7621 = vsel %vm1319, %v7617, %v7620
    %v7622 = vrot.slane %v7620, 4
    %v7623 = vrot.slane %v6566, 6
    %v7624 = vrot.slane %v6562, 7
    %v7625 = vor.u32 %v7623, %v7624
    %v7626 = vsel %vm1319, %v7622, %v7625
    %v7627 = vrot.slane %v7625, 4
    %v7628 = vrot.slane %v6576, 6
    %v7629 = vrot.slane %v6572, 7
    %v7630 = vor.u32 %v7628, %v7629
    %v7631 = vsel %vm1319, %v7627, %v7630
    %v7632 = vrot.slane %v7630, 4
    %v7633 = vrot.slane %v6586, 6
    %v7634 = vrot.slane %v6582, 7
    %v7635 = vor.u32 %v7633, %v7634
    %v7636 = vsel %vm1319, %v7632, %v7635
    %v7637 = vrot.slane %v7635, 4
    %v7638 = vrot.slane %v6596, 6
    %v7639 = vrot.slane %v6592, 7
    %v7640 = vor.u32 %v7638, %v7639
    %v7641 = vsel %vm1319, %v7637, %v7640
    %v7642 = vrot.slane %v7640, 4
    %v7644 = vshrl.u32 %v7545, 16
    %v7646 = vrot.slane %v7644, 6
    %v7647 = vshll.u32 %v7545, 16
    %v7649 = vrot.slane %v7647, 7
    %v7650 = vor.u32 %v7646, %v7649
    %v7651 = vsel %vm1319, %v7642, %v7650
    %v7652 = vld [vmem:[%s2 + $0x15c] sm:$0xf]
    %v7653 = vld [vmem:[%s2 + $0x160] sm:$0xf]
    %v7654 = vld [vmem:[%s2 + $0x164] sm:$0xf]
    %v7655 = vunpack.c.l.b16 %v7558
    %v7656 = vunpack.c.l.b16 %v7563
    %v7657 = vunpack.c.l.b16 %v7568
    %v7658 = vunpack.c.l.b16 %v7573
    %v7659 = vunpack.c.l.b16 %v7578
    %v7660 = vunpack.c.l.b16 %v7583
    %v7661 = vunpack.c.l.b16 %v7588
    %v7662 = vunpack.c.l.b16 %v7598
    %v7663 = vunpack.c.l.b16 %v7611
    %v7664 = vunpack.c.l.b16 %v7616
    %v7665 = vunpack.c.l.b16 %v7621
    %v7666 = vunpack.c.l.b16 %v7626
    %v7667 = vunpack.c.l.b16 %v7631
    %v7668 = vunpack.c.l.b16 %v7636
    %v7669 = vunpack.c.l.b16 %v7641
    %v7670 = vunpack.c.l.b16 %v7651
    %v7671 = vpack.c.b16 %v7656, %v7655
    %v7672 = vpack.c.b16 %v7658, %v7657
    %v7673 = vpack.c.b16 %v7660, %v7659
    %v7674 = vpack.c.b16 %v7662, %v7661
    %v7675 = vpack.c.b16 %v7664, %v7663
    %v7676 = vpack.c.b16 %v7666, %v7665
    %v7677 = vpack.c.b16 %v7668, %v7667
    %v7678 = vpack.c.b16 %v7670, %v7669
    %v7682 = vunpack.c.l.b16 %v7652
    %v7683 = vunpack.c.l.b16 %v7653
    %v7684 = vunpack.c.l.b16 %v7654
    %v7685 = vpack.c.b16 %v7683, %v7682
    %v7686 = vpack.c.b16 %v7684, %v7684
    %v7689 = vsel %vm259, %v7671, 0
    %v7692 = vsel %vm259, %v7672, 0
    %v7695 = vsel %vm259, %v7673, 0
    %v7698 = vsel %vm259, %v7674, 0
    %v7701 = vsel %vm259, %v7675, 0
    %v7704 = vsel %vm259, %v7676, 0
    %v7707 = vsel %vm259, %v7677, 0
    %v7710 = vsel %vm259, %v7678, 0
    %v7713 = vsel %vm284, %v7686, 0
    %7715 = vmatprep.subr.bf16.mxu0 0
    %7716 = vmatpush1.bf16.msra.mxu0 %v7685
    %7717 = vmatprep.subr.bf16.mxu0 0
    %7718 = vmatpush1.bf16.msra.mxu0 %v7713
    %7719 = vmatprep.subr.bf16.mxu0 0
    %7720 = vmatpush1.bf16.msra.mxu0 0
    %7721 = vmatprep.subr.bf16.mxu0 0
    %7722 = vmatpush1.bf16.msra.mxu0 0
    %7723 = vmatprep.subr.bf16.mxu0 0
    %7724 = vmatpush1.bf16.msra.mxu0 0
    %7725 = vmatprep.subr.bf16.mxu0 0
    %7726 = vmatpush1.bf16.msra.mxu0 0
    %7727 = vmatprep.subr.bf16.mxu0 0
    %7728 = vmatpush1.bf16.msra.mxu0 0
    %7729 = vmatprep.subr.bf16.mxu0 0
    %7730 = vmatpush1.bf16.msra.mxu0 0
    %7731 = vmatprep.subr.bf16.mxu0 0
    %7732 = vmatpush1.bf16.msra.mxu0 0
    %7733 = vmatprep.subr.bf16.mxu0 0
    %7734 = vmatpush1.bf16.msra.mxu0 0
    %7735 = vmatprep.subr.bf16.mxu0 0
    %7736 = vmatpush1.bf16.msra.mxu0 0
    %7737 = vmatprep.subr.bf16.mxu0 0
    %7738 = vmatpush1.bf16.msra.mxu0 0
    %7739 = vmatprep.subr.bf16.mxu0 0
    %7740 = vmatpush1.bf16.msra.mxu0 0
    %7741 = vmatprep.subr.bf16.mxu0 0
    %7742 = vmatpush1.bf16.msra.mxu0 0
    %7743 = vmatprep.subr.bf16.mxu0 0
    %7744 = vmatpush1.bf16.msra.mxu0 0
    %7745 = vmatprep.subr.bf16.mxu0 0
    %7746 = vmatpush1.bf16.msra.mxu0 0
    %7747 = vmatprep.mubr.bf16.mxu0 0
    %7748 = vmatmul.mubr.bf16.gmra.mrb[0].mxu0 %v7689
    %v7749 = vpop.f32.mrb[0].mxu0
    %v7750 = vadd.f32 0.0, %v7749
    %v7751 = vpop.f32.mrb[0].mxu0
    %v7752 = vpop.f32.mrb[0].mxu0
    %v7753 = vadd.f32 0.0, %v7752
    %v7754 = vpop.f32.mrb[0].mxu0
    %7755 = vmatprep.mubr.bf16.mxu0 0
    %7756 = vmatmul.mubr.bf16.gmra.mrb[0].mxu0 %v7692
    %v7757 = vpop.f32.mrb[0].mxu0
    %v7758 = vadd.f32 0.0, %v7757
    %v7759 = vpop.f32.mrb[0].mxu0
    %v7760 = vpop.f32.mrb[0].mxu0
    %v7761 = vadd.f32 0.0, %v7760
    %v7762 = vpop.f32.mrb[0].mxu0
    %7763 = vmatprep.mubr.bf16.mxu0 0
    %7764 = vmatmul.mubr.bf16.gmra.mrb[0].mxu0 %v7695
    %v7765 = vpop.f32.mrb[0].mxu0
    %v7766 = vadd.f32 0.0, %v7765
    %v7767 = vpop.f32.mrb[0].mxu0
    %v7768 = vpop.f32.mrb[0].mxu0
    %v7769 = vadd.f32 0.0, %v7768
    %v7770 = vpop.f32.mrb[0].mxu0
    %7771 = vmatprep.mubr.bf16.mxu0 0
    %7772 = vmatmul.mubr.bf16.gmra.mrb[0].mxu0 %v7698
    %v7773 = vpop.f32.mrb[0].mxu0
    %v7774 = vadd.f32 0.0, %v7773
    %v7775 = vpop.f32.mrb[0].mxu0
    %v7776 = vpop.f32.mrb[0].mxu0
    %v7777 = vadd.f32 0.0, %v7776
    %v7778 = vpop.f32.mrb[0].mxu0
    %7779 = vmatprep.mubr.bf16.mxu0 0
    %7780 = vmatmul.mubr.bf16.gmra.mrb[0].mxu0 %v7701
    %v7781 = vpop.f32.mrb[0].mxu0
    %v7782 = vadd.f32 0.0, %v7781
    %v7783 = vpop.f32.mrb[0].mxu0
    %v7784 = vpop.f32.mrb[0].mxu0
    %v7785 = vadd.f32 0.0, %v7784
    %v7786 = vpop.f32.mrb[0].mxu0
    %7787 = vmatprep.mubr.bf16.mxu0 0
    %7788 = vmatmul.mubr.bf16.gmra.mrb[0].mxu0 %v7704
    %v7789 = vpop.f32.mrb[0].mxu0
    %v7790 = vadd.f32 0.0, %v7789
    %v7791 = vpop.f32.mrb[0].mxu0
    %v7792 = vpop.f32.mrb[0].mxu0
    %v7793 = vadd.f32 0.0, %v7792
    %v7794 = vpop.f32.mrb[0].mxu0
    %7795 = vmatprep.mubr.bf16.mxu0 0
    %7796 = vmatmul.mubr.bf16.gmra.mrb[0].mxu0 %v7707
    %v7797 = vpop.f32.mrb[0].mxu0
    %v7798 = vadd.f32 0.0, %v7797
    %v7799 = vpop.f32.mrb[0].mxu0
    %v7800 = vpop.f32.mrb[0].mxu0
    %v7801 = vadd.f32 0.0, %v7800
    %v7802 = vpop.f32.mrb[0].mxu0
    %7803 = vmatprep.mubr.bf16.mxu0 0
    %7804 = vmatmul.mubr.bf16.gmra.mrb[0].mxu0 %v7710
    %v7805 = vpop.f32.mrb[0].mxu0
    %v7806 = vadd.f32 0.0, %v7805
    %v7807 = vpop.f32.mrb[0].mxu0
    %v7808 = vpop.f32.mrb[0].mxu0
    %v7809 = vadd.f32 0.0, %v7808
    %v7810 = vpop.f32.mrb[0].mxu0
    %7811 = vdwg.mxu0
    %v7812 = vadd.f32 %v7528, %v7750
    %v7813 = vadd.f32 %v7529, %v7753
    %v7814 = vadd.f32 %v7530, %v7758
    %v7815 = vadd.f32 %v7531, %v7761
    %v7816 = vadd.f32 %v7532, %v7766
    %v7817 = vadd.f32 %v7533, %v7769
    %v7818 = vadd.f32 %v7534, %v7774
    %v7819 = vadd.f32 %v7535, %v7777
    %v7820 = vadd.f32 %v7536, %v7782
    %v7821 = vadd.f32 %v7537, %v7785
    %v7822 = vadd.f32 %v7538, %v7790
    %v7823 = vadd.f32 %v7539, %v7793
    %v7824 = vadd.f32 %v7540, %v7798
    %v7825 = vadd.f32 %v7541, %v7801
    %v7826 = vadd.f32 %v7542, %v7806
    %v7827 = vadd.f32 %v7543, %v7809
    %v7828 = vld [vmem:[%s0 + $0xc] sm:$0x8]
    %v7829 = vld [vmem:[%s0 + $0x3c] sm:$0x8]
    %v7834 = vrot.slane %v7828, 7
    %v7835 = vrot.slane %v7834, 4
    %v7836 = vrot.slane %v6421, 7
    %v7837 = vsel %vm1610, %v7835, %v7836
    %v7838 = vrot.slane %v7836, 4
    %v7839 = vrot.slane %v6422, 7
    %v7840 = vsel %vm1610, %v7838, %v7839
    %v7841 = vrot.slane %v7839, 4
    %v7842 = vrot.slane %v6423, 7
    %v7843 = vsel %vm1610, %v7841, %v7842
    %v7844 = vrot.slane %v7842, 4
    %v7845 = vrot.slane %v6424, 7
    %v7846 = vsel %vm1610, %v7844, %v7845
    %v7847 = vrot.slane %v7845, 4
    %v7848 = vrot.slane %v6425, 7
    %v7849 = vsel %vm1610, %v7847, %v7848
    %v7850 = vrot.slane %v7848, 4
    %v7851 = vrot.slane %v6426, 7
    %v7852 = vsel %vm1610, %v7850, %v7851
    %v7853 = vrot.slane %v7851, 4
    %v7854 = vrot.slane %v6427, 7
    %v7855 = vsel %vm1610, %v7853, %v7854
    %v7856 = vrot.slane %v7854, 4
    %v7857 = vrot.slane %v7544, 7
    %v7858 = vsel %vm1610, %v7856, %v7857
    %v7859 = vrot.slane %v7829, 7
    %v7860 = vrot.slane %v7859, 4
    %v7861 = vrot.slane %v6430, 7
    %v7862 = vsel %vm1610, %v7860, %v7861
    %v7863 = vrot.slane %v7861, 4
    %v7864 = vrot.slane %v6431, 7
    %v7865 = vsel %vm1610, %v7863, %v7864
    %v7866 = vrot.slane %v7864, 4
    %v7867 = vrot.slane %v6432, 7
    %v7868 = vsel %vm1610, %v7866, %v7867
    %v7869 = vrot.slane %v7867, 4
    %v7870 = vrot.slane %v6433, 7
    %v7871 = vsel %vm1610, %v7869, %v7870
    %v7872 = vrot.slane %v7870, 4
    %v7873 = vrot.slane %v6434, 7
    %v7874 = vsel %vm1610, %v7872, %v7873
    %v7875 = vrot.slane %v7873, 4
    %v7876 = vrot.slane %v6435, 7
    %v7877 = vsel %vm1610, %v7875, %v7876
    %v7878 = vrot.slane %v7876, 4
    %v7879 = vrot.slane %v6436, 7
    %v7880 = vsel %vm1610, %v7878, %v7879
    %v7881 = vrot.slane %v7879, 4
    %v7882 = vrot.slane %v7545, 7
    %v7883 = vsel %vm1610, %v7881, %v7882
    %v7884 = vld [vmem:[%s2 + $0x168] sm:$0xf]
    %v7885 = vld [vmem:[%s2 + $0x16c] sm:$0xf]
    %v7886 = vld [vmem:[%s2 + $0x170] sm:$0xf]
    %v7887 = vunpack.c.l.b16 %v7837
    %v7888 = vunpack.c.l.b16 %v7840
    %v7889 = vunpack.c.l.b16 %v7843
    %v7890 = vunpack.c.l.b16 %v7846
    %v7891 = vunpack.c.l.b16 %v7849
    %v7892 = vunpack.c.l.b16 %v7852
    %v7893 = vunpack.c.l.b16 %v7855
    %v7894 = vunpack.c.l.b16 %v7858
    %v7895 = vunpack.c.l.b16 %v7862
    %v7896 = vunpack.c.l.b16 %v7865
    %v7897 = vunpack.c.l.b16 %v7868
    %v7898 = vunpack.c.l.b16 %v7871
    %v7899 = vunpack.c.l.b16 %v7874
    %v7900 = vunpack.c.l.b16 %v7877
    %v7901 = vunpack.c.l.b16 %v7880
    %v7902 = vunpack.c.l.b16 %v7883
    %v7903 = vpack.c.b16 %v7888, %v7887
    %v7904 = vpack.c.b16 %v7890, %v7889
    %v7905 = vpack.c.b16 %v7892, %v7891
    %v7906 = vpack.c.b16 %v7894, %v7893
    %v7907 = vpack.c.b16 %v7896, %v7895
    %v7908 = vpack.c.b16 %v7898, %v7897
    %v7909 = vpack.c.b16 %v7900, %v7899
    %v7910 = vpack.c.b16 %v7902, %v7901
    %v7914 = vunpack.c.l.b16 %v7884
    %v7915 = vunpack.c.l.b16 %v7885
    %v7916 = vunpack.c.l.b16 %v7886
    %v7917 = vpack.c.b16 %v7915, %v7914
    %v7918 = vpack.c.b16 %v7916, %v7916
    %v7921 = vsel %vm259, %v7903, 0
    %v7924 = vsel %vm259, %v7904, 0
    %v7927 = vsel %vm259, %v7905, 0
    %v7930 = vsel %vm259, %v7906, 0
    %v7933 = vsel %vm259, %v7907, 0
    %v7936 = vsel %vm259, %v7908, 0
    %v7939 = vsel %vm259, %v7909, 0
    %v7942 = vsel %vm259, %v7910, 0
    %v7945 = vsel %vm284, %v7918, 0
    %7947 = vmatprep.subr.bf16.mxu0 0
    %7948 = vmatpush1.bf16.msra.mxu0 %v7917
    %7949 = vmatprep.subr.bf16.mxu0 0
    %7950 = vmatpush1.bf16.msra.mxu0 %v7945
    %7951 = vmatprep.subr.bf16.mxu0 0
    %7952 = vmatpush1.bf16.msra.mxu0 0
    %7953 = vmatprep.subr.bf16.mxu0 0
    %7954 = vmatpush1.bf16.msra.mxu0 0
    %7955 = vmatprep.subr.bf16.mxu0 0
    %7956 = vmatpush1.bf16.msra.mxu0 0
    %7957 = vmatprep.subr.bf16.mxu0 0
    %7958 = vmatpush1.bf16.msra.mxu0 0
    %7959 = vmatprep.subr.bf16.mxu0 0
    %7960 = vmatpush1.bf16.msra.mxu0 0
    %7961 = vmatprep.subr.bf16.mxu0 0
    %7962 = vmatpush1.bf16.msra.mxu0 0
    %7963 = vmatprep.subr.bf16.mxu0 0
    %7964 = vmatpush1.bf16.msra.mxu0 0
    %7965 = vmatprep.subr.bf16.mxu0 0
    %7966 = vmatpush1.bf16.msra.mxu0 0
    %7967 = vmatprep.subr.bf16.mxu0 0
    %7968 = vmatpush1.bf16.msra.mxu0 0
    %7969 = vmatprep.subr.bf16.mxu0 0
    %7970 = vmatpush1.bf16.msra.mxu0 0
    %7971 = vmatprep.subr.bf16.mxu0 0
    %7972 = vmatpush1.bf16.msra.mxu0 0
    %7973 = vmatprep.subr.bf16.mxu0 0
    %7974 = vmatpush1.bf16.msra.mxu0 0
    %7975 = vmatprep.subr.bf16.mxu0 0
    %7976 = vmatpush1.bf16.msra.mxu0 0
    %7977 = vmatprep.subr.bf16.mxu0 0
    %7978 = vmatpush1.bf16.msra.mxu0 0
    %7979 = vmatprep.mubr.bf16.mxu0 0
    %7980 = vmatmul.mubr.bf16.gmra.mrb[0].mxu0 %v7921
    %v7981 = vpop.f32.mrb[0].mxu0
    %v7982 = vadd.f32 0.0, %v7981
    %v7983 = vpop.f32.mrb[0].mxu0
    %v7984 = vpop.f32.mrb[0].mxu0
    %v7985 = vadd.f32 0.0, %v7984
    %v7986 = vpop.f32.mrb[0].mxu0
    %7987 = vmatprep.mubr.bf16.mxu0 0
    %7988 = vmatmul.mubr.bf16.gmra.mrb[0].mxu0 %v7924
    %v7989 = vpop.f32.mrb[0].mxu0
    %v7990 = vadd.f32 0.0, %v7989
    %v7991 = vpop.f32.mrb[0].mxu0
    %v7992 = vpop.f32.mrb[0].mxu0
    %v7993 = vadd.f32 0.0, %v7992
    %v7994 = vpop.f32.mrb[0].mxu0
    %7995 = vmatprep.mubr.bf16.mxu0 0
    %7996 = vmatmul.mubr.bf16.gmra.mrb[0].mxu0 %v7927
    %v7997 = vpop.f32.mrb[0].mxu0
    %v7998 = vadd.f32 0.0, %v7997
    %v7999 = vpop.f32.mrb[0].mxu0
    %v8000 = vpop.f32.mrb[0].mxu0
    %v8001 = vadd.f32 0.0, %v8000
    %v8002 = vpop.f32.mrb[0].mxu0
    %8003 = vmatprep.mubr.bf16.mxu0 0
    %8004 = vmatmul.mubr.bf16.gmra.mrb[0].mxu0 %v7930
    %v8005 = vpop.f32.mrb[0].mxu0
    %v8006 = vadd.f32 0.0, %v8005
    %v8007 = vpop.f32.mrb[0].mxu0
    %v8008 = vpop.f32.mrb[0].mxu0
    %v8009 = vadd.f32 0.0, %v8008
    %v8010 = vpop.f32.mrb[0].mxu0
    %8011 = vmatprep.mubr.bf16.mxu0 0
    %8012 = vmatmul.mubr.bf16.gmra.mrb[0].mxu0 %v7933
    %v8013 = vpop.f32.mrb[0].mxu0
    %v8014 = vadd.f32 0.0, %v8013
    %v8015 = vpop.f32.mrb[0].mxu0
    %v8016 = vpop.f32.mrb[0].mxu0
    %v8017 = vadd.f32 0.0, %v8016
    %v8018 = vpop.f32.mrb[0].mxu0
    %8019 = vmatprep.mubr.bf16.mxu0 0
    %8020 = vmatmul.mubr.bf16.gmra.mrb[0].mxu0 %v7936
    %v8021 = vpop.f32.mrb[0].mxu0
    %v8022 = vadd.f32 0.0, %v8021
    %v8023 = vpop.f32.mrb[0].mxu0
    %v8024 = vpop.f32.mrb[0].mxu0
    %v8025 = vadd.f32 0.0, %v8024
    %v8026 = vpop.f32.mrb[0].mxu0
    %8027 = vmatprep.mubr.bf16.mxu0 0
    %8028 = vmatmul.mubr.bf16.gmra.mrb[0].mxu0 %v7939
    %v8029 = vpop.f32.mrb[0].mxu0
    %v8030 = vadd.f32 0.0, %v8029
    %v8031 = vpop.f32.mrb[0].mxu0
    %v8032 = vpop.f32.mrb[0].mxu0
    %v8033 = vadd.f32 0.0, %v8032
    %v8034 = vpop.f32.mrb[0].mxu0
    %8035 = vmatprep.mubr.bf16.mxu0 0
    %8036 = vmatmul.mubr.bf16.gmra.mrb[0].mxu0 %v7942
    %v8037 = vpop.f32.mrb[0].mxu0
    %v8038 = vadd.f32 0.0, %v8037
    %v8039 = vpop.f32.mrb[0].mxu0
    %v8040 = vpop.f32.mrb[0].mxu0
    %v8041 = vadd.f32 0.0, %v8040
    %v8042 = vpop.f32.mrb[0].mxu0
    %8043 = vdwg.mxu0
    %v8044 = vadd.f32 %v7812, %v7982
    %v8045 = vadd.f32 %v7813, %v7985
    %v8046 = vadd.f32 %v7814, %v7990
    %v8047 = vadd.f32 %v7815, %v7993
    %v8048 = vadd.f32 %v7816, %v7998
    %v8049 = vadd.f32 %v7817, %v8001
    %v8050 = vadd.f32 %v7818, %v8006
    %v8051 = vadd.f32 %v7819, %v8009
    %v8052 = vadd.f32 %v7820, %v8014
    %v8053 = vadd.f32 %v7821, %v8017
    %v8054 = vadd.f32 %v7822, %v8022
    %v8055 = vadd.f32 %v7823, %v8025
    %v8056 = vadd.f32 %v7824, %v8030
    %v8057 = vadd.f32 %v7825, %v8033
    %v8058 = vadd.f32 %v7826, %v8038
    %v8059 = vadd.f32 %v7827, %v8041
    %v8060 = vld [vmem:[%s0 + $0x2c] sm:$0xf]
    %v8061 = vld [vmem:[%s0 + $0x5c] sm:$0xf]
    %v8063 = vshrl.u32 %v7828, 16
    %v8065 = vrot.slane %v8063, 7
    %v8066 = vrot.slane %v8065, 4
    %v8067 = vrot.slane %v6452, 7
    %v8068 = vor.u32 %v8067, %v6448
    %v8069 = vsel %vm1841, %v8066, %v8068
    %v8070 = vrot.slane %v8067, 4
    %v8071 = vrot.slane %v6462, 7
    %v8072 = vor.u32 %v8071, %v6458
    %v8073 = vsel %vm1841, %v8070, %v8072
    %v8074 = vrot.slane %v8071, 4
    %v8075 = vrot.slane %v6472, 7
    %v8076 = vor.u32 %v8075, %v6468
    %v8077 = vsel %vm1841, %v8074, %v8076
    %v8078 = vrot.slane %v8075, 4
    %v8079 = vrot.slane %v6482, 7
    %v8080 = vor.u32 %v8079, %v6478
    %v8081 = vsel %vm1841, %v8078, %v8080
    %v8082 = vrot.slane %v8079, 4
    %v8083 = vrot.slane %v6492, 7
    %v8084 = vor.u32 %v8083, %v6488
    %v8085 = vsel %vm1841, %v8082, %v8084
    %v8086 = vrot.slane %v8083, 4
    %v8087 = vrot.slane %v6502, 7
    %v8088 = vor.u32 %v8087, %v6498
    %v8089 = vsel %vm1841, %v8086, %v8088
    %v8090 = vrot.slane %v8087, 4
    %v8091 = vrot.slane %v6512, 7
    %v8092 = vor.u32 %v8091, %v6508
    %v8093 = vsel %vm1841, %v8090, %v8092
    %v8094 = vrot.slane %v8091, 4
    %v8096 = vshrl.u32 %v8060, 16
    %v8098 = vrot.slane %v8096, 7
    %v8099 = vshll.u32 %v8060, 16
    %v8101 = vor.u32 %v8098, %v8099
    %v8102 = vsel %vm1841, %v8094, %v8101
    %v8104 = vshrl.u32 %v7829, 16
    %v8106 = vrot.slane %v8104, 7
    %v8107 = vrot.slane %v8106, 4
    %v8108 = vrot.slane %v6536, 7
    %v8109 = vor.u32 %v8108, %v6532
    %v8110 = vsel %vm1841, %v8107, %v8109
    %v8111 = vrot.slane %v8108, 4
    %v8112 = vrot.slane %v6546, 7
    %v8113 = vor.u32 %v8112, %v6542
    %v8114 = vsel %vm1841, %v8111, %v8113
    %v8115 = vrot.slane %v8112, 4
    %v8116 = vrot.slane %v6556, 7
    %v8117 = vor.u32 %v8116, %v6552
    %v8118 = vsel %vm1841, %v8115, %v8117
    %v8119 = vrot.slane %v8116, 4
    %v8120 = vrot.slane %v6566, 7
    %v8121 = vor.u32 %v8120, %v6562
    %v8122 = vsel %vm1841, %v8119, %v8121
    %v8123 = vrot.slane %v8120, 4
    %v8124 = vrot.slane %v6576, 7
    %v8125 = vor.u32 %v8124, %v6572
    %v8126 = vsel %vm1841, %v8123, %v8125
    %v8127 = vrot.slane %v8124, 4
    %v8128 = vrot.slane %v6586, 7
    %v8129 = vor.u32 %v8128, %v6582
    %v8130 = vsel %vm1841, %v8127, %v8129
    %v8131 = vrot.slane %v8128, 4
    %v8132 = vrot.slane %v6596, 7
    %v8133 = vor.u32 %v8132, %v6592
    %v8134 = vsel %vm1841, %v8131, %v8133
    %v8135 = vrot.slane %v8132, 4
    %v8137 = vshrl.u32 %v8061, 16
    %v8139 = vrot.slane %v8137, 7
    %v8140 = vshll.u32 %v8061, 16
    %v8142 = vor.u32 %v8139, %v8140
    %v8143 = vsel %vm1841, %v8135, %v8142
    %v8144 = vld [vmem:[%s2 + $0x174] sm:$0xf]
    %v8145 = vld [vmem:[%s2 + $0x178] sm:$0xf]
    %v8146 = vld [vmem:[%s2 + $0x17c] sm:$0xf]
    %v8147 = vunpack.c.l.b16 %v8069
    %v8148 = vunpack.c.l.b16 %v8073
    %v8149 = vunpack.c.l.b16 %v8077
    %v8150 = vunpack.c.l.b16 %v8081
    %v8151 = vunpack.c.l.b16 %v8085
    %v8152 = vunpack.c.l.b16 %v8089
    %v8153 = vunpack.c.l.b16 %v8093
    %v8154 = vunpack.c.l.b16 %v8102
    %v8155 = vunpack.c.l.b16 %v8110
    %v8156 = vunpack.c.l.b16 %v8114
    %v8157 = vunpack.c.l.b16 %v8118
    %v8158 = vunpack.c.l.b16 %v8122
    %v8159 = vunpack.c.l.b16 %v8126
    %v8160 = vunpack.c.l.b16 %v8130
    %v8161 = vunpack.c.l.b16 %v8134
    %v8162 = vunpack.c.l.b16 %v8143
    %v8163 = vpack.c.b16 %v8148, %v8147
    %v8164 = vpack.c.b16 %v8150, %v8149
    %v8165 = vpack.c.b16 %v8152, %v8151
    %v8166 = vpack.c.b16 %v8154, %v8153
    %v8167 = vpack.c.b16 %v8156, %v8155
    %v8168 = vpack.c.b16 %v8158, %v8157
    %v8169 = vpack.c.b16 %v8160, %v8159
    %v8170 = vpack.c.b16 %v8162, %v8161
    %v8174 = vunpack.c.l.b16 %v8144
    %v8175 = vunpack.c.l.b16 %v8145
    %v8176 = vunpack.c.l.b16 %v8146
    %v8177 = vpack.c.b16 %v8175, %v8174
    %v8178 = vpack.c.b16 %v8176, %v8176
    %v8181 = vsel %vm259, %v8163, 0
    %v8184 = vsel %vm259, %v8164, 0
    %v8187 = vsel %vm259, %v8165, 0
    %v8190 = vsel %vm259, %v8166, 0
    %v8193 = vsel %vm259, %v8167, 0
    %v8196 = vsel %vm259, %v8168, 0
    %v8199 = vsel %vm259, %v8169, 0
    %v8202 = vsel %vm259, %v8170, 0
    %v8205 = vsel %vm284, %v8178, 0
    %8207 = vmatprep.subr.bf16.mxu0 0
    %8208 = vmatpush1.bf16.msra.mxu0 %v8177
    %8209 = vmatprep.subr.bf16.mxu0 0
    %8210 = vmatpush1.bf16.msra.mxu0 %v8205
    %8211 = vmatprep.subr.bf16.mxu0 0
    %8212 = vmatpush1.bf16.msra.mxu0 0
    %8213 = vmatprep.subr.bf16.mxu0 0
    %8214 = vmatpush1.bf16.msra.mxu0 0
    %8215 = vmatprep.subr.bf16.mxu0 0
    %8216 = vmatpush1.bf16.msra.mxu0 0
    %8217 = vmatprep.subr.bf16.mxu0 0
    %8218 = vmatpush1.bf16.msra.mxu0 0
    %8219 = vmatprep.subr.bf16.mxu0 0
    %8220 = vmatpush1.bf16.msra.mxu0 0
    %8221 = vmatprep.subr.bf16.mxu0 0
    %8222 = vmatpush1.bf16.msra.mxu0 0
    %8223 = vmatprep.subr.bf16.mxu0 0
    %8224 = vmatpush1.bf16.msra.mxu0 0
    %8225 = vmatprep.subr.bf16.mxu0 0
    %8226 = vmatpush1.bf16.msra.mxu0 0
    %8227 = vmatprep.subr.bf16.mxu0 0
    %8228 = vmatpush1.bf16.msra.mxu0 0
    %8229 = vmatprep.subr.bf16.mxu0 0
    %8230 = vmatpush1.bf16.msra.mxu0 0
    %8231 = vmatprep.subr.bf16.mxu0 0
    %8232 = vmatpush1.bf16.msra.mxu0 0
    %8233 = vmatprep.subr.bf16.mxu0 0
    %8234 = vmatpush1.bf16.msra.mxu0 0
    %8235 = vmatprep.subr.bf16.mxu0 0
    %8236 = vmatpush1.bf16.msra.mxu0 0
    %8237 = vmatprep.subr.bf16.mxu0 0
    %8238 = vmatpush1.bf16.msra.mxu0 0
    %8239 = vmatprep.mubr.bf16.mxu0 0
    %8240 = vmatmul.mubr.bf16.gmra.mrb[0].mxu0 %v8181
    %v8241 = vpop.f32.mrb[0].mxu0
    %v8242 = vadd.f32 0.0, %v8241
    %v8243 = vpop.f32.mrb[0].mxu0
    %v8244 = vpop.f32.mrb[0].mxu0
    %v8245 = vadd.f32 0.0, %v8244
    %v8246 = vpop.f32.mrb[0].mxu0
    %8247 = vmatprep.mubr.bf16.mxu0 0
    %8248 = vmatmul.mubr.bf16.gmra.mrb[0].mxu0 %v8184
    %v8249 = vpop.f32.mrb[0].mxu0
    %v8250 = vadd.f32 0.0, %v8249
    %v8251 = vpop.f32.mrb[0].mxu0
    %v8252 = vpop.f32.mrb[0].mxu0
    %v8253 = vadd.f32 0.0, %v8252
    %v8254 = vpop.f32.mrb[0].mxu0
    %8255 = vmatprep.mubr.bf16.mxu0 0
    %8256 = vmatmul.mubr.bf16.gmra.mrb[0].mxu0 %v8187
    %v8257 = vpop.f32.mrb[0].mxu0
    %v8258 = vadd.f32 0.0, %v8257
    %v8259 = vpop.f32.mrb[0].mxu0
    %v8260 = vpop.f32.mrb[0].mxu0
    %v8261 = vadd.f32 0.0, %v8260
    %v8262 = vpop.f32.mrb[0].mxu0
    %8263 = vmatprep.mubr.bf16.mxu0 0
    %8264 = vmatmul.mubr.bf16.gmra.mrb[0].mxu0 %v8190
    %v8265 = vpop.f32.mrb[0].mxu0
    %v8266 = vadd.f32 0.0, %v8265
    %v8267 = vpop.f32.mrb[0].mxu0
    %v8268 = vpop.f32.mrb[0].mxu0
    %v8269 = vadd.f32 0.0, %v8268
    %v8270 = vpop.f32.mrb[0].mxu0
    %8271 = vmatprep.mubr.bf16.mxu0 0
    %8272 = vmatmul.mubr.bf16.gmra.mrb[0].mxu0 %v8193
    %v8273 = vpop.f32.mrb[0].mxu0
    %v8274 = vadd.f32 0.0, %v8273
    %v8275 = vpop.f32.mrb[0].mxu0
    %v8276 = vpop.f32.mrb[0].mxu0
    %v8277 = vadd.f32 0.0, %v8276
    %v8278 = vpop.f32.mrb[0].mxu0
    %8279 = vmatprep.mubr.bf16.mxu0 0
    %8280 = vmatmul.mubr.bf16.gmra.mrb[0].mxu0 %v8196
    %v8281 = vpop.f32.mrb[0].mxu0
    %v8282 = vadd.f32 0.0, %v8281
    %v8283 = vpop.f32.mrb[0].mxu0
    %v8284 = vpop.f32.mrb[0].mxu0
    %v8285 = vadd.f32 0.0, %v8284
    %v8286 = vpop.f32.mrb[0].mxu0
    %8287 = vmatprep.mubr.bf16.mxu0 0
    %8288 = vmatmul.mubr.bf16.gmra.mrb[0].mxu0 %v8199
    %v8289 = vpop.f32.mrb[0].mxu0
    %v8290 = vadd.f32 0.0, %v8289
    %v8291 = vpop.f32.mrb[0].mxu0
    %v8292 = vpop.f32.mrb[0].mxu0
    %v8293 = vadd.f32 0.0, %v8292
    %v8294 = vpop.f32.mrb[0].mxu0
    %8295 = vmatprep.mubr.bf16.mxu0 0
    %8296 = vmatmul.mubr.bf16.gmra.mrb[0].mxu0 %v8202
    %v8297 = vpop.f32.mrb[0].mxu0
    %v8298 = vadd.f32 0.0, %v8297
    %v8299 = vpop.f32.mrb[0].mxu0
    %v8300 = vpop.f32.mrb[0].mxu0
    %v8301 = vadd.f32 0.0, %v8300
    %v8302 = vpop.f32.mrb[0].mxu0
    %8303 = vdwg.mxu0
    %v8304 = vadd.f32 %v8044, %v8242
    %v8305 = vadd.f32 %v8045, %v8245
    %v8306 = vadd.f32 %v8046, %v8250
    %v8307 = vadd.f32 %v8047, %v8253
    %v8308 = vadd.f32 %v8048, %v8258
    %v8309 = vadd.f32 %v8049, %v8261
    %v8310 = vadd.f32 %v8050, %v8266
    %v8311 = vadd.f32 %v8051, %v8269
    %v8312 = vadd.f32 %v8052, %v8274
    %v8313 = vadd.f32 %v8053, %v8277
    %v8314 = vadd.f32 %v8054, %v8282
    %v8315 = vadd.f32 %v8055, %v8285
    %v8316 = vadd.f32 %v8056, %v8290
    %v8317 = vadd.f32 %v8057, %v8293
    %v8318 = vadd.f32 %v8058, %v8298
    %v8319 = vadd.f32 %v8059, %v8301
    %v8320 = vld [vmem:[%s1] sm:$0xff]
    %v8321 = vld [vmem:[%s1 + $0x8] sm:$0xff]
    %v8322 = vld [vmem:[%s1 + $0x10] sm:$0xff]
    %v8323 = vld [vmem:[%s1 + $0x18] sm:$0xff]
    %v8324 = vld [vmem:[%s1 + $0x20] sm:$0xff]
    %v8325 = vld [vmem:[%s1 + $0x28] sm:$0xff]
    %v8326 = vld [vmem:[%s1 + $0x30] sm:$0xff]
    %v8327 = vld [vmem:[%s1 + $0x38] sm:$0xff]
    %v8328 = vld [vmem:[%s1 + $0x40] sm:$0xff]
    %v8329 = vld [vmem:[%s1 + $0x48] sm:$0xff]
    %v8330 = vld [vmem:[%s1 + $0x50] sm:$0xff]
    %v8331 = vld [vmem:[%s1 + $0x58] sm:$0xff]
    %v8332 = vld [vmem:[%s1 + $0x60] sm:$0xff]
    %v8333 = vld [vmem:[%s1 + $0x68] sm:$0xff]
    %v8334 = vld [vmem:[%s1 + $0x70] sm:$0xff]
    %v8335 = vld [vmem:[%s1 + $0x78] sm:$0xff]
    %v8336 = vadd.f32 %v8304, %v8320
    %v8337 = vadd.f32 %v8305, %v8321
    %v8338 = vadd.f32 %v8306, %v8322
    %v8339 = vadd.f32 %v8307, %v8323
    %v8340 = vadd.f32 %v8308, %v8324
    %v8341 = vadd.f32 %v8309, %v8325
    %v8342 = vadd.f32 %v8310, %v8326
    %v8343 = vadd.f32 %v8311, %v8327
    %v8344 = vadd.f32 %v8312, %v8328
    %v8345 = vadd.f32 %v8313, %v8329
    %v8346 = vadd.f32 %v8314, %v8330
    %v8347 = vadd.f32 %v8315, %v8331
    %v8348 = vadd.f32 %v8316, %v8332
    %v8349 = vadd.f32 %v8317, %v8333
    %v8350 = vadd.f32 %v8318, %v8334
    %v8351 = vadd.f32 %v8319, %v8335
    %vm8352 = vcmask 523264
    %v8353 = vsel %vm8352, %v8336, -inf
    %v8354 = vsel %vm8352, %v8337, -inf
    %v8355 = vsel %vm8352, %v8338, -inf
    %v8356 = vsel %vm8352, %v8339, -inf
    %v8357 = vsel %vm8352, %v8340, -inf
    %v8358 = vmax.f32 %v8353, %v8357
    %v8359 = vsel %vm8352, %v8341, -inf
    %v8360 = vmax.f32 %v8354, %v8359
    %v8361 = vsel %vm8352, %v8342, -inf
    %v8362 = vmax.f32 %v8355, %v8361
    %v8363 = vsel %vm8352, %v8343, -inf
    %v8364 = vmax.f32 %v8356, %v8363
    %v8365 = vmax.f32 %v8358, %v8360
    %v8366 = vmax.f32 %v8362, %v8364
    %v8367 = vmax.f32 %v8365, %v8366
    %v8368 = vrot.slane %v8367, 4
    %v8369 = vmax.f32 %v8367, %v8368
    %v8370 = vrot.slane %v8369, 2
    %v8371 = vmax.f32 %v8369, %v8370
    %v8372 = vrot.slane %v8371, 1
    %v8373 = vmax.f32 %v8371, %v8372
    %v8374 = vsel %vm8352, %v8344, -inf
    %v8375 = vsel %vm8352, %v8345, -inf
    %v8376 = vsel %vm8352, %v8346, -inf
    %v8377 = vsel %vm8352, %v8347, -inf
    %v8378 = vsel %vm8352, %v8348, -inf
    %v8379 = vmax.f32 %v8374, %v8378
    %v8380 = vsel %vm8352, %v8349, -inf
    %v8381 = vmax.f32 %v8375, %v8380
    %v8382 = vsel %vm8352, %v8350, -inf
    %v8383 = vmax.f32 %v8376, %v8382
    %v8384 = vsel %vm8352, %v8351, -inf
    %v8385 = vmax.f32 %v8377, %v8384
    %v8386 = vmax.f32 %v8379, %v8381
    %v8387 = vmax.f32 %v8383, %v8385
    %v8388 = vmax.f32 %v8386, %v8387
    %v8389 = vrot.slane %v8388, 4
    %v8390 = vmax.f32 %v8388, %v8389
    %v8391 = vrot.slane %v8390, 2
    %v8392 = vmax.f32 %v8390, %v8391
    %v8393 = vrot.slane %v8392, 1
    %v8394 = vmax.f32 %v8392, %v8393
    %vm8395 = vcmask 1040384
    %v8396 = vsel %vm8395, %v8373, %v8394
    %v8397 = vld [vmem:[%s3] sm:$0x1]
    %v8399 = vlaneseq
    %v8400 = vshrl.u32 %v8399, 7
    %v8401 = vsub.s32 0, %v8400
    %v8402 = vrot.slane %v8397, %v8401
    %v8404 = vadd.f32 %v8396, %v8402
    %v8405 = vpack.c.bf16 %v8404, %v8404
    %v8406 = vld [vmem:[%s4] sm:$0xf]
    %v8407 = vld [vmem:[%s4 + $0x4] sm:$0xf]
    %v8408 = vld [vmem:[%s4 + $0x8] sm:$0xf]
    %v8409 = vld [vmem:[%s4 + $0xc] sm:$0xf]
    %v8410 = vld [vmem:[%s4 + $0x10] sm:$0xf]
    %v8411 = vld [vmem:[%s4 + $0x14] sm:$0xf]
    %v8412 = vld [vmem:[%s4 + $0x18] sm:$0xf]
    %v8413 = vld [vmem:[%s4 + $0x1c] sm:$0xf]
    %v8414 = vld [vmem:[%s5] sm:$0x1]
    %v8416 = vlaneseq
    %v8417 = vshrl.u32 %v8416, 7
    %v8418 = vsub.s32 0, %v8417
    %v8419 = vrot.slane %v8414, %v8418
    %v8429 = vunpack.c.l.b16 %v8406
    %v8430 = vunpack.c.l.b16 %v8407
    %v8431 = vunpack.c.l.b16 %v8408
    %v8432 = vunpack.c.l.b16 %v8409
    %v8433 = vunpack.c.l.b16 %v8410
    %v8434 = vunpack.c.l.b16 %v8411
    %v8435 = vunpack.c.l.b16 %v8412
    %v8436 = vunpack.c.l.b16 %v8413
    %v8437 = vpack.c.b16 %v8430, %v8429
    %v8438 = vpack.c.b16 %v8432, %v8431
    %v8439 = vpack.c.b16 %v8434, %v8433
    %v8440 = vpack.c.b16 %v8436, %v8435
    %v8446 = vsel %vm8352, %v8405, 0
    %8448 = vmatprep.subr.bf16.mxu0 0
    %8449 = vmatpush1.bf16.msra.mxu0 %v8437
    %8450 = vmatprep.subr.bf16.mxu0 0
    %8451 = vmatpush1.bf16.msra.mxu0 %v8438
    %8452 = vmatprep.subr.bf16.mxu0 0
    %8453 = vmatpush1.bf16.msra.mxu0 %v8439
    %8454 = vmatprep.subr.bf16.mxu0 0
    %8455 = vmatpush1.bf16.msra.mxu0 %v8440
    %8456 = vmatprep.subr.bf16.mxu0 0
    %8457 = vmatpush1.bf16.msra.mxu0 0
    %8458 = vmatprep.subr.bf16.mxu0 0
    %8459 = vmatpush1.bf16.msra.mxu0 0
    %8460 = vmatprep.subr.bf16.mxu0 0
    %8461 = vmatpush1.bf16.msra.mxu0 0
    %8462 = vmatprep.subr.bf16.mxu0 0
    %8463 = vmatpush1.bf16.msra.mxu0 0
    %8464 = vmatprep.subr.bf16.mxu0 0
    %8465 = vmatpush1.bf16.msra.mxu0 0
    %8466 = vmatprep.subr.bf16.mxu0 0
    %8467 = vmatpush1.bf16.msra.mxu0 0
    %8468 = vmatprep.subr.bf16.mxu0 0
    %8469 = vmatpush1.bf16.msra.mxu0 0
    %8470 = vmatprep.subr.bf16.mxu0 0
    %8471 = vmatpush1.bf16.msra.mxu0 0
    %8472 = vmatprep.subr.bf16.mxu0 0
    %8473 = vmatpush1.bf16.msra.mxu0 0
    %8474 = vmatprep.subr.bf16.mxu0 0
    %8475 = vmatpush1.bf16.msra.mxu0 0
    %8476 = vmatprep.subr.bf16.mxu0 0
    %8477 = vmatpush1.bf16.msra.mxu0 0
    %8478 = vmatprep.subr.bf16.mxu0 0
    %8479 = vmatpush1.bf16.msra.mxu0 0
    %8480 = vmatprep.mubr.bf16.mxu0 0
    %8481 = vmatmul.mubr.bf16.gmra.mrb[0].mxu0 %v8446
    %v8482 = vpop.f32.mrb[0].mxu0
    %v8483 = vadd.f32 %v8419, %v8482
    %v8484 = vpop.f32.mrb[0].mxu0
    %v8485 = vpop.f32.mrb[0].mxu0
    %v8486 = vpop.f32.mrb[0].mxu0
    %8487 = vdwg.mxu0
    %v8488 = vmax.f32 %v8483, 0.0
    %v8489 = vpack.c.bf16 %v8488, %v8488
    %v8490 = vld [vmem:[%s6] sm:$0xf]
    %v8491 = vld [vmem:[%s6 + $0x4] sm:$0xf]
    %v8492 = vld [vmem:[%s6 + $0x8] sm:$0xf]
    %v8493 = vld [vmem:[%s6 + $0xc] sm:$0xf]
    %v8494 = vld [vmem:[%s7] sm:$0x1]
    %v8496 = vlaneseq
    %v8497 = vshrl.u32 %v8496, 7
    %v8498 = vsub.s32 0, %v8497
    %v8499 = vrot.slane %v8494, %v8498
    %v8505 = vunpack.c.l.b16 %v8490
    %v8506 = vunpack.c.l.b16 %v8491
    %v8507 = vunpack.c.l.b16 %v8492
    %v8508 = vunpack.c.l.b16 %v8493
    %v8509 = vpack.c.b16 %v8506, %v8505
    %v8510 = vpack.c.b16 %v8508, %v8507
    %vm8513 = vcmask 261120
    %v8515 = vsel %vm8513, %v8489, 0
    %8517 = vmatprep.subr.bf16.mxu0 0
    %8518 = vmatpush1.bf16.msra.mxu0 %v8509
    %8519 = vmatprep.subr.bf16.mxu0 0
    %8520 = vmatpush1.bf16.msra.mxu0 %v8510
    %8521 = vmatprep.subr.bf16.mxu0 0
    %8522 = vmatpush1.bf16.msra.mxu0 0
    %8523 = vmatprep.subr.bf16.mxu0 0
    %8524 = vmatpush1.bf16.msra.mxu0 0
    %8525 = vmatprep.subr.bf16.mxu0 0
    %8526 = vmatpush1.bf16.msra.mxu0 0
    %8527 = vmatprep.subr.bf16.mxu0 0
    %8528 = vmatpush1.bf16.msra.mxu0 0
    %8529 = vmatprep.subr.bf16.mxu0 0
    %8530 = vmatpush1.bf16.msra.mxu0 0
    %8531 = vmatprep.subr.bf16.mxu0 0
    %8532 = vmatpush1.bf16.msra.mxu0 0
    %8533 = vmatprep.subr.bf16.mxu0 0
    %8534 = vmatpush1.bf16.msra.mxu0 0
    %8535 = vmatprep.subr.bf16.mxu0 0
    %8536 = vmatpush1.bf16.msra.mxu0 0
    %8537 = vmatprep.subr.bf16.mxu0 0
    %8538 = vmatpush1.bf16.msra.mxu0 0
    %8539 = vmatprep.subr.bf16.mxu0 0
    %8540 = vmatpush1.bf16.msra.mxu0 0
    %8541 = vmatprep.subr.bf16.mxu0 0
    %8542 = vmatpush1.bf16.msra.mxu0 0
    %8543 = vmatprep.subr.bf16.mxu0 0
    %8544 = vmatpush1.bf16.msra.mxu0 0
    %8545 = vmatprep.subr.bf16.mxu0 0
    %8546 = vmatpush1.bf16.msra.mxu0 0
    %8547 = vmatprep.subr.bf16.mxu0 0
    %8548 = vmatpush1.bf16.msra.mxu0 0
    %8549 = vmatprep.mubr.bf16.mxu0 0
    %8550 = vmatmul.mubr.bf16.gmra.mrb[0].mxu0 %v8515
    %v8551 = vpop.f32.mrb[0].mxu0
    %v8552 = vadd.f32 %v8499, %v8551
    %v8553 = vpop.f32.mrb[0].mxu0
    %v8554 = vpop.f32.mrb[0].mxu0
    %v8555 = vpop.f32.mrb[0].mxu0
    %8556 = vdwg.mxu0
    %v8557 = vxor.u32 %v8552, 2147483648
    %v8558 = vmul.f32 %v8557, 1.442695
    %v8559 = vpow.pop %v8558
    %v8560 = vadd.f32 %v8559, 1.0
    %v8561 = vrcp.pop %v8560
    %v8562 = vmul.f32 1.0, %v8561
    %vm8563 = vcmask 74752
    %8564 = vst.msk [vmem:[#allocation2] sm:$0x3] %vm8563, %v8562
    // Predicated region
    $region34: #{dgcnn_forward.1} parent=1 // pred_check
      _
    $region35: #{dgcnn_forward.1} parent=1 // pred_check_branch
      %8566 = sbr.rel (0) target = $region37
    $region36: #{dgcnn_forward.1} parent=1 // pred_region
      %s8568 = ssub.s32 32, 32
      %8569 = vsyncadd [#allocation3], %s8568
      %s8571 = sshll.u32 [#allocation2], 4
      %s8572 = int_to_ptr.vmem [resolvable:$true] %s8571
      %8574 = dma.vmem_to_hbm [thread:$0]  %s8572, 32, %s8, [#allocation3]
    $region37: #{dgcnn_forward.1} parent=1 // pred_fallthru
      _
    // Predicated region
    $region38: #{dgcnn_forward.1} parent=1 // pred_check
      _
    $region39: #{dgcnn_forward.1} parent=1 // pred_check_branch
      %8576 = sbr.rel (0) target = $region41
    $region40: #{dgcnn_forward.1} parent=1 // pred_region
      %8577 = dma.done [#allocation3], 32
    $region41: #{dgcnn_forward.1} parent=1 // pred_fallthru
      _
    %8578 = vsyncpa [#allocation3], 1

</llo_original>
